<compile_context>
chip_gen: v7x
topology: tpu7x:2x2x1
jax: 0.10.0
libtpu: 0.0.40
codegen_flags: <defaults>
</compile_context>

<pallas_src>
import functools

import jax
import jax.numpy as jnp
from jax.experimental import pallas as pl
from jax.experimental.pallas import tpu as pltpu

DROPOUT_P = 0.2


def _ffn_kernel(x_ref, w1_ref, b1_ref, w2_ref, b2_ref, *rest, apply_dropout):
    """Fused MLP tile: relu(x@W1 + b1) @ W2 + b2, then (pre-scaled) dropout."""
    if apply_dropout:
        drop_ref, o_ref = rest
    else:
        (o_ref,) = rest
        drop_ref = None

    x = x_ref[...]                                         # (tm, C) bf16
    # --- first linear + bias + ReLU (MXU accumulate in f32, VPU epilogue) ---
    h = jnp.dot(x, w1_ref[...], preferred_element_type=jnp.float32)
    h = jnp.maximum(h + b1_ref[...], 0.0)                  # (tm, H) f32
    # --- second linear + bias ---
    y = jnp.dot(h.astype(w2_ref.dtype), w2_ref[...],
                preferred_element_type=jnp.float32)
    y = y + b2_ref[...]                                    # (tm, C) f32
    # --- dropout: mask already holds keep/(1-p) (inverted dropout) ---
    if apply_dropout:
        y = y * drop_ref[...].astype(jnp.float32)
    o_ref[...] = y.astype(o_ref.dtype)


def feedforward_pallas(x, w1, b1, w2, b2, *, dropout_p=DROPOUT_P,
                       training=True, rng=None, tm=256,
                       compute_dtype=jnp.bfloat16):
    """x: (..., C).  Returns same shape/dtype as x."""
    orig_shape = x.shape
    C = orig_shape[-1]
    H = w1.shape[1]
    xm = x.reshape(-1, C)                                  # (M, C)
    M = xm.shape[0]

    # Pad token rows up to the tile so we can keep an MXU-efficient tile size.
    n_tiles = pl.cdiv(M, tm)
    M_pad = n_tiles * tm
    if M_pad != M:
        xm = jnp.pad(xm, ((0, M_pad - M), (0, 0)))

    itemsize_c = jnp.dtype(compute_dtype).itemsize
    x_c = xm.astype(compute_dtype)
    w1_c = w1.astype(compute_dtype)
    w2_c = w2.astype(compute_dtype)
    b1_2d = b1.reshape(1, H).astype(jnp.float32)
    b2_2d = b2.reshape(1, C).astype(jnp.float32)

    apply_dropout = bool(training) and dropout_p > 0.0

    inputs = [x_c, w1_c, b1_2d, w2_c, b2_2d]
    in_specs = [
        pl.BlockSpec((tm, C), lambda i: (i, 0)),           # x rows
        pl.BlockSpec((C, H), lambda i: (0, 0)),            # W1 (resident)
        pl.BlockSpec((1, H), lambda i: (0, 0)),            # b1
        pl.BlockSpec((H, C), lambda i: (0, 0)),            # W2 (resident)
        pl.BlockSpec((1, C), lambda i: (0, 0)),            # b2
    ]

    if apply_dropout:
        if rng is None:
            rng = jax.random.PRNGKey(0)
        if dropout_p >= 1.0:
            drop = jnp.zeros((M_pad, C), compute_dtype)    # drop everything
        else:
            keep = jax.random.bernoulli(rng, 1.0 - dropout_p, (M_pad, C))
            drop = (keep.astype(jnp.float32)
                    * (1.0 / (1.0 - dropout_p))).astype(compute_dtype)
        inputs.append(drop)
        in_specs.append(pl.BlockSpec((tm, C), lambda i: (i, 0)))

    kernel = functools.partial(_ffn_kernel, apply_dropout=apply_dropout)

    out_itemsize = jnp.dtype(x.dtype).itemsize
    flops = 4 * M_pad * C * H                              # 2 matmuls, 2*M*C*H each
    bytes_accessed = (M_pad * C * itemsize_c               # x
                      + 2 * C * H * itemsize_c             # W1 + W2
                      + (H + C) * 4                        # biases
                      + (M_pad * C * itemsize_c if apply_dropout else 0)
                      + M_pad * C * out_itemsize)          # output

    out = pl.pallas_call(
        kernel,
        out_shape=jax.ShapeDtypeStruct((M_pad, C), x.dtype),
        grid=(n_tiles,),
        in_specs=in_specs,
        out_specs=pl.BlockSpec((tm, C), lambda i: (i, 0)),
        compiler_params=pltpu.CompilerParams(
            dimension_semantics=("parallel",),             # row tiles independent
            vmem_limit_bytes=64 * 1024 * 1024,
        ),
        cost_estimate=pl.CostEstimate(
            flops=int(flops), transcendentals=0,
            bytes_accessed=int(bytes_accessed)),
    )(*inputs)

    out = out[:M]
    return out.reshape(orig_shape)


def init_feedforward_params(key, n_embd):
    """Deterministic init matching nn.Linear's U(-1/sqrt(fan_in), 1/sqrt(fan_in))."""
    h = 4 * n_embd
    k1, k2, k3, k4 = jax.random.split(key, 4)
    lim1 = 1.0 / jnp.sqrt(n_embd)
    lim2 = 1.0 / jnp.sqrt(h)
    w1 = jax.random.uniform(k1, (n_embd, h), jnp.float32, -lim1, lim1)
    b1 = jax.random.uniform(k2, (h,), jnp.float32, -lim1, lim1)
    w2 = jax.random.uniform(k3, (h, n_embd), jnp.float32, -lim2, lim2)
    b2 = jax.random.uniform(k4, (n_embd,), jnp.float32, -lim2, lim2)
    return w1, b1, w2, b2


if __name__ == "__main__":
    # Small shapes consistent with the module: (batch, seq, n_embd=384).
    B, T, n_embd = 2, 8, 384
    key = jax.random.PRNGKey(0)
    kx, kp, kd = jax.random.split(key, 3)
    x = jax.random.normal(kx, (B, T, n_embd), dtype=jnp.float32)
    w1, b1, w2, b2 = init_feedforward_params(kp, n_embd)

    # Training path (Dropout active, matching the torch module's default mode).
    y = feedforward_pallas(x, w1, b1, w2, b2, rng=kd, training=True)
    y = jax.block_until_ready(y)
    assert y.shape == x.shape and y.dtype == x.dtype
    assert bool(jnp.all(jnp.isfinite(y)))

    # Eval path (dropout = identity) vs. a plain-JAX reference using the same
    # bf16-inputs / f32-accumulation precision as the kernel.
    y_eval = jax.block_until_ready(
        feedforward_pallas(x, w1, b1, w2, b2, training=False))
    bf = jnp.bfloat16
    h_ref = jnp.maximum(
        jnp.dot(x.astype(bf), w1.astype(bf),
                preferred_element_type=jnp.float32) + b1, 0.0)
    ref = jnp.dot(h_ref.astype(bf), w2.astype(bf),
                  preferred_element_type=jnp.float32) + b2
    assert jnp.allclose(y_eval, ref, atol=1e-2, rtol=1e-2)

    print("KERNEL_OK")
</pallas_src>

<mosaic_0001>
module attributes {stable_mosaic.version = 11 : i64} {
  func.func @_ffn_kernel(%arg0: i32, %arg1: memref<256x384xbf16, #tpu.memory_space<vmem>>, %arg2: memref<384x1536xbf16, #tpu.memory_space<vmem>>, %arg3: memref<1x1536xf32, #tpu.memory_space<vmem>>, %arg4: memref<1536x384xbf16, #tpu.memory_space<vmem>>, %arg5: memref<1x384xf32, #tpu.memory_space<vmem>>, %arg6: memref<256x384xbf16, #tpu.memory_space<vmem>>, %arg7: memref<256x384xf32, #tpu.memory_space<vmem>>) attributes {dimension_semantics = [#tpu.dimension_semantics<parallel>], iteration_bounds = array<i64: 1>, scalar_prefetch = 0 : i64, scratch_operands = 0 : i64, tpu.core_type = #tpu.core_type<tc>, window_params = [{transform_indices = @transform_0, window_bounds = array<i64: 256, 384>}, {pipeline_mode = #tpu.pipeline_mode<synchronous>, transform_indices = @transform_1, window_bounds = array<i64: 384, 1536>}, {pipeline_mode = #tpu.pipeline_mode<synchronous>, transform_indices = @transform_2, window_bounds = array<i64: 1, 1536>}, {pipeline_mode = #tpu.pipeline_mode<synchronous>, transform_indices = @transform_3, window_bounds = array<i64: 1536, 384>}, {pipeline_mode = #tpu.pipeline_mode<synchronous>, transform_indices = @transform_4, window_bounds = array<i64: 1, 384>}, {transform_indices = @transform_5, window_bounds = array<i64: 256, 384>}, {transform_indices = @transform_6, window_bounds = array<i64: 256, 384>}]} {
    %c0 = arith.constant 0 : index
    %c0_0 = arith.constant 0 : index
    %0 = vector.load %arg1[%c0, %c0_0] : memref<256x384xbf16, #tpu.memory_space<vmem>>, vector<256x384xbf16>
    %c0_1 = arith.constant 0 : index
    %c0_2 = arith.constant 0 : index
    %1 = vector.load %arg2[%c0_1, %c0_2] : memref<384x1536xbf16, #tpu.memory_space<vmem>>, vector<384x1536xbf16>
    %cst = arith.constant dense<0.000000e+00> : vector<256x1536xf32>
    %2 = tpu.matmul %0, %1, %cst {dimension_numbers = #tpu.dot_dimension_numbers<[1], [0], [0], [1], [0, 0, 1, 1], [], []>} : vector<256x384xbf16>, vector<384x1536xbf16>, vector<256x1536xf32> -> vector<256x1536xf32>
    %c0_3 = arith.constant 0 : index
    %c0_4 = arith.constant 0 : index
    %3 = vector.load %arg3[%c0_3, %c0_4] : memref<1x1536xf32, #tpu.memory_space<vmem>>, vector<1x1536xf32>
    %4 = vector.broadcast %3 : vector<1x1536xf32> to vector<256x1536xf32>
    %5 = arith.addf %2, %4 : vector<256x1536xf32>
    %cst_5 = arith.constant 0.000000e+00 : f32
    %6 = vector.broadcast %cst_5 : f32 to vector<256x1536xf32>
    %7 = arith.maximumf %5, %6 : vector<256x1536xf32>
    %8 = arith.truncf %7 : vector<256x1536xf32> to vector<256x1536xbf16>
    %c0_6 = arith.constant 0 : index
    %c0_7 = arith.constant 0 : index
    %9 = vector.load %arg4[%c0_6, %c0_7] : memref<1536x384xbf16, #tpu.memory_space<vmem>>, vector<1536x384xbf16>
    %cst_8 = arith.constant dense<0.000000e+00> : vector<256x384xf32>
    %10 = tpu.matmul %8, %9, %cst_8 {dimension_numbers = #tpu.dot_dimension_numbers<[1], [0], [0], [1], [0, 0, 1, 1], [], []>} : vector<256x1536xbf16>, vector<1536x384xbf16>, vector<256x384xf32> -> vector<256x384xf32>
    %c0_9 = arith.constant 0 : index
    %c0_10 = arith.constant 0 : index
    %11 = vector.load %arg5[%c0_9, %c0_10] : memref<1x384xf32, #tpu.memory_space<vmem>>, vector<1x384xf32>
    %12 = vector.broadcast %11 : vector<1x384xf32> to vector<256x384xf32>
    %13 = arith.addf %10, %12 : vector<256x384xf32>
    %c0_11 = arith.constant 0 : index
    %c0_12 = arith.constant 0 : index
    %14 = vector.load %arg6[%c0_11, %c0_12] : memref<256x384xbf16, #tpu.memory_space<vmem>>, vector<256x384xbf16>
    %15 = arith.extf %14 : vector<256x384xbf16> to vector<256x384xf32>
    %16 = arith.mulf %13, %15 : vector<256x384xf32>
    %c0_13 = arith.constant 0 : index
    %c0_14 = arith.constant 0 : index
    %17 = vector.load %arg7[%c0_13, %c0_14] : memref<256x384xf32, #tpu.memory_space<vmem>>, vector<256x384xf32>
    tpu.vector_store %arg7[%c0_13, %c0_14], %16 {strides = array<i32>} : memref<256x384xf32, #tpu.memory_space<vmem>>, vector<256x384xf32>,
    return
  }
  func.func @transform_0(%arg0: i32) -> (i32, i32) {
    %c0_i32 = arith.constant 0 : i32
    %c0_i32_0 = arith.constant 0 : i32
    return %arg0, %c0_i32 : i32, i32
  }
  func.func @transform_1(%arg0: i32) -> (i32, i32) {
    %c0_i32 = arith.constant 0 : i32
    %c0_i32_0 = arith.constant 0 : i32
    %c0_i32_1 = arith.constant 0 : i32
    return %c0_i32, %c0_i32_0 : i32, i32
  }
  func.func @transform_2(%arg0: i32) -> (i32, i32) {
    %c0_i32 = arith.constant 0 : i32
    %c0_i32_0 = arith.constant 0 : i32
    %c0_i32_1 = arith.constant 0 : i32
    return %c0_i32, %c0_i32_0 : i32, i32
  }
  func.func @transform_3(%arg0: i32) -> (i32, i32) {
    %c0_i32 = arith.constant 0 : i32
    %c0_i32_0 = arith.constant 0 : i32
    %c0_i32_1 = arith.constant 0 : i32
    return %c0_i32, %c0_i32_0 : i32, i32
  }
  func.func @transform_4(%arg0: i32) -> (i32, i32) {
    %c0_i32 = arith.constant 0 : i32
    %c0_i32_0 = arith.constant 0 : i32
    %c0_i32_1 = arith.constant 0 : i32
    return %c0_i32, %c0_i32_0 : i32, i32
  }
  func.func @transform_5(%arg0: i32) -> (i32, i32) {
    %c0_i32 = arith.constant 0 : i32
    %c0_i32_0 = arith.constant 0 : i32
    return %arg0, %c0_i32 : i32, i32
  }
  func.func @transform_6(%arg0: i32) -> (i32, i32) {
    %c0_i32 = arith.constant 0 : i32
    %c0_i32_0 = arith.constant 0 : i32
    return %arg0, %c0_i32 : i32, i32
  }
}

</mosaic_0001>

<llo_original>
// kernel: tpu_custom_call.1
$region0: #{tpu_custom_call.1}
  #allocation0 [shape = 'u32[]', space=smem, size = 0x4, offset = 0x4, fixed_abs, tag = 'smem constant byte address 0x4 - core index']
  #allocation1 [shape = 'u32[144,128]{1,0:T(1,128)}', space=vmem, size = 0x12000, scoped, tag = 'internal scratch']
  %s0 = inlined_call_operand.hbm [shape: bf16[256,384], index: 0, kind: input, shape index: {}]
  %s1 = inlined_call_operand.hbm [shape: bf16[384,1536], index: 1, kind: input, shape index: {}]
  %s2 = inlined_call_operand.hbm [shape: f32[1,1536], index: 2, kind: input, shape index: {}]
  %s3 = inlined_call_operand.hbm [shape: bf16[1536,384], index: 3, kind: input, shape index: {}]
  %s4 = inlined_call_operand.hbm [shape: f32[1,384], index: 4, kind: input, shape index: {}]
  %s5 = inlined_call_operand.hbm [shape: bf16[256,384], index: 5, kind: input, shape index: {}]
  %s6 = inlined_call_operand.hbm [shape: f32[256,384], index: 6, kind: output, shape index: {}]
  %s7 = sld [smem:[#allocation0]]
  $region58: #{tpu_custom_call.1} parent=0
    _
  %s9 = ssub.s32 1, %s7
  %s10 = scalar_select 0, %s9, %s7
  $region1: #{tpu_custom_call.1} parent=0
    #allocation2 [shape = 'u8[196608]{0}', space=vmem, size = 0x30000, scoped, tag = 'input window, operand 0, single buffered']
    #allocation3 [shape = 's32[1]{0}', space=sflag, size = 0x4, scoped, tag = 'scoped memory for tpu_custom_call.1']
    #allocation4 [shape = 's32[1]{0}', space=sflag, size = 0x4, scoped, tag = 'scoped memory for tpu_custom_call.1']
    #allocation5 [shape = 'u8[1179648]{0}', space=vmem, size = 0x120000, scoped, tag = 'input window, operand 1, single buffered']
    #allocation6 [shape = 's32[1]{0}', space=sflag, size = 0x4, scoped, tag = 'scoped memory for tpu_custom_call.1']
    #allocation7 [shape = 'u8[6144]{0}', space=vmem, size = 0x1800, scoped, tag = 'input window, operand 2, single buffered']
    #allocation8 [shape = 'u8[1179648]{0}', space=vmem, size = 0x120000, scoped, tag = 'input window, operand 3, single buffered']
    #allocation9 [shape = 's32[1]{0}', space=sflag, size = 0x4, scoped, tag = 'scoped memory for tpu_custom_call.1']
    #allocation10 [shape = 'u8[1536]{0}', space=vmem, size = 0x800, scoped, tag = 'input window, operand 4, single buffered']
    #allocation11 [shape = 'u8[196608]{0}', space=vmem, size = 0x30000, scoped, tag = 'input window, operand 5, single buffered']
    #allocation12 [shape = 's32[1]{0}', space=sflag, size = 0x4, scoped, tag = 'scoped memory for tpu_custom_call.1']
    #allocation13 [shape = 'u8[393216]{0}', space=vmem, size = 0x60000, scoped, tag = 'output window, operand 0, single buffered']
    %11 = vsyncpa [#allocation3], 0
    %12 = vsyncpa [#allocation6], 0
    %13 = vsyncpa [#allocation9], 0
    %14 = vsyncpa [#allocation12], 0
    %15 = vsyncpa [#allocation4], 0
    // Predicated region
    $region2: #{tpu_custom_call.1} parent=1 // pred_check
      _
    $region3: #{tpu_custom_call.1} parent=1 // pred_check_branch
      %17 = sbr.rel (0) target = $region5
    $region4: #{tpu_custom_call.1} parent=1 // pred_region
      %s19 = ssub.s32 6144, 6144
      %20 = vsyncadd [#allocation3], %s19
      %s21 = sshll.u32 [#allocation2], 4
      %s22 = int_to_ptr.vmem [resolvable:$true] %s21
      %27 = dma.hbm_to_vmem [thread:$0]  %s0, 6144, %s22, [#allocation3], 192, 192, 12
    $region5: #{tpu_custom_call.1} parent=1 // pred_fallthru
      _
    // Predicated region
    $region6: #{tpu_custom_call.1} parent=1 // pred_check
      _
    $region7: #{tpu_custom_call.1} parent=1 // pred_check_branch
      %29 = sbr.rel (0) target = $region9
    $region8: #{tpu_custom_call.1} parent=1 // pred_region
      %s31 = ssub.s32 36864, 36864
      %32 = vsyncadd [#allocation6], %s31
      %s33 = sshll.u32 [#allocation5], 4
      %s34 = int_to_ptr.vmem [resolvable:$true] %s33
      %39 = dma.hbm_to_vmem [thread:$0]  %s1, 36864, %s34, [#allocation6], 768, 768, 48
    $region9: #{tpu_custom_call.1} parent=1 // pred_fallthru
      _
    // Predicated region
    $region10: #{tpu_custom_call.1} parent=1 // pred_check
      _
    $region11: #{tpu_custom_call.1} parent=1 // pred_check_branch
      %41 = sbr.rel (0) target = $region13
    $region12: #{tpu_custom_call.1} parent=1 // pred_region
      %s43 = ssub.s32 192, 192
      %44 = vsyncadd [#allocation6], %s43
      %s46 = sshll.u32 [#allocation7], 4
      %s47 = int_to_ptr.vmem [resolvable:$true] %s46
      %49 = dma.hbm_to_vmem [thread:$0]  %s2, 192, %s47, [#allocation6]
    $region13: #{tpu_custom_call.1} parent=1 // pred_fallthru
      _
    // Predicated region
    $region14: #{tpu_custom_call.1} parent=1 // pred_check
      _
    $region15: #{tpu_custom_call.1} parent=1 // pred_check_branch
      %51 = sbr.rel (0) target = $region17
    $region16: #{tpu_custom_call.1} parent=1 // pred_region
      %s53 = ssub.s32 36864, 36864
      %54 = vsyncadd [#allocation9], %s53
      %s55 = sshll.u32 [#allocation8], 4
      %s56 = int_to_ptr.vmem [resolvable:$true] %s55
      %61 = dma.hbm_to_vmem [thread:$0]  %s3, 36864, %s56, [#allocation9], 192, 192, 12
    $region17: #{tpu_custom_call.1} parent=1 // pred_fallthru
      _
    // Predicated region
    $region18: #{tpu_custom_call.1} parent=1 // pred_check
      _
    $region19: #{tpu_custom_call.1} parent=1 // pred_check_branch
      %63 = sbr.rel (0) target = $region21
    $region20: #{tpu_custom_call.1} parent=1 // pred_region
      %s65 = ssub.s32 48, 48
      %66 = vsyncadd [#allocation9], %s65
      %s68 = sshll.u32 [#allocation10], 4
      %s69 = int_to_ptr.vmem [resolvable:$true] %s68
      %71 = dma.hbm_to_vmem [thread:$0]  %s4, 48, %s69, [#allocation9]
    $region21: #{tpu_custom_call.1} parent=1 // pred_fallthru
      _
    // Predicated region
    $region22: #{tpu_custom_call.1} parent=1 // pred_check
      _
    $region23: #{tpu_custom_call.1} parent=1 // pred_check_branch
      %73 = sbr.rel (0) target = $region25
    $region24: #{tpu_custom_call.1} parent=1 // pred_region
      %s75 = ssub.s32 6144, 6144
      %76 = vsyncadd [#allocation12], %s75
      %s77 = sshll.u32 [#allocation11], 4
      %s78 = int_to_ptr.vmem [resolvable:$true] %s77
      %83 = dma.hbm_to_vmem [thread:$0]  %s5, 6144, %s78, [#allocation12], 192, 192, 12
    $region25: #{tpu_custom_call.1} parent=1 // pred_fallthru
      _
    // Predicated region
    $region26: #{tpu_custom_call.1} parent=1 // pred_check
      _
    $region27: #{tpu_custom_call.1} parent=1 // pred_check_branch
      %85 = sbr.rel (0) target = $region29
    $region28: #{tpu_custom_call.1} parent=1 // pred_region
      %86 = dma.done [#allocation3], 6144
    $region29: #{tpu_custom_call.1} parent=1 // pred_fallthru
      _
    // Predicated region
    $region30: #{tpu_custom_call.1} parent=1 // pred_check
      _
    $region31: #{tpu_custom_call.1} parent=1 // pred_check_branch
      %88 = sbr.rel (0) target = $region33
    $region32: #{tpu_custom_call.1} parent=1 // pred_region
      %89 = dma.done [#allocation6], 36864
    $region33: #{tpu_custom_call.1} parent=1 // pred_fallthru
      _
    // Predicated region
    $region34: #{tpu_custom_call.1} parent=1 // pred_check
      _
    $region35: #{tpu_custom_call.1} parent=1 // pred_check_branch
      %91 = sbr.rel (0) target = $region37
    $region36: #{tpu_custom_call.1} parent=1 // pred_region
      %92 = dma.done [#allocation6], 192
    $region37: #{tpu_custom_call.1} parent=1 // pred_fallthru
      _
    // Predicated region
    $region38: #{tpu_custom_call.1} parent=1 // pred_check
      _
    $region39: #{tpu_custom_call.1} parent=1 // pred_check_branch
      %94 = sbr.rel (0) target = $region41
    $region40: #{tpu_custom_call.1} parent=1 // pred_region
      %95 = dma.done [#allocation9], 36864
    $region41: #{tpu_custom_call.1} parent=1 // pred_fallthru
      _
    // Predicated region
    $region42: #{tpu_custom_call.1} parent=1 // pred_check
      _
    $region43: #{tpu_custom_call.1} parent=1 // pred_check_branch
      %97 = sbr.rel (0) target = $region45
    $region44: #{tpu_custom_call.1} parent=1 // pred_region
      %98 = dma.done [#allocation9], 48
    $region45: #{tpu_custom_call.1} parent=1 // pred_fallthru
      _
    // Predicated region
    $region46: #{tpu_custom_call.1} parent=1 // pred_check
      _
    $region47: #{tpu_custom_call.1} parent=1 // pred_check_branch
      %100 = sbr.rel (0) target = $region49
    $region48: #{tpu_custom_call.1} parent=1 // pred_region
      %101 = dma.done [#allocation12], 6144
    $region49: #{tpu_custom_call.1} parent=1 // pred_fallthru
      _
    %v103 = vld [vmem:[#allocation2] sm:$0xff]
    %v104 = vld [vmem:[#allocation2 + $0x8] sm:$0xf]
    %v105 = vld [vmem:[#allocation2 + $0xc] sm:$0xff]
    %v106 = vld [vmem:[#allocation2 + $0x14] sm:$0xf]
    %v107 = vld [vmem:[#allocation2 + $0x18] sm:$0xff]
    %v108 = vld [vmem:[#allocation2 + $0x20] sm:$0xf]
    %v109 = vld [vmem:[#allocation2 + $0x24] sm:$0xff]
    %v110 = vld [vmem:[#allocation2 + $0x2c] sm:$0xf]
    %v111 = vld [vmem:[#allocation2 + $0x30] sm:$0xff]
    %v112 = vld [vmem:[#allocation2 + $0x38] sm:$0xf]
    %v113 = vld [vmem:[#allocation2 + $0x3c] sm:$0xff]
    %v114 = vld [vmem:[#allocation2 + $0x44] sm:$0xf]
    %v115 = vld [vmem:[#allocation2 + $0x48] sm:$0xff]
    %v116 = vld [vmem:[#allocation2 + $0x50] sm:$0xf]
    %v117 = vld [vmem:[#allocation2 + $0x54] sm:$0xff]
    %v118 = vld [vmem:[#allocation2 + $0x5c] sm:$0xf]
    %v119 = vld [vmem:[#allocation2 + $0x60] sm:$0xff]
    %v120 = vld [vmem:[#allocation2 + $0x68] sm:$0xf]
    %v121 = vld [vmem:[#allocation2 + $0x6c] sm:$0xff]
    %v122 = vld [vmem:[#allocation2 + $0x74] sm:$0xf]
    %v123 = vld [vmem:[#allocation2 + $0x78] sm:$0xff]
    %v124 = vld [vmem:[#allocation2 + $0x80] sm:$0xf]
    %v125 = vld [vmem:[#allocation2 + $0x84] sm:$0xff]
    %v126 = vld [vmem:[#allocation2 + $0x8c] sm:$0xf]
    %v127 = vld [vmem:[#allocation2 + $0x90] sm:$0xff]
    %v128 = vld [vmem:[#allocation2 + $0x98] sm:$0xf]
    %v129 = vld [vmem:[#allocation2 + $0x9c] sm:$0xff]
    %v130 = vld [vmem:[#allocation2 + $0xa4] sm:$0xf]
    %v131 = vld [vmem:[#allocation2 + $0xa8] sm:$0xff]
    %v132 = vld [vmem:[#allocation2 + $0xb0] sm:$0xf]
    %v133 = vld [vmem:[#allocation2 + $0xb4] sm:$0xff]
    %v134 = vld [vmem:[#allocation2 + $0xbc] sm:$0xf]
    %v135 = vld [vmem:[#allocation2 + $0xc0] sm:$0xff]
    %v136 = vld [vmem:[#allocation2 + $0xc8] sm:$0xf]
    %v137 = vld [vmem:[#allocation2 + $0xcc] sm:$0xff]
    %v138 = vld [vmem:[#allocation2 + $0xd4] sm:$0xf]
    %v139 = vld [vmem:[#allocation2 + $0xd8] sm:$0xff]
    %v140 = vld [vmem:[#allocation2 + $0xe0] sm:$0xf]
    %v141 = vld [vmem:[#allocation2 + $0xe4] sm:$0xff]
    %v142 = vld [vmem:[#allocation2 + $0xec] sm:$0xf]
    %v143 = vld [vmem:[#allocation2 + $0xf0] sm:$0xff]
    %v144 = vld [vmem:[#allocation2 + $0xf8] sm:$0xf]
    %v145 = vld [vmem:[#allocation2 + $0xfc] sm:$0xff]
    %v146 = vld [vmem:[#allocation2 + $0x104] sm:$0xf]
    %v147 = vld [vmem:[#allocation2 + $0x108] sm:$0xff]
    %v148 = vld [vmem:[#allocation2 + $0x110] sm:$0xf]
    %v149 = vld [vmem:[#allocation2 + $0x114] sm:$0xff]
    %v150 = vld [vmem:[#allocation2 + $0x11c] sm:$0xf]
    %v151 = vld [vmem:[#allocation2 + $0x120] sm:$0xff]
    %v152 = vld [vmem:[#allocation2 + $0x128] sm:$0xf]
    %v153 = vld [vmem:[#allocation2 + $0x12c] sm:$0xff]
    %v154 = vld [vmem:[#allocation2 + $0x134] sm:$0xf]
    %v155 = vld [vmem:[#allocation2 + $0x138] sm:$0xff]
    %v156 = vld [vmem:[#allocation2 + $0x140] sm:$0xf]
    %v157 = vld [vmem:[#allocation2 + $0x144] sm:$0xff]
    %v158 = vld [vmem:[#allocation2 + $0x14c] sm:$0xf]
    %v159 = vld [vmem:[#allocation2 + $0x150] sm:$0xff]
    %v160 = vld [vmem:[#allocation2 + $0x158] sm:$0xf]
    %v161 = vld [vmem:[#allocation2 + $0x15c] sm:$0xff]
    %v162 = vld [vmem:[#allocation2 + $0x164] sm:$0xf]
    %v163 = vld [vmem:[#allocation2 + $0x168] sm:$0xff]
    %v164 = vld [vmem:[#allocation2 + $0x170] sm:$0xf]
    %v165 = vld [vmem:[#allocation2 + $0x174] sm:$0xff]
    %v166 = vld [vmem:[#allocation2 + $0x17c] sm:$0xf]
    %v167 = vld [vmem:[#allocation5] sm:$0xff]
    %v168 = vld [vmem:[#allocation5 + $0x8] sm:$0xff]
    %v169 = vld [vmem:[#allocation5 + $0x10] sm:$0xff]
    %v170 = vld [vmem:[#allocation5 + $0x18] sm:$0xff]
    %v171 = vld [vmem:[#allocation5 + $0x20] sm:$0xff]
    %v172 = vld [vmem:[#allocation5 + $0x28] sm:$0xff]
    %v173 = vld [vmem:[#allocation5 + $0x30] sm:$0xff]
    %v174 = vld [vmem:[#allocation5 + $0x38] sm:$0xff]
    %v175 = vld [vmem:[#allocation5 + $0x40] sm:$0xff]
    %v176 = vld [vmem:[#allocation5 + $0x48] sm:$0xff]
    %v177 = vld [vmem:[#allocation5 + $0x50] sm:$0xff]
    %v178 = vld [vmem:[#allocation5 + $0x58] sm:$0xff]
    %v179 = vld [vmem:[#allocation5 + $0x60] sm:$0xff]
    %v180 = vld [vmem:[#allocation5 + $0x68] sm:$0xff]
    %v181 = vld [vmem:[#allocation5 + $0x70] sm:$0xff]
    %v182 = vld [vmem:[#allocation5 + $0x78] sm:$0xff]
    %v183 = vld [vmem:[#allocation5 + $0x80] sm:$0xff]
    %v184 = vld [vmem:[#allocation5 + $0x88] sm:$0xff]
    %v185 = vld [vmem:[#allocation5 + $0x90] sm:$0xff]
    %v186 = vld [vmem:[#allocation5 + $0x98] sm:$0xff]
    %v187 = vld [vmem:[#allocation5 + $0xa0] sm:$0xff]
    %v188 = vld [vmem:[#allocation5 + $0xa8] sm:$0xff]
    %v189 = vld [vmem:[#allocation5 + $0xb0] sm:$0xff]
    %v190 = vld [vmem:[#allocation5 + $0xb8] sm:$0xff]
    %v191 = vld [vmem:[#allocation5 + $0xc0] sm:$0xff]
    %v192 = vld [vmem:[#allocation5 + $0xc8] sm:$0xff]
    %v193 = vld [vmem:[#allocation5 + $0xd0] sm:$0xff]
    %v194 = vld [vmem:[#allocation5 + $0xd8] sm:$0xff]
    %v195 = vld [vmem:[#allocation5 + $0xe0] sm:$0xff]
    %v196 = vld [vmem:[#allocation5 + $0xe8] sm:$0xff]
    %v197 = vld [vmem:[#allocation5 + $0xf0] sm:$0xff]
    %v198 = vld [vmem:[#allocation5 + $0xf8] sm:$0xff]
    %v199 = vld [vmem:[#allocation5 + $0x100] sm:$0xff]
    %v200 = vld [vmem:[#allocation5 + $0x108] sm:$0xff]
    %v201 = vld [vmem:[#allocation5 + $0x110] sm:$0xff]
    %v202 = vld [vmem:[#allocation5 + $0x118] sm:$0xff]
    %v203 = vld [vmem:[#allocation5 + $0x120] sm:$0xff]
    %v204 = vld [vmem:[#allocation5 + $0x128] sm:$0xff]
    %v205 = vld [vmem:[#allocation5 + $0x130] sm:$0xff]
    %v206 = vld [vmem:[#allocation5 + $0x138] sm:$0xff]
    %v207 = vld [vmem:[#allocation5 + $0x140] sm:$0xff]
    %v208 = vld [vmem:[#allocation5 + $0x148] sm:$0xff]
    %v209 = vld [vmem:[#allocation5 + $0x150] sm:$0xff]
    %v210 = vld [vmem:[#allocation5 + $0x158] sm:$0xff]
    %v211 = vld [vmem:[#allocation5 + $0x160] sm:$0xff]
    %v212 = vld [vmem:[#allocation5 + $0x168] sm:$0xff]
    %v213 = vld [vmem:[#allocation5 + $0x170] sm:$0xff]
    %v214 = vld [vmem:[#allocation5 + $0x178] sm:$0xff]
    %v215 = vld [vmem:[#allocation5 + $0x180] sm:$0xff]
    %v216 = vld [vmem:[#allocation5 + $0x188] sm:$0xff]
    %v217 = vld [vmem:[#allocation5 + $0x190] sm:$0xff]
    %v218 = vld [vmem:[#allocation5 + $0x198] sm:$0xff]
    %v219 = vld [vmem:[#allocation5 + $0x1a0] sm:$0xff]
    %v220 = vld [vmem:[#allocation5 + $0x1a8] sm:$0xff]
    %v221 = vld [vmem:[#allocation5 + $0x1b0] sm:$0xff]
    %v222 = vld [vmem:[#allocation5 + $0x1b8] sm:$0xff]
    %v223 = vld [vmem:[#allocation5 + $0x1c0] sm:$0xff]
    %v224 = vld [vmem:[#allocation5 + $0x1c8] sm:$0xff]
    %v225 = vld [vmem:[#allocation5 + $0x1d0] sm:$0xff]
    %v226 = vld [vmem:[#allocation5 + $0x1d8] sm:$0xff]
    %v227 = vld [vmem:[#allocation5 + $0x1e0] sm:$0xff]
    %v228 = vld [vmem:[#allocation5 + $0x1e8] sm:$0xff]
    %v229 = vld [vmem:[#allocation5 + $0x1f0] sm:$0xff]
    %v230 = vld [vmem:[#allocation5 + $0x1f8] sm:$0xff]
    %v231 = vld [vmem:[#allocation5 + $0x200] sm:$0xff]
    %v232 = vld [vmem:[#allocation5 + $0x208] sm:$0xff]
    %v233 = vld [vmem:[#allocation5 + $0x210] sm:$0xff]
    %v234 = vld [vmem:[#allocation5 + $0x218] sm:$0xff]
    %v235 = vld [vmem:[#allocation5 + $0x220] sm:$0xff]
    %v236 = vld [vmem:[#allocation5 + $0x228] sm:$0xff]
    %v237 = vld [vmem:[#allocation5 + $0x230] sm:$0xff]
    %v238 = vld [vmem:[#allocation5 + $0x238] sm:$0xff]
    %v239 = vld [vmem:[#allocation5 + $0x240] sm:$0xff]
    %v240 = vld [vmem:[#allocation5 + $0x248] sm:$0xff]
    %v241 = vld [vmem:[#allocation5 + $0x250] sm:$0xff]
    %v242 = vld [vmem:[#allocation5 + $0x258] sm:$0xff]
    %v243 = vld [vmem:[#allocation5 + $0x260] sm:$0xff]
    %v244 = vld [vmem:[#allocation5 + $0x268] sm:$0xff]
    %v245 = vld [vmem:[#allocation5 + $0x270] sm:$0xff]
    %v246 = vld [vmem:[#allocation5 + $0x278] sm:$0xff]
    %v247 = vld [vmem:[#allocation5 + $0x280] sm:$0xff]
    %v248 = vld [vmem:[#allocation5 + $0x288] sm:$0xff]
    %v249 = vld [vmem:[#allocation5 + $0x290] sm:$0xff]
    %v250 = vld [vmem:[#allocation5 + $0x298] sm:$0xff]
    %v251 = vld [vmem:[#allocation5 + $0x2a0] sm:$0xff]
    %v252 = vld [vmem:[#allocation5 + $0x2a8] sm:$0xff]
    %v253 = vld [vmem:[#allocation5 + $0x2b0] sm:$0xff]
    %v254 = vld [vmem:[#allocation5 + $0x2b8] sm:$0xff]
    %v255 = vld [vmem:[#allocation5 + $0x2c0] sm:$0xff]
    %v256 = vld [vmem:[#allocation5 + $0x2c8] sm:$0xff]
    %v257 = vld [vmem:[#allocation5 + $0x2d0] sm:$0xff]
    %v258 = vld [vmem:[#allocation5 + $0x2d8] sm:$0xff]
    %v259 = vld [vmem:[#allocation5 + $0x2e0] sm:$0xff]
    %v260 = vld [vmem:[#allocation5 + $0x2e8] sm:$0xff]
    %v261 = vld [vmem:[#allocation5 + $0x2f0] sm:$0xff]
    %v262 = vld [vmem:[#allocation5 + $0x2f8] sm:$0xff]
    %v263 = vld [vmem:[#allocation5 + $0x300] sm:$0xff]
    %v264 = vld [vmem:[#allocation5 + $0x308] sm:$0xff]
    %v265 = vld [vmem:[#allocation5 + $0x310] sm:$0xff]
    %v266 = vld [vmem:[#allocation5 + $0x318] sm:$0xff]
    %v267 = vld [vmem:[#allocation5 + $0x320] sm:$0xff]
    %v268 = vld [vmem:[#allocation5 + $0x328] sm:$0xff]
    %v269 = vld [vmem:[#allocation5 + $0x330] sm:$0xff]
    %v270 = vld [vmem:[#allocation5 + $0x338] sm:$0xff]
    %v271 = vld [vmem:[#allocation5 + $0x340] sm:$0xff]
    %v272 = vld [vmem:[#allocation5 + $0x348] sm:$0xff]
    %v273 = vld [vmem:[#allocation5 + $0x350] sm:$0xff]
    %v274 = vld [vmem:[#allocation5 + $0x358] sm:$0xff]
    %v275 = vld [vmem:[#allocation5 + $0x360] sm:$0xff]
    %v276 = vld [vmem:[#allocation5 + $0x368] sm:$0xff]
    %v277 = vld [vmem:[#allocation5 + $0x370] sm:$0xff]
    %v278 = vld [vmem:[#allocation5 + $0x378] sm:$0xff]
    %v279 = vld [vmem:[#allocation5 + $0x380] sm:$0xff]
    %v280 = vld [vmem:[#allocation5 + $0x388] sm:$0xff]
    %v281 = vld [vmem:[#allocation5 + $0x390] sm:$0xff]
    %v282 = vld [vmem:[#allocation5 + $0x398] sm:$0xff]
    %v283 = vld [vmem:[#allocation5 + $0x3a0] sm:$0xff]
    %v284 = vld [vmem:[#allocation5 + $0x3a8] sm:$0xff]
    %v285 = vld [vmem:[#allocation5 + $0x3b0] sm:$0xff]
    %v286 = vld [vmem:[#allocation5 + $0x3b8] sm:$0xff]
    %v287 = vld [vmem:[#allocation5 + $0x3c0] sm:$0xff]
    %v288 = vld [vmem:[#allocation5 + $0x3c8] sm:$0xff]
    %v289 = vld [vmem:[#allocation5 + $0x3d0] sm:$0xff]
    %v290 = vld [vmem:[#allocation5 + $0x3d8] sm:$0xff]
    %v291 = vld [vmem:[#allocation5 + $0x3e0] sm:$0xff]
    %v292 = vld [vmem:[#allocation5 + $0x3e8] sm:$0xff]
    %v293 = vld [vmem:[#allocation5 + $0x3f0] sm:$0xff]
    %v294 = vld [vmem:[#allocation5 + $0x3f8] sm:$0xff]
    %v295 = vld [vmem:[#allocation5 + $0x400] sm:$0xff]
    %v296 = vld [vmem:[#allocation5 + $0x408] sm:$0xff]
    %v297 = vld [vmem:[#allocation5 + $0x410] sm:$0xff]
    %v298 = vld [vmem:[#allocation5 + $0x418] sm:$0xff]
    %v299 = vld [vmem:[#allocation5 + $0x420] sm:$0xff]
    %v300 = vld [vmem:[#allocation5 + $0x428] sm:$0xff]
    %v301 = vld [vmem:[#allocation5 + $0x430] sm:$0xff]
    %v302 = vld [vmem:[#allocation5 + $0x438] sm:$0xff]
    %v303 = vld [vmem:[#allocation5 + $0x440] sm:$0xff]
    %v304 = vld [vmem:[#allocation5 + $0x448] sm:$0xff]
    %v305 = vld [vmem:[#allocation5 + $0x450] sm:$0xff]
    %v306 = vld [vmem:[#allocation5 + $0x458] sm:$0xff]
    %v307 = vld [vmem:[#allocation5 + $0x460] sm:$0xff]
    %v308 = vld [vmem:[#allocation5 + $0x468] sm:$0xff]
    %v309 = vld [vmem:[#allocation5 + $0x470] sm:$0xff]
    %v310 = vld [vmem:[#allocation5 + $0x478] sm:$0xff]
    %v311 = vld [vmem:[#allocation5 + $0x480] sm:$0xff]
    %v312 = vld [vmem:[#allocation5 + $0x488] sm:$0xff]
    %v313 = vld [vmem:[#allocation5 + $0x490] sm:$0xff]
    %v314 = vld [vmem:[#allocation5 + $0x498] sm:$0xff]
    %v315 = vld [vmem:[#allocation5 + $0x4a0] sm:$0xff]
    %v316 = vld [vmem:[#allocation5 + $0x4a8] sm:$0xff]
    %v317 = vld [vmem:[#allocation5 + $0x4b0] sm:$0xff]
    %v318 = vld [vmem:[#allocation5 + $0x4b8] sm:$0xff]
    %v319 = vld [vmem:[#allocation5 + $0x4c0] sm:$0xff]
    %v320 = vld [vmem:[#allocation5 + $0x4c8] sm:$0xff]
    %v321 = vld [vmem:[#allocation5 + $0x4d0] sm:$0xff]
    %v322 = vld [vmem:[#allocation5 + $0x4d8] sm:$0xff]
    %v323 = vld [vmem:[#allocation5 + $0x4e0] sm:$0xff]
    %v324 = vld [vmem:[#allocation5 + $0x4e8] sm:$0xff]
    %v325 = vld [vmem:[#allocation5 + $0x4f0] sm:$0xff]
    %v326 = vld [vmem:[#allocation5 + $0x4f8] sm:$0xff]
    %v327 = vld [vmem:[#allocation5 + $0x500] sm:$0xff]
    %v328 = vld [vmem:[#allocation5 + $0x508] sm:$0xff]
    %v329 = vld [vmem:[#allocation5 + $0x510] sm:$0xff]
    %v330 = vld [vmem:[#allocation5 + $0x518] sm:$0xff]
    %v331 = vld [vmem:[#allocation5 + $0x520] sm:$0xff]
    %v332 = vld [vmem:[#allocation5 + $0x528] sm:$0xff]
    %v333 = vld [vmem:[#allocation5 + $0x530] sm:$0xff]
    %v334 = vld [vmem:[#allocation5 + $0x538] sm:$0xff]
    %v335 = vld [vmem:[#allocation5 + $0x540] sm:$0xff]
    %v336 = vld [vmem:[#allocation5 + $0x548] sm:$0xff]
    %v337 = vld [vmem:[#allocation5 + $0x550] sm:$0xff]
    %v338 = vld [vmem:[#allocation5 + $0x558] sm:$0xff]
    %v339 = vld [vmem:[#allocation5 + $0x560] sm:$0xff]
    %v340 = vld [vmem:[#allocation5 + $0x568] sm:$0xff]
    %v341 = vld [vmem:[#allocation5 + $0x570] sm:$0xff]
    %v342 = vld [vmem:[#allocation5 + $0x578] sm:$0xff]
    %v343 = vld [vmem:[#allocation5 + $0x580] sm:$0xff]
    %v344 = vld [vmem:[#allocation5 + $0x588] sm:$0xff]
    %v345 = vld [vmem:[#allocation5 + $0x590] sm:$0xff]
    %v346 = vld [vmem:[#allocation5 + $0x598] sm:$0xff]
    %v347 = vld [vmem:[#allocation5 + $0x5a0] sm:$0xff]
    %v348 = vld [vmem:[#allocation5 + $0x5a8] sm:$0xff]
    %v349 = vld [vmem:[#allocation5 + $0x5b0] sm:$0xff]
    %v350 = vld [vmem:[#allocation5 + $0x5b8] sm:$0xff]
    %v351 = vld [vmem:[#allocation5 + $0x5c0] sm:$0xff]
    %v352 = vld [vmem:[#allocation5 + $0x5c8] sm:$0xff]
    %v353 = vld [vmem:[#allocation5 + $0x5d0] sm:$0xff]
    %v354 = vld [vmem:[#allocation5 + $0x5d8] sm:$0xff]
    %v355 = vld [vmem:[#allocation5 + $0x5e0] sm:$0xff]
    %v356 = vld [vmem:[#allocation5 + $0x5e8] sm:$0xff]
    %v357 = vld [vmem:[#allocation5 + $0x5f0] sm:$0xff]
    %v358 = vld [vmem:[#allocation5 + $0x5f8] sm:$0xff]
    %v359 = vld [vmem:[#allocation5 + $0x600] sm:$0xff]
    %v360 = vld [vmem:[#allocation5 + $0x608] sm:$0xff]
    %v361 = vld [vmem:[#allocation5 + $0x610] sm:$0xff]
    %v362 = vld [vmem:[#allocation5 + $0x618] sm:$0xff]
    %v363 = vld [vmem:[#allocation5 + $0x620] sm:$0xff]
    %v364 = vld [vmem:[#allocation5 + $0x628] sm:$0xff]
    %v365 = vld [vmem:[#allocation5 + $0x630] sm:$0xff]
    %v366 = vld [vmem:[#allocation5 + $0x638] sm:$0xff]
    %v367 = vld [vmem:[#allocation5 + $0x640] sm:$0xff]
    %v368 = vld [vmem:[#allocation5 + $0x648] sm:$0xff]
    %v369 = vld [vmem:[#allocation5 + $0x650] sm:$0xff]
    %v370 = vld [vmem:[#allocation5 + $0x658] sm:$0xff]
    %v371 = vld [vmem:[#allocation5 + $0x660] sm:$0xff]
    %v372 = vld [vmem:[#allocation5 + $0x668] sm:$0xff]
    %v373 = vld [vmem:[#allocation5 + $0x670] sm:$0xff]
    %v374 = vld [vmem:[#allocation5 + $0x678] sm:$0xff]
    %v375 = vld [vmem:[#allocation5 + $0x680] sm:$0xff]
    %v376 = vld [vmem:[#allocation5 + $0x688] sm:$0xff]
    %v377 = vld [vmem:[#allocation5 + $0x690] sm:$0xff]
    %v378 = vld [vmem:[#allocation5 + $0x698] sm:$0xff]
    %v379 = vld [vmem:[#allocation5 + $0x6a0] sm:$0xff]
    %v380 = vld [vmem:[#allocation5 + $0x6a8] sm:$0xff]
    %v381 = vld [vmem:[#allocation5 + $0x6b0] sm:$0xff]
    %v382 = vld [vmem:[#allocation5 + $0x6b8] sm:$0xff]
    %v383 = vld [vmem:[#allocation5 + $0x6c0] sm:$0xff]
    %v384 = vld [vmem:[#allocation5 + $0x6c8] sm:$0xff]
    %v385 = vld [vmem:[#allocation5 + $0x6d0] sm:$0xff]
    %v386 = vld [vmem:[#allocation5 + $0x6d8] sm:$0xff]
    %v387 = vld [vmem:[#allocation5 + $0x6e0] sm:$0xff]
    %v388 = vld [vmem:[#allocation5 + $0x6e8] sm:$0xff]
    %v389 = vld [vmem:[#allocation5 + $0x6f0] sm:$0xff]
    %v390 = vld [vmem:[#allocation5 + $0x6f8] sm:$0xff]
    %v391 = vld [vmem:[#allocation5 + $0x700] sm:$0xff]
    %v392 = vld [vmem:[#allocation5 + $0x708] sm:$0xff]
    %v393 = vld [vmem:[#allocation5 + $0x710] sm:$0xff]
    %v394 = vld [vmem:[#allocation5 + $0x718] sm:$0xff]
    %v395 = vld [vmem:[#allocation5 + $0x720] sm:$0xff]
    %v396 = vld [vmem:[#allocation5 + $0x728] sm:$0xff]
    %v397 = vld [vmem:[#allocation5 + $0x730] sm:$0xff]
    %v398 = vld [vmem:[#allocation5 + $0x738] sm:$0xff]
    %v399 = vld [vmem:[#allocation5 + $0x740] sm:$0xff]
    %v400 = vld [vmem:[#allocation5 + $0x748] sm:$0xff]
    %v401 = vld [vmem:[#allocation5 + $0x750] sm:$0xff]
    %v402 = vld [vmem:[#allocation5 + $0x758] sm:$0xff]
    %v403 = vld [vmem:[#allocation5 + $0x760] sm:$0xff]
    %v404 = vld [vmem:[#allocation5 + $0x768] sm:$0xff]
    %v405 = vld [vmem:[#allocation5 + $0x770] sm:$0xff]
    %v406 = vld [vmem:[#allocation5 + $0x778] sm:$0xff]
    %v407 = vld [vmem:[#allocation5 + $0x780] sm:$0xff]
    %v408 = vld [vmem:[#allocation5 + $0x788] sm:$0xff]
    %v409 = vld [vmem:[#allocation5 + $0x790] sm:$0xff]
    %v410 = vld [vmem:[#allocation5 + $0x798] sm:$0xff]
    %v411 = vld [vmem:[#allocation5 + $0x7a0] sm:$0xff]
    %v412 = vld [vmem:[#allocation5 + $0x7a8] sm:$0xff]
    %v413 = vld [vmem:[#allocation5 + $0x7b0] sm:$0xff]
    %v414 = vld [vmem:[#allocation5 + $0x7b8] sm:$0xff]
    %v415 = vld [vmem:[#allocation5 + $0x7c0] sm:$0xff]
    %v416 = vld [vmem:[#allocation5 + $0x7c8] sm:$0xff]
    %v417 = vld [vmem:[#allocation5 + $0x7d0] sm:$0xff]
    %v418 = vld [vmem:[#allocation5 + $0x7d8] sm:$0xff]
    %v419 = vld [vmem:[#allocation5 + $0x7e0] sm:$0xff]
    %v420 = vld [vmem:[#allocation5 + $0x7e8] sm:$0xff]
    %v421 = vld [vmem:[#allocation5 + $0x7f0] sm:$0xff]
    %v422 = vld [vmem:[#allocation5 + $0x7f8] sm:$0xff]
    %v423 = vld [vmem:[#allocation5 + $0x800] sm:$0xff]
    %v424 = vld [vmem:[#allocation5 + $0x808] sm:$0xff]
    %v425 = vld [vmem:[#allocation5 + $0x810] sm:$0xff]
    %v426 = vld [vmem:[#allocation5 + $0x818] sm:$0xff]
    %v427 = vld [vmem:[#allocation5 + $0x820] sm:$0xff]
    %v428 = vld [vmem:[#allocation5 + $0x828] sm:$0xff]
    %v429 = vld [vmem:[#allocation5 + $0x830] sm:$0xff]
    %v430 = vld [vmem:[#allocation5 + $0x838] sm:$0xff]
    %v431 = vld [vmem:[#allocation5 + $0x840] sm:$0xff]
    %v432 = vld [vmem:[#allocation5 + $0x848] sm:$0xff]
    %v433 = vld [vmem:[#allocation5 + $0x850] sm:$0xff]
    %v434 = vld [vmem:[#allocation5 + $0x858] sm:$0xff]
    %v435 = vld [vmem:[#allocation5 + $0x860] sm:$0xff]
    %v436 = vld [vmem:[#allocation5 + $0x868] sm:$0xff]
    %v437 = vld [vmem:[#allocation5 + $0x870] sm:$0xff]
    %v438 = vld [vmem:[#allocation5 + $0x878] sm:$0xff]
    %v439 = vld [vmem:[#allocation5 + $0x880] sm:$0xff]
    %v440 = vld [vmem:[#allocation5 + $0x888] sm:$0xff]
    %v441 = vld [vmem:[#allocation5 + $0x890] sm:$0xff]
    %v442 = vld [vmem:[#allocation5 + $0x898] sm:$0xff]
    %v443 = vld [vmem:[#allocation5 + $0x8a0] sm:$0xff]
    %v444 = vld [vmem:[#allocation5 + $0x8a8] sm:$0xff]
    %v445 = vld [vmem:[#allocation5 + $0x8b0] sm:$0xff]
    %v446 = vld [vmem:[#allocation5 + $0x8b8] sm:$0xff]
    %v447 = vld [vmem:[#allocation5 + $0x8c0] sm:$0xff]
    %v448 = vld [vmem:[#allocation5 + $0x8c8] sm:$0xff]
    %v449 = vld [vmem:[#allocation5 + $0x8d0] sm:$0xff]
    %v450 = vld [vmem:[#allocation5 + $0x8d8] sm:$0xff]
    %v451 = vld [vmem:[#allocation5 + $0x8e0] sm:$0xff]
    %v452 = vld [vmem:[#allocation5 + $0x8e8] sm:$0xff]
    %v453 = vld [vmem:[#allocation5 + $0x8f0] sm:$0xff]
    %v454 = vld [vmem:[#allocation5 + $0x8f8] sm:$0xff]
    %v455 = vld [vmem:[#allocation7] sm:$0xff]
    %v456 = vld [vmem:[#allocation7 + $0x8] sm:$0xf]
    %v459 = vlaneseq
    %v460 = vshrl.u32 %v459, 7
    %v461 = vsub.s32 0, %v460
    %v462 = vrot.slane %v455, %v461
    %v463 = vlaneseq
    %v464 = vshrl.u32 %v463, 7
    %v465 = vsub.s32 1, %v464
    %v466 = vrot.slane %v455, %v465
    %v467 = vlaneseq
    %v468 = vshrl.u32 %v467, 7
    %v469 = vsub.s32 2, %v468
    %v470 = vrot.slane %v455, %v469
    %v471 = vlaneseq
    %v472 = vshrl.u32 %v471, 7
    %v473 = vsub.s32 3, %v472
    %v474 = vrot.slane %v455, %v473
    %v475 = vlaneseq
    %v476 = vshrl.u32 %v475, 7
    %v477 = vsub.s32 4, %v476
    %v478 = vrot.slane %v455, %v477
    %v479 = vlaneseq
    %v480 = vshrl.u32 %v479, 7
    %v481 = vsub.s32 5, %v480
    %v482 = vrot.slane %v455, %v481
    %v483 = vlaneseq
    %v484 = vshrl.u32 %v483, 7
    %v485 = vsub.s32 6, %v484
    %v486 = vrot.slane %v455, %v485
    %v487 = vlaneseq
    %v488 = vshrl.u32 %v487, 7
    %v489 = vsub.s32 7, %v488
    %v490 = vrot.slane %v455, %v489
    %v491 = vlaneseq
    %v492 = vshrl.u32 %v491, 7
    %v493 = vsub.s32 0, %v492
    %v494 = vrot.slane %v456, %v493
    %v495 = vlaneseq
    %v496 = vshrl.u32 %v495, 7
    %v497 = vsub.s32 1, %v496
    %v498 = vrot.slane %v456, %v497
    %v499 = vlaneseq
    %v500 = vshrl.u32 %v499, 7
    %v501 = vsub.s32 2, %v500
    %v502 = vrot.slane %v456, %v501
    %v503 = vlaneseq
    %v504 = vshrl.u32 %v503, 7
    %v505 = vsub.s32 3, %v504
    %v506 = vrot.slane %v456, %v505
    %v583 = vunpack.c.l.b16 %v103
    %v584 = vunpack.c.h.b16 %v103
    %v585 = vunpack.c.l.b16 %v104
    %v586 = vunpack.c.l.b16 %v105
    %v587 = vunpack.c.h.b16 %v105
    %v588 = vunpack.c.l.b16 %v106
    %v589 = vunpack.c.l.b16 %v107
    %v590 = vunpack.c.h.b16 %v107
    %v591 = vunpack.c.l.b16 %v108
    %v592 = vunpack.c.l.b16 %v109
    %v593 = vunpack.c.h.b16 %v109
    %v594 = vunpack.c.l.b16 %v110
    %v595 = vunpack.c.l.b16 %v111
    %v596 = vunpack.c.h.b16 %v111
    %v597 = vunpack.c.l.b16 %v112
    %v598 = vunpack.c.l.b16 %v113
    %v599 = vunpack.c.h.b16 %v113
    %v600 = vunpack.c.l.b16 %v114
    %v601 = vunpack.c.l.b16 %v115
    %v602 = vunpack.c.h.b16 %v115
    %v603 = vunpack.c.l.b16 %v116
    %v604 = vunpack.c.l.b16 %v117
    %v605 = vunpack.c.h.b16 %v117
    %v606 = vunpack.c.l.b16 %v118
    %v607 = vunpack.c.l.b16 %v119
    %v608 = vunpack.c.h.b16 %v119
    %v609 = vunpack.c.l.b16 %v120
    %v610 = vunpack.c.l.b16 %v121
    %v611 = vunpack.c.h.b16 %v121
    %v612 = vunpack.c.l.b16 %v122
    %v613 = vunpack.c.l.b16 %v123
    %v614 = vunpack.c.h.b16 %v123
    %v615 = vunpack.c.l.b16 %v124
    %v616 = vunpack.c.l.b16 %v125
    %v617 = vunpack.c.h.b16 %v125
    %v618 = vunpack.c.l.b16 %v126
    %v619 = vunpack.c.l.b16 %v127
    %v620 = vunpack.c.h.b16 %v127
    %v621 = vunpack.c.l.b16 %v128
    %v622 = vunpack.c.l.b16 %v129
    %v623 = vunpack.c.h.b16 %v129
    %v624 = vunpack.c.l.b16 %v130
    %v625 = vunpack.c.l.b16 %v131
    %v626 = vunpack.c.h.b16 %v131
    %v627 = vunpack.c.l.b16 %v132
    %v628 = vunpack.c.l.b16 %v133
    %v629 = vunpack.c.h.b16 %v133
    %v630 = vunpack.c.l.b16 %v134
    %v631 = vunpack.c.l.b16 %v135
    %v632 = vunpack.c.h.b16 %v135
    %v633 = vunpack.c.l.b16 %v136
    %v634 = vunpack.c.l.b16 %v137
    %v635 = vunpack.c.h.b16 %v137
    %v636 = vunpack.c.l.b16 %v138
    %v637 = vunpack.c.l.b16 %v139
    %v638 = vunpack.c.h.b16 %v139
    %v639 = vunpack.c.l.b16 %v140
    %v640 = vunpack.c.l.b16 %v141
    %v641 = vunpack.c.h.b16 %v141
    %v642 = vunpack.c.l.b16 %v142
    %v643 = vunpack.c.l.b16 %v143
    %v644 = vunpack.c.h.b16 %v143
    %v645 = vunpack.c.l.b16 %v144
    %v646 = vunpack.c.l.b16 %v145
    %v647 = vunpack.c.h.b16 %v145
    %v648 = vunpack.c.l.b16 %v146
    %v649 = vunpack.c.l.b16 %v147
    %v650 = vunpack.c.h.b16 %v147
    %v651 = vunpack.c.l.b16 %v148
    %v652 = vunpack.c.l.b16 %v149
    %v653 = vunpack.c.h.b16 %v149
    %v654 = vunpack.c.l.b16 %v150
    %v655 = vunpack.c.l.b16 %v151
    %v656 = vunpack.c.h.b16 %v151
    %v657 = vunpack.c.l.b16 %v152
    %v658 = vunpack.c.l.b16 %v153
    %v659 = vunpack.c.h.b16 %v153
    %v660 = vunpack.c.l.b16 %v154
    %v661 = vunpack.c.l.b16 %v155
    %v662 = vunpack.c.h.b16 %v155
    %v663 = vunpack.c.l.b16 %v156
    %v664 = vunpack.c.l.b16 %v157
    %v665 = vunpack.c.h.b16 %v157
    %v666 = vunpack.c.l.b16 %v158
    %v667 = vunpack.c.l.b16 %v159
    %v668 = vunpack.c.h.b16 %v159
    %v669 = vunpack.c.l.b16 %v160
    %v670 = vunpack.c.l.b16 %v161
    %v671 = vunpack.c.h.b16 %v161
    %v672 = vunpack.c.l.b16 %v162
    %v673 = vunpack.c.l.b16 %v163
    %v674 = vunpack.c.h.b16 %v163
    %v675 = vunpack.c.l.b16 %v164
    %v676 = vunpack.c.l.b16 %v165
    %v677 = vunpack.c.h.b16 %v165
    %v678 = vunpack.c.l.b16 %v166
    %v679 = vpack.c.b16 %v586, %v583
    %v680 = vpack.c.b16 %v587, %v584
    %v681 = vpack.c.b16 %v588, %v585
    %v682 = vpack.c.b16 %v592, %v589
    %v683 = vpack.c.b16 %v593, %v590
    %v684 = vpack.c.b16 %v594, %v591
    %v685 = vpack.c.b16 %v598, %v595
    %v686 = vpack.c.b16 %v599, %v596
    %v687 = vpack.c.b16 %v600, %v597
    %v688 = vpack.c.b16 %v604, %v601
    %v689 = vpack.c.b16 %v605, %v602
    %v690 = vpack.c.b16 %v606, %v603
    %v691 = vpack.c.b16 %v610, %v607
    %v692 = vpack.c.b16 %v611, %v608
    %v693 = vpack.c.b16 %v612, %v609
    %v694 = vpack.c.b16 %v616, %v613
    %v695 = vpack.c.b16 %v617, %v614
    %v696 = vpack.c.b16 %v618, %v615
    %v697 = vpack.c.b16 %v622, %v619
    %v698 = vpack.c.b16 %v623, %v620
    %v699 = vpack.c.b16 %v624, %v621
    %v700 = vpack.c.b16 %v628, %v625
    %v701 = vpack.c.b16 %v629, %v626
    %v702 = vpack.c.b16 %v630, %v627
    %v703 = vpack.c.b16 %v634, %v631
    %v704 = vpack.c.b16 %v635, %v632
    %v705 = vpack.c.b16 %v636, %v633
    %v706 = vpack.c.b16 %v640, %v637
    %v707 = vpack.c.b16 %v641, %v638
    %v708 = vpack.c.b16 %v642, %v639
    %v709 = vpack.c.b16 %v646, %v643
    %v710 = vpack.c.b16 %v647, %v644
    %v711 = vpack.c.b16 %v648, %v645
    %v712 = vpack.c.b16 %v652, %v649
    %v713 = vpack.c.b16 %v653, %v650
    %v714 = vpack.c.b16 %v654, %v651
    %v715 = vpack.c.b16 %v658, %v655
    %v716 = vpack.c.b16 %v659, %v656
    %v717 = vpack.c.b16 %v660, %v657
    %v718 = vpack.c.b16 %v664, %v661
    %v719 = vpack.c.b16 %v665, %v662
    %v720 = vpack.c.b16 %v666, %v663
    %v721 = vpack.c.b16 %v670, %v667
    %v722 = vpack.c.b16 %v671, %v668
    %v723 = vpack.c.b16 %v672, %v669
    %v724 = vpack.c.b16 %v676, %v673
    %v725 = vpack.c.b16 %v677, %v674
    %v726 = vpack.c.b16 %v678, %v675
    %v1063 = vunpack.c.l.b16 %v167
    %v1064 = vunpack.c.h.b16 %v167
    %v1065 = vunpack.c.l.b16 %v168
    %v1066 = vunpack.c.h.b16 %v168
    %v1067 = vunpack.c.l.b16 %v169
    %v1068 = vunpack.c.h.b16 %v169
    %v1069 = vunpack.c.l.b16 %v170
    %v1070 = vunpack.c.h.b16 %v170
    %v1071 = vunpack.c.l.b16 %v171
    %v1072 = vunpack.c.h.b16 %v171
    %v1073 = vunpack.c.l.b16 %v172
    %v1074 = vunpack.c.h.b16 %v172
    %v1075 = vunpack.c.l.b16 %v173
    %v1076 = vunpack.c.h.b16 %v173
    %v1077 = vunpack.c.l.b16 %v174
    %v1078 = vunpack.c.h.b16 %v174
    %v1079 = vunpack.c.l.b16 %v175
    %v1080 = vunpack.c.h.b16 %v175
    %v1081 = vunpack.c.l.b16 %v176
    %v1082 = vunpack.c.h.b16 %v176
    %v1083 = vunpack.c.l.b16 %v177
    %v1084 = vunpack.c.h.b16 %v177
    %v1085 = vunpack.c.l.b16 %v178
    %v1086 = vunpack.c.h.b16 %v178
    %v1087 = vunpack.c.l.b16 %v179
    %v1088 = vunpack.c.h.b16 %v179
    %v1089 = vunpack.c.l.b16 %v180
    %v1090 = vunpack.c.h.b16 %v180
    %v1091 = vunpack.c.l.b16 %v181
    %v1092 = vunpack.c.h.b16 %v181
    %v1093 = vunpack.c.l.b16 %v182
    %v1094 = vunpack.c.h.b16 %v182
    %v1095 = vunpack.c.l.b16 %v183
    %v1096 = vunpack.c.h.b16 %v183
    %v1097 = vunpack.c.l.b16 %v184
    %v1098 = vunpack.c.h.b16 %v184
    %v1099 = vunpack.c.l.b16 %v185
    %v1100 = vunpack.c.h.b16 %v185
    %v1101 = vunpack.c.l.b16 %v186
    %v1102 = vunpack.c.h.b16 %v186
    %v1103 = vunpack.c.l.b16 %v187
    %v1104 = vunpack.c.h.b16 %v187
    %v1105 = vunpack.c.l.b16 %v188
    %v1106 = vunpack.c.h.b16 %v188
    %v1107 = vunpack.c.l.b16 %v189
    %v1108 = vunpack.c.h.b16 %v189
    %v1109 = vunpack.c.l.b16 %v190
    %v1110 = vunpack.c.h.b16 %v190
    %v1111 = vunpack.c.l.b16 %v191
    %v1112 = vunpack.c.h.b16 %v191
    %v1113 = vunpack.c.l.b16 %v192
    %v1114 = vunpack.c.h.b16 %v192
    %v1115 = vunpack.c.l.b16 %v193
    %v1116 = vunpack.c.h.b16 %v193
    %v1117 = vunpack.c.l.b16 %v194
    %v1118 = vunpack.c.h.b16 %v194
    %v1119 = vunpack.c.l.b16 %v195
    %v1120 = vunpack.c.h.b16 %v195
    %v1121 = vunpack.c.l.b16 %v196
    %v1122 = vunpack.c.h.b16 %v196
    %v1123 = vunpack.c.l.b16 %v197
    %v1124 = vunpack.c.h.b16 %v197
    %v1125 = vunpack.c.l.b16 %v198
    %v1126 = vunpack.c.h.b16 %v198
    %v1127 = vunpack.c.l.b16 %v199
    %v1128 = vunpack.c.h.b16 %v199
    %v1129 = vunpack.c.l.b16 %v200
    %v1130 = vunpack.c.h.b16 %v200
    %v1131 = vunpack.c.l.b16 %v201
    %v1132 = vunpack.c.h.b16 %v201
    %v1133 = vunpack.c.l.b16 %v202
    %v1134 = vunpack.c.h.b16 %v202
    %v1135 = vunpack.c.l.b16 %v203
    %v1136 = vunpack.c.h.b16 %v203
    %v1137 = vunpack.c.l.b16 %v204
    %v1138 = vunpack.c.h.b16 %v204
    %v1139 = vunpack.c.l.b16 %v205
    %v1140 = vunpack.c.h.b16 %v205
    %v1141 = vunpack.c.l.b16 %v206
    %v1142 = vunpack.c.h.b16 %v206
    %v1143 = vunpack.c.l.b16 %v207
    %v1144 = vunpack.c.h.b16 %v207
    %v1145 = vunpack.c.l.b16 %v208
    %v1146 = vunpack.c.h.b16 %v208
    %v1147 = vunpack.c.l.b16 %v209
    %v1148 = vunpack.c.h.b16 %v209
    %v1149 = vunpack.c.l.b16 %v210
    %v1150 = vunpack.c.h.b16 %v210
    %v1151 = vunpack.c.l.b16 %v211
    %v1152 = vunpack.c.h.b16 %v211
    %v1153 = vunpack.c.l.b16 %v212
    %v1154 = vunpack.c.h.b16 %v212
    %v1155 = vunpack.c.l.b16 %v213
    %v1156 = vunpack.c.h.b16 %v213
    %v1157 = vunpack.c.l.b16 %v214
    %v1158 = vunpack.c.h.b16 %v214
    %v1159 = vunpack.c.l.b16 %v215
    %v1160 = vunpack.c.h.b16 %v215
    %v1161 = vunpack.c.l.b16 %v216
    %v1162 = vunpack.c.h.b16 %v216
    %v1163 = vunpack.c.l.b16 %v217
    %v1164 = vunpack.c.h.b16 %v217
    %v1165 = vunpack.c.l.b16 %v218
    %v1166 = vunpack.c.h.b16 %v218
    %v1167 = vunpack.c.l.b16 %v219
    %v1168 = vunpack.c.h.b16 %v219
    %v1169 = vunpack.c.l.b16 %v220
    %v1170 = vunpack.c.h.b16 %v220
    %v1171 = vunpack.c.l.b16 %v221
    %v1172 = vunpack.c.h.b16 %v221
    %v1173 = vunpack.c.l.b16 %v222
    %v1174 = vunpack.c.h.b16 %v222
    %v1175 = vunpack.c.l.b16 %v223
    %v1176 = vunpack.c.h.b16 %v223
    %v1177 = vunpack.c.l.b16 %v224
    %v1178 = vunpack.c.h.b16 %v224
    %v1179 = vunpack.c.l.b16 %v225
    %v1180 = vunpack.c.h.b16 %v225
    %v1181 = vunpack.c.l.b16 %v226
    %v1182 = vunpack.c.h.b16 %v226
    %v1183 = vunpack.c.l.b16 %v227
    %v1184 = vunpack.c.h.b16 %v227
    %v1185 = vunpack.c.l.b16 %v228
    %v1186 = vunpack.c.h.b16 %v228
    %v1187 = vunpack.c.l.b16 %v229
    %v1188 = vunpack.c.h.b16 %v229
    %v1189 = vunpack.c.l.b16 %v230
    %v1190 = vunpack.c.h.b16 %v230
    %v1191 = vunpack.c.l.b16 %v231
    %v1192 = vunpack.c.h.b16 %v231
    %v1193 = vunpack.c.l.b16 %v232
    %v1194 = vunpack.c.h.b16 %v232
    %v1195 = vunpack.c.l.b16 %v233
    %v1196 = vunpack.c.h.b16 %v233
    %v1197 = vunpack.c.l.b16 %v234
    %v1198 = vunpack.c.h.b16 %v234
    %v1199 = vunpack.c.l.b16 %v235
    %v1200 = vunpack.c.h.b16 %v235
    %v1201 = vunpack.c.l.b16 %v236
    %v1202 = vunpack.c.h.b16 %v236
    %v1203 = vunpack.c.l.b16 %v237
    %v1204 = vunpack.c.h.b16 %v237
    %v1205 = vunpack.c.l.b16 %v238
    %v1206 = vunpack.c.h.b16 %v238
    %v1207 = vunpack.c.l.b16 %v239
    %v1208 = vunpack.c.h.b16 %v239
    %v1209 = vunpack.c.l.b16 %v240
    %v1210 = vunpack.c.h.b16 %v240
    %v1211 = vunpack.c.l.b16 %v241
    %v1212 = vunpack.c.h.b16 %v241
    %v1213 = vunpack.c.l.b16 %v242
    %v1214 = vunpack.c.h.b16 %v242
    %v1215 = vunpack.c.l.b16 %v243
    %v1216 = vunpack.c.h.b16 %v243
    %v1217 = vunpack.c.l.b16 %v244
    %v1218 = vunpack.c.h.b16 %v244
    %v1219 = vunpack.c.l.b16 %v245
    %v1220 = vunpack.c.h.b16 %v245
    %v1221 = vunpack.c.l.b16 %v246
    %v1222 = vunpack.c.h.b16 %v246
    %v1223 = vunpack.c.l.b16 %v247
    %v1224 = vunpack.c.h.b16 %v247
    %v1225 = vunpack.c.l.b16 %v248
    %v1226 = vunpack.c.h.b16 %v248
    %v1227 = vunpack.c.l.b16 %v249
    %v1228 = vunpack.c.h.b16 %v249
    %v1229 = vunpack.c.l.b16 %v250
    %v1230 = vunpack.c.h.b16 %v250
    %v1231 = vunpack.c.l.b16 %v251
    %v1232 = vunpack.c.h.b16 %v251
    %v1233 = vunpack.c.l.b16 %v252
    %v1234 = vunpack.c.h.b16 %v252
    %v1235 = vunpack.c.l.b16 %v253
    %v1236 = vunpack.c.h.b16 %v253
    %v1237 = vunpack.c.l.b16 %v254
    %v1238 = vunpack.c.h.b16 %v254
    %v1239 = vunpack.c.l.b16 %v255
    %v1240 = vunpack.c.h.b16 %v255
    %v1241 = vunpack.c.l.b16 %v256
    %v1242 = vunpack.c.h.b16 %v256
    %v1243 = vunpack.c.l.b16 %v257
    %v1244 = vunpack.c.h.b16 %v257
    %v1245 = vunpack.c.l.b16 %v258
    %v1246 = vunpack.c.h.b16 %v258
    %v1247 = vunpack.c.l.b16 %v259
    %v1248 = vunpack.c.h.b16 %v259
    %v1249 = vunpack.c.l.b16 %v260
    %v1250 = vunpack.c.h.b16 %v260
    %v1251 = vunpack.c.l.b16 %v261
    %v1252 = vunpack.c.h.b16 %v261
    %v1253 = vunpack.c.l.b16 %v262
    %v1254 = vunpack.c.h.b16 %v262
    %v1255 = vunpack.c.l.b16 %v263
    %v1256 = vunpack.c.h.b16 %v263
    %v1257 = vunpack.c.l.b16 %v264
    %v1258 = vunpack.c.h.b16 %v264
    %v1259 = vunpack.c.l.b16 %v265
    %v1260 = vunpack.c.h.b16 %v265
    %v1261 = vunpack.c.l.b16 %v266
    %v1262 = vunpack.c.h.b16 %v266
    %v1263 = vunpack.c.l.b16 %v267
    %v1264 = vunpack.c.h.b16 %v267
    %v1265 = vunpack.c.l.b16 %v268
    %v1266 = vunpack.c.h.b16 %v268
    %v1267 = vunpack.c.l.b16 %v269
    %v1268 = vunpack.c.h.b16 %v269
    %v1269 = vunpack.c.l.b16 %v270
    %v1270 = vunpack.c.h.b16 %v270
    %v1271 = vunpack.c.l.b16 %v271
    %v1272 = vunpack.c.h.b16 %v271
    %v1273 = vunpack.c.l.b16 %v272
    %v1274 = vunpack.c.h.b16 %v272
    %v1275 = vunpack.c.l.b16 %v273
    %v1276 = vunpack.c.h.b16 %v273
    %v1277 = vunpack.c.l.b16 %v274
    %v1278 = vunpack.c.h.b16 %v274
    %v1279 = vunpack.c.l.b16 %v275
    %v1280 = vunpack.c.h.b16 %v275
    %v1281 = vunpack.c.l.b16 %v276
    %v1282 = vunpack.c.h.b16 %v276
    %v1283 = vunpack.c.l.b16 %v277
    %v1284 = vunpack.c.h.b16 %v277
    %v1285 = vunpack.c.l.b16 %v278
    %v1286 = vunpack.c.h.b16 %v278
    %v1287 = vunpack.c.l.b16 %v279
    %v1288 = vunpack.c.h.b16 %v279
    %v1289 = vunpack.c.l.b16 %v280
    %v1290 = vunpack.c.h.b16 %v280
    %v1291 = vunpack.c.l.b16 %v281
    %v1292 = vunpack.c.h.b16 %v281
    %v1293 = vunpack.c.l.b16 %v282
    %v1294 = vunpack.c.h.b16 %v282
    %v1295 = vunpack.c.l.b16 %v283
    %v1296 = vunpack.c.h.b16 %v283
    %v1297 = vunpack.c.l.b16 %v284
    %v1298 = vunpack.c.h.b16 %v284
    %v1299 = vunpack.c.l.b16 %v285
    %v1300 = vunpack.c.h.b16 %v285
    %v1301 = vunpack.c.l.b16 %v286
    %v1302 = vunpack.c.h.b16 %v286
    %v1303 = vunpack.c.l.b16 %v287
    %v1304 = vunpack.c.h.b16 %v287
    %v1305 = vunpack.c.l.b16 %v288
    %v1306 = vunpack.c.h.b16 %v288
    %v1307 = vunpack.c.l.b16 %v289
    %v1308 = vunpack.c.h.b16 %v289
    %v1309 = vunpack.c.l.b16 %v290
    %v1310 = vunpack.c.h.b16 %v290
    %v1311 = vunpack.c.l.b16 %v291
    %v1312 = vunpack.c.h.b16 %v291
    %v1313 = vunpack.c.l.b16 %v292
    %v1314 = vunpack.c.h.b16 %v292
    %v1315 = vunpack.c.l.b16 %v293
    %v1316 = vunpack.c.h.b16 %v293
    %v1317 = vunpack.c.l.b16 %v294
    %v1318 = vunpack.c.h.b16 %v294
    %v1319 = vunpack.c.l.b16 %v295
    %v1320 = vunpack.c.h.b16 %v295
    %v1321 = vunpack.c.l.b16 %v296
    %v1322 = vunpack.c.h.b16 %v296
    %v1323 = vunpack.c.l.b16 %v297
    %v1324 = vunpack.c.h.b16 %v297
    %v1325 = vunpack.c.l.b16 %v298
    %v1326 = vunpack.c.h.b16 %v298
    %v1327 = vunpack.c.l.b16 %v299
    %v1328 = vunpack.c.h.b16 %v299
    %v1329 = vunpack.c.l.b16 %v300
    %v1330 = vunpack.c.h.b16 %v300
    %v1331 = vunpack.c.l.b16 %v301
    %v1332 = vunpack.c.h.b16 %v301
    %v1333 = vunpack.c.l.b16 %v302
    %v1334 = vunpack.c.h.b16 %v302
    %v1335 = vunpack.c.l.b16 %v303
    %v1336 = vunpack.c.h.b16 %v303
    %v1337 = vunpack.c.l.b16 %v304
    %v1338 = vunpack.c.h.b16 %v304
    %v1339 = vunpack.c.l.b16 %v305
    %v1340 = vunpack.c.h.b16 %v305
    %v1341 = vunpack.c.l.b16 %v306
    %v1342 = vunpack.c.h.b16 %v306
    %v1343 = vunpack.c.l.b16 %v307
    %v1344 = vunpack.c.h.b16 %v307
    %v1345 = vunpack.c.l.b16 %v308
    %v1346 = vunpack.c.h.b16 %v308
    %v1347 = vunpack.c.l.b16 %v309
    %v1348 = vunpack.c.h.b16 %v309
    %v1349 = vunpack.c.l.b16 %v310
    %v1350 = vunpack.c.h.b16 %v310
    %v1351 = vunpack.c.l.b16 %v311
    %v1352 = vunpack.c.h.b16 %v311
    %v1353 = vunpack.c.l.b16 %v312
    %v1354 = vunpack.c.h.b16 %v312
    %v1355 = vunpack.c.l.b16 %v313
    %v1356 = vunpack.c.h.b16 %v313
    %v1357 = vunpack.c.l.b16 %v314
    %v1358 = vunpack.c.h.b16 %v314
    %v1359 = vunpack.c.l.b16 %v315
    %v1360 = vunpack.c.h.b16 %v315
    %v1361 = vunpack.c.l.b16 %v316
    %v1362 = vunpack.c.h.b16 %v316
    %v1363 = vunpack.c.l.b16 %v317
    %v1364 = vunpack.c.h.b16 %v317
    %v1365 = vunpack.c.l.b16 %v318
    %v1366 = vunpack.c.h.b16 %v318
    %v1367 = vunpack.c.l.b16 %v319
    %v1368 = vunpack.c.h.b16 %v319
    %v1369 = vunpack.c.l.b16 %v320
    %v1370 = vunpack.c.h.b16 %v320
    %v1371 = vunpack.c.l.b16 %v321
    %v1372 = vunpack.c.h.b16 %v321
    %v1373 = vunpack.c.l.b16 %v322
    %v1374 = vunpack.c.h.b16 %v322
    %v1375 = vunpack.c.l.b16 %v323
    %v1376 = vunpack.c.h.b16 %v323
    %v1377 = vunpack.c.l.b16 %v324
    %v1378 = vunpack.c.h.b16 %v324
    %v1379 = vunpack.c.l.b16 %v325
    %v1380 = vunpack.c.h.b16 %v325
    %v1381 = vunpack.c.l.b16 %v326
    %v1382 = vunpack.c.h.b16 %v326
    %v1383 = vunpack.c.l.b16 %v327
    %v1384 = vunpack.c.h.b16 %v327
    %v1385 = vunpack.c.l.b16 %v328
    %v1386 = vunpack.c.h.b16 %v328
    %v1387 = vunpack.c.l.b16 %v329
    %v1388 = vunpack.c.h.b16 %v329
    %v1389 = vunpack.c.l.b16 %v330
    %v1390 = vunpack.c.h.b16 %v330
    %v1391 = vunpack.c.l.b16 %v331
    %v1392 = vunpack.c.h.b16 %v331
    %v1393 = vunpack.c.l.b16 %v332
    %v1394 = vunpack.c.h.b16 %v332
    %v1395 = vunpack.c.l.b16 %v333
    %v1396 = vunpack.c.h.b16 %v333
    %v1397 = vunpack.c.l.b16 %v334
    %v1398 = vunpack.c.h.b16 %v334
    %v1399 = vunpack.c.l.b16 %v335
    %v1400 = vunpack.c.h.b16 %v335
    %v1401 = vunpack.c.l.b16 %v336
    %v1402 = vunpack.c.h.b16 %v336
    %v1403 = vunpack.c.l.b16 %v337
    %v1404 = vunpack.c.h.b16 %v337
    %v1405 = vunpack.c.l.b16 %v338
    %v1406 = vunpack.c.h.b16 %v338
    %v1407 = vunpack.c.l.b16 %v339
    %v1408 = vunpack.c.h.b16 %v339
    %v1409 = vunpack.c.l.b16 %v340
    %v1410 = vunpack.c.h.b16 %v340
    %v1411 = vunpack.c.l.b16 %v341
    %v1412 = vunpack.c.h.b16 %v341
    %v1413 = vunpack.c.l.b16 %v342
    %v1414 = vunpack.c.h.b16 %v342
    %v1415 = vunpack.c.l.b16 %v343
    %v1416 = vunpack.c.h.b16 %v343
    %v1417 = vunpack.c.l.b16 %v344
    %v1418 = vunpack.c.h.b16 %v344
    %v1419 = vunpack.c.l.b16 %v345
    %v1420 = vunpack.c.h.b16 %v345
    %v1421 = vunpack.c.l.b16 %v346
    %v1422 = vunpack.c.h.b16 %v346
    %v1423 = vunpack.c.l.b16 %v347
    %v1424 = vunpack.c.h.b16 %v347
    %v1425 = vunpack.c.l.b16 %v348
    %v1426 = vunpack.c.h.b16 %v348
    %v1427 = vunpack.c.l.b16 %v349
    %v1428 = vunpack.c.h.b16 %v349
    %v1429 = vunpack.c.l.b16 %v350
    %v1430 = vunpack.c.h.b16 %v350
    %v1431 = vunpack.c.l.b16 %v351
    %v1432 = vunpack.c.h.b16 %v351
    %v1433 = vunpack.c.l.b16 %v352
    %v1434 = vunpack.c.h.b16 %v352
    %v1435 = vunpack.c.l.b16 %v353
    %v1436 = vunpack.c.h.b16 %v353
    %v1437 = vunpack.c.l.b16 %v354
    %v1438 = vunpack.c.h.b16 %v354
    %v1439 = vunpack.c.l.b16 %v355
    %v1440 = vunpack.c.h.b16 %v355
    %v1441 = vunpack.c.l.b16 %v356
    %v1442 = vunpack.c.h.b16 %v356
    %v1443 = vunpack.c.l.b16 %v357
    %v1444 = vunpack.c.h.b16 %v357
    %v1445 = vunpack.c.l.b16 %v358
    %v1446 = vunpack.c.h.b16 %v358
    %v1447 = vunpack.c.l.b16 %v359
    %v1448 = vunpack.c.h.b16 %v359
    %v1449 = vunpack.c.l.b16 %v360
    %v1450 = vunpack.c.h.b16 %v360
    %v1451 = vunpack.c.l.b16 %v361
    %v1452 = vunpack.c.h.b16 %v361
    %v1453 = vunpack.c.l.b16 %v362
    %v1454 = vunpack.c.h.b16 %v362
    %v1455 = vunpack.c.l.b16 %v363
    %v1456 = vunpack.c.h.b16 %v363
    %v1457 = vunpack.c.l.b16 %v364
    %v1458 = vunpack.c.h.b16 %v364
    %v1459 = vunpack.c.l.b16 %v365
    %v1460 = vunpack.c.h.b16 %v365
    %v1461 = vunpack.c.l.b16 %v366
    %v1462 = vunpack.c.h.b16 %v366
    %v1463 = vunpack.c.l.b16 %v367
    %v1464 = vunpack.c.h.b16 %v367
    %v1465 = vunpack.c.l.b16 %v368
    %v1466 = vunpack.c.h.b16 %v368
    %v1467 = vunpack.c.l.b16 %v369
    %v1468 = vunpack.c.h.b16 %v369
    %v1469 = vunpack.c.l.b16 %v370
    %v1470 = vunpack.c.h.b16 %v370
    %v1471 = vunpack.c.l.b16 %v371
    %v1472 = vunpack.c.h.b16 %v371
    %v1473 = vunpack.c.l.b16 %v372
    %v1474 = vunpack.c.h.b16 %v372
    %v1475 = vunpack.c.l.b16 %v373
    %v1476 = vunpack.c.h.b16 %v373
    %v1477 = vunpack.c.l.b16 %v374
    %v1478 = vunpack.c.h.b16 %v374
    %v1479 = vunpack.c.l.b16 %v375
    %v1480 = vunpack.c.h.b16 %v375
    %v1481 = vunpack.c.l.b16 %v376
    %v1482 = vunpack.c.h.b16 %v376
    %v1483 = vunpack.c.l.b16 %v377
    %v1484 = vunpack.c.h.b16 %v377
    %v1485 = vunpack.c.l.b16 %v378
    %v1486 = vunpack.c.h.b16 %v378
    %v1487 = vunpack.c.l.b16 %v379
    %v1488 = vunpack.c.h.b16 %v379
    %v1489 = vunpack.c.l.b16 %v380
    %v1490 = vunpack.c.h.b16 %v380
    %v1491 = vunpack.c.l.b16 %v381
    %v1492 = vunpack.c.h.b16 %v381
    %v1493 = vunpack.c.l.b16 %v382
    %v1494 = vunpack.c.h.b16 %v382
    %v1495 = vunpack.c.l.b16 %v383
    %v1496 = vunpack.c.h.b16 %v383
    %v1497 = vunpack.c.l.b16 %v384
    %v1498 = vunpack.c.h.b16 %v384
    %v1499 = vunpack.c.l.b16 %v385
    %v1500 = vunpack.c.h.b16 %v385
    %v1501 = vunpack.c.l.b16 %v386
    %v1502 = vunpack.c.h.b16 %v386
    %v1503 = vunpack.c.l.b16 %v387
    %v1504 = vunpack.c.h.b16 %v387
    %v1505 = vunpack.c.l.b16 %v388
    %v1506 = vunpack.c.h.b16 %v388
    %v1507 = vunpack.c.l.b16 %v389
    %v1508 = vunpack.c.h.b16 %v389
    %v1509 = vunpack.c.l.b16 %v390
    %v1510 = vunpack.c.h.b16 %v390
    %v1511 = vunpack.c.l.b16 %v391
    %v1512 = vunpack.c.h.b16 %v391
    %v1513 = vunpack.c.l.b16 %v392
    %v1514 = vunpack.c.h.b16 %v392
    %v1515 = vunpack.c.l.b16 %v393
    %v1516 = vunpack.c.h.b16 %v393
    %v1517 = vunpack.c.l.b16 %v394
    %v1518 = vunpack.c.h.b16 %v394
    %v1519 = vunpack.c.l.b16 %v395
    %v1520 = vunpack.c.h.b16 %v395
    %v1521 = vunpack.c.l.b16 %v396
    %v1522 = vunpack.c.h.b16 %v396
    %v1523 = vunpack.c.l.b16 %v397
    %v1524 = vunpack.c.h.b16 %v397
    %v1525 = vunpack.c.l.b16 %v398
    %v1526 = vunpack.c.h.b16 %v398
    %v1527 = vunpack.c.l.b16 %v399
    %v1528 = vunpack.c.h.b16 %v399
    %v1529 = vunpack.c.l.b16 %v400
    %v1530 = vunpack.c.h.b16 %v400
    %v1531 = vunpack.c.l.b16 %v401
    %v1532 = vunpack.c.h.b16 %v401
    %v1533 = vunpack.c.l.b16 %v402
    %v1534 = vunpack.c.h.b16 %v402
    %v1535 = vunpack.c.l.b16 %v403
    %v1536 = vunpack.c.h.b16 %v403
    %v1537 = vunpack.c.l.b16 %v404
    %v1538 = vunpack.c.h.b16 %v404
    %v1539 = vunpack.c.l.b16 %v405
    %v1540 = vunpack.c.h.b16 %v405
    %v1541 = vunpack.c.l.b16 %v406
    %v1542 = vunpack.c.h.b16 %v406
    %v1543 = vunpack.c.l.b16 %v407
    %v1544 = vunpack.c.h.b16 %v407
    %v1545 = vunpack.c.l.b16 %v408
    %v1546 = vunpack.c.h.b16 %v408
    %v1547 = vunpack.c.l.b16 %v409
    %v1548 = vunpack.c.h.b16 %v409
    %v1549 = vunpack.c.l.b16 %v410
    %v1550 = vunpack.c.h.b16 %v410
    %v1551 = vunpack.c.l.b16 %v411
    %v1552 = vunpack.c.h.b16 %v411
    %v1553 = vunpack.c.l.b16 %v412
    %v1554 = vunpack.c.h.b16 %v412
    %v1555 = vunpack.c.l.b16 %v413
    %v1556 = vunpack.c.h.b16 %v413
    %v1557 = vunpack.c.l.b16 %v414
    %v1558 = vunpack.c.h.b16 %v414
    %v1559 = vunpack.c.l.b16 %v415
    %v1560 = vunpack.c.h.b16 %v415
    %v1561 = vunpack.c.l.b16 %v416
    %v1562 = vunpack.c.h.b16 %v416
    %v1563 = vunpack.c.l.b16 %v417
    %v1564 = vunpack.c.h.b16 %v417
    %v1565 = vunpack.c.l.b16 %v418
    %v1566 = vunpack.c.h.b16 %v418
    %v1567 = vunpack.c.l.b16 %v419
    %v1568 = vunpack.c.h.b16 %v419
    %v1569 = vunpack.c.l.b16 %v420
    %v1570 = vunpack.c.h.b16 %v420
    %v1571 = vunpack.c.l.b16 %v421
    %v1572 = vunpack.c.h.b16 %v421
    %v1573 = vunpack.c.l.b16 %v422
    %v1574 = vunpack.c.h.b16 %v422
    %v1575 = vunpack.c.l.b16 %v423
    %v1576 = vunpack.c.h.b16 %v423
    %v1577 = vunpack.c.l.b16 %v424
    %v1578 = vunpack.c.h.b16 %v424
    %v1579 = vunpack.c.l.b16 %v425
    %v1580 = vunpack.c.h.b16 %v425
    %v1581 = vunpack.c.l.b16 %v426
    %v1582 = vunpack.c.h.b16 %v426
    %v1583 = vunpack.c.l.b16 %v427
    %v1584 = vunpack.c.h.b16 %v427
    %v1585 = vunpack.c.l.b16 %v428
    %v1586 = vunpack.c.h.b16 %v428
    %v1587 = vunpack.c.l.b16 %v429
    %v1588 = vunpack.c.h.b16 %v429
    %v1589 = vunpack.c.l.b16 %v430
    %v1590 = vunpack.c.h.b16 %v430
    %v1591 = vunpack.c.l.b16 %v431
    %v1592 = vunpack.c.h.b16 %v431
    %v1593 = vunpack.c.l.b16 %v432
    %v1594 = vunpack.c.h.b16 %v432
    %v1595 = vunpack.c.l.b16 %v433
    %v1596 = vunpack.c.h.b16 %v433
    %v1597 = vunpack.c.l.b16 %v434
    %v1598 = vunpack.c.h.b16 %v434
    %v1599 = vunpack.c.l.b16 %v435
    %v1600 = vunpack.c.h.b16 %v435
    %v1601 = vunpack.c.l.b16 %v436
    %v1602 = vunpack.c.h.b16 %v436
    %v1603 = vunpack.c.l.b16 %v437
    %v1604 = vunpack.c.h.b16 %v437
    %v1605 = vunpack.c.l.b16 %v438
    %v1606 = vunpack.c.h.b16 %v438
    %v1607 = vunpack.c.l.b16 %v439
    %v1608 = vunpack.c.h.b16 %v439
    %v1609 = vunpack.c.l.b16 %v440
    %v1610 = vunpack.c.h.b16 %v440
    %v1611 = vunpack.c.l.b16 %v441
    %v1612 = vunpack.c.h.b16 %v441
    %v1613 = vunpack.c.l.b16 %v442
    %v1614 = vunpack.c.h.b16 %v442
    %v1615 = vunpack.c.l.b16 %v443
    %v1616 = vunpack.c.h.b16 %v443
    %v1617 = vunpack.c.l.b16 %v444
    %v1618 = vunpack.c.h.b16 %v444
    %v1619 = vunpack.c.l.b16 %v445
    %v1620 = vunpack.c.h.b16 %v445
    %v1621 = vunpack.c.l.b16 %v446
    %v1622 = vunpack.c.h.b16 %v446
    %v1623 = vunpack.c.l.b16 %v447
    %v1624 = vunpack.c.h.b16 %v447
    %v1625 = vunpack.c.l.b16 %v448
    %v1626 = vunpack.c.h.b16 %v448
    %v1627 = vunpack.c.l.b16 %v449
    %v1628 = vunpack.c.h.b16 %v449
    %v1629 = vunpack.c.l.b16 %v450
    %v1630 = vunpack.c.h.b16 %v450
    %v1631 = vunpack.c.l.b16 %v451
    %v1632 = vunpack.c.h.b16 %v451
    %v1633 = vunpack.c.l.b16 %v452
    %v1634 = vunpack.c.h.b16 %v452
    %v1635 = vunpack.c.l.b16 %v453
    %v1636 = vunpack.c.h.b16 %v453
    %v1637 = vunpack.c.l.b16 %v454
    %v1638 = vunpack.c.h.b16 %v454
    %v1639 = vpack.c.b16 %v1075, %v1063
    %v1640 = vpack.c.b16 %v1076, %v1064
    %v1641 = vpack.c.b16 %v1077, %v1065
    %v1642 = vpack.c.b16 %v1078, %v1066
    %v1643 = vpack.c.b16 %v1079, %v1067
    %v1644 = vpack.c.b16 %v1080, %v1068
    %v1645 = vpack.c.b16 %v1081, %v1069
    %v1646 = vpack.c.b16 %v1082, %v1070
    %v1647 = vpack.c.b16 %v1083, %v1071
    %v1648 = vpack.c.b16 %v1084, %v1072
    %v1649 = vpack.c.b16 %v1085, %v1073
    %v1650 = vpack.c.b16 %v1086, %v1074
    %v1651 = vpack.c.b16 %v1099, %v1087
    %v1652 = vpack.c.b16 %v1100, %v1088
    %v1653 = vpack.c.b16 %v1101, %v1089
    %v1654 = vpack.c.b16 %v1102, %v1090
    %v1655 = vpack.c.b16 %v1103, %v1091
    %v1656 = vpack.c.b16 %v1104, %v1092
    %v1657 = vpack.c.b16 %v1105, %v1093
    %v1658 = vpack.c.b16 %v1106, %v1094
    %v1659 = vpack.c.b16 %v1107, %v1095
    %v1660 = vpack.c.b16 %v1108, %v1096
    %v1661 = vpack.c.b16 %v1109, %v1097
    %v1662 = vpack.c.b16 %v1110, %v1098
    %v1663 = vpack.c.b16 %v1123, %v1111
    %v1664 = vpack.c.b16 %v1124, %v1112
    %v1665 = vpack.c.b16 %v1125, %v1113
    %v1666 = vpack.c.b16 %v1126, %v1114
    %v1667 = vpack.c.b16 %v1127, %v1115
    %v1668 = vpack.c.b16 %v1128, %v1116
    %v1669 = vpack.c.b16 %v1129, %v1117
    %v1670 = vpack.c.b16 %v1130, %v1118
    %v1671 = vpack.c.b16 %v1131, %v1119
    %v1672 = vpack.c.b16 %v1132, %v1120
    %v1673 = vpack.c.b16 %v1133, %v1121
    %v1674 = vpack.c.b16 %v1134, %v1122
    %v1675 = vpack.c.b16 %v1147, %v1135
    %v1676 = vpack.c.b16 %v1148, %v1136
    %v1677 = vpack.c.b16 %v1149, %v1137
    %v1678 = vpack.c.b16 %v1150, %v1138
    %v1679 = vpack.c.b16 %v1151, %v1139
    %v1680 = vpack.c.b16 %v1152, %v1140
    %v1681 = vpack.c.b16 %v1153, %v1141
    %v1682 = vpack.c.b16 %v1154, %v1142
    %v1683 = vpack.c.b16 %v1155, %v1143
    %v1684 = vpack.c.b16 %v1156, %v1144
    %v1685 = vpack.c.b16 %v1157, %v1145
    %v1686 = vpack.c.b16 %v1158, %v1146
    %v1687 = vpack.c.b16 %v1171, %v1159
    %v1688 = vpack.c.b16 %v1172, %v1160
    %v1689 = vpack.c.b16 %v1173, %v1161
    %v1690 = vpack.c.b16 %v1174, %v1162
    %v1691 = vpack.c.b16 %v1175, %v1163
    %v1692 = vpack.c.b16 %v1176, %v1164
    %v1693 = vpack.c.b16 %v1177, %v1165
    %v1694 = vpack.c.b16 %v1178, %v1166
    %v1695 = vpack.c.b16 %v1179, %v1167
    %v1696 = vpack.c.b16 %v1180, %v1168
    %v1697 = vpack.c.b16 %v1181, %v1169
    %v1698 = vpack.c.b16 %v1182, %v1170
    %v1699 = vpack.c.b16 %v1195, %v1183
    %v1700 = vpack.c.b16 %v1196, %v1184
    %v1701 = vpack.c.b16 %v1197, %v1185
    %v1702 = vpack.c.b16 %v1198, %v1186
    %v1703 = vpack.c.b16 %v1199, %v1187
    %v1704 = vpack.c.b16 %v1200, %v1188
    %v1705 = vpack.c.b16 %v1201, %v1189
    %v1706 = vpack.c.b16 %v1202, %v1190
    %v1707 = vpack.c.b16 %v1203, %v1191
    %v1708 = vpack.c.b16 %v1204, %v1192
    %v1709 = vpack.c.b16 %v1205, %v1193
    %v1710 = vpack.c.b16 %v1206, %v1194
    %v1711 = vpack.c.b16 %v1219, %v1207
    %v1712 = vpack.c.b16 %v1220, %v1208
    %v1713 = vpack.c.b16 %v1221, %v1209
    %v1714 = vpack.c.b16 %v1222, %v1210
    %v1715 = vpack.c.b16 %v1223, %v1211
    %v1716 = vpack.c.b16 %v1224, %v1212
    %v1717 = vpack.c.b16 %v1225, %v1213
    %v1718 = vpack.c.b16 %v1226, %v1214
    %v1719 = vpack.c.b16 %v1227, %v1215
    %v1720 = vpack.c.b16 %v1228, %v1216
    %v1721 = vpack.c.b16 %v1229, %v1217
    %v1722 = vpack.c.b16 %v1230, %v1218
    %v1723 = vpack.c.b16 %v1243, %v1231
    %v1724 = vpack.c.b16 %v1244, %v1232
    %v1725 = vpack.c.b16 %v1245, %v1233
    %v1726 = vpack.c.b16 %v1246, %v1234
    %v1727 = vpack.c.b16 %v1247, %v1235
    %v1728 = vpack.c.b16 %v1248, %v1236
    %v1729 = vpack.c.b16 %v1249, %v1237
    %v1730 = vpack.c.b16 %v1250, %v1238
    %v1731 = vpack.c.b16 %v1251, %v1239
    %v1732 = vpack.c.b16 %v1252, %v1240
    %v1733 = vpack.c.b16 %v1253, %v1241
    %v1734 = vpack.c.b16 %v1254, %v1242
    %v1735 = vpack.c.b16 %v1267, %v1255
    %v1736 = vpack.c.b16 %v1268, %v1256
    %v1737 = vpack.c.b16 %v1269, %v1257
    %v1738 = vpack.c.b16 %v1270, %v1258
    %v1739 = vpack.c.b16 %v1271, %v1259
    %v1740 = vpack.c.b16 %v1272, %v1260
    %v1741 = vpack.c.b16 %v1273, %v1261
    %v1742 = vpack.c.b16 %v1274, %v1262
    %v1743 = vpack.c.b16 %v1275, %v1263
    %v1744 = vpack.c.b16 %v1276, %v1264
    %v1745 = vpack.c.b16 %v1277, %v1265
    %v1746 = vpack.c.b16 %v1278, %v1266
    %v1747 = vpack.c.b16 %v1291, %v1279
    %v1748 = vpack.c.b16 %v1292, %v1280
    %v1749 = vpack.c.b16 %v1293, %v1281
    %v1750 = vpack.c.b16 %v1294, %v1282
    %v1751 = vpack.c.b16 %v1295, %v1283
    %v1752 = vpack.c.b16 %v1296, %v1284
    %v1753 = vpack.c.b16 %v1297, %v1285
    %v1754 = vpack.c.b16 %v1298, %v1286
    %v1755 = vpack.c.b16 %v1299, %v1287
    %v1756 = vpack.c.b16 %v1300, %v1288
    %v1757 = vpack.c.b16 %v1301, %v1289
    %v1758 = vpack.c.b16 %v1302, %v1290
    %v1759 = vpack.c.b16 %v1315, %v1303
    %v1760 = vpack.c.b16 %v1316, %v1304
    %v1761 = vpack.c.b16 %v1317, %v1305
    %v1762 = vpack.c.b16 %v1318, %v1306
    %v1763 = vpack.c.b16 %v1319, %v1307
    %v1764 = vpack.c.b16 %v1320, %v1308
    %v1765 = vpack.c.b16 %v1321, %v1309
    %v1766 = vpack.c.b16 %v1322, %v1310
    %v1767 = vpack.c.b16 %v1323, %v1311
    %v1768 = vpack.c.b16 %v1324, %v1312
    %v1769 = vpack.c.b16 %v1325, %v1313
    %v1770 = vpack.c.b16 %v1326, %v1314
    %v1771 = vpack.c.b16 %v1339, %v1327
    %v1772 = vpack.c.b16 %v1340, %v1328
    %v1773 = vpack.c.b16 %v1341, %v1329
    %v1774 = vpack.c.b16 %v1342, %v1330
    %v1775 = vpack.c.b16 %v1343, %v1331
    %v1776 = vpack.c.b16 %v1344, %v1332
    %v1777 = vpack.c.b16 %v1345, %v1333
    %v1778 = vpack.c.b16 %v1346, %v1334
    %v1779 = vpack.c.b16 %v1347, %v1335
    %v1780 = vpack.c.b16 %v1348, %v1336
    %v1781 = vpack.c.b16 %v1349, %v1337
    %v1782 = vpack.c.b16 %v1350, %v1338
    %v1783 = vpack.c.b16 %v1363, %v1351
    %v1784 = vpack.c.b16 %v1364, %v1352
    %v1785 = vpack.c.b16 %v1365, %v1353
    %v1786 = vpack.c.b16 %v1366, %v1354
    %v1787 = vpack.c.b16 %v1367, %v1355
    %v1788 = vpack.c.b16 %v1368, %v1356
    %v1789 = vpack.c.b16 %v1369, %v1357
    %v1790 = vpack.c.b16 %v1370, %v1358
    %v1791 = vpack.c.b16 %v1371, %v1359
    %v1792 = vpack.c.b16 %v1372, %v1360
    %v1793 = vpack.c.b16 %v1373, %v1361
    %v1794 = vpack.c.b16 %v1374, %v1362
    %v1795 = vpack.c.b16 %v1387, %v1375
    %v1796 = vpack.c.b16 %v1388, %v1376
    %v1797 = vpack.c.b16 %v1389, %v1377
    %v1798 = vpack.c.b16 %v1390, %v1378
    %v1799 = vpack.c.b16 %v1391, %v1379
    %v1800 = vpack.c.b16 %v1392, %v1380
    %v1801 = vpack.c.b16 %v1393, %v1381
    %v1802 = vpack.c.b16 %v1394, %v1382
    %v1803 = vpack.c.b16 %v1395, %v1383
    %v1804 = vpack.c.b16 %v1396, %v1384
    %v1805 = vpack.c.b16 %v1397, %v1385
    %v1806 = vpack.c.b16 %v1398, %v1386
    %v1807 = vpack.c.b16 %v1411, %v1399
    %v1808 = vpack.c.b16 %v1412, %v1400
    %v1809 = vpack.c.b16 %v1413, %v1401
    %v1810 = vpack.c.b16 %v1414, %v1402
    %v1811 = vpack.c.b16 %v1415, %v1403
    %v1812 = vpack.c.b16 %v1416, %v1404
    %v1813 = vpack.c.b16 %v1417, %v1405
    %v1814 = vpack.c.b16 %v1418, %v1406
    %v1815 = vpack.c.b16 %v1419, %v1407
    %v1816 = vpack.c.b16 %v1420, %v1408
    %v1817 = vpack.c.b16 %v1421, %v1409
    %v1818 = vpack.c.b16 %v1422, %v1410
    %v1819 = vpack.c.b16 %v1435, %v1423
    %v1820 = vpack.c.b16 %v1436, %v1424
    %v1821 = vpack.c.b16 %v1437, %v1425
    %v1822 = vpack.c.b16 %v1438, %v1426
    %v1823 = vpack.c.b16 %v1439, %v1427
    %v1824 = vpack.c.b16 %v1440, %v1428
    %v1825 = vpack.c.b16 %v1441, %v1429
    %v1826 = vpack.c.b16 %v1442, %v1430
    %v1827 = vpack.c.b16 %v1443, %v1431
    %v1828 = vpack.c.b16 %v1444, %v1432
    %v1829 = vpack.c.b16 %v1445, %v1433
    %v1830 = vpack.c.b16 %v1446, %v1434
    %v1831 = vpack.c.b16 %v1459, %v1447
    %v1832 = vpack.c.b16 %v1460, %v1448
    %v1833 = vpack.c.b16 %v1461, %v1449
    %v1834 = vpack.c.b16 %v1462, %v1450
    %v1835 = vpack.c.b16 %v1463, %v1451
    %v1836 = vpack.c.b16 %v1464, %v1452
    %v1837 = vpack.c.b16 %v1465, %v1453
    %v1838 = vpack.c.b16 %v1466, %v1454
    %v1839 = vpack.c.b16 %v1467, %v1455
    %v1840 = vpack.c.b16 %v1468, %v1456
    %v1841 = vpack.c.b16 %v1469, %v1457
    %v1842 = vpack.c.b16 %v1470, %v1458
    %v1843 = vpack.c.b16 %v1483, %v1471
    %v1844 = vpack.c.b16 %v1484, %v1472
    %v1845 = vpack.c.b16 %v1485, %v1473
    %v1846 = vpack.c.b16 %v1486, %v1474
    %v1847 = vpack.c.b16 %v1487, %v1475
    %v1848 = vpack.c.b16 %v1488, %v1476
    %v1849 = vpack.c.b16 %v1489, %v1477
    %v1850 = vpack.c.b16 %v1490, %v1478
    %v1851 = vpack.c.b16 %v1491, %v1479
    %v1852 = vpack.c.b16 %v1492, %v1480
    %v1853 = vpack.c.b16 %v1493, %v1481
    %v1854 = vpack.c.b16 %v1494, %v1482
    %v1855 = vpack.c.b16 %v1507, %v1495
    %v1856 = vpack.c.b16 %v1508, %v1496
    %v1857 = vpack.c.b16 %v1509, %v1497
    %v1858 = vpack.c.b16 %v1510, %v1498
    %v1859 = vpack.c.b16 %v1511, %v1499
    %v1860 = vpack.c.b16 %v1512, %v1500
    %v1861 = vpack.c.b16 %v1513, %v1501
    %v1862 = vpack.c.b16 %v1514, %v1502
    %v1863 = vpack.c.b16 %v1515, %v1503
    %v1864 = vpack.c.b16 %v1516, %v1504
    %v1865 = vpack.c.b16 %v1517, %v1505
    %v1866 = vpack.c.b16 %v1518, %v1506
    %v1867 = vpack.c.b16 %v1531, %v1519
    %v1868 = vpack.c.b16 %v1532, %v1520
    %v1869 = vpack.c.b16 %v1533, %v1521
    %v1870 = vpack.c.b16 %v1534, %v1522
    %v1871 = vpack.c.b16 %v1535, %v1523
    %v1872 = vpack.c.b16 %v1536, %v1524
    %v1873 = vpack.c.b16 %v1537, %v1525
    %v1874 = vpack.c.b16 %v1538, %v1526
    %v1875 = vpack.c.b16 %v1539, %v1527
    %v1876 = vpack.c.b16 %v1540, %v1528
    %v1877 = vpack.c.b16 %v1541, %v1529
    %v1878 = vpack.c.b16 %v1542, %v1530
    %v1879 = vpack.c.b16 %v1555, %v1543
    %v1880 = vpack.c.b16 %v1556, %v1544
    %v1881 = vpack.c.b16 %v1557, %v1545
    %v1882 = vpack.c.b16 %v1558, %v1546
    %v1883 = vpack.c.b16 %v1559, %v1547
    %v1884 = vpack.c.b16 %v1560, %v1548
    %v1885 = vpack.c.b16 %v1561, %v1549
    %v1886 = vpack.c.b16 %v1562, %v1550
    %v1887 = vpack.c.b16 %v1563, %v1551
    %v1888 = vpack.c.b16 %v1564, %v1552
    %v1889 = vpack.c.b16 %v1565, %v1553
    %v1890 = vpack.c.b16 %v1566, %v1554
    %v1891 = vpack.c.b16 %v1579, %v1567
    %v1892 = vpack.c.b16 %v1580, %v1568
    %v1893 = vpack.c.b16 %v1581, %v1569
    %v1894 = vpack.c.b16 %v1582, %v1570
    %v1895 = vpack.c.b16 %v1583, %v1571
    %v1896 = vpack.c.b16 %v1584, %v1572
    %v1897 = vpack.c.b16 %v1585, %v1573
    %v1898 = vpack.c.b16 %v1586, %v1574
    %v1899 = vpack.c.b16 %v1587, %v1575
    %v1900 = vpack.c.b16 %v1588, %v1576
    %v1901 = vpack.c.b16 %v1589, %v1577
    %v1902 = vpack.c.b16 %v1590, %v1578
    %v1903 = vpack.c.b16 %v1603, %v1591
    %v1904 = vpack.c.b16 %v1604, %v1592
    %v1905 = vpack.c.b16 %v1605, %v1593
    %v1906 = vpack.c.b16 %v1606, %v1594
    %v1907 = vpack.c.b16 %v1607, %v1595
    %v1908 = vpack.c.b16 %v1608, %v1596
    %v1909 = vpack.c.b16 %v1609, %v1597
    %v1910 = vpack.c.b16 %v1610, %v1598
    %v1911 = vpack.c.b16 %v1611, %v1599
    %v1912 = vpack.c.b16 %v1612, %v1600
    %v1913 = vpack.c.b16 %v1613, %v1601
    %v1914 = vpack.c.b16 %v1614, %v1602
    %v1915 = vpack.c.b16 %v1627, %v1615
    %v1916 = vpack.c.b16 %v1628, %v1616
    %v1917 = vpack.c.b16 %v1629, %v1617
    %v1918 = vpack.c.b16 %v1630, %v1618
    %v1919 = vpack.c.b16 %v1631, %v1619
    %v1920 = vpack.c.b16 %v1632, %v1620
    %v1921 = vpack.c.b16 %v1633, %v1621
    %v1922 = vpack.c.b16 %v1634, %v1622
    %v1923 = vpack.c.b16 %v1635, %v1623
    %v1924 = vpack.c.b16 %v1636, %v1624
    %v1925 = vpack.c.b16 %v1637, %v1625
    %v1926 = vpack.c.b16 %v1638, %v1626
    %2215 = vmatprep.subr.bf16.mxu0 %v1640
    %2216 = vmatpush1.bf16.msra.mxu0 %v1639
    %2217 = vmatprep.subr.bf16.mxu0 %v1652
    %2218 = vmatpush1.bf16.msra.mxu0 %v1651
    %2219 = vmatprep.subr.bf16.mxu0 %v1664
    %2220 = vmatpush1.bf16.msra.mxu0 %v1663
    %2221 = vmatprep.subr.bf16.mxu0 %v1676
    %2222 = vmatpush1.bf16.msra.mxu0 %v1675
    %2223 = vmatprep.subr.bf16.mxu0 %v1688
    %2224 = vmatpush1.bf16.msra.mxu0 %v1687
    %2225 = vmatprep.subr.bf16.mxu0 %v1700
    %2226 = vmatpush1.bf16.msra.mxu0 %v1699
    %2227 = vmatprep.subr.bf16.mxu0 %v1712
    %2228 = vmatpush1.bf16.msra.mxu0 %v1711
    %2229 = vmatprep.subr.bf16.mxu0 %v1724
    %2230 = vmatpush1.bf16.msra.mxu0 %v1723
    %2231 = vmatprep.subr.bf16.mxu0 %v1736
    %2232 = vmatpush1.bf16.msra.mxu0 %v1735
    %2233 = vmatprep.subr.bf16.mxu0 %v1748
    %2234 = vmatpush1.bf16.msra.mxu0 %v1747
    %2235 = vmatprep.subr.bf16.mxu0 %v1760
    %2236 = vmatpush1.bf16.msra.mxu0 %v1759
    %2237 = vmatprep.subr.bf16.mxu0 %v1772
    %2238 = vmatpush1.bf16.msra.mxu0 %v1771
    %2239 = vmatprep.subr.bf16.mxu0 %v1784
    %2240 = vmatpush1.bf16.msra.mxu0 %v1783
    %2241 = vmatprep.subr.bf16.mxu0 %v1796
    %2242 = vmatpush1.bf16.msra.mxu0 %v1795
    %2243 = vmatprep.subr.bf16.mxu0 %v1808
    %2244 = vmatpush1.bf16.msra.mxu0 %v1807
    %2245 = vmatprep.subr.bf16.mxu0 %v1820
    %2246 = vmatpush1.bf16.msra.mxu0 %v1819
    %2247 = vmatprep.mubr.bf16.mxu0 %v680
    %2248 = vmatmul.mubr.bf16.gmra.mrb[0].mxu0 %v679
    %v2249 = vpop.f32.mrb[0].mxu0
    %v2250 = vadd.f32 %v462, %v2249
    %v2251 = vpop.f32.mrb[0].mxu0
    %v2252 = vadd.f32 %v466, %v2251
    %v2253 = vpop.f32.mrb[0].mxu0
    %v2254 = vadd.f32 %v462, %v2253
    %v2255 = vpop.f32.mrb[0].mxu0
    %v2256 = vadd.f32 %v466, %v2255
    %2257 = vmatprep.mubr.bf16.mxu0 %v683
    %2258 = vmatmul.mubr.bf16.gmra.mrb[0].mxu0 %v682
    %v2259 = vpop.f32.mrb[0].mxu0
    %v2260 = vadd.f32 %v462, %v2259
    %v2261 = vpop.f32.mrb[0].mxu0
    %v2262 = vadd.f32 %v466, %v2261
    %v2263 = vpop.f32.mrb[0].mxu0
    %v2264 = vadd.f32 %v462, %v2263
    %v2265 = vpop.f32.mrb[0].mxu0
    %v2266 = vadd.f32 %v466, %v2265
    %2267 = vmatprep.mubr.bf16.mxu0 %v686
    %2268 = vmatmul.mubr.bf16.gmra.mrb[0].mxu0 %v685
    %v2269 = vpop.f32.mrb[0].mxu0
    %v2270 = vadd.f32 %v462, %v2269
    %v2271 = vpop.f32.mrb[0].mxu0
    %v2272 = vadd.f32 %v466, %v2271
    %v2273 = vpop.f32.mrb[0].mxu0
    %v2274 = vadd.f32 %v462, %v2273
    %v2275 = vpop.f32.mrb[0].mxu0
    %v2276 = vadd.f32 %v466, %v2275
    %2277 = vmatprep.mubr.bf16.mxu0 %v689
    %2278 = vmatmul.mubr.bf16.gmra.mrb[0].mxu0 %v688
    %v2279 = vpop.f32.mrb[0].mxu0
    %v2280 = vadd.f32 %v462, %v2279
    %v2281 = vpop.f32.mrb[0].mxu0
    %v2282 = vadd.f32 %v466, %v2281
    %v2283 = vpop.f32.mrb[0].mxu0
    %v2284 = vadd.f32 %v462, %v2283
    %v2285 = vpop.f32.mrb[0].mxu0
    %v2286 = vadd.f32 %v466, %v2285
    %2287 = vmatprep.mubr.bf16.mxu0 %v692
    %2288 = vmatmul.mubr.bf16.gmra.mrb[0].mxu0 %v691
    %v2289 = vpop.f32.mrb[0].mxu0
    %v2290 = vadd.f32 %v462, %v2289
    %v2291 = vpop.f32.mrb[0].mxu0
    %v2292 = vadd.f32 %v466, %v2291
    %v2293 = vpop.f32.mrb[0].mxu0
    %v2294 = vadd.f32 %v462, %v2293
    %v2295 = vpop.f32.mrb[0].mxu0
    %v2296 = vadd.f32 %v466, %v2295
    %2297 = vmatprep.mubr.bf16.mxu0 %v695
    %2298 = vmatmul.mubr.bf16.gmra.mrb[0].mxu0 %v694
    %v2299 = vpop.f32.mrb[0].mxu0
    %v2300 = vadd.f32 %v462, %v2299
    %v2301 = vpop.f32.mrb[0].mxu0
    %v2302 = vadd.f32 %v466, %v2301
    %v2303 = vpop.f32.mrb[0].mxu0
    %v2304 = vadd.f32 %v462, %v2303
    %v2305 = vpop.f32.mrb[0].mxu0
    %v2306 = vadd.f32 %v466, %v2305
    %2307 = vmatprep.mubr.bf16.mxu0 %v698
    %2308 = vmatmul.mubr.bf16.gmra.mrb[0].mxu0 %v697
    %v2309 = vpop.f32.mrb[0].mxu0
    %v2310 = vadd.f32 %v462, %v2309
    %v2311 = vpop.f32.mrb[0].mxu0
    %v2312 = vadd.f32 %v466, %v2311
    %v2313 = vpop.f32.mrb[0].mxu0
    %v2314 = vadd.f32 %v462, %v2313
    %v2315 = vpop.f32.mrb[0].mxu0
    %v2316 = vadd.f32 %v466, %v2315
    %2317 = vmatprep.mubr.bf16.mxu0 %v701
    %2318 = vmatmul.mubr.bf16.gmra.mrb[0].mxu0 %v700
    %v2319 = vpop.f32.mrb[0].mxu0
    %v2320 = vadd.f32 %v462, %v2319
    %v2321 = vpop.f32.mrb[0].mxu0
    %v2322 = vadd.f32 %v466, %v2321
    %v2323 = vpop.f32.mrb[0].mxu0
    %v2324 = vadd.f32 %v462, %v2323
    %v2325 = vpop.f32.mrb[0].mxu0
    %v2326 = vadd.f32 %v466, %v2325
    %2327 = vmatprep.mubr.bf16.mxu0 %v704
    %2328 = vmatmul.mubr.bf16.gmra.mrb[0].mxu0 %v703
    %v2329 = vpop.f32.mrb[0].mxu0
    %v2330 = vadd.f32 %v462, %v2329
    %v2331 = vpop.f32.mrb[0].mxu0
    %v2332 = vadd.f32 %v466, %v2331
    %v2333 = vpop.f32.mrb[0].mxu0
    %v2334 = vadd.f32 %v462, %v2333
    %v2335 = vpop.f32.mrb[0].mxu0
    %v2336 = vadd.f32 %v466, %v2335
    %2337 = vmatprep.mubr.bf16.mxu0 %v707
    %2338 = vmatmul.mubr.bf16.gmra.mrb[0].mxu0 %v706
    %v2339 = vpop.f32.mrb[0].mxu0
    %v2340 = vadd.f32 %v462, %v2339
    %v2341 = vpop.f32.mrb[0].mxu0
    %v2342 = vadd.f32 %v466, %v2341
    %v2343 = vpop.f32.mrb[0].mxu0
    %v2344 = vadd.f32 %v462, %v2343
    %v2345 = vpop.f32.mrb[0].mxu0
    %v2346 = vadd.f32 %v466, %v2345
    %2347 = vmatprep.mubr.bf16.mxu0 %v710
    %2348 = vmatmul.mubr.bf16.gmra.mrb[0].mxu0 %v709
    %v2349 = vpop.f32.mrb[0].mxu0
    %v2350 = vadd.f32 %v462, %v2349
    %v2351 = vpop.f32.mrb[0].mxu0
    %v2352 = vadd.f32 %v466, %v2351
    %v2353 = vpop.f32.mrb[0].mxu0
    %v2354 = vadd.f32 %v462, %v2353
    %v2355 = vpop.f32.mrb[0].mxu0
    %v2356 = vadd.f32 %v466, %v2355
    %2357 = vmatprep.mubr.bf16.mxu0 %v713
    %2358 = vmatmul.mubr.bf16.gmra.mrb[0].mxu0 %v712
    %v2359 = vpop.f32.mrb[0].mxu0
    %v2360 = vadd.f32 %v462, %v2359
    %v2361 = vpop.f32.mrb[0].mxu0
    %v2362 = vadd.f32 %v466, %v2361
    %v2363 = vpop.f32.mrb[0].mxu0
    %v2364 = vadd.f32 %v462, %v2363
    %v2365 = vpop.f32.mrb[0].mxu0
    %v2366 = vadd.f32 %v466, %v2365
    %2367 = vmatprep.mubr.bf16.mxu0 %v716
    %2368 = vmatmul.mubr.bf16.gmra.mrb[0].mxu0 %v715
    %v2369 = vpop.f32.mrb[0].mxu0
    %v2370 = vadd.f32 %v462, %v2369
    %v2371 = vpop.f32.mrb[0].mxu0
    %v2372 = vadd.f32 %v466, %v2371
    %v2373 = vpop.f32.mrb[0].mxu0
    %v2374 = vadd.f32 %v462, %v2373
    %v2375 = vpop.f32.mrb[0].mxu0
    %v2376 = vadd.f32 %v466, %v2375
    %2377 = vmatprep.mubr.bf16.mxu0 %v719
    %2378 = vmatmul.mubr.bf16.gmra.mrb[0].mxu0 %v718
    %v2379 = vpop.f32.mrb[0].mxu0
    %v2380 = vadd.f32 %v462, %v2379
    %v2381 = vpop.f32.mrb[0].mxu0
    %v2382 = vadd.f32 %v466, %v2381
    %v2383 = vpop.f32.mrb[0].mxu0
    %v2384 = vadd.f32 %v462, %v2383
    %v2385 = vpop.f32.mrb[0].mxu0
    %v2386 = vadd.f32 %v466, %v2385
    %2387 = vmatprep.mubr.bf16.mxu0 %v722
    %2388 = vmatmul.mubr.bf16.gmra.mrb[0].mxu0 %v721
    %v2389 = vpop.f32.mrb[0].mxu0
    %v2390 = vadd.f32 %v462, %v2389
    %v2391 = vpop.f32.mrb[0].mxu0
    %v2392 = vadd.f32 %v466, %v2391
    %v2393 = vpop.f32.mrb[0].mxu0
    %v2394 = vadd.f32 %v462, %v2393
    %v2395 = vpop.f32.mrb[0].mxu0
    %v2396 = vadd.f32 %v466, %v2395
    %2397 = vmatprep.mubr.bf16.mxu0 %v725
    %2398 = vmatmul.mubr.bf16.gmra.mrb[0].mxu0 %v724
    %v2399 = vpop.f32.mrb[0].mxu0
    %v2400 = vadd.f32 %v462, %v2399
    %v2401 = vpop.f32.mrb[0].mxu0
    %v2402 = vadd.f32 %v466, %v2401
    %v2403 = vpop.f32.mrb[0].mxu0
    %v2404 = vadd.f32 %v462, %v2403
    %v2405 = vpop.f32.mrb[0].mxu0
    %v2406 = vadd.f32 %v466, %v2405
    %2407 = vdwg.mxu0
    %2408 = vmatprep.subr.bf16.mxu0 %v1832
    %2409 = vmatpush1.bf16.msra.mxu0 %v1831
    %2410 = vmatprep.subr.bf16.mxu0 %v1844
    %2411 = vmatpush1.bf16.msra.mxu0 %v1843
    %2412 = vmatprep.subr.bf16.mxu0 %v1856
    %2413 = vmatpush1.bf16.msra.mxu0 %v1855
    %2414 = vmatprep.subr.bf16.mxu0 %v1868
    %2415 = vmatpush1.bf16.msra.mxu0 %v1867
    %2416 = vmatprep.subr.bf16.mxu0 %v1880
    %2417 = vmatpush1.bf16.msra.mxu0 %v1879
    %2418 = vmatprep.subr.bf16.mxu0 %v1892
    %2419 = vmatpush1.bf16.msra.mxu0 %v1891
    %2420 = vmatprep.subr.bf16.mxu0 %v1904
    %2421 = vmatpush1.bf16.msra.mxu0 %v1903
    %2422 = vmatprep.subr.bf16.mxu0 %v1916
    %2423 = vmatpush1.bf16.msra.mxu0 %v1915
    %2424 = vmatprep.subr.bf16.mxu0 0
    %2425 = vmatpush1.bf16.msra.mxu0 0
    %2426 = vmatprep.subr.bf16.mxu0 0
    %2427 = vmatpush1.bf16.msra.mxu0 0
    %2428 = vmatprep.subr.bf16.mxu0 0
    %2429 = vmatpush1.bf16.msra.mxu0 0
    %2430 = vmatprep.subr.bf16.mxu0 0
    %2431 = vmatpush1.bf16.msra.mxu0 0
    %2432 = vmatprep.subr.bf16.mxu0 0
    %2433 = vmatpush1.bf16.msra.mxu0 0
    %2434 = vmatprep.subr.bf16.mxu0 0
    %2435 = vmatpush1.bf16.msra.mxu0 0
    %2436 = vmatprep.subr.bf16.mxu0 0
    %2437 = vmatpush1.bf16.msra.mxu0 0
    %2438 = vmatprep.subr.bf16.mxu0 0
    %2439 = vmatpush1.bf16.msra.mxu0 0
    %2440 = vmatprep.mubr.bf16.mxu0 0
    %2441 = vmatmul.mubr.bf16.gmra.mrb[0].mxu0 %v681
    %v2442 = vpop.f32.mrb[0].mxu0
    %v2443 = vadd.f32 %v2250, %v2442
    %v2444 = vpop.f32.mrb[0].mxu0
    %v2445 = vadd.f32 %v2252, %v2444
    %v2446 = vpop.f32.mrb[0].mxu0
    %v2447 = vadd.f32 %v2254, %v2446
    %v2448 = vpop.f32.mrb[0].mxu0
    %v2449 = vadd.f32 %v2256, %v2448
    %2450 = vmatprep.mubr.bf16.mxu0 0
    %2451 = vmatmul.mubr.bf16.gmra.mrb[0].mxu0 %v684
    %v2452 = vpop.f32.mrb[0].mxu0
    %v2453 = vadd.f32 %v2260, %v2452
    %v2454 = vpop.f32.mrb[0].mxu0
    %v2455 = vadd.f32 %v2262, %v2454
    %v2456 = vpop.f32.mrb[0].mxu0
    %v2457 = vadd.f32 %v2264, %v2456
    %v2458 = vpop.f32.mrb[0].mxu0
    %v2459 = vadd.f32 %v2266, %v2458
    %2460 = vmatprep.mubr.bf16.mxu0 0
    %2461 = vmatmul.mubr.bf16.gmra.mrb[0].mxu0 %v687
    %v2462 = vpop.f32.mrb[0].mxu0
    %v2463 = vadd.f32 %v2270, %v2462
    %v2464 = vpop.f32.mrb[0].mxu0
    %v2465 = vadd.f32 %v2272, %v2464
    %v2466 = vpop.f32.mrb[0].mxu0
    %v2467 = vadd.f32 %v2274, %v2466
    %v2468 = vpop.f32.mrb[0].mxu0
    %v2469 = vadd.f32 %v2276, %v2468
    %2470 = vmatprep.mubr.bf16.mxu0 0
    %2471 = vmatmul.mubr.bf16.gmra.mrb[0].mxu0 %v690
    %v2472 = vpop.f32.mrb[0].mxu0
    %v2473 = vadd.f32 %v2280, %v2472
    %v2474 = vpop.f32.mrb[0].mxu0
    %v2475 = vadd.f32 %v2282, %v2474
    %v2476 = vpop.f32.mrb[0].mxu0
    %v2477 = vadd.f32 %v2284, %v2476
    %v2478 = vpop.f32.mrb[0].mxu0
    %v2479 = vadd.f32 %v2286, %v2478
    %2480 = vmatprep.mubr.bf16.mxu0 0
    %2481 = vmatmul.mubr.bf16.gmra.mrb[0].mxu0 %v693
    %v2482 = vpop.f32.mrb[0].mxu0
    %v2483 = vadd.f32 %v2290, %v2482
    %v2484 = vpop.f32.mrb[0].mxu0
    %v2485 = vadd.f32 %v2292, %v2484
    %v2486 = vpop.f32.mrb[0].mxu0
    %v2487 = vadd.f32 %v2294, %v2486
    %v2488 = vpop.f32.mrb[0].mxu0
    %v2489 = vadd.f32 %v2296, %v2488
    %2490 = vmatprep.mubr.bf16.mxu0 0
    %2491 = vmatmul.mubr.bf16.gmra.mrb[0].mxu0 %v696
    %v2492 = vpop.f32.mrb[0].mxu0
    %v2493 = vadd.f32 %v2300, %v2492
    %v2494 = vpop.f32.mrb[0].mxu0
    %v2495 = vadd.f32 %v2302, %v2494
    %v2496 = vpop.f32.mrb[0].mxu0
    %v2497 = vadd.f32 %v2304, %v2496
    %v2498 = vpop.f32.mrb[0].mxu0
    %v2499 = vadd.f32 %v2306, %v2498
    %2500 = vmatprep.mubr.bf16.mxu0 0
    %2501 = vmatmul.mubr.bf16.gmra.mrb[0].mxu0 %v699
    %v2502 = vpop.f32.mrb[0].mxu0
    %v2503 = vadd.f32 %v2310, %v2502
    %v2504 = vpop.f32.mrb[0].mxu0
    %v2505 = vadd.f32 %v2312, %v2504
    %v2506 = vpop.f32.mrb[0].mxu0
    %v2507 = vadd.f32 %v2314, %v2506
    %v2508 = vpop.f32.mrb[0].mxu0
    %v2509 = vadd.f32 %v2316, %v2508
    %2510 = vmatprep.mubr.bf16.mxu0 0
    %2511 = vmatmul.mubr.bf16.gmra.mrb[0].mxu0 %v702
    %v2512 = vpop.f32.mrb[0].mxu0
    %v2513 = vadd.f32 %v2320, %v2512
    %v2514 = vpop.f32.mrb[0].mxu0
    %v2515 = vadd.f32 %v2322, %v2514
    %v2516 = vpop.f32.mrb[0].mxu0
    %v2517 = vadd.f32 %v2324, %v2516
    %v2518 = vpop.f32.mrb[0].mxu0
    %v2519 = vadd.f32 %v2326, %v2518
    %2520 = vmatprep.mubr.bf16.mxu0 0
    %2521 = vmatmul.mubr.bf16.gmra.mrb[0].mxu0 %v705
    %v2522 = vpop.f32.mrb[0].mxu0
    %v2523 = vadd.f32 %v2330, %v2522
    %v2524 = vpop.f32.mrb[0].mxu0
    %v2525 = vadd.f32 %v2332, %v2524
    %v2526 = vpop.f32.mrb[0].mxu0
    %v2527 = vadd.f32 %v2334, %v2526
    %v2528 = vpop.f32.mrb[0].mxu0
    %v2529 = vadd.f32 %v2336, %v2528
    %2530 = vmatprep.mubr.bf16.mxu0 0
    %2531 = vmatmul.mubr.bf16.gmra.mrb[0].mxu0 %v708
    %v2532 = vpop.f32.mrb[0].mxu0
    %v2533 = vadd.f32 %v2340, %v2532
    %v2534 = vpop.f32.mrb[0].mxu0
    %v2535 = vadd.f32 %v2342, %v2534
    %v2536 = vpop.f32.mrb[0].mxu0
    %v2537 = vadd.f32 %v2344, %v2536
    %v2538 = vpop.f32.mrb[0].mxu0
    %v2539 = vadd.f32 %v2346, %v2538
    %2540 = vmatprep.mubr.bf16.mxu0 0
    %2541 = vmatmul.mubr.bf16.gmra.mrb[0].mxu0 %v711
    %v2542 = vpop.f32.mrb[0].mxu0
    %v2543 = vadd.f32 %v2350, %v2542
    %v2544 = vpop.f32.mrb[0].mxu0
    %v2545 = vadd.f32 %v2352, %v2544
    %v2546 = vpop.f32.mrb[0].mxu0
    %v2547 = vadd.f32 %v2354, %v2546
    %v2548 = vpop.f32.mrb[0].mxu0
    %v2549 = vadd.f32 %v2356, %v2548
    %2550 = vmatprep.mubr.bf16.mxu0 0
    %2551 = vmatmul.mubr.bf16.gmra.mrb[0].mxu0 %v714
    %v2552 = vpop.f32.mrb[0].mxu0
    %v2553 = vadd.f32 %v2360, %v2552
    %v2554 = vpop.f32.mrb[0].mxu0
    %v2555 = vadd.f32 %v2362, %v2554
    %v2556 = vpop.f32.mrb[0].mxu0
    %v2557 = vadd.f32 %v2364, %v2556
    %v2558 = vpop.f32.mrb[0].mxu0
    %v2559 = vadd.f32 %v2366, %v2558
    %2560 = vmatprep.mubr.bf16.mxu0 0
    %2561 = vmatmul.mubr.bf16.gmra.mrb[0].mxu0 %v717
    %v2562 = vpop.f32.mrb[0].mxu0
    %v2563 = vadd.f32 %v2370, %v2562
    %v2564 = vpop.f32.mrb[0].mxu0
    %v2565 = vadd.f32 %v2372, %v2564
    %v2566 = vpop.f32.mrb[0].mxu0
    %v2567 = vadd.f32 %v2374, %v2566
    %v2568 = vpop.f32.mrb[0].mxu0
    %v2569 = vadd.f32 %v2376, %v2568
    %2570 = vmatprep.mubr.bf16.mxu0 0
    %2571 = vmatmul.mubr.bf16.gmra.mrb[0].mxu0 %v720
    %v2572 = vpop.f32.mrb[0].mxu0
    %v2573 = vadd.f32 %v2380, %v2572
    %v2574 = vpop.f32.mrb[0].mxu0
    %v2575 = vadd.f32 %v2382, %v2574
    %v2576 = vpop.f32.mrb[0].mxu0
    %v2577 = vadd.f32 %v2384, %v2576
    %v2578 = vpop.f32.mrb[0].mxu0
    %v2579 = vadd.f32 %v2386, %v2578
    %2580 = vmatprep.mubr.bf16.mxu0 0
    %2581 = vmatmul.mubr.bf16.gmra.mrb[0].mxu0 %v723
    %v2582 = vpop.f32.mrb[0].mxu0
    %v2583 = vadd.f32 %v2390, %v2582
    %v2584 = vpop.f32.mrb[0].mxu0
    %v2585 = vadd.f32 %v2392, %v2584
    %v2586 = vpop.f32.mrb[0].mxu0
    %v2587 = vadd.f32 %v2394, %v2586
    %v2588 = vpop.f32.mrb[0].mxu0
    %v2589 = vadd.f32 %v2396, %v2588
    %2590 = vmatprep.mubr.bf16.mxu0 0
    %2591 = vmatmul.mubr.bf16.gmra.mrb[0].mxu0 %v726
    %v2592 = vpop.f32.mrb[0].mxu0
    %v2593 = vadd.f32 %v2400, %v2592
    %v2594 = vpop.f32.mrb[0].mxu0
    %v2595 = vadd.f32 %v2402, %v2594
    %v2596 = vpop.f32.mrb[0].mxu0
    %v2597 = vadd.f32 %v2404, %v2596
    %v2598 = vpop.f32.mrb[0].mxu0
    %v2599 = vadd.f32 %v2406, %v2598
    %2600 = vdwg.mxu0
    %2601 = vmatprep.subr.bf16.mxu0 %v1642
    %2602 = vmatpush1.bf16.msra.mxu0 %v1641
    %2603 = vmatprep.subr.bf16.mxu0 %v1654
    %2604 = vmatpush1.bf16.msra.mxu0 %v1653
    %2605 = vmatprep.subr.bf16.mxu0 %v1666
    %2606 = vmatpush1.bf16.msra.mxu0 %v1665
    %2607 = vmatprep.subr.bf16.mxu0 %v1678
    %2608 = vmatpush1.bf16.msra.mxu0 %v1677
    %2609 = vmatprep.subr.bf16.mxu0 %v1690
    %2610 = vmatpush1.bf16.msra.mxu0 %v1689
    %2611 = vmatprep.subr.bf16.mxu0 %v1702
    %2612 = vmatpush1.bf16.msra.mxu0 %v1701
    %2613 = vmatprep.subr.bf16.mxu0 %v1714
    %2614 = vmatpush1.bf16.msra.mxu0 %v1713
    %2615 = vmatprep.subr.bf16.mxu0 %v1726
    %2616 = vmatpush1.bf16.msra.mxu0 %v1725
    %2617 = vmatprep.subr.bf16.mxu0 %v1738
    %2618 = vmatpush1.bf16.msra.mxu0 %v1737
    %2619 = vmatprep.subr.bf16.mxu0 %v1750
    %2620 = vmatpush1.bf16.msra.mxu0 %v1749
    %2621 = vmatprep.subr.bf16.mxu0 %v1762
    %2622 = vmatpush1.bf16.msra.mxu0 %v1761
    %2623 = vmatprep.subr.bf16.mxu0 %v1774
    %2624 = vmatpush1.bf16.msra.mxu0 %v1773
    %2625 = vmatprep.subr.bf16.mxu0 %v1786
    %2626 = vmatpush1.bf16.msra.mxu0 %v1785
    %2627 = vmatprep.subr.bf16.mxu0 %v1798
    %2628 = vmatpush1.bf16.msra.mxu0 %v1797
    %2629 = vmatprep.subr.bf16.mxu0 %v1810
    %2630 = vmatpush1.bf16.msra.mxu0 %v1809
    %2631 = vmatprep.subr.bf16.mxu0 %v1822
    %2632 = vmatpush1.bf16.msra.mxu0 %v1821
    %2633 = vmatprep.mubr.bf16.mxu0 %v680
    %2634 = vmatmul.mubr.bf16.gmra.mrb[0].mxu0 %v679
    %v2635 = vpop.f32.mrb[0].mxu0
    %v2636 = vadd.f32 %v470, %v2635
    %v2637 = vpop.f32.mrb[0].mxu0
    %v2638 = vadd.f32 %v474, %v2637
    %v2639 = vpop.f32.mrb[0].mxu0
    %v2640 = vadd.f32 %v470, %v2639
    %v2641 = vpop.f32.mrb[0].mxu0
    %v2642 = vadd.f32 %v474, %v2641
    %2643 = vmatprep.mubr.bf16.mxu0 %v683
    %2644 = vmatmul.mubr.bf16.gmra.mrb[0].mxu0 %v682
    %v2645 = vpop.f32.mrb[0].mxu0
    %v2646 = vadd.f32 %v470, %v2645
    %v2647 = vpop.f32.mrb[0].mxu0
    %v2648 = vadd.f32 %v474, %v2647
    %v2649 = vpop.f32.mrb[0].mxu0
    %v2650 = vadd.f32 %v470, %v2649
    %v2651 = vpop.f32.mrb[0].mxu0
    %v2652 = vadd.f32 %v474, %v2651
    %2653 = vmatprep.mubr.bf16.mxu0 %v686
    %2654 = vmatmul.mubr.bf16.gmra.mrb[0].mxu0 %v685
    %v2655 = vpop.f32.mrb[0].mxu0
    %v2656 = vadd.f32 %v470, %v2655
    %v2657 = vpop.f32.mrb[0].mxu0
    %v2658 = vadd.f32 %v474, %v2657
    %v2659 = vpop.f32.mrb[0].mxu0
    %v2660 = vadd.f32 %v470, %v2659
    %v2661 = vpop.f32.mrb[0].mxu0
    %v2662 = vadd.f32 %v474, %v2661
    %2663 = vmatprep.mubr.bf16.mxu0 %v689
    %2664 = vmatmul.mubr.bf16.gmra.mrb[0].mxu0 %v688
    %v2665 = vpop.f32.mrb[0].mxu0
    %v2666 = vadd.f32 %v470, %v2665
    %v2667 = vpop.f32.mrb[0].mxu0
    %v2668 = vadd.f32 %v474, %v2667
    %v2669 = vpop.f32.mrb[0].mxu0
    %v2670 = vadd.f32 %v470, %v2669
    %v2671 = vpop.f32.mrb[0].mxu0
    %v2672 = vadd.f32 %v474, %v2671
    %2673 = vmatprep.mubr.bf16.mxu0 %v692
    %2674 = vmatmul.mubr.bf16.gmra.mrb[0].mxu0 %v691
    %v2675 = vpop.f32.mrb[0].mxu0
    %v2676 = vadd.f32 %v470, %v2675
    %v2677 = vpop.f32.mrb[0].mxu0
    %v2678 = vadd.f32 %v474, %v2677
    %v2679 = vpop.f32.mrb[0].mxu0
    %v2680 = vadd.f32 %v470, %v2679
    %v2681 = vpop.f32.mrb[0].mxu0
    %v2682 = vadd.f32 %v474, %v2681
    %2683 = vmatprep.mubr.bf16.mxu0 %v695
    %2684 = vmatmul.mubr.bf16.gmra.mrb[0].mxu0 %v694
    %v2685 = vpop.f32.mrb[0].mxu0
    %v2686 = vadd.f32 %v470, %v2685
    %v2687 = vpop.f32.mrb[0].mxu0
    %v2688 = vadd.f32 %v474, %v2687
    %v2689 = vpop.f32.mrb[0].mxu0
    %v2690 = vadd.f32 %v470, %v2689
    %v2691 = vpop.f32.mrb[0].mxu0
    %v2692 = vadd.f32 %v474, %v2691
    %2693 = vmatprep.mubr.bf16.mxu0 %v698
    %2694 = vmatmul.mubr.bf16.gmra.mrb[0].mxu0 %v697
    %v2695 = vpop.f32.mrb[0].mxu0
    %v2696 = vadd.f32 %v470, %v2695
    %v2697 = vpop.f32.mrb[0].mxu0
    %v2698 = vadd.f32 %v474, %v2697
    %v2699 = vpop.f32.mrb[0].mxu0
    %v2700 = vadd.f32 %v470, %v2699
    %v2701 = vpop.f32.mrb[0].mxu0
    %v2702 = vadd.f32 %v474, %v2701
    %2703 = vmatprep.mubr.bf16.mxu0 %v701
    %2704 = vmatmul.mubr.bf16.gmra.mrb[0].mxu0 %v700
    %v2705 = vpop.f32.mrb[0].mxu0
    %v2706 = vadd.f32 %v470, %v2705
    %v2707 = vpop.f32.mrb[0].mxu0
    %v2708 = vadd.f32 %v474, %v2707
    %v2709 = vpop.f32.mrb[0].mxu0
    %v2710 = vadd.f32 %v470, %v2709
    %v2711 = vpop.f32.mrb[0].mxu0
    %v2712 = vadd.f32 %v474, %v2711
    %2713 = vmatprep.mubr.bf16.mxu0 %v704
    %2714 = vmatmul.mubr.bf16.gmra.mrb[0].mxu0 %v703
    %v2715 = vpop.f32.mrb[0].mxu0
    %v2716 = vadd.f32 %v470, %v2715
    %v2717 = vpop.f32.mrb[0].mxu0
    %v2718 = vadd.f32 %v474, %v2717
    %v2719 = vpop.f32.mrb[0].mxu0
    %v2720 = vadd.f32 %v470, %v2719
    %v2721 = vpop.f32.mrb[0].mxu0
    %v2722 = vadd.f32 %v474, %v2721
    %2723 = vmatprep.mubr.bf16.mxu0 %v707
    %2724 = vmatmul.mubr.bf16.gmra.mrb[0].mxu0 %v706
    %v2725 = vpop.f32.mrb[0].mxu0
    %v2726 = vadd.f32 %v470, %v2725
    %v2727 = vpop.f32.mrb[0].mxu0
    %v2728 = vadd.f32 %v474, %v2727
    %v2729 = vpop.f32.mrb[0].mxu0
    %v2730 = vadd.f32 %v470, %v2729
    %v2731 = vpop.f32.mrb[0].mxu0
    %v2732 = vadd.f32 %v474, %v2731
    %2733 = vmatprep.mubr.bf16.mxu0 %v710
    %2734 = vmatmul.mubr.bf16.gmra.mrb[0].mxu0 %v709
    %v2735 = vpop.f32.mrb[0].mxu0
    %v2736 = vadd.f32 %v470, %v2735
    %v2737 = vpop.f32.mrb[0].mxu0
    %v2738 = vadd.f32 %v474, %v2737
    %v2739 = vpop.f32.mrb[0].mxu0
    %v2740 = vadd.f32 %v470, %v2739
    %v2741 = vpop.f32.mrb[0].mxu0
    %v2742 = vadd.f32 %v474, %v2741
    %2743 = vmatprep.mubr.bf16.mxu0 %v713
    %2744 = vmatmul.mubr.bf16.gmra.mrb[0].mxu0 %v712
    %v2745 = vpop.f32.mrb[0].mxu0
    %v2746 = vadd.f32 %v470, %v2745
    %v2747 = vpop.f32.mrb[0].mxu0
    %v2748 = vadd.f32 %v474, %v2747
    %v2749 = vpop.f32.mrb[0].mxu0
    %v2750 = vadd.f32 %v470, %v2749
    %v2751 = vpop.f32.mrb[0].mxu0
    %v2752 = vadd.f32 %v474, %v2751
    %2753 = vmatprep.mubr.bf16.mxu0 %v716
    %2754 = vmatmul.mubr.bf16.gmra.mrb[0].mxu0 %v715
    %v2755 = vpop.f32.mrb[0].mxu0
    %v2756 = vadd.f32 %v470, %v2755
    %v2757 = vpop.f32.mrb[0].mxu0
    %v2758 = vadd.f32 %v474, %v2757
    %v2759 = vpop.f32.mrb[0].mxu0
    %v2760 = vadd.f32 %v470, %v2759
    %v2761 = vpop.f32.mrb[0].mxu0
    %v2762 = vadd.f32 %v474, %v2761
    %2763 = vmatprep.mubr.bf16.mxu0 %v719
    %2764 = vmatmul.mubr.bf16.gmra.mrb[0].mxu0 %v718
    %v2765 = vpop.f32.mrb[0].mxu0
    %v2766 = vadd.f32 %v470, %v2765
    %v2767 = vpop.f32.mrb[0].mxu0
    %v2768 = vadd.f32 %v474, %v2767
    %v2769 = vpop.f32.mrb[0].mxu0
    %v2770 = vadd.f32 %v470, %v2769
    %v2771 = vpop.f32.mrb[0].mxu0
    %v2772 = vadd.f32 %v474, %v2771
    %2773 = vmatprep.mubr.bf16.mxu0 %v722
    %2774 = vmatmul.mubr.bf16.gmra.mrb[0].mxu0 %v721
    %v2775 = vpop.f32.mrb[0].mxu0
    %v2776 = vadd.f32 %v470, %v2775
    %v2777 = vpop.f32.mrb[0].mxu0
    %v2778 = vadd.f32 %v474, %v2777
    %v2779 = vpop.f32.mrb[0].mxu0
    %v2780 = vadd.f32 %v470, %v2779
    %v2781 = vpop.f32.mrb[0].mxu0
    %v2782 = vadd.f32 %v474, %v2781
    %2783 = vmatprep.mubr.bf16.mxu0 %v725
    %2784 = vmatmul.mubr.bf16.gmra.mrb[0].mxu0 %v724
    %v2785 = vpop.f32.mrb[0].mxu0
    %v2786 = vadd.f32 %v470, %v2785
    %v2787 = vpop.f32.mrb[0].mxu0
    %v2788 = vadd.f32 %v474, %v2787
    %v2789 = vpop.f32.mrb[0].mxu0
    %v2790 = vadd.f32 %v470, %v2789
    %v2791 = vpop.f32.mrb[0].mxu0
    %v2792 = vadd.f32 %v474, %v2791
    %2793 = vdwg.mxu0
    %2794 = vmatprep.subr.bf16.mxu0 %v1834
    %2795 = vmatpush1.bf16.msra.mxu0 %v1833
    %2796 = vmatprep.subr.bf16.mxu0 %v1846
    %2797 = vmatpush1.bf16.msra.mxu0 %v1845
    %2798 = vmatprep.subr.bf16.mxu0 %v1858
    %2799 = vmatpush1.bf16.msra.mxu0 %v1857
    %2800 = vmatprep.subr.bf16.mxu0 %v1870
    %2801 = vmatpush1.bf16.msra.mxu0 %v1869
    %2802 = vmatprep.subr.bf16.mxu0 %v1882
    %2803 = vmatpush1.bf16.msra.mxu0 %v1881
    %2804 = vmatprep.subr.bf16.mxu0 %v1894
    %2805 = vmatpush1.bf16.msra.mxu0 %v1893
    %2806 = vmatprep.subr.bf16.mxu0 %v1906
    %2807 = vmatpush1.bf16.msra.mxu0 %v1905
    %2808 = vmatprep.subr.bf16.mxu0 %v1918
    %2809 = vmatpush1.bf16.msra.mxu0 %v1917
    %2810 = vmatprep.subr.bf16.mxu0 0
    %2811 = vmatpush1.bf16.msra.mxu0 0
    %2812 = vmatprep.subr.bf16.mxu0 0
    %2813 = vmatpush1.bf16.msra.mxu0 0
    %2814 = vmatprep.subr.bf16.mxu0 0
    %2815 = vmatpush1.bf16.msra.mxu0 0
    %2816 = vmatprep.subr.bf16.mxu0 0
    %2817 = vmatpush1.bf16.msra.mxu0 0
    %2818 = vmatprep.subr.bf16.mxu0 0
    %2819 = vmatpush1.bf16.msra.mxu0 0
    %2820 = vmatprep.subr.bf16.mxu0 0
    %2821 = vmatpush1.bf16.msra.mxu0 0
    %2822 = vmatprep.subr.bf16.mxu0 0
    %2823 = vmatpush1.bf16.msra.mxu0 0
    %2824 = vmatprep.subr.bf16.mxu0 0
    %2825 = vmatpush1.bf16.msra.mxu0 0
    %2826 = vmatprep.mubr.bf16.mxu0 0
    %2827 = vmatmul.mubr.bf16.gmra.mrb[0].mxu0 %v681
    %v2828 = vpop.f32.mrb[0].mxu0
    %v2829 = vadd.f32 %v2636, %v2828
    %v2830 = vpop.f32.mrb[0].mxu0
    %v2831 = vadd.f32 %v2638, %v2830
    %v2832 = vpop.f32.mrb[0].mxu0
    %v2833 = vadd.f32 %v2640, %v2832
    %v2834 = vpop.f32.mrb[0].mxu0
    %v2835 = vadd.f32 %v2642, %v2834
    %2836 = vmatprep.mubr.bf16.mxu0 0
    %2837 = vmatmul.mubr.bf16.gmra.mrb[0].mxu0 %v684
    %v2838 = vpop.f32.mrb[0].mxu0
    %v2839 = vadd.f32 %v2646, %v2838
    %v2840 = vpop.f32.mrb[0].mxu0
    %v2841 = vadd.f32 %v2648, %v2840
    %v2842 = vpop.f32.mrb[0].mxu0
    %v2843 = vadd.f32 %v2650, %v2842
    %v2844 = vpop.f32.mrb[0].mxu0
    %v2845 = vadd.f32 %v2652, %v2844
    %2846 = vmatprep.mubr.bf16.mxu0 0
    %2847 = vmatmul.mubr.bf16.gmra.mrb[0].mxu0 %v687
    %v2848 = vpop.f32.mrb[0].mxu0
    %v2849 = vadd.f32 %v2656, %v2848
    %v2850 = vpop.f32.mrb[0].mxu0
    %v2851 = vadd.f32 %v2658, %v2850
    %v2852 = vpop.f32.mrb[0].mxu0
    %v2853 = vadd.f32 %v2660, %v2852
    %v2854 = vpop.f32.mrb[0].mxu0
    %v2855 = vadd.f32 %v2662, %v2854
    %2856 = vmatprep.mubr.bf16.mxu0 0
    %2857 = vmatmul.mubr.bf16.gmra.mrb[0].mxu0 %v690
    %v2858 = vpop.f32.mrb[0].mxu0
    %v2859 = vadd.f32 %v2666, %v2858
    %v2860 = vpop.f32.mrb[0].mxu0
    %v2861 = vadd.f32 %v2668, %v2860
    %v2862 = vpop.f32.mrb[0].mxu0
    %v2863 = vadd.f32 %v2670, %v2862
    %v2864 = vpop.f32.mrb[0].mxu0
    %v2865 = vadd.f32 %v2672, %v2864
    %2866 = vmatprep.mubr.bf16.mxu0 0
    %2867 = vmatmul.mubr.bf16.gmra.mrb[0].mxu0 %v693
    %v2868 = vpop.f32.mrb[0].mxu0
    %v2869 = vadd.f32 %v2676, %v2868
    %v2870 = vpop.f32.mrb[0].mxu0
    %v2871 = vadd.f32 %v2678, %v2870
    %v2872 = vpop.f32.mrb[0].mxu0
    %v2873 = vadd.f32 %v2680, %v2872
    %v2874 = vpop.f32.mrb[0].mxu0
    %v2875 = vadd.f32 %v2682, %v2874
    %2876 = vmatprep.mubr.bf16.mxu0 0
    %2877 = vmatmul.mubr.bf16.gmra.mrb[0].mxu0 %v696
    %v2878 = vpop.f32.mrb[0].mxu0
    %v2879 = vadd.f32 %v2686, %v2878
    %v2880 = vpop.f32.mrb[0].mxu0
    %v2881 = vadd.f32 %v2688, %v2880
    %v2882 = vpop.f32.mrb[0].mxu0
    %v2883 = vadd.f32 %v2690, %v2882
    %v2884 = vpop.f32.mrb[0].mxu0
    %v2885 = vadd.f32 %v2692, %v2884
    %2886 = vmatprep.mubr.bf16.mxu0 0
    %2887 = vmatmul.mubr.bf16.gmra.mrb[0].mxu0 %v699
    %v2888 = vpop.f32.mrb[0].mxu0
    %v2889 = vadd.f32 %v2696, %v2888
    %v2890 = vpop.f32.mrb[0].mxu0
    %v2891 = vadd.f32 %v2698, %v2890
    %v2892 = vpop.f32.mrb[0].mxu0
    %v2893 = vadd.f32 %v2700, %v2892
    %v2894 = vpop.f32.mrb[0].mxu0
    %v2895 = vadd.f32 %v2702, %v2894
    %2896 = vmatprep.mubr.bf16.mxu0 0
    %2897 = vmatmul.mubr.bf16.gmra.mrb[0].mxu0 %v702
    %v2898 = vpop.f32.mrb[0].mxu0
    %v2899 = vadd.f32 %v2706, %v2898
    %v2900 = vpop.f32.mrb[0].mxu0
    %v2901 = vadd.f32 %v2708, %v2900
    %v2902 = vpop.f32.mrb[0].mxu0
    %v2903 = vadd.f32 %v2710, %v2902
    %v2904 = vpop.f32.mrb[0].mxu0
    %v2905 = vadd.f32 %v2712, %v2904
    %2906 = vmatprep.mubr.bf16.mxu0 0
    %2907 = vmatmul.mubr.bf16.gmra.mrb[0].mxu0 %v705
    %v2908 = vpop.f32.mrb[0].mxu0
    %v2909 = vadd.f32 %v2716, %v2908
    %v2910 = vpop.f32.mrb[0].mxu0
    %v2911 = vadd.f32 %v2718, %v2910
    %v2912 = vpop.f32.mrb[0].mxu0
    %v2913 = vadd.f32 %v2720, %v2912
    %v2914 = vpop.f32.mrb[0].mxu0
    %v2915 = vadd.f32 %v2722, %v2914
    %2916 = vmatprep.mubr.bf16.mxu0 0
    %2917 = vmatmul.mubr.bf16.gmra.mrb[0].mxu0 %v708
    %v2918 = vpop.f32.mrb[0].mxu0
    %v2919 = vadd.f32 %v2726, %v2918
    %v2920 = vpop.f32.mrb[0].mxu0
    %v2921 = vadd.f32 %v2728, %v2920
    %v2922 = vpop.f32.mrb[0].mxu0
    %v2923 = vadd.f32 %v2730, %v2922
    %v2924 = vpop.f32.mrb[0].mxu0
    %v2925 = vadd.f32 %v2732, %v2924
    %2926 = vmatprep.mubr.bf16.mxu0 0
    %2927 = vmatmul.mubr.bf16.gmra.mrb[0].mxu0 %v711
    %v2928 = vpop.f32.mrb[0].mxu0
    %v2929 = vadd.f32 %v2736, %v2928
    %v2930 = vpop.f32.mrb[0].mxu0
    %v2931 = vadd.f32 %v2738, %v2930
    %v2932 = vpop.f32.mrb[0].mxu0
    %v2933 = vadd.f32 %v2740, %v2932
    %v2934 = vpop.f32.mrb[0].mxu0
    %v2935 = vadd.f32 %v2742, %v2934
    %2936 = vmatprep.mubr.bf16.mxu0 0
    %2937 = vmatmul.mubr.bf16.gmra.mrb[0].mxu0 %v714
    %v2938 = vpop.f32.mrb[0].mxu0
    %v2939 = vadd.f32 %v2746, %v2938
    %v2940 = vpop.f32.mrb[0].mxu0
    %v2941 = vadd.f32 %v2748, %v2940
    %v2942 = vpop.f32.mrb[0].mxu0
    %v2943 = vadd.f32 %v2750, %v2942
    %v2944 = vpop.f32.mrb[0].mxu0
    %v2945 = vadd.f32 %v2752, %v2944
    %2946 = vmatprep.mubr.bf16.mxu0 0
    %2947 = vmatmul.mubr.bf16.gmra.mrb[0].mxu0 %v717
    %v2948 = vpop.f32.mrb[0].mxu0
    %v2949 = vadd.f32 %v2756, %v2948
    %v2950 = vpop.f32.mrb[0].mxu0
    %v2951 = vadd.f32 %v2758, %v2950
    %v2952 = vpop.f32.mrb[0].mxu0
    %v2953 = vadd.f32 %v2760, %v2952
    %v2954 = vpop.f32.mrb[0].mxu0
    %v2955 = vadd.f32 %v2762, %v2954
    %2956 = vmatprep.mubr.bf16.mxu0 0
    %2957 = vmatmul.mubr.bf16.gmra.mrb[0].mxu0 %v720
    %v2958 = vpop.f32.mrb[0].mxu0
    %v2959 = vadd.f32 %v2766, %v2958
    %v2960 = vpop.f32.mrb[0].mxu0
    %v2961 = vadd.f32 %v2768, %v2960
    %v2962 = vpop.f32.mrb[0].mxu0
    %v2963 = vadd.f32 %v2770, %v2962
    %v2964 = vpop.f32.mrb[0].mxu0
    %v2965 = vadd.f32 %v2772, %v2964
    %2966 = vmatprep.mubr.bf16.mxu0 0
    %2967 = vmatmul.mubr.bf16.gmra.mrb[0].mxu0 %v723
    %v2968 = vpop.f32.mrb[0].mxu0
    %v2969 = vadd.f32 %v2776, %v2968
    %v2970 = vpop.f32.mrb[0].mxu0
    %v2971 = vadd.f32 %v2778, %v2970
    %v2972 = vpop.f32.mrb[0].mxu0
    %v2973 = vadd.f32 %v2780, %v2972
    %v2974 = vpop.f32.mrb[0].mxu0
    %v2975 = vadd.f32 %v2782, %v2974
    %2976 = vmatprep.mubr.bf16.mxu0 0
    %2977 = vmatmul.mubr.bf16.gmra.mrb[0].mxu0 %v726
    %v2978 = vpop.f32.mrb[0].mxu0
    %v2979 = vadd.f32 %v2786, %v2978
    %v2980 = vpop.f32.mrb[0].mxu0
    %v2981 = vadd.f32 %v2788, %v2980
    %v2982 = vpop.f32.mrb[0].mxu0
    %v2983 = vadd.f32 %v2790, %v2982
    %v2984 = vpop.f32.mrb[0].mxu0
    %v2985 = vadd.f32 %v2792, %v2984
    %2986 = vdwg.mxu0
    %2987 = vmatprep.subr.bf16.mxu0 %v1644
    %2988 = vmatpush1.bf16.msra.mxu0 %v1643
    %2989 = vmatprep.subr.bf16.mxu0 %v1656
    %2990 = vmatpush1.bf16.msra.mxu0 %v1655
    %2991 = vmatprep.subr.bf16.mxu0 %v1668
    %2992 = vmatpush1.bf16.msra.mxu0 %v1667
    %2993 = vmatprep.subr.bf16.mxu0 %v1680
    %2994 = vmatpush1.bf16.msra.mxu0 %v1679
    %2995 = vmatprep.subr.bf16.mxu0 %v1692
    %2996 = vmatpush1.bf16.msra.mxu0 %v1691
    %2997 = vmatprep.subr.bf16.mxu0 %v1704
    %2998 = vmatpush1.bf16.msra.mxu0 %v1703
    %2999 = vmatprep.subr.bf16.mxu0 %v1716
    %3000 = vmatpush1.bf16.msra.mxu0 %v1715
    %3001 = vmatprep.subr.bf16.mxu0 %v1728
    %3002 = vmatpush1.bf16.msra.mxu0 %v1727
    %3003 = vmatprep.subr.bf16.mxu0 %v1740
    %3004 = vmatpush1.bf16.msra.mxu0 %v1739
    %3005 = vmatprep.subr.bf16.mxu0 %v1752
    %3006 = vmatpush1.bf16.msra.mxu0 %v1751
    %3007 = vmatprep.subr.bf16.mxu0 %v1764
    %3008 = vmatpush1.bf16.msra.mxu0 %v1763
    %3009 = vmatprep.subr.bf16.mxu0 %v1776
    %3010 = vmatpush1.bf16.msra.mxu0 %v1775
    %3011 = vmatprep.subr.bf16.mxu0 %v1788
    %3012 = vmatpush1.bf16.msra.mxu0 %v1787
    %3013 = vmatprep.subr.bf16.mxu0 %v1800
    %3014 = vmatpush1.bf16.msra.mxu0 %v1799
    %3015 = vmatprep.subr.bf16.mxu0 %v1812
    %3016 = vmatpush1.bf16.msra.mxu0 %v1811
    %3017 = vmatprep.subr.bf16.mxu0 %v1824
    %3018 = vmatpush1.bf16.msra.mxu0 %v1823
    %3019 = vmatprep.mubr.bf16.mxu0 %v680
    %3020 = vmatmul.mubr.bf16.gmra.mrb[0].mxu0 %v679
    %v3021 = vpop.f32.mrb[0].mxu0
    %v3022 = vadd.f32 %v478, %v3021
    %v3023 = vpop.f32.mrb[0].mxu0
    %v3024 = vadd.f32 %v482, %v3023
    %v3025 = vpop.f32.mrb[0].mxu0
    %v3026 = vadd.f32 %v478, %v3025
    %v3027 = vpop.f32.mrb[0].mxu0
    %v3028 = vadd.f32 %v482, %v3027
    %3029 = vmatprep.mubr.bf16.mxu0 %v683
    %3030 = vmatmul.mubr.bf16.gmra.mrb[0].mxu0 %v682
    %v3031 = vpop.f32.mrb[0].mxu0
    %v3032 = vadd.f32 %v478, %v3031
    %v3033 = vpop.f32.mrb[0].mxu0
    %v3034 = vadd.f32 %v482, %v3033
    %v3035 = vpop.f32.mrb[0].mxu0
    %v3036 = vadd.f32 %v478, %v3035
    %v3037 = vpop.f32.mrb[0].mxu0
    %v3038 = vadd.f32 %v482, %v3037
    %3039 = vmatprep.mubr.bf16.mxu0 %v686
    %3040 = vmatmul.mubr.bf16.gmra.mrb[0].mxu0 %v685
    %v3041 = vpop.f32.mrb[0].mxu0
    %v3042 = vadd.f32 %v478, %v3041
    %v3043 = vpop.f32.mrb[0].mxu0
    %v3044 = vadd.f32 %v482, %v3043
    %v3045 = vpop.f32.mrb[0].mxu0
    %v3046 = vadd.f32 %v478, %v3045
    %v3047 = vpop.f32.mrb[0].mxu0
    %v3048 = vadd.f32 %v482, %v3047
    %3049 = vmatprep.mubr.bf16.mxu0 %v689
    %3050 = vmatmul.mubr.bf16.gmra.mrb[0].mxu0 %v688
    %v3051 = vpop.f32.mrb[0].mxu0
    %v3052 = vadd.f32 %v478, %v3051
    %v3053 = vpop.f32.mrb[0].mxu0
    %v3054 = vadd.f32 %v482, %v3053
    %v3055 = vpop.f32.mrb[0].mxu0
    %v3056 = vadd.f32 %v478, %v3055
    %v3057 = vpop.f32.mrb[0].mxu0
    %v3058 = vadd.f32 %v482, %v3057
    %3059 = vmatprep.mubr.bf16.mxu0 %v692
    %3060 = vmatmul.mubr.bf16.gmra.mrb[0].mxu0 %v691
    %v3061 = vpop.f32.mrb[0].mxu0
    %v3062 = vadd.f32 %v478, %v3061
    %v3063 = vpop.f32.mrb[0].mxu0
    %v3064 = vadd.f32 %v482, %v3063
    %v3065 = vpop.f32.mrb[0].mxu0
    %v3066 = vadd.f32 %v478, %v3065
    %v3067 = vpop.f32.mrb[0].mxu0
    %v3068 = vadd.f32 %v482, %v3067
    %3069 = vmatprep.mubr.bf16.mxu0 %v695
    %3070 = vmatmul.mubr.bf16.gmra.mrb[0].mxu0 %v694
    %v3071 = vpop.f32.mrb[0].mxu0
    %v3072 = vadd.f32 %v478, %v3071
    %v3073 = vpop.f32.mrb[0].mxu0
    %v3074 = vadd.f32 %v482, %v3073
    %v3075 = vpop.f32.mrb[0].mxu0
    %v3076 = vadd.f32 %v478, %v3075
    %v3077 = vpop.f32.mrb[0].mxu0
    %v3078 = vadd.f32 %v482, %v3077
    %3079 = vmatprep.mubr.bf16.mxu0 %v698
    %3080 = vmatmul.mubr.bf16.gmra.mrb[0].mxu0 %v697
    %v3081 = vpop.f32.mrb[0].mxu0
    %v3082 = vadd.f32 %v478, %v3081
    %v3083 = vpop.f32.mrb[0].mxu0
    %v3084 = vadd.f32 %v482, %v3083
    %v3085 = vpop.f32.mrb[0].mxu0
    %v3086 = vadd.f32 %v478, %v3085
    %v3087 = vpop.f32.mrb[0].mxu0
    %v3088 = vadd.f32 %v482, %v3087
    %3089 = vmatprep.mubr.bf16.mxu0 %v701
    %3090 = vmatmul.mubr.bf16.gmra.mrb[0].mxu0 %v700
    %v3091 = vpop.f32.mrb[0].mxu0
    %v3092 = vadd.f32 %v478, %v3091
    %v3093 = vpop.f32.mrb[0].mxu0
    %v3094 = vadd.f32 %v482, %v3093
    %v3095 = vpop.f32.mrb[0].mxu0
    %v3096 = vadd.f32 %v478, %v3095
    %v3097 = vpop.f32.mrb[0].mxu0
    %v3098 = vadd.f32 %v482, %v3097
    %3099 = vmatprep.mubr.bf16.mxu0 %v704
    %3100 = vmatmul.mubr.bf16.gmra.mrb[0].mxu0 %v703
    %v3101 = vpop.f32.mrb[0].mxu0
    %v3102 = vadd.f32 %v478, %v3101
    %v3103 = vpop.f32.mrb[0].mxu0
    %v3104 = vadd.f32 %v482, %v3103
    %v3105 = vpop.f32.mrb[0].mxu0
    %v3106 = vadd.f32 %v478, %v3105
    %v3107 = vpop.f32.mrb[0].mxu0
    %v3108 = vadd.f32 %v482, %v3107
    %3109 = vmatprep.mubr.bf16.mxu0 %v707
    %3110 = vmatmul.mubr.bf16.gmra.mrb[0].mxu0 %v706
    %v3111 = vpop.f32.mrb[0].mxu0
    %v3112 = vadd.f32 %v478, %v3111
    %v3113 = vpop.f32.mrb[0].mxu0
    %v3114 = vadd.f32 %v482, %v3113
    %v3115 = vpop.f32.mrb[0].mxu0
    %v3116 = vadd.f32 %v478, %v3115
    %v3117 = vpop.f32.mrb[0].mxu0
    %v3118 = vadd.f32 %v482, %v3117
    %3119 = vmatprep.mubr.bf16.mxu0 %v710
    %3120 = vmatmul.mubr.bf16.gmra.mrb[0].mxu0 %v709
    %v3121 = vpop.f32.mrb[0].mxu0
    %v3122 = vadd.f32 %v478, %v3121
    %v3123 = vpop.f32.mrb[0].mxu0
    %v3124 = vadd.f32 %v482, %v3123
    %v3125 = vpop.f32.mrb[0].mxu0
    %v3126 = vadd.f32 %v478, %v3125
    %v3127 = vpop.f32.mrb[0].mxu0
    %v3128 = vadd.f32 %v482, %v3127
    %3129 = vmatprep.mubr.bf16.mxu0 %v713
    %3130 = vmatmul.mubr.bf16.gmra.mrb[0].mxu0 %v712
    %v3131 = vpop.f32.mrb[0].mxu0
    %v3132 = vadd.f32 %v478, %v3131
    %v3133 = vpop.f32.mrb[0].mxu0
    %v3134 = vadd.f32 %v482, %v3133
    %v3135 = vpop.f32.mrb[0].mxu0
    %v3136 = vadd.f32 %v478, %v3135
    %v3137 = vpop.f32.mrb[0].mxu0
    %v3138 = vadd.f32 %v482, %v3137
    %3139 = vmatprep.mubr.bf16.mxu0 %v716
    %3140 = vmatmul.mubr.bf16.gmra.mrb[0].mxu0 %v715
    %v3141 = vpop.f32.mrb[0].mxu0
    %v3142 = vadd.f32 %v478, %v3141
    %v3143 = vpop.f32.mrb[0].mxu0
    %v3144 = vadd.f32 %v482, %v3143
    %v3145 = vpop.f32.mrb[0].mxu0
    %v3146 = vadd.f32 %v478, %v3145
    %v3147 = vpop.f32.mrb[0].mxu0
    %v3148 = vadd.f32 %v482, %v3147
    %3149 = vmatprep.mubr.bf16.mxu0 %v719
    %3150 = vmatmul.mubr.bf16.gmra.mrb[0].mxu0 %v718
    %v3151 = vpop.f32.mrb[0].mxu0
    %v3152 = vadd.f32 %v478, %v3151
    %v3153 = vpop.f32.mrb[0].mxu0
    %v3154 = vadd.f32 %v482, %v3153
    %v3155 = vpop.f32.mrb[0].mxu0
    %v3156 = vadd.f32 %v478, %v3155
    %v3157 = vpop.f32.mrb[0].mxu0
    %v3158 = vadd.f32 %v482, %v3157
    %3159 = vmatprep.mubr.bf16.mxu0 %v722
    %3160 = vmatmul.mubr.bf16.gmra.mrb[0].mxu0 %v721
    %v3161 = vpop.f32.mrb[0].mxu0
    %v3162 = vadd.f32 %v478, %v3161
    %v3163 = vpop.f32.mrb[0].mxu0
    %v3164 = vadd.f32 %v482, %v3163
    %v3165 = vpop.f32.mrb[0].mxu0
    %v3166 = vadd.f32 %v478, %v3165
    %v3167 = vpop.f32.mrb[0].mxu0
    %v3168 = vadd.f32 %v482, %v3167
    %3169 = vmatprep.mubr.bf16.mxu0 %v725
    %3170 = vmatmul.mubr.bf16.gmra.mrb[0].mxu0 %v724
    %v3171 = vpop.f32.mrb[0].mxu0
    %v3172 = vadd.f32 %v478, %v3171
    %v3173 = vpop.f32.mrb[0].mxu0
    %v3174 = vadd.f32 %v482, %v3173
    %v3175 = vpop.f32.mrb[0].mxu0
    %v3176 = vadd.f32 %v478, %v3175
    %v3177 = vpop.f32.mrb[0].mxu0
    %v3178 = vadd.f32 %v482, %v3177
    %3179 = vdwg.mxu0
    %3180 = vmatprep.subr.bf16.mxu0 %v1836
    %3181 = vmatpush1.bf16.msra.mxu0 %v1835
    %3182 = vmatprep.subr.bf16.mxu0 %v1848
    %3183 = vmatpush1.bf16.msra.mxu0 %v1847
    %3184 = vmatprep.subr.bf16.mxu0 %v1860
    %3185 = vmatpush1.bf16.msra.mxu0 %v1859
    %3186 = vmatprep.subr.bf16.mxu0 %v1872
    %3187 = vmatpush1.bf16.msra.mxu0 %v1871
    %3188 = vmatprep.subr.bf16.mxu0 %v1884
    %3189 = vmatpush1.bf16.msra.mxu0 %v1883
    %3190 = vmatprep.subr.bf16.mxu0 %v1896
    %3191 = vmatpush1.bf16.msra.mxu0 %v1895
    %3192 = vmatprep.subr.bf16.mxu0 %v1908
    %3193 = vmatpush1.bf16.msra.mxu0 %v1907
    %3194 = vmatprep.subr.bf16.mxu0 %v1920
    %3195 = vmatpush1.bf16.msra.mxu0 %v1919
    %3196 = vmatprep.subr.bf16.mxu0 0
    %3197 = vmatpush1.bf16.msra.mxu0 0
    %3198 = vmatprep.subr.bf16.mxu0 0
    %3199 = vmatpush1.bf16.msra.mxu0 0
    %3200 = vmatprep.subr.bf16.mxu0 0
    %3201 = vmatpush1.bf16.msra.mxu0 0
    %3202 = vmatprep.subr.bf16.mxu0 0
    %3203 = vmatpush1.bf16.msra.mxu0 0
    %3204 = vmatprep.subr.bf16.mxu0 0
    %3205 = vmatpush1.bf16.msra.mxu0 0
    %3206 = vmatprep.subr.bf16.mxu0 0
    %3207 = vmatpush1.bf16.msra.mxu0 0
    %3208 = vmatprep.subr.bf16.mxu0 0
    %3209 = vmatpush1.bf16.msra.mxu0 0
    %3210 = vmatprep.subr.bf16.mxu0 0
    %3211 = vmatpush1.bf16.msra.mxu0 0
    %3212 = vmatprep.mubr.bf16.mxu0 0
    %3213 = vmatmul.mubr.bf16.gmra.mrb[0].mxu0 %v681
    %v3214 = vpop.f32.mrb[0].mxu0
    %v3215 = vadd.f32 %v3022, %v3214
    %v3216 = vpop.f32.mrb[0].mxu0
    %v3217 = vadd.f32 %v3024, %v3216
    %v3218 = vpop.f32.mrb[0].mxu0
    %v3219 = vadd.f32 %v3026, %v3218
    %v3220 = vpop.f32.mrb[0].mxu0
    %v3221 = vadd.f32 %v3028, %v3220
    %3222 = vmatprep.mubr.bf16.mxu0 0
    %3223 = vmatmul.mubr.bf16.gmra.mrb[0].mxu0 %v684
    %v3224 = vpop.f32.mrb[0].mxu0
    %v3225 = vadd.f32 %v3032, %v3224
    %v3226 = vpop.f32.mrb[0].mxu0
    %v3227 = vadd.f32 %v3034, %v3226
    %v3228 = vpop.f32.mrb[0].mxu0
    %v3229 = vadd.f32 %v3036, %v3228
    %v3230 = vpop.f32.mrb[0].mxu0
    %v3231 = vadd.f32 %v3038, %v3230
    %3232 = vmatprep.mubr.bf16.mxu0 0
    %3233 = vmatmul.mubr.bf16.gmra.mrb[0].mxu0 %v687
    %v3234 = vpop.f32.mrb[0].mxu0
    %v3235 = vadd.f32 %v3042, %v3234
    %v3236 = vpop.f32.mrb[0].mxu0
    %v3237 = vadd.f32 %v3044, %v3236
    %v3238 = vpop.f32.mrb[0].mxu0
    %v3239 = vadd.f32 %v3046, %v3238
    %v3240 = vpop.f32.mrb[0].mxu0
    %v3241 = vadd.f32 %v3048, %v3240
    %3242 = vmatprep.mubr.bf16.mxu0 0
    %3243 = vmatmul.mubr.bf16.gmra.mrb[0].mxu0 %v690
    %v3244 = vpop.f32.mrb[0].mxu0
    %v3245 = vadd.f32 %v3052, %v3244
    %v3246 = vpop.f32.mrb[0].mxu0
    %v3247 = vadd.f32 %v3054, %v3246
    %v3248 = vpop.f32.mrb[0].mxu0
    %v3249 = vadd.f32 %v3056, %v3248
    %v3250 = vpop.f32.mrb[0].mxu0
    %v3251 = vadd.f32 %v3058, %v3250
    %3252 = vmatprep.mubr.bf16.mxu0 0
    %3253 = vmatmul.mubr.bf16.gmra.mrb[0].mxu0 %v693
    %v3254 = vpop.f32.mrb[0].mxu0
    %v3255 = vadd.f32 %v3062, %v3254
    %v3256 = vpop.f32.mrb[0].mxu0
    %v3257 = vadd.f32 %v3064, %v3256
    %v3258 = vpop.f32.mrb[0].mxu0
    %v3259 = vadd.f32 %v3066, %v3258
    %v3260 = vpop.f32.mrb[0].mxu0
    %v3261 = vadd.f32 %v3068, %v3260
    %3262 = vmatprep.mubr.bf16.mxu0 0
    %3263 = vmatmul.mubr.bf16.gmra.mrb[0].mxu0 %v696
    %v3264 = vpop.f32.mrb[0].mxu0
    %v3265 = vadd.f32 %v3072, %v3264
    %v3266 = vpop.f32.mrb[0].mxu0
    %v3267 = vadd.f32 %v3074, %v3266
    %v3268 = vpop.f32.mrb[0].mxu0
    %v3269 = vadd.f32 %v3076, %v3268
    %v3270 = vpop.f32.mrb[0].mxu0
    %v3271 = vadd.f32 %v3078, %v3270
    %3272 = vmatprep.mubr.bf16.mxu0 0
    %3273 = vmatmul.mubr.bf16.gmra.mrb[0].mxu0 %v699
    %v3274 = vpop.f32.mrb[0].mxu0
    %v3275 = vadd.f32 %v3082, %v3274
    %v3276 = vpop.f32.mrb[0].mxu0
    %v3277 = vadd.f32 %v3084, %v3276
    %v3278 = vpop.f32.mrb[0].mxu0
    %v3279 = vadd.f32 %v3086, %v3278
    %v3280 = vpop.f32.mrb[0].mxu0
    %v3281 = vadd.f32 %v3088, %v3280
    %3282 = vmatprep.mubr.bf16.mxu0 0
    %3283 = vmatmul.mubr.bf16.gmra.mrb[0].mxu0 %v702
    %v3284 = vpop.f32.mrb[0].mxu0
    %v3285 = vadd.f32 %v3092, %v3284
    %v3286 = vpop.f32.mrb[0].mxu0
    %v3287 = vadd.f32 %v3094, %v3286
    %v3288 = vpop.f32.mrb[0].mxu0
    %v3289 = vadd.f32 %v3096, %v3288
    %v3290 = vpop.f32.mrb[0].mxu0
    %v3291 = vadd.f32 %v3098, %v3290
    %3292 = vmatprep.mubr.bf16.mxu0 0
    %3293 = vmatmul.mubr.bf16.gmra.mrb[0].mxu0 %v705
    %v3294 = vpop.f32.mrb[0].mxu0
    %v3295 = vadd.f32 %v3102, %v3294
    %v3296 = vpop.f32.mrb[0].mxu0
    %v3297 = vadd.f32 %v3104, %v3296
    %v3298 = vpop.f32.mrb[0].mxu0
    %v3299 = vadd.f32 %v3106, %v3298
    %v3300 = vpop.f32.mrb[0].mxu0
    %v3301 = vadd.f32 %v3108, %v3300
    %3302 = vmatprep.mubr.bf16.mxu0 0
    %3303 = vmatmul.mubr.bf16.gmra.mrb[0].mxu0 %v708
    %v3304 = vpop.f32.mrb[0].mxu0
    %v3305 = vadd.f32 %v3112, %v3304
    %v3306 = vpop.f32.mrb[0].mxu0
    %v3307 = vadd.f32 %v3114, %v3306
    %v3308 = vpop.f32.mrb[0].mxu0
    %v3309 = vadd.f32 %v3116, %v3308
    %v3310 = vpop.f32.mrb[0].mxu0
    %v3311 = vadd.f32 %v3118, %v3310
    %3312 = vmatprep.mubr.bf16.mxu0 0
    %3313 = vmatmul.mubr.bf16.gmra.mrb[0].mxu0 %v711
    %v3314 = vpop.f32.mrb[0].mxu0
    %v3315 = vadd.f32 %v3122, %v3314
    %v3316 = vpop.f32.mrb[0].mxu0
    %v3317 = vadd.f32 %v3124, %v3316
    %v3318 = vpop.f32.mrb[0].mxu0
    %v3319 = vadd.f32 %v3126, %v3318
    %v3320 = vpop.f32.mrb[0].mxu0
    %v3321 = vadd.f32 %v3128, %v3320
    %3322 = vmatprep.mubr.bf16.mxu0 0
    %3323 = vmatmul.mubr.bf16.gmra.mrb[0].mxu0 %v714
    %v3324 = vpop.f32.mrb[0].mxu0
    %v3325 = vadd.f32 %v3132, %v3324
    %v3326 = vpop.f32.mrb[0].mxu0
    %v3327 = vadd.f32 %v3134, %v3326
    %v3328 = vpop.f32.mrb[0].mxu0
    %v3329 = vadd.f32 %v3136, %v3328
    %v3330 = vpop.f32.mrb[0].mxu0
    %v3331 = vadd.f32 %v3138, %v3330
    %3332 = vmatprep.mubr.bf16.mxu0 0
    %3333 = vmatmul.mubr.bf16.gmra.mrb[0].mxu0 %v717
    %v3334 = vpop.f32.mrb[0].mxu0
    %v3335 = vadd.f32 %v3142, %v3334
    %v3336 = vpop.f32.mrb[0].mxu0
    %v3337 = vadd.f32 %v3144, %v3336
    %v3338 = vpop.f32.mrb[0].mxu0
    %v3339 = vadd.f32 %v3146, %v3338
    %v3340 = vpop.f32.mrb[0].mxu0
    %v3341 = vadd.f32 %v3148, %v3340
    %3342 = vmatprep.mubr.bf16.mxu0 0
    %3343 = vmatmul.mubr.bf16.gmra.mrb[0].mxu0 %v720
    %v3344 = vpop.f32.mrb[0].mxu0
    %v3345 = vadd.f32 %v3152, %v3344
    %v3346 = vpop.f32.mrb[0].mxu0
    %v3347 = vadd.f32 %v3154, %v3346
    %v3348 = vpop.f32.mrb[0].mxu0
    %v3349 = vadd.f32 %v3156, %v3348
    %v3350 = vpop.f32.mrb[0].mxu0
    %v3351 = vadd.f32 %v3158, %v3350
    %3352 = vmatprep.mubr.bf16.mxu0 0
    %3353 = vmatmul.mubr.bf16.gmra.mrb[0].mxu0 %v723
    %v3354 = vpop.f32.mrb[0].mxu0
    %v3355 = vadd.f32 %v3162, %v3354
    %v3356 = vpop.f32.mrb[0].mxu0
    %v3357 = vadd.f32 %v3164, %v3356
    %v3358 = vpop.f32.mrb[0].mxu0
    %v3359 = vadd.f32 %v3166, %v3358
    %v3360 = vpop.f32.mrb[0].mxu0
    %v3361 = vadd.f32 %v3168, %v3360
    %3362 = vmatprep.mubr.bf16.mxu0 0
    %3363 = vmatmul.mubr.bf16.gmra.mrb[0].mxu0 %v726
    %v3364 = vpop.f32.mrb[0].mxu0
    %v3365 = vadd.f32 %v3172, %v3364
    %v3366 = vpop.f32.mrb[0].mxu0
    %v3367 = vadd.f32 %v3174, %v3366
    %v3368 = vpop.f32.mrb[0].mxu0
    %v3369 = vadd.f32 %v3176, %v3368
    %v3370 = vpop.f32.mrb[0].mxu0
    %v3371 = vadd.f32 %v3178, %v3370
    %3372 = vdwg.mxu0
    %3373 = vmatprep.subr.bf16.mxu0 %v1646
    %3374 = vmatpush1.bf16.msra.mxu0 %v1645
    %3375 = vmatprep.subr.bf16.mxu0 %v1658
    %3376 = vmatpush1.bf16.msra.mxu0 %v1657
    %3377 = vmatprep.subr.bf16.mxu0 %v1670
    %3378 = vmatpush1.bf16.msra.mxu0 %v1669
    %3379 = vmatprep.subr.bf16.mxu0 %v1682
    %3380 = vmatpush1.bf16.msra.mxu0 %v1681
    %3381 = vmatprep.subr.bf16.mxu0 %v1694
    %3382 = vmatpush1.bf16.msra.mxu0 %v1693
    %3383 = vmatprep.subr.bf16.mxu0 %v1706
    %3384 = vmatpush1.bf16.msra.mxu0 %v1705
    %3385 = vmatprep.subr.bf16.mxu0 %v1718
    %3386 = vmatpush1.bf16.msra.mxu0 %v1717
    %3387 = vmatprep.subr.bf16.mxu0 %v1730
    %3388 = vmatpush1.bf16.msra.mxu0 %v1729
    %3389 = vmatprep.subr.bf16.mxu0 %v1742
    %3390 = vmatpush1.bf16.msra.mxu0 %v1741
    %3391 = vmatprep.subr.bf16.mxu0 %v1754
    %3392 = vmatpush1.bf16.msra.mxu0 %v1753
    %3393 = vmatprep.subr.bf16.mxu0 %v1766
    %3394 = vmatpush1.bf16.msra.mxu0 %v1765
    %3395 = vmatprep.subr.bf16.mxu0 %v1778
    %3396 = vmatpush1.bf16.msra.mxu0 %v1777
    %3397 = vmatprep.subr.bf16.mxu0 %v1790
    %3398 = vmatpush1.bf16.msra.mxu0 %v1789
    %3399 = vmatprep.subr.bf16.mxu0 %v1802
    %3400 = vmatpush1.bf16.msra.mxu0 %v1801
    %3401 = vmatprep.subr.bf16.mxu0 %v1814
    %3402 = vmatpush1.bf16.msra.mxu0 %v1813
    %3403 = vmatprep.subr.bf16.mxu0 %v1826
    %3404 = vmatpush1.bf16.msra.mxu0 %v1825
    %3405 = vmatprep.mubr.bf16.mxu0 %v680
    %3406 = vmatmul.mubr.bf16.gmra.mrb[0].mxu0 %v679
    %v3407 = vpop.f32.mrb[0].mxu0
    %v3408 = vadd.f32 %v486, %v3407
    %v3409 = vpop.f32.mrb[0].mxu0
    %v3410 = vadd.f32 %v490, %v3409
    %v3411 = vpop.f32.mrb[0].mxu0
    %v3412 = vadd.f32 %v486, %v3411
    %v3413 = vpop.f32.mrb[0].mxu0
    %v3414 = vadd.f32 %v490, %v3413
    %3415 = vmatprep.mubr.bf16.mxu0 %v683
    %3416 = vmatmul.mubr.bf16.gmra.mrb[0].mxu0 %v682
    %v3417 = vpop.f32.mrb[0].mxu0
    %v3418 = vadd.f32 %v486, %v3417
    %v3419 = vpop.f32.mrb[0].mxu0
    %v3420 = vadd.f32 %v490, %v3419
    %v3421 = vpop.f32.mrb[0].mxu0
    %v3422 = vadd.f32 %v486, %v3421
    %v3423 = vpop.f32.mrb[0].mxu0
    %v3424 = vadd.f32 %v490, %v3423
    %3425 = vmatprep.mubr.bf16.mxu0 %v686
    %3426 = vmatmul.mubr.bf16.gmra.mrb[0].mxu0 %v685
    %v3427 = vpop.f32.mrb[0].mxu0
    %v3428 = vadd.f32 %v486, %v3427
    %v3429 = vpop.f32.mrb[0].mxu0
    %v3430 = vadd.f32 %v490, %v3429
    %v3431 = vpop.f32.mrb[0].mxu0
    %v3432 = vadd.f32 %v486, %v3431
    %v3433 = vpop.f32.mrb[0].mxu0
    %v3434 = vadd.f32 %v490, %v3433
    %3435 = vmatprep.mubr.bf16.mxu0 %v689
    %3436 = vmatmul.mubr.bf16.gmra.mrb[0].mxu0 %v688
    %v3437 = vpop.f32.mrb[0].mxu0
    %v3438 = vadd.f32 %v486, %v3437
    %v3439 = vpop.f32.mrb[0].mxu0
    %v3440 = vadd.f32 %v490, %v3439
    %v3441 = vpop.f32.mrb[0].mxu0
    %v3442 = vadd.f32 %v486, %v3441
    %v3443 = vpop.f32.mrb[0].mxu0
    %v3444 = vadd.f32 %v490, %v3443
    %3445 = vmatprep.mubr.bf16.mxu0 %v692
    %3446 = vmatmul.mubr.bf16.gmra.mrb[0].mxu0 %v691
    %v3447 = vpop.f32.mrb[0].mxu0
    %v3448 = vadd.f32 %v486, %v3447
    %v3449 = vpop.f32.mrb[0].mxu0
    %v3450 = vadd.f32 %v490, %v3449
    %v3451 = vpop.f32.mrb[0].mxu0
    %v3452 = vadd.f32 %v486, %v3451
    %v3453 = vpop.f32.mrb[0].mxu0
    %v3454 = vadd.f32 %v490, %v3453
    %3455 = vmatprep.mubr.bf16.mxu0 %v695
    %3456 = vmatmul.mubr.bf16.gmra.mrb[0].mxu0 %v694
    %v3457 = vpop.f32.mrb[0].mxu0
    %v3458 = vadd.f32 %v486, %v3457
    %v3459 = vpop.f32.mrb[0].mxu0
    %v3460 = vadd.f32 %v490, %v3459
    %v3461 = vpop.f32.mrb[0].mxu0
    %v3462 = vadd.f32 %v486, %v3461
    %v3463 = vpop.f32.mrb[0].mxu0
    %v3464 = vadd.f32 %v490, %v3463
    %3465 = vmatprep.mubr.bf16.mxu0 %v698
    %3466 = vmatmul.mubr.bf16.gmra.mrb[0].mxu0 %v697
    %v3467 = vpop.f32.mrb[0].mxu0
    %v3468 = vadd.f32 %v486, %v3467
    %v3469 = vpop.f32.mrb[0].mxu0
    %v3470 = vadd.f32 %v490, %v3469
    %v3471 = vpop.f32.mrb[0].mxu0
    %v3472 = vadd.f32 %v486, %v3471
    %v3473 = vpop.f32.mrb[0].mxu0
    %v3474 = vadd.f32 %v490, %v3473
    %3475 = vmatprep.mubr.bf16.mxu0 %v701
    %3476 = vmatmul.mubr.bf16.gmra.mrb[0].mxu0 %v700
    %v3477 = vpop.f32.mrb[0].mxu0
    %v3478 = vadd.f32 %v486, %v3477
    %v3479 = vpop.f32.mrb[0].mxu0
    %v3480 = vadd.f32 %v490, %v3479
    %v3481 = vpop.f32.mrb[0].mxu0
    %v3482 = vadd.f32 %v486, %v3481
    %v3483 = vpop.f32.mrb[0].mxu0
    %v3484 = vadd.f32 %v490, %v3483
    %3485 = vmatprep.mubr.bf16.mxu0 %v704
    %3486 = vmatmul.mubr.bf16.gmra.mrb[0].mxu0 %v703
    %v3487 = vpop.f32.mrb[0].mxu0
    %v3488 = vadd.f32 %v486, %v3487
    %v3489 = vpop.f32.mrb[0].mxu0
    %v3490 = vadd.f32 %v490, %v3489
    %v3491 = vpop.f32.mrb[0].mxu0
    %v3492 = vadd.f32 %v486, %v3491
    %v3493 = vpop.f32.mrb[0].mxu0
    %v3494 = vadd.f32 %v490, %v3493
    %3495 = vmatprep.mubr.bf16.mxu0 %v707
    %3496 = vmatmul.mubr.bf16.gmra.mrb[0].mxu0 %v706
    %v3497 = vpop.f32.mrb[0].mxu0
    %v3498 = vadd.f32 %v486, %v3497
    %v3499 = vpop.f32.mrb[0].mxu0
    %v3500 = vadd.f32 %v490, %v3499
    %v3501 = vpop.f32.mrb[0].mxu0
    %v3502 = vadd.f32 %v486, %v3501
    %v3503 = vpop.f32.mrb[0].mxu0
    %v3504 = vadd.f32 %v490, %v3503
    %3505 = vmatprep.mubr.bf16.mxu0 %v710
    %3506 = vmatmul.mubr.bf16.gmra.mrb[0].mxu0 %v709
    %v3507 = vpop.f32.mrb[0].mxu0
    %v3508 = vadd.f32 %v486, %v3507
    %v3509 = vpop.f32.mrb[0].mxu0
    %v3510 = vadd.f32 %v490, %v3509
    %v3511 = vpop.f32.mrb[0].mxu0
    %v3512 = vadd.f32 %v486, %v3511
    %v3513 = vpop.f32.mrb[0].mxu0
    %v3514 = vadd.f32 %v490, %v3513
    %3515 = vmatprep.mubr.bf16.mxu0 %v713
    %3516 = vmatmul.mubr.bf16.gmra.mrb[0].mxu0 %v712
    %v3517 = vpop.f32.mrb[0].mxu0
    %v3518 = vadd.f32 %v486, %v3517
    %v3519 = vpop.f32.mrb[0].mxu0
    %v3520 = vadd.f32 %v490, %v3519
    %v3521 = vpop.f32.mrb[0].mxu0
    %v3522 = vadd.f32 %v486, %v3521
    %v3523 = vpop.f32.mrb[0].mxu0
    %v3524 = vadd.f32 %v490, %v3523
    %3525 = vmatprep.mubr.bf16.mxu0 %v716
    %3526 = vmatmul.mubr.bf16.gmra.mrb[0].mxu0 %v715
    %v3527 = vpop.f32.mrb[0].mxu0
    %v3528 = vadd.f32 %v486, %v3527
    %v3529 = vpop.f32.mrb[0].mxu0
    %v3530 = vadd.f32 %v490, %v3529
    %v3531 = vpop.f32.mrb[0].mxu0
    %v3532 = vadd.f32 %v486, %v3531
    %v3533 = vpop.f32.mrb[0].mxu0
    %v3534 = vadd.f32 %v490, %v3533
    %3535 = vmatprep.mubr.bf16.mxu0 %v719
    %3536 = vmatmul.mubr.bf16.gmra.mrb[0].mxu0 %v718
    %v3537 = vpop.f32.mrb[0].mxu0
    %v3538 = vadd.f32 %v486, %v3537
    %v3539 = vpop.f32.mrb[0].mxu0
    %v3540 = vadd.f32 %v490, %v3539
    %v3541 = vpop.f32.mrb[0].mxu0
    %v3542 = vadd.f32 %v486, %v3541
    %v3543 = vpop.f32.mrb[0].mxu0
    %v3544 = vadd.f32 %v490, %v3543
    %3545 = vmatprep.mubr.bf16.mxu0 %v722
    %3546 = vmatmul.mubr.bf16.gmra.mrb[0].mxu0 %v721
    %v3547 = vpop.f32.mrb[0].mxu0
    %v3548 = vadd.f32 %v486, %v3547
    %v3549 = vpop.f32.mrb[0].mxu0
    %v3550 = vadd.f32 %v490, %v3549
    %v3551 = vpop.f32.mrb[0].mxu0
    %v3552 = vadd.f32 %v486, %v3551
    %v3553 = vpop.f32.mrb[0].mxu0
    %v3554 = vadd.f32 %v490, %v3553
    %3555 = vmatprep.mubr.bf16.mxu0 %v725
    %3556 = vmatmul.mubr.bf16.gmra.mrb[0].mxu0 %v724
    %v3557 = vpop.f32.mrb[0].mxu0
    %v3558 = vadd.f32 %v486, %v3557
    %v3559 = vpop.f32.mrb[0].mxu0
    %v3560 = vadd.f32 %v490, %v3559
    %v3561 = vpop.f32.mrb[0].mxu0
    %v3562 = vadd.f32 %v486, %v3561
    %v3563 = vpop.f32.mrb[0].mxu0
    %v3564 = vadd.f32 %v490, %v3563
    %3565 = vdwg.mxu0
    %3566 = vmatprep.subr.bf16.mxu0 %v1838
    %3567 = vmatpush1.bf16.msra.mxu0 %v1837
    %3568 = vmatprep.subr.bf16.mxu0 %v1850
    %3569 = vmatpush1.bf16.msra.mxu0 %v1849
    %3570 = vmatprep.subr.bf16.mxu0 %v1862
    %3571 = vmatpush1.bf16.msra.mxu0 %v1861
    %3572 = vmatprep.subr.bf16.mxu0 %v1874
    %3573 = vmatpush1.bf16.msra.mxu0 %v1873
    %3574 = vmatprep.subr.bf16.mxu0 %v1886
    %3575 = vmatpush1.bf16.msra.mxu0 %v1885
    %3576 = vmatprep.subr.bf16.mxu0 %v1898
    %3577 = vmatpush1.bf16.msra.mxu0 %v1897
    %3578 = vmatprep.subr.bf16.mxu0 %v1910
    %3579 = vmatpush1.bf16.msra.mxu0 %v1909
    %3580 = vmatprep.subr.bf16.mxu0 %v1922
    %3581 = vmatpush1.bf16.msra.mxu0 %v1921
    %3582 = vmatprep.subr.bf16.mxu0 0
    %3583 = vmatpush1.bf16.msra.mxu0 0
    %3584 = vmatprep.subr.bf16.mxu0 0
    %3585 = vmatpush1.bf16.msra.mxu0 0
    %3586 = vmatprep.subr.bf16.mxu0 0
    %3587 = vmatpush1.bf16.msra.mxu0 0
    %3588 = vmatprep.subr.bf16.mxu0 0
    %3589 = vmatpush1.bf16.msra.mxu0 0
    %3590 = vmatprep.subr.bf16.mxu0 0
    %3591 = vmatpush1.bf16.msra.mxu0 0
    %3592 = vmatprep.subr.bf16.mxu0 0
    %3593 = vmatpush1.bf16.msra.mxu0 0
    %3594 = vmatprep.subr.bf16.mxu0 0
    %3595 = vmatpush1.bf16.msra.mxu0 0
    %3596 = vmatprep.subr.bf16.mxu0 0
    %3597 = vmatpush1.bf16.msra.mxu0 0
    %3598 = vmatprep.mubr.bf16.mxu0 0
    %3599 = vmatmul.mubr.bf16.gmra.mrb[0].mxu0 %v681
    %v3600 = vpop.f32.mrb[0].mxu0
    %v3601 = vadd.f32 %v3408, %v3600
    %v3602 = vpop.f32.mrb[0].mxu0
    %v3603 = vadd.f32 %v3410, %v3602
    %v3604 = vpop.f32.mrb[0].mxu0
    %v3605 = vadd.f32 %v3412, %v3604
    %v3606 = vpop.f32.mrb[0].mxu0
    %v3607 = vadd.f32 %v3414, %v3606
    %3608 = vmatprep.mubr.bf16.mxu0 0
    %3609 = vmatmul.mubr.bf16.gmra.mrb[0].mxu0 %v684
    %v3610 = vpop.f32.mrb[0].mxu0
    %v3611 = vadd.f32 %v3418, %v3610
    %v3612 = vpop.f32.mrb[0].mxu0
    %v3613 = vadd.f32 %v3420, %v3612
    %v3614 = vpop.f32.mrb[0].mxu0
    %v3615 = vadd.f32 %v3422, %v3614
    %v3616 = vpop.f32.mrb[0].mxu0
    %v3617 = vadd.f32 %v3424, %v3616
    %3618 = vmatprep.mubr.bf16.mxu0 0
    %3619 = vmatmul.mubr.bf16.gmra.mrb[0].mxu0 %v687
    %v3620 = vpop.f32.mrb[0].mxu0
    %v3621 = vadd.f32 %v3428, %v3620
    %v3622 = vpop.f32.mrb[0].mxu0
    %v3623 = vadd.f32 %v3430, %v3622
    %v3624 = vpop.f32.mrb[0].mxu0
    %v3625 = vadd.f32 %v3432, %v3624
    %v3626 = vpop.f32.mrb[0].mxu0
    %v3627 = vadd.f32 %v3434, %v3626
    %3628 = vmatprep.mubr.bf16.mxu0 0
    %3629 = vmatmul.mubr.bf16.gmra.mrb[0].mxu0 %v690
    %v3630 = vpop.f32.mrb[0].mxu0
    %v3631 = vadd.f32 %v3438, %v3630
    %v3632 = vpop.f32.mrb[0].mxu0
    %v3633 = vadd.f32 %v3440, %v3632
    %v3634 = vpop.f32.mrb[0].mxu0
    %v3635 = vadd.f32 %v3442, %v3634
    %v3636 = vpop.f32.mrb[0].mxu0
    %v3637 = vadd.f32 %v3444, %v3636
    %3638 = vmatprep.mubr.bf16.mxu0 0
    %3639 = vmatmul.mubr.bf16.gmra.mrb[0].mxu0 %v693
    %v3640 = vpop.f32.mrb[0].mxu0
    %v3641 = vadd.f32 %v3448, %v3640
    %v3642 = vpop.f32.mrb[0].mxu0
    %v3643 = vadd.f32 %v3450, %v3642
    %v3644 = vpop.f32.mrb[0].mxu0
    %v3645 = vadd.f32 %v3452, %v3644
    %v3646 = vpop.f32.mrb[0].mxu0
    %v3647 = vadd.f32 %v3454, %v3646
    %3648 = vmatprep.mubr.bf16.mxu0 0
    %3649 = vmatmul.mubr.bf16.gmra.mrb[0].mxu0 %v696
    %v3650 = vpop.f32.mrb[0].mxu0
    %v3651 = vadd.f32 %v3458, %v3650
    %v3652 = vpop.f32.mrb[0].mxu0
    %v3653 = vadd.f32 %v3460, %v3652
    %v3654 = vpop.f32.mrb[0].mxu0
    %v3655 = vadd.f32 %v3462, %v3654
    %v3656 = vpop.f32.mrb[0].mxu0
    %v3657 = vadd.f32 %v3464, %v3656
    %3658 = vmatprep.mubr.bf16.mxu0 0
    %3659 = vmatmul.mubr.bf16.gmra.mrb[0].mxu0 %v699
    %v3660 = vpop.f32.mrb[0].mxu0
    %v3661 = vadd.f32 %v3468, %v3660
    %v3662 = vpop.f32.mrb[0].mxu0
    %v3663 = vadd.f32 %v3470, %v3662
    %v3664 = vpop.f32.mrb[0].mxu0
    %v3665 = vadd.f32 %v3472, %v3664
    %v3666 = vpop.f32.mrb[0].mxu0
    %v3667 = vadd.f32 %v3474, %v3666
    %3668 = vmatprep.mubr.bf16.mxu0 0
    %3669 = vmatmul.mubr.bf16.gmra.mrb[0].mxu0 %v702
    %v3670 = vpop.f32.mrb[0].mxu0
    %v3671 = vadd.f32 %v3478, %v3670
    %v3672 = vpop.f32.mrb[0].mxu0
    %v3673 = vadd.f32 %v3480, %v3672
    %v3674 = vpop.f32.mrb[0].mxu0
    %v3675 = vadd.f32 %v3482, %v3674
    %v3676 = vpop.f32.mrb[0].mxu0
    %v3677 = vadd.f32 %v3484, %v3676
    %3678 = vmatprep.mubr.bf16.mxu0 0
    %3679 = vmatmul.mubr.bf16.gmra.mrb[0].mxu0 %v705
    %v3680 = vpop.f32.mrb[0].mxu0
    %v3681 = vadd.f32 %v3488, %v3680
    %v3682 = vpop.f32.mrb[0].mxu0
    %v3683 = vadd.f32 %v3490, %v3682
    %v3684 = vpop.f32.mrb[0].mxu0
    %v3685 = vadd.f32 %v3492, %v3684
    %v3686 = vpop.f32.mrb[0].mxu0
    %v3687 = vadd.f32 %v3494, %v3686
    %3688 = vmatprep.mubr.bf16.mxu0 0
    %3689 = vmatmul.mubr.bf16.gmra.mrb[0].mxu0 %v708
    %v3690 = vpop.f32.mrb[0].mxu0
    %v3691 = vadd.f32 %v3498, %v3690
    %v3692 = vpop.f32.mrb[0].mxu0
    %v3693 = vadd.f32 %v3500, %v3692
    %v3694 = vpop.f32.mrb[0].mxu0
    %v3695 = vadd.f32 %v3502, %v3694
    %v3696 = vpop.f32.mrb[0].mxu0
    %v3697 = vadd.f32 %v3504, %v3696
    %3698 = vmatprep.mubr.bf16.mxu0 0
    %3699 = vmatmul.mubr.bf16.gmra.mrb[0].mxu0 %v711
    %v3700 = vpop.f32.mrb[0].mxu0
    %v3701 = vadd.f32 %v3508, %v3700
    %v3702 = vpop.f32.mrb[0].mxu0
    %v3703 = vadd.f32 %v3510, %v3702
    %v3704 = vpop.f32.mrb[0].mxu0
    %v3705 = vadd.f32 %v3512, %v3704
    %v3706 = vpop.f32.mrb[0].mxu0
    %v3707 = vadd.f32 %v3514, %v3706
    %3708 = vmatprep.mubr.bf16.mxu0 0
    %3709 = vmatmul.mubr.bf16.gmra.mrb[0].mxu0 %v714
    %v3710 = vpop.f32.mrb[0].mxu0
    %v3711 = vadd.f32 %v3518, %v3710
    %v3712 = vpop.f32.mrb[0].mxu0
    %v3713 = vadd.f32 %v3520, %v3712
    %v3714 = vpop.f32.mrb[0].mxu0
    %v3715 = vadd.f32 %v3522, %v3714
    %v3716 = vpop.f32.mrb[0].mxu0
    %v3717 = vadd.f32 %v3524, %v3716
    %3718 = vmatprep.mubr.bf16.mxu0 0
    %3719 = vmatmul.mubr.bf16.gmra.mrb[0].mxu0 %v717
    %v3720 = vpop.f32.mrb[0].mxu0
    %v3721 = vadd.f32 %v3528, %v3720
    %v3722 = vpop.f32.mrb[0].mxu0
    %v3723 = vadd.f32 %v3530, %v3722
    %v3724 = vpop.f32.mrb[0].mxu0
    %v3725 = vadd.f32 %v3532, %v3724
    %v3726 = vpop.f32.mrb[0].mxu0
    %v3727 = vadd.f32 %v3534, %v3726
    %3728 = vmatprep.mubr.bf16.mxu0 0
    %3729 = vmatmul.mubr.bf16.gmra.mrb[0].mxu0 %v720
    %v3730 = vpop.f32.mrb[0].mxu0
    %v3731 = vadd.f32 %v3538, %v3730
    %v3732 = vpop.f32.mrb[0].mxu0
    %v3733 = vadd.f32 %v3540, %v3732
    %v3734 = vpop.f32.mrb[0].mxu0
    %v3735 = vadd.f32 %v3542, %v3734
    %v3736 = vpop.f32.mrb[0].mxu0
    %v3737 = vadd.f32 %v3544, %v3736
    %3738 = vmatprep.mubr.bf16.mxu0 0
    %3739 = vmatmul.mubr.bf16.gmra.mrb[0].mxu0 %v723
    %v3740 = vpop.f32.mrb[0].mxu0
    %v3741 = vadd.f32 %v3548, %v3740
    %v3742 = vpop.f32.mrb[0].mxu0
    %v3743 = vadd.f32 %v3550, %v3742
    %v3744 = vpop.f32.mrb[0].mxu0
    %v3745 = vadd.f32 %v3552, %v3744
    %v3746 = vpop.f32.mrb[0].mxu0
    %v3747 = vadd.f32 %v3554, %v3746
    %3748 = vmatprep.mubr.bf16.mxu0 0
    %3749 = vmatmul.mubr.bf16.gmra.mrb[0].mxu0 %v726
    %v3750 = vpop.f32.mrb[0].mxu0
    %v3751 = vadd.f32 %v3558, %v3750
    %v3752 = vpop.f32.mrb[0].mxu0
    %v3753 = vadd.f32 %v3560, %v3752
    %v3754 = vpop.f32.mrb[0].mxu0
    %v3755 = vadd.f32 %v3562, %v3754
    %v3756 = vpop.f32.mrb[0].mxu0
    %v3757 = vadd.f32 %v3564, %v3756
    %3758 = vdwg.mxu0
    %3759 = vmatprep.subr.bf16.mxu0 %v1648
    %3760 = vmatpush1.bf16.msra.mxu0 %v1647
    %3761 = vmatprep.subr.bf16.mxu0 %v1660
    %3762 = vmatpush1.bf16.msra.mxu0 %v1659
    %3763 = vmatprep.subr.bf16.mxu0 %v1672
    %3764 = vmatpush1.bf16.msra.mxu0 %v1671
    %3765 = vmatprep.subr.bf16.mxu0 %v1684
    %3766 = vmatpush1.bf16.msra.mxu0 %v1683
    %3767 = vmatprep.subr.bf16.mxu0 %v1696
    %3768 = vmatpush1.bf16.msra.mxu0 %v1695
    %3769 = vmatprep.subr.bf16.mxu0 %v1708
    %3770 = vmatpush1.bf16.msra.mxu0 %v1707
    %3771 = vmatprep.subr.bf16.mxu0 %v1720
    %3772 = vmatpush1.bf16.msra.mxu0 %v1719
    %3773 = vmatprep.subr.bf16.mxu0 %v1732
    %3774 = vmatpush1.bf16.msra.mxu0 %v1731
    %3775 = vmatprep.subr.bf16.mxu0 %v1744
    %3776 = vmatpush1.bf16.msra.mxu0 %v1743
    %3777 = vmatprep.subr.bf16.mxu0 %v1756
    %3778 = vmatpush1.bf16.msra.mxu0 %v1755
    %3779 = vmatprep.subr.bf16.mxu0 %v1768
    %3780 = vmatpush1.bf16.msra.mxu0 %v1767
    %3781 = vmatprep.subr.bf16.mxu0 %v1780
    %3782 = vmatpush1.bf16.msra.mxu0 %v1779
    %3783 = vmatprep.subr.bf16.mxu0 %v1792
    %3784 = vmatpush1.bf16.msra.mxu0 %v1791
    %3785 = vmatprep.subr.bf16.mxu0 %v1804
    %3786 = vmatpush1.bf16.msra.mxu0 %v1803
    %3787 = vmatprep.subr.bf16.mxu0 %v1816
    %3788 = vmatpush1.bf16.msra.mxu0 %v1815
    %3789 = vmatprep.subr.bf16.mxu0 %v1828
    %3790 = vmatpush1.bf16.msra.mxu0 %v1827
    %3791 = vmatprep.mubr.bf16.mxu0 %v680
    %3792 = vmatmul.mubr.bf16.gmra.mrb[0].mxu0 %v679
    %v3793 = vpop.f32.mrb[0].mxu0
    %v3794 = vadd.f32 %v494, %v3793
    %v3795 = vpop.f32.mrb[0].mxu0
    %v3796 = vadd.f32 %v498, %v3795
    %v3797 = vpop.f32.mrb[0].mxu0
    %v3798 = vadd.f32 %v494, %v3797
    %v3799 = vpop.f32.mrb[0].mxu0
    %v3800 = vadd.f32 %v498, %v3799
    %3801 = vmatprep.mubr.bf16.mxu0 %v683
    %3802 = vmatmul.mubr.bf16.gmra.mrb[0].mxu0 %v682
    %v3803 = vpop.f32.mrb[0].mxu0
    %v3804 = vadd.f32 %v494, %v3803
    %v3805 = vpop.f32.mrb[0].mxu0
    %v3806 = vadd.f32 %v498, %v3805
    %v3807 = vpop.f32.mrb[0].mxu0
    %v3808 = vadd.f32 %v494, %v3807
    %v3809 = vpop.f32.mrb[0].mxu0
    %v3810 = vadd.f32 %v498, %v3809
    %3811 = vmatprep.mubr.bf16.mxu0 %v686
    %3812 = vmatmul.mubr.bf16.gmra.mrb[0].mxu0 %v685
    %v3813 = vpop.f32.mrb[0].mxu0
    %v3814 = vadd.f32 %v494, %v3813
    %v3815 = vpop.f32.mrb[0].mxu0
    %v3816 = vadd.f32 %v498, %v3815
    %v3817 = vpop.f32.mrb[0].mxu0
    %v3818 = vadd.f32 %v494, %v3817
    %v3819 = vpop.f32.mrb[0].mxu0
    %v3820 = vadd.f32 %v498, %v3819
    %3821 = vmatprep.mubr.bf16.mxu0 %v689
    %3822 = vmatmul.mubr.bf16.gmra.mrb[0].mxu0 %v688
    %v3823 = vpop.f32.mrb[0].mxu0
    %v3824 = vadd.f32 %v494, %v3823
    %v3825 = vpop.f32.mrb[0].mxu0
    %v3826 = vadd.f32 %v498, %v3825
    %v3827 = vpop.f32.mrb[0].mxu0
    %v3828 = vadd.f32 %v494, %v3827
    %v3829 = vpop.f32.mrb[0].mxu0
    %v3830 = vadd.f32 %v498, %v3829
    %3831 = vmatprep.mubr.bf16.mxu0 %v692
    %3832 = vmatmul.mubr.bf16.gmra.mrb[0].mxu0 %v691
    %v3833 = vpop.f32.mrb[0].mxu0
    %v3834 = vadd.f32 %v494, %v3833
    %v3835 = vpop.f32.mrb[0].mxu0
    %v3836 = vadd.f32 %v498, %v3835
    %v3837 = vpop.f32.mrb[0].mxu0
    %v3838 = vadd.f32 %v494, %v3837
    %v3839 = vpop.f32.mrb[0].mxu0
    %v3840 = vadd.f32 %v498, %v3839
    %3841 = vmatprep.mubr.bf16.mxu0 %v695
    %3842 = vmatmul.mubr.bf16.gmra.mrb[0].mxu0 %v694
    %v3843 = vpop.f32.mrb[0].mxu0
    %v3844 = vadd.f32 %v494, %v3843
    %v3845 = vpop.f32.mrb[0].mxu0
    %v3846 = vadd.f32 %v498, %v3845
    %v3847 = vpop.f32.mrb[0].mxu0
    %v3848 = vadd.f32 %v494, %v3847
    %v3849 = vpop.f32.mrb[0].mxu0
    %v3850 = vadd.f32 %v498, %v3849
    %3851 = vmatprep.mubr.bf16.mxu0 %v698
    %3852 = vmatmul.mubr.bf16.gmra.mrb[0].mxu0 %v697
    %v3853 = vpop.f32.mrb[0].mxu0
    %v3854 = vadd.f32 %v494, %v3853
    %v3855 = vpop.f32.mrb[0].mxu0
    %v3856 = vadd.f32 %v498, %v3855
    %v3857 = vpop.f32.mrb[0].mxu0
    %v3858 = vadd.f32 %v494, %v3857
    %v3859 = vpop.f32.mrb[0].mxu0
    %v3860 = vadd.f32 %v498, %v3859
    %3861 = vmatprep.mubr.bf16.mxu0 %v701
    %3862 = vmatmul.mubr.bf16.gmra.mrb[0].mxu0 %v700
    %v3863 = vpop.f32.mrb[0].mxu0
    %v3864 = vadd.f32 %v494, %v3863
    %v3865 = vpop.f32.mrb[0].mxu0
    %v3866 = vadd.f32 %v498, %v3865
    %v3867 = vpop.f32.mrb[0].mxu0
    %v3868 = vadd.f32 %v494, %v3867
    %v3869 = vpop.f32.mrb[0].mxu0
    %v3870 = vadd.f32 %v498, %v3869
    %3871 = vmatprep.mubr.bf16.mxu0 %v704
    %3872 = vmatmul.mubr.bf16.gmra.mrb[0].mxu0 %v703
    %v3873 = vpop.f32.mrb[0].mxu0
    %v3874 = vadd.f32 %v494, %v3873
    %v3875 = vpop.f32.mrb[0].mxu0
    %v3876 = vadd.f32 %v498, %v3875
    %v3877 = vpop.f32.mrb[0].mxu0
    %v3878 = vadd.f32 %v494, %v3877
    %v3879 = vpop.f32.mrb[0].mxu0
    %v3880 = vadd.f32 %v498, %v3879
    %3881 = vmatprep.mubr.bf16.mxu0 %v707
    %3882 = vmatmul.mubr.bf16.gmra.mrb[0].mxu0 %v706
    %v3883 = vpop.f32.mrb[0].mxu0
    %v3884 = vadd.f32 %v494, %v3883
    %v3885 = vpop.f32.mrb[0].mxu0
    %v3886 = vadd.f32 %v498, %v3885
    %v3887 = vpop.f32.mrb[0].mxu0
    %v3888 = vadd.f32 %v494, %v3887
    %v3889 = vpop.f32.mrb[0].mxu0
    %v3890 = vadd.f32 %v498, %v3889
    %3891 = vmatprep.mubr.bf16.mxu0 %v710
    %3892 = vmatmul.mubr.bf16.gmra.mrb[0].mxu0 %v709
    %v3893 = vpop.f32.mrb[0].mxu0
    %v3894 = vadd.f32 %v494, %v3893
    %v3895 = vpop.f32.mrb[0].mxu0
    %v3896 = vadd.f32 %v498, %v3895
    %v3897 = vpop.f32.mrb[0].mxu0
    %v3898 = vadd.f32 %v494, %v3897
    %v3899 = vpop.f32.mrb[0].mxu0
    %v3900 = vadd.f32 %v498, %v3899
    %3901 = vmatprep.mubr.bf16.mxu0 %v713
    %3902 = vmatmul.mubr.bf16.gmra.mrb[0].mxu0 %v712
    %v3903 = vpop.f32.mrb[0].mxu0
    %v3904 = vadd.f32 %v494, %v3903
    %v3905 = vpop.f32.mrb[0].mxu0
    %v3906 = vadd.f32 %v498, %v3905
    %v3907 = vpop.f32.mrb[0].mxu0
    %v3908 = vadd.f32 %v494, %v3907
    %v3909 = vpop.f32.mrb[0].mxu0
    %v3910 = vadd.f32 %v498, %v3909
    %3911 = vmatprep.mubr.bf16.mxu0 %v716
    %3912 = vmatmul.mubr.bf16.gmra.mrb[0].mxu0 %v715
    %v3913 = vpop.f32.mrb[0].mxu0
    %v3914 = vadd.f32 %v494, %v3913
    %v3915 = vpop.f32.mrb[0].mxu0
    %v3916 = vadd.f32 %v498, %v3915
    %v3917 = vpop.f32.mrb[0].mxu0
    %v3918 = vadd.f32 %v494, %v3917
    %v3919 = vpop.f32.mrb[0].mxu0
    %v3920 = vadd.f32 %v498, %v3919
    %3921 = vmatprep.mubr.bf16.mxu0 %v719
    %3922 = vmatmul.mubr.bf16.gmra.mrb[0].mxu0 %v718
    %v3923 = vpop.f32.mrb[0].mxu0
    %v3924 = vadd.f32 %v494, %v3923
    %v3925 = vpop.f32.mrb[0].mxu0
    %v3926 = vadd.f32 %v498, %v3925
    %v3927 = vpop.f32.mrb[0].mxu0
    %v3928 = vadd.f32 %v494, %v3927
    %v3929 = vpop.f32.mrb[0].mxu0
    %v3930 = vadd.f32 %v498, %v3929
    %3931 = vmatprep.mubr.bf16.mxu0 %v722
    %3932 = vmatmul.mubr.bf16.gmra.mrb[0].mxu0 %v721
    %v3933 = vpop.f32.mrb[0].mxu0
    %v3934 = vadd.f32 %v494, %v3933
    %v3935 = vpop.f32.mrb[0].mxu0
    %v3936 = vadd.f32 %v498, %v3935
    %v3937 = vpop.f32.mrb[0].mxu0
    %v3938 = vadd.f32 %v494, %v3937
    %v3939 = vpop.f32.mrb[0].mxu0
    %v3940 = vadd.f32 %v498, %v3939
    %3941 = vmatprep.mubr.bf16.mxu0 %v725
    %3942 = vmatmul.mubr.bf16.gmra.mrb[0].mxu0 %v724
    %v3943 = vpop.f32.mrb[0].mxu0
    %v3944 = vadd.f32 %v494, %v3943
    %v3945 = vpop.f32.mrb[0].mxu0
    %v3946 = vadd.f32 %v498, %v3945
    %v3947 = vpop.f32.mrb[0].mxu0
    %v3948 = vadd.f32 %v494, %v3947
    %v3949 = vpop.f32.mrb[0].mxu0
    %v3950 = vadd.f32 %v498, %v3949
    %3951 = vdwg.mxu0
    %3952 = vmatprep.subr.bf16.mxu0 %v1840
    %3953 = vmatpush1.bf16.msra.mxu0 %v1839
    %3954 = vmatprep.subr.bf16.mxu0 %v1852
    %3955 = vmatpush1.bf16.msra.mxu0 %v1851
    %3956 = vmatprep.subr.bf16.mxu0 %v1864
    %3957 = vmatpush1.bf16.msra.mxu0 %v1863
    %3958 = vmatprep.subr.bf16.mxu0 %v1876
    %3959 = vmatpush1.bf16.msra.mxu0 %v1875
    %3960 = vmatprep.subr.bf16.mxu0 %v1888
    %3961 = vmatpush1.bf16.msra.mxu0 %v1887
    %3962 = vmatprep.subr.bf16.mxu0 %v1900
    %3963 = vmatpush1.bf16.msra.mxu0 %v1899
    %3964 = vmatprep.subr.bf16.mxu0 %v1912
    %3965 = vmatpush1.bf16.msra.mxu0 %v1911
    %3966 = vmatprep.subr.bf16.mxu0 %v1924
    %3967 = vmatpush1.bf16.msra.mxu0 %v1923
    %3968 = vmatprep.subr.bf16.mxu0 0
    %3969 = vmatpush1.bf16.msra.mxu0 0
    %3970 = vmatprep.subr.bf16.mxu0 0
    %3971 = vmatpush1.bf16.msra.mxu0 0
    %3972 = vmatprep.subr.bf16.mxu0 0
    %3973 = vmatpush1.bf16.msra.mxu0 0
    %3974 = vmatprep.subr.bf16.mxu0 0
    %3975 = vmatpush1.bf16.msra.mxu0 0
    %3976 = vmatprep.subr.bf16.mxu0 0
    %3977 = vmatpush1.bf16.msra.mxu0 0
    %3978 = vmatprep.subr.bf16.mxu0 0
    %3979 = vmatpush1.bf16.msra.mxu0 0
    %3980 = vmatprep.subr.bf16.mxu0 0
    %3981 = vmatpush1.bf16.msra.mxu0 0
    %3982 = vmatprep.subr.bf16.mxu0 0
    %3983 = vmatpush1.bf16.msra.mxu0 0
    %3984 = vmatprep.mubr.bf16.mxu0 0
    %3985 = vmatmul.mubr.bf16.gmra.mrb[0].mxu0 %v681
    %v3986 = vpop.f32.mrb[0].mxu0
    %v3987 = vadd.f32 %v3794, %v3986
    %v3988 = vpop.f32.mrb[0].mxu0
    %v3989 = vadd.f32 %v3796, %v3988
    %v3990 = vpop.f32.mrb[0].mxu0
    %v3991 = vadd.f32 %v3798, %v3990
    %v3992 = vpop.f32.mrb[0].mxu0
    %v3993 = vadd.f32 %v3800, %v3992
    %3994 = vmatprep.mubr.bf16.mxu0 0
    %3995 = vmatmul.mubr.bf16.gmra.mrb[0].mxu0 %v684
    %v3996 = vpop.f32.mrb[0].mxu0
    %v3997 = vadd.f32 %v3804, %v3996
    %v3998 = vpop.f32.mrb[0].mxu0
    %v3999 = vadd.f32 %v3806, %v3998
    %v4000 = vpop.f32.mrb[0].mxu0
    %v4001 = vadd.f32 %v3808, %v4000
    %v4002 = vpop.f32.mrb[0].mxu0
    %v4003 = vadd.f32 %v3810, %v4002
    %4004 = vmatprep.mubr.bf16.mxu0 0
    %4005 = vmatmul.mubr.bf16.gmra.mrb[0].mxu0 %v687
    %v4006 = vpop.f32.mrb[0].mxu0
    %v4007 = vadd.f32 %v3814, %v4006
    %v4008 = vpop.f32.mrb[0].mxu0
    %v4009 = vadd.f32 %v3816, %v4008
    %v4010 = vpop.f32.mrb[0].mxu0
    %v4011 = vadd.f32 %v3818, %v4010
    %v4012 = vpop.f32.mrb[0].mxu0
    %v4013 = vadd.f32 %v3820, %v4012
    %4014 = vmatprep.mubr.bf16.mxu0 0
    %4015 = vmatmul.mubr.bf16.gmra.mrb[0].mxu0 %v690
    %v4016 = vpop.f32.mrb[0].mxu0
    %v4017 = vadd.f32 %v3824, %v4016
    %v4018 = vpop.f32.mrb[0].mxu0
    %v4019 = vadd.f32 %v3826, %v4018
    %v4020 = vpop.f32.mrb[0].mxu0
    %v4021 = vadd.f32 %v3828, %v4020
    %v4022 = vpop.f32.mrb[0].mxu0
    %v4023 = vadd.f32 %v3830, %v4022
    %4024 = vmatprep.mubr.bf16.mxu0 0
    %4025 = vmatmul.mubr.bf16.gmra.mrb[0].mxu0 %v693
    %v4026 = vpop.f32.mrb[0].mxu0
    %v4027 = vadd.f32 %v3834, %v4026
    %v4028 = vpop.f32.mrb[0].mxu0
    %v4029 = vadd.f32 %v3836, %v4028
    %v4030 = vpop.f32.mrb[0].mxu0
    %v4031 = vadd.f32 %v3838, %v4030
    %v4032 = vpop.f32.mrb[0].mxu0
    %v4033 = vadd.f32 %v3840, %v4032
    %4034 = vmatprep.mubr.bf16.mxu0 0
    %4035 = vmatmul.mubr.bf16.gmra.mrb[0].mxu0 %v696
    %v4036 = vpop.f32.mrb[0].mxu0
    %v4037 = vadd.f32 %v3844, %v4036
    %v4038 = vpop.f32.mrb[0].mxu0
    %v4039 = vadd.f32 %v3846, %v4038
    %v4040 = vpop.f32.mrb[0].mxu0
    %v4041 = vadd.f32 %v3848, %v4040
    %v4042 = vpop.f32.mrb[0].mxu0
    %v4043 = vadd.f32 %v3850, %v4042
    %4044 = vmatprep.mubr.bf16.mxu0 0
    %4045 = vmatmul.mubr.bf16.gmra.mrb[0].mxu0 %v699
    %v4046 = vpop.f32.mrb[0].mxu0
    %v4047 = vadd.f32 %v3854, %v4046
    %v4048 = vpop.f32.mrb[0].mxu0
    %v4049 = vadd.f32 %v3856, %v4048
    %v4050 = vpop.f32.mrb[0].mxu0
    %v4051 = vadd.f32 %v3858, %v4050
    %v4052 = vpop.f32.mrb[0].mxu0
    %v4053 = vadd.f32 %v3860, %v4052
    %4054 = vmatprep.mubr.bf16.mxu0 0
    %4055 = vmatmul.mubr.bf16.gmra.mrb[0].mxu0 %v702
    %v4056 = vpop.f32.mrb[0].mxu0
    %v4057 = vadd.f32 %v3864, %v4056
    %v4058 = vpop.f32.mrb[0].mxu0
    %v4059 = vadd.f32 %v3866, %v4058
    %v4060 = vpop.f32.mrb[0].mxu0
    %v4061 = vadd.f32 %v3868, %v4060
    %v4062 = vpop.f32.mrb[0].mxu0
    %v4063 = vadd.f32 %v3870, %v4062
    %4064 = vmatprep.mubr.bf16.mxu0 0
    %4065 = vmatmul.mubr.bf16.gmra.mrb[0].mxu0 %v705
    %v4066 = vpop.f32.mrb[0].mxu0
    %v4067 = vadd.f32 %v3874, %v4066
    %v4068 = vpop.f32.mrb[0].mxu0
    %v4069 = vadd.f32 %v3876, %v4068
    %v4070 = vpop.f32.mrb[0].mxu0
    %v4071 = vadd.f32 %v3878, %v4070
    %v4072 = vpop.f32.mrb[0].mxu0
    %v4073 = vadd.f32 %v3880, %v4072
    %4074 = vmatprep.mubr.bf16.mxu0 0
    %4075 = vmatmul.mubr.bf16.gmra.mrb[0].mxu0 %v708
    %v4076 = vpop.f32.mrb[0].mxu0
    %v4077 = vadd.f32 %v3884, %v4076
    %v4078 = vpop.f32.mrb[0].mxu0
    %v4079 = vadd.f32 %v3886, %v4078
    %v4080 = vpop.f32.mrb[0].mxu0
    %v4081 = vadd.f32 %v3888, %v4080
    %v4082 = vpop.f32.mrb[0].mxu0
    %v4083 = vadd.f32 %v3890, %v4082
    %4084 = vmatprep.mubr.bf16.mxu0 0
    %4085 = vmatmul.mubr.bf16.gmra.mrb[0].mxu0 %v711
    %v4086 = vpop.f32.mrb[0].mxu0
    %v4087 = vadd.f32 %v3894, %v4086
    %v4088 = vpop.f32.mrb[0].mxu0
    %v4089 = vadd.f32 %v3896, %v4088
    %v4090 = vpop.f32.mrb[0].mxu0
    %v4091 = vadd.f32 %v3898, %v4090
    %v4092 = vpop.f32.mrb[0].mxu0
    %v4093 = vadd.f32 %v3900, %v4092
    %4094 = vmatprep.mubr.bf16.mxu0 0
    %4095 = vmatmul.mubr.bf16.gmra.mrb[0].mxu0 %v714
    %v4096 = vpop.f32.mrb[0].mxu0
    %v4097 = vadd.f32 %v3904, %v4096
    %v4098 = vpop.f32.mrb[0].mxu0
    %v4099 = vadd.f32 %v3906, %v4098
    %v4100 = vpop.f32.mrb[0].mxu0
    %v4101 = vadd.f32 %v3908, %v4100
    %v4102 = vpop.f32.mrb[0].mxu0
    %v4103 = vadd.f32 %v3910, %v4102
    %4104 = vmatprep.mubr.bf16.mxu0 0
    %4105 = vmatmul.mubr.bf16.gmra.mrb[0].mxu0 %v717
    %v4106 = vpop.f32.mrb[0].mxu0
    %v4107 = vadd.f32 %v3914, %v4106
    %v4108 = vpop.f32.mrb[0].mxu0
    %v4109 = vadd.f32 %v3916, %v4108
    %v4110 = vpop.f32.mrb[0].mxu0
    %v4111 = vadd.f32 %v3918, %v4110
    %v4112 = vpop.f32.mrb[0].mxu0
    %v4113 = vadd.f32 %v3920, %v4112
    %4114 = vmatprep.mubr.bf16.mxu0 0
    %4115 = vmatmul.mubr.bf16.gmra.mrb[0].mxu0 %v720
    %v4116 = vpop.f32.mrb[0].mxu0
    %v4117 = vadd.f32 %v3924, %v4116
    %v4118 = vpop.f32.mrb[0].mxu0
    %v4119 = vadd.f32 %v3926, %v4118
    %v4120 = vpop.f32.mrb[0].mxu0
    %v4121 = vadd.f32 %v3928, %v4120
    %v4122 = vpop.f32.mrb[0].mxu0
    %v4123 = vadd.f32 %v3930, %v4122
    %4124 = vmatprep.mubr.bf16.mxu0 0
    %4125 = vmatmul.mubr.bf16.gmra.mrb[0].mxu0 %v723
    %v4126 = vpop.f32.mrb[0].mxu0
    %v4127 = vadd.f32 %v3934, %v4126
    %v4128 = vpop.f32.mrb[0].mxu0
    %v4129 = vadd.f32 %v3936, %v4128
    %v4130 = vpop.f32.mrb[0].mxu0
    %v4131 = vadd.f32 %v3938, %v4130
    %v4132 = vpop.f32.mrb[0].mxu0
    %v4133 = vadd.f32 %v3940, %v4132
    %4134 = vmatprep.mubr.bf16.mxu0 0
    %4135 = vmatmul.mubr.bf16.gmra.mrb[0].mxu0 %v726
    %v4136 = vpop.f32.mrb[0].mxu0
    %v4137 = vadd.f32 %v3944, %v4136
    %v4138 = vpop.f32.mrb[0].mxu0
    %v4139 = vadd.f32 %v3946, %v4138
    %v4140 = vpop.f32.mrb[0].mxu0
    %v4141 = vadd.f32 %v3948, %v4140
    %v4142 = vpop.f32.mrb[0].mxu0
    %v4143 = vadd.f32 %v3950, %v4142
    %4144 = vdwg.mxu0
    %4145 = vmatprep.subr.bf16.mxu0 %v1650
    %4146 = vmatpush1.bf16.msra.mxu0 %v1649
    %4147 = vmatprep.subr.bf16.mxu0 %v1662
    %4148 = vmatpush1.bf16.msra.mxu0 %v1661
    %4149 = vmatprep.subr.bf16.mxu0 %v1674
    %4150 = vmatpush1.bf16.msra.mxu0 %v1673
    %4151 = vmatprep.subr.bf16.mxu0 %v1686
    %4152 = vmatpush1.bf16.msra.mxu0 %v1685
    %4153 = vmatprep.subr.bf16.mxu0 %v1698
    %4154 = vmatpush1.bf16.msra.mxu0 %v1697
    %4155 = vmatprep.subr.bf16.mxu0 %v1710
    %4156 = vmatpush1.bf16.msra.mxu0 %v1709
    %4157 = vmatprep.subr.bf16.mxu0 %v1722
    %4158 = vmatpush1.bf16.msra.mxu0 %v1721
    %4159 = vmatprep.subr.bf16.mxu0 %v1734
    %4160 = vmatpush1.bf16.msra.mxu0 %v1733
    %4161 = vmatprep.subr.bf16.mxu0 %v1746
    %4162 = vmatpush1.bf16.msra.mxu0 %v1745
    %4163 = vmatprep.subr.bf16.mxu0 %v1758
    %4164 = vmatpush1.bf16.msra.mxu0 %v1757
    %4165 = vmatprep.subr.bf16.mxu0 %v1770
    %4166 = vmatpush1.bf16.msra.mxu0 %v1769
    %4167 = vmatprep.subr.bf16.mxu0 %v1782
    %4168 = vmatpush1.bf16.msra.mxu0 %v1781
    %4169 = vmatprep.subr.bf16.mxu0 %v1794
    %4170 = vmatpush1.bf16.msra.mxu0 %v1793
    %4171 = vmatprep.subr.bf16.mxu0 %v1806
    %4172 = vmatpush1.bf16.msra.mxu0 %v1805
    %4173 = vmatprep.subr.bf16.mxu0 %v1818
    %4174 = vmatpush1.bf16.msra.mxu0 %v1817
    %4175 = vmatprep.subr.bf16.mxu0 %v1830
    %4176 = vmatpush1.bf16.msra.mxu0 %v1829
    %4177 = vmatprep.mubr.bf16.mxu0 %v680
    %4178 = vmatmul.mubr.bf16.gmra.mrb[0].mxu0 %v679
    %v4179 = vpop.f32.mrb[0].mxu0
    %v4180 = vadd.f32 %v502, %v4179
    %v4181 = vpop.f32.mrb[0].mxu0
    %v4182 = vadd.f32 %v506, %v4181
    %v4183 = vpop.f32.mrb[0].mxu0
    %v4184 = vadd.f32 %v502, %v4183
    %v4185 = vpop.f32.mrb[0].mxu0
    %v4186 = vadd.f32 %v506, %v4185
    %4187 = vmatprep.mubr.bf16.mxu0 %v683
    %4188 = vmatmul.mubr.bf16.gmra.mrb[0].mxu0 %v682
    %v4189 = vpop.f32.mrb[0].mxu0
    %v4190 = vadd.f32 %v502, %v4189
    %v4191 = vpop.f32.mrb[0].mxu0
    %v4192 = vadd.f32 %v506, %v4191
    %v4193 = vpop.f32.mrb[0].mxu0
    %v4194 = vadd.f32 %v502, %v4193
    %v4195 = vpop.f32.mrb[0].mxu0
    %v4196 = vadd.f32 %v506, %v4195
    %4197 = vmatprep.mubr.bf16.mxu0 %v686
    %4198 = vmatmul.mubr.bf16.gmra.mrb[0].mxu0 %v685
    %v4199 = vpop.f32.mrb[0].mxu0
    %v4200 = vadd.f32 %v502, %v4199
    %v4201 = vpop.f32.mrb[0].mxu0
    %v4202 = vadd.f32 %v506, %v4201
    %v4203 = vpop.f32.mrb[0].mxu0
    %v4204 = vadd.f32 %v502, %v4203
    %v4205 = vpop.f32.mrb[0].mxu0
    %v4206 = vadd.f32 %v506, %v4205
    %4207 = vmatprep.mubr.bf16.mxu0 %v689
    %4208 = vmatmul.mubr.bf16.gmra.mrb[0].mxu0 %v688
    %v4209 = vpop.f32.mrb[0].mxu0
    %v4210 = vadd.f32 %v502, %v4209
    %v4211 = vpop.f32.mrb[0].mxu0
    %v4212 = vadd.f32 %v506, %v4211
    %v4213 = vpop.f32.mrb[0].mxu0
    %v4214 = vadd.f32 %v502, %v4213
    %v4215 = vpop.f32.mrb[0].mxu0
    %v4216 = vadd.f32 %v506, %v4215
    %4217 = vmatprep.mubr.bf16.mxu0 %v692
    %4218 = vmatmul.mubr.bf16.gmra.mrb[0].mxu0 %v691
    %v4219 = vpop.f32.mrb[0].mxu0
    %v4220 = vadd.f32 %v502, %v4219
    %v4221 = vpop.f32.mrb[0].mxu0
    %v4222 = vadd.f32 %v506, %v4221
    %v4223 = vpop.f32.mrb[0].mxu0
    %v4224 = vadd.f32 %v502, %v4223
    %v4225 = vpop.f32.mrb[0].mxu0
    %v4226 = vadd.f32 %v506, %v4225
    %4227 = vmatprep.mubr.bf16.mxu0 %v695
    %4228 = vmatmul.mubr.bf16.gmra.mrb[0].mxu0 %v694
    %v4229 = vpop.f32.mrb[0].mxu0
    %v4230 = vadd.f32 %v502, %v4229
    %v4231 = vpop.f32.mrb[0].mxu0
    %v4232 = vadd.f32 %v506, %v4231
    %v4233 = vpop.f32.mrb[0].mxu0
    %v4234 = vadd.f32 %v502, %v4233
    %v4235 = vpop.f32.mrb[0].mxu0
    %v4236 = vadd.f32 %v506, %v4235
    %4237 = vmatprep.mubr.bf16.mxu0 %v698
    %4238 = vmatmul.mubr.bf16.gmra.mrb[0].mxu0 %v697
    %v4239 = vpop.f32.mrb[0].mxu0
    %v4240 = vadd.f32 %v502, %v4239
    %v4241 = vpop.f32.mrb[0].mxu0
    %v4242 = vadd.f32 %v506, %v4241
    %v4243 = vpop.f32.mrb[0].mxu0
    %v4244 = vadd.f32 %v502, %v4243
    %v4245 = vpop.f32.mrb[0].mxu0
    %v4246 = vadd.f32 %v506, %v4245
    %4247 = vmatprep.mubr.bf16.mxu0 %v701
    %4248 = vmatmul.mubr.bf16.gmra.mrb[0].mxu0 %v700
    %v4249 = vpop.f32.mrb[0].mxu0
    %v4250 = vadd.f32 %v502, %v4249
    %v4251 = vpop.f32.mrb[0].mxu0
    %v4252 = vadd.f32 %v506, %v4251
    %v4253 = vpop.f32.mrb[0].mxu0
    %v4254 = vadd.f32 %v502, %v4253
    %v4255 = vpop.f32.mrb[0].mxu0
    %v4256 = vadd.f32 %v506, %v4255
    %4257 = vmatprep.mubr.bf16.mxu0 %v704
    %4258 = vmatmul.mubr.bf16.gmra.mrb[0].mxu0 %v703
    %v4259 = vpop.f32.mrb[0].mxu0
    %v4260 = vadd.f32 %v502, %v4259
    %v4261 = vpop.f32.mrb[0].mxu0
    %v4262 = vadd.f32 %v506, %v4261
    %v4263 = vpop.f32.mrb[0].mxu0
    %v4264 = vadd.f32 %v502, %v4263
    %v4265 = vpop.f32.mrb[0].mxu0
    %v4266 = vadd.f32 %v506, %v4265
    %4267 = vmatprep.mubr.bf16.mxu0 %v707
    %4268 = vmatmul.mubr.bf16.gmra.mrb[0].mxu0 %v706
    %v4269 = vpop.f32.mrb[0].mxu0
    %v4270 = vadd.f32 %v502, %v4269
    %v4271 = vpop.f32.mrb[0].mxu0
    %v4272 = vadd.f32 %v506, %v4271
    %v4273 = vpop.f32.mrb[0].mxu0
    %v4274 = vadd.f32 %v502, %v4273
    %v4275 = vpop.f32.mrb[0].mxu0
    %v4276 = vadd.f32 %v506, %v4275
    %4277 = vmatprep.mubr.bf16.mxu0 %v710
    %4278 = vmatmul.mubr.bf16.gmra.mrb[0].mxu0 %v709
    %v4279 = vpop.f32.mrb[0].mxu0
    %v4280 = vadd.f32 %v502, %v4279
    %v4281 = vpop.f32.mrb[0].mxu0
    %v4282 = vadd.f32 %v506, %v4281
    %v4283 = vpop.f32.mrb[0].mxu0
    %v4284 = vadd.f32 %v502, %v4283
    %v4285 = vpop.f32.mrb[0].mxu0
    %v4286 = vadd.f32 %v506, %v4285
    %4287 = vmatprep.mubr.bf16.mxu0 %v713
    %4288 = vmatmul.mubr.bf16.gmra.mrb[0].mxu0 %v712
    %v4289 = vpop.f32.mrb[0].mxu0
    %v4290 = vadd.f32 %v502, %v4289
    %v4291 = vpop.f32.mrb[0].mxu0
    %v4292 = vadd.f32 %v506, %v4291
    %v4293 = vpop.f32.mrb[0].mxu0
    %v4294 = vadd.f32 %v502, %v4293
    %v4295 = vpop.f32.mrb[0].mxu0
    %v4296 = vadd.f32 %v506, %v4295
    %4297 = vmatprep.mubr.bf16.mxu0 %v716
    %4298 = vmatmul.mubr.bf16.gmra.mrb[0].mxu0 %v715
    %v4299 = vpop.f32.mrb[0].mxu0
    %v4300 = vadd.f32 %v502, %v4299
    %v4301 = vpop.f32.mrb[0].mxu0
    %v4302 = vadd.f32 %v506, %v4301
    %v4303 = vpop.f32.mrb[0].mxu0
    %v4304 = vadd.f32 %v502, %v4303
    %v4305 = vpop.f32.mrb[0].mxu0
    %v4306 = vadd.f32 %v506, %v4305
    %4307 = vmatprep.mubr.bf16.mxu0 %v719
    %4308 = vmatmul.mubr.bf16.gmra.mrb[0].mxu0 %v718
    %v4309 = vpop.f32.mrb[0].mxu0
    %v4310 = vadd.f32 %v502, %v4309
    %v4311 = vpop.f32.mrb[0].mxu0
    %v4312 = vadd.f32 %v506, %v4311
    %v4313 = vpop.f32.mrb[0].mxu0
    %v4314 = vadd.f32 %v502, %v4313
    %v4315 = vpop.f32.mrb[0].mxu0
    %v4316 = vadd.f32 %v506, %v4315
    %4317 = vmatprep.mubr.bf16.mxu0 %v722
    %4318 = vmatmul.mubr.bf16.gmra.mrb[0].mxu0 %v721
    %v4319 = vpop.f32.mrb[0].mxu0
    %v4320 = vadd.f32 %v502, %v4319
    %v4321 = vpop.f32.mrb[0].mxu0
    %v4322 = vadd.f32 %v506, %v4321
    %v4323 = vpop.f32.mrb[0].mxu0
    %v4324 = vadd.f32 %v502, %v4323
    %v4325 = vpop.f32.mrb[0].mxu0
    %v4326 = vadd.f32 %v506, %v4325
    %4327 = vmatprep.mubr.bf16.mxu0 %v725
    %4328 = vmatmul.mubr.bf16.gmra.mrb[0].mxu0 %v724
    %v4329 = vpop.f32.mrb[0].mxu0
    %v4330 = vadd.f32 %v502, %v4329
    %v4331 = vpop.f32.mrb[0].mxu0
    %v4332 = vadd.f32 %v506, %v4331
    %v4333 = vpop.f32.mrb[0].mxu0
    %v4334 = vadd.f32 %v502, %v4333
    %v4335 = vpop.f32.mrb[0].mxu0
    %v4336 = vadd.f32 %v506, %v4335
    %4337 = vdwg.mxu0
    %4338 = vmatprep.subr.bf16.mxu0 %v1842
    %4339 = vmatpush1.bf16.msra.mxu0 %v1841
    %4340 = vmatprep.subr.bf16.mxu0 %v1854
    %4341 = vmatpush1.bf16.msra.mxu0 %v1853
    %4342 = vmatprep.subr.bf16.mxu0 %v1866
    %4343 = vmatpush1.bf16.msra.mxu0 %v1865
    %4344 = vmatprep.subr.bf16.mxu0 %v1878
    %4345 = vmatpush1.bf16.msra.mxu0 %v1877
    %4346 = vmatprep.subr.bf16.mxu0 %v1890
    %4347 = vmatpush1.bf16.msra.mxu0 %v1889
    %4348 = vmatprep.subr.bf16.mxu0 %v1902
    %4349 = vmatpush1.bf16.msra.mxu0 %v1901
    %4350 = vmatprep.subr.bf16.mxu0 %v1914
    %4351 = vmatpush1.bf16.msra.mxu0 %v1913
    %4352 = vmatprep.subr.bf16.mxu0 %v1926
    %4353 = vmatpush1.bf16.msra.mxu0 %v1925
    %4354 = vmatprep.subr.bf16.mxu0 0
    %4355 = vmatpush1.bf16.msra.mxu0 0
    %4356 = vmatprep.subr.bf16.mxu0 0
    %4357 = vmatpush1.bf16.msra.mxu0 0
    %4358 = vmatprep.subr.bf16.mxu0 0
    %4359 = vmatpush1.bf16.msra.mxu0 0
    %4360 = vmatprep.subr.bf16.mxu0 0
    %4361 = vmatpush1.bf16.msra.mxu0 0
    %4362 = vmatprep.subr.bf16.mxu0 0
    %4363 = vmatpush1.bf16.msra.mxu0 0
    %4364 = vmatprep.subr.bf16.mxu0 0
    %4365 = vmatpush1.bf16.msra.mxu0 0
    %4366 = vmatprep.subr.bf16.mxu0 0
    %4367 = vmatpush1.bf16.msra.mxu0 0
    %4368 = vmatprep.subr.bf16.mxu0 0
    %4369 = vmatpush1.bf16.msra.mxu0 0
    %4370 = vmatprep.mubr.bf16.mxu0 0
    %4371 = vmatmul.mubr.bf16.gmra.mrb[0].mxu0 %v681
    %v4372 = vpop.f32.mrb[0].mxu0
    %v4373 = vadd.f32 %v4180, %v4372
    %v4374 = vpop.f32.mrb[0].mxu0
    %v4375 = vadd.f32 %v4182, %v4374
    %v4376 = vpop.f32.mrb[0].mxu0
    %v4377 = vadd.f32 %v4184, %v4376
    %v4378 = vpop.f32.mrb[0].mxu0
    %v4379 = vadd.f32 %v4186, %v4378
    %4380 = vmatprep.mubr.bf16.mxu0 0
    %4381 = vmatmul.mubr.bf16.gmra.mrb[0].mxu0 %v684
    %v4382 = vpop.f32.mrb[0].mxu0
    %v4383 = vadd.f32 %v4190, %v4382
    %v4384 = vpop.f32.mrb[0].mxu0
    %v4385 = vadd.f32 %v4192, %v4384
    %v4386 = vpop.f32.mrb[0].mxu0
    %v4387 = vadd.f32 %v4194, %v4386
    %v4388 = vpop.f32.mrb[0].mxu0
    %v4389 = vadd.f32 %v4196, %v4388
    %4390 = vmatprep.mubr.bf16.mxu0 0
    %4391 = vmatmul.mubr.bf16.gmra.mrb[0].mxu0 %v687
    %v4392 = vpop.f32.mrb[0].mxu0
    %v4393 = vadd.f32 %v4200, %v4392
    %v4394 = vpop.f32.mrb[0].mxu0
    %v4395 = vadd.f32 %v4202, %v4394
    %v4396 = vpop.f32.mrb[0].mxu0
    %v4397 = vadd.f32 %v4204, %v4396
    %v4398 = vpop.f32.mrb[0].mxu0
    %v4399 = vadd.f32 %v4206, %v4398
    %4400 = vmatprep.mubr.bf16.mxu0 0
    %4401 = vmatmul.mubr.bf16.gmra.mrb[0].mxu0 %v690
    %v4402 = vpop.f32.mrb[0].mxu0
    %v4403 = vadd.f32 %v4210, %v4402
    %v4404 = vpop.f32.mrb[0].mxu0
    %v4405 = vadd.f32 %v4212, %v4404
    %v4406 = vpop.f32.mrb[0].mxu0
    %v4407 = vadd.f32 %v4214, %v4406
    %v4408 = vpop.f32.mrb[0].mxu0
    %v4409 = vadd.f32 %v4216, %v4408
    %4410 = vmatprep.mubr.bf16.mxu0 0
    %4411 = vmatmul.mubr.bf16.gmra.mrb[0].mxu0 %v693
    %v4412 = vpop.f32.mrb[0].mxu0
    %v4413 = vadd.f32 %v4220, %v4412
    %v4414 = vpop.f32.mrb[0].mxu0
    %v4415 = vadd.f32 %v4222, %v4414
    %v4416 = vpop.f32.mrb[0].mxu0
    %v4417 = vadd.f32 %v4224, %v4416
    %v4418 = vpop.f32.mrb[0].mxu0
    %v4419 = vadd.f32 %v4226, %v4418
    %4420 = vmatprep.mubr.bf16.mxu0 0
    %4421 = vmatmul.mubr.bf16.gmra.mrb[0].mxu0 %v696
    %v4422 = vpop.f32.mrb[0].mxu0
    %v4423 = vadd.f32 %v4230, %v4422
    %v4424 = vpop.f32.mrb[0].mxu0
    %v4425 = vadd.f32 %v4232, %v4424
    %v4426 = vpop.f32.mrb[0].mxu0
    %v4427 = vadd.f32 %v4234, %v4426
    %v4428 = vpop.f32.mrb[0].mxu0
    %v4429 = vadd.f32 %v4236, %v4428
    %4430 = vmatprep.mubr.bf16.mxu0 0
    %4431 = vmatmul.mubr.bf16.gmra.mrb[0].mxu0 %v699
    %v4432 = vpop.f32.mrb[0].mxu0
    %v4433 = vadd.f32 %v4240, %v4432
    %v4434 = vpop.f32.mrb[0].mxu0
    %v4435 = vadd.f32 %v4242, %v4434
    %v4436 = vpop.f32.mrb[0].mxu0
    %v4437 = vadd.f32 %v4244, %v4436
    %v4438 = vpop.f32.mrb[0].mxu0
    %v4439 = vadd.f32 %v4246, %v4438
    %4440 = vmatprep.mubr.bf16.mxu0 0
    %4441 = vmatmul.mubr.bf16.gmra.mrb[0].mxu0 %v702
    %v4442 = vpop.f32.mrb[0].mxu0
    %v4443 = vadd.f32 %v4250, %v4442
    %v4444 = vpop.f32.mrb[0].mxu0
    %v4445 = vadd.f32 %v4252, %v4444
    %v4446 = vpop.f32.mrb[0].mxu0
    %v4447 = vadd.f32 %v4254, %v4446
    %v4448 = vpop.f32.mrb[0].mxu0
    %v4449 = vadd.f32 %v4256, %v4448
    %4450 = vmatprep.mubr.bf16.mxu0 0
    %4451 = vmatmul.mubr.bf16.gmra.mrb[0].mxu0 %v705
    %v4452 = vpop.f32.mrb[0].mxu0
    %v4453 = vadd.f32 %v4260, %v4452
    %v4454 = vpop.f32.mrb[0].mxu0
    %v4455 = vadd.f32 %v4262, %v4454
    %v4456 = vpop.f32.mrb[0].mxu0
    %v4457 = vadd.f32 %v4264, %v4456
    %v4458 = vpop.f32.mrb[0].mxu0
    %v4459 = vadd.f32 %v4266, %v4458
    %4460 = vmatprep.mubr.bf16.mxu0 0
    %4461 = vmatmul.mubr.bf16.gmra.mrb[0].mxu0 %v708
    %v4462 = vpop.f32.mrb[0].mxu0
    %v4463 = vadd.f32 %v4270, %v4462
    %v4464 = vpop.f32.mrb[0].mxu0
    %v4465 = vadd.f32 %v4272, %v4464
    %v4466 = vpop.f32.mrb[0].mxu0
    %v4467 = vadd.f32 %v4274, %v4466
    %v4468 = vpop.f32.mrb[0].mxu0
    %v4469 = vadd.f32 %v4276, %v4468
    %4470 = vmatprep.mubr.bf16.mxu0 0
    %4471 = vmatmul.mubr.bf16.gmra.mrb[0].mxu0 %v711
    %v4472 = vpop.f32.mrb[0].mxu0
    %v4473 = vadd.f32 %v4280, %v4472
    %v4474 = vpop.f32.mrb[0].mxu0
    %v4475 = vadd.f32 %v4282, %v4474
    %v4476 = vpop.f32.mrb[0].mxu0
    %v4477 = vadd.f32 %v4284, %v4476
    %v4478 = vpop.f32.mrb[0].mxu0
    %v4479 = vadd.f32 %v4286, %v4478
    %4480 = vmatprep.mubr.bf16.mxu0 0
    %4481 = vmatmul.mubr.bf16.gmra.mrb[0].mxu0 %v714
    %v4482 = vpop.f32.mrb[0].mxu0
    %v4483 = vadd.f32 %v4290, %v4482
    %v4484 = vpop.f32.mrb[0].mxu0
    %v4485 = vadd.f32 %v4292, %v4484
    %v4486 = vpop.f32.mrb[0].mxu0
    %v4487 = vadd.f32 %v4294, %v4486
    %v4488 = vpop.f32.mrb[0].mxu0
    %v4489 = vadd.f32 %v4296, %v4488
    %4490 = vmatprep.mubr.bf16.mxu0 0
    %4491 = vmatmul.mubr.bf16.gmra.mrb[0].mxu0 %v717
    %v4492 = vpop.f32.mrb[0].mxu0
    %v4493 = vadd.f32 %v4300, %v4492
    %v4494 = vpop.f32.mrb[0].mxu0
    %v4495 = vadd.f32 %v4302, %v4494
    %v4496 = vpop.f32.mrb[0].mxu0
    %v4497 = vadd.f32 %v4304, %v4496
    %v4498 = vpop.f32.mrb[0].mxu0
    %v4499 = vadd.f32 %v4306, %v4498
    %4500 = vmatprep.mubr.bf16.mxu0 0
    %4501 = vmatmul.mubr.bf16.gmra.mrb[0].mxu0 %v720
    %v4502 = vpop.f32.mrb[0].mxu0
    %v4503 = vadd.f32 %v4310, %v4502
    %v4504 = vpop.f32.mrb[0].mxu0
    %v4505 = vadd.f32 %v4312, %v4504
    %v4506 = vpop.f32.mrb[0].mxu0
    %v4507 = vadd.f32 %v4314, %v4506
    %v4508 = vpop.f32.mrb[0].mxu0
    %v4509 = vadd.f32 %v4316, %v4508
    %4510 = vmatprep.mubr.bf16.mxu0 0
    %4511 = vmatmul.mubr.bf16.gmra.mrb[0].mxu0 %v723
    %v4512 = vpop.f32.mrb[0].mxu0
    %v4513 = vadd.f32 %v4320, %v4512
    %v4514 = vpop.f32.mrb[0].mxu0
    %v4515 = vadd.f32 %v4322, %v4514
    %v4516 = vpop.f32.mrb[0].mxu0
    %v4517 = vadd.f32 %v4324, %v4516
    %v4518 = vpop.f32.mrb[0].mxu0
    %v4519 = vadd.f32 %v4326, %v4518
    %4520 = vmatprep.mubr.bf16.mxu0 0
    %4521 = vmatmul.mubr.bf16.gmra.mrb[0].mxu0 %v726
    %v4522 = vpop.f32.mrb[0].mxu0
    %v4523 = vadd.f32 %v4330, %v4522
    %v4524 = vpop.f32.mrb[0].mxu0
    %v4525 = vadd.f32 %v4332, %v4524
    %v4526 = vpop.f32.mrb[0].mxu0
    %v4527 = vadd.f32 %v4334, %v4526
    %v4528 = vpop.f32.mrb[0].mxu0
    %v4529 = vadd.f32 %v4336, %v4528
    %4530 = vdwg.mxu0
    %v4531 = vmax.f32 %v2443, 0.0
    %v4532 = vmax.f32 %v2445, 0.0
    %v4533 = vmax.f32 %v2829, 0.0
    %v4534 = vmax.f32 %v2831, 0.0
    %v4535 = vmax.f32 %v3215, 0.0
    %v4536 = vmax.f32 %v3217, 0.0
    %v4537 = vmax.f32 %v3601, 0.0
    %v4538 = vmax.f32 %v3603, 0.0
    %v4539 = vmax.f32 %v3987, 0.0
    %v4540 = vmax.f32 %v3989, 0.0
    %v4541 = vmax.f32 %v4373, 0.0
    %v4542 = vmax.f32 %v4375, 0.0
    %v4543 = vmax.f32 %v2447, 0.0
    %v4544 = vmax.f32 %v2449, 0.0
    %v4545 = vmax.f32 %v2833, 0.0
    %v4546 = vmax.f32 %v2835, 0.0
    %v4547 = vmax.f32 %v3219, 0.0
    %v4548 = vmax.f32 %v3221, 0.0
    %v4549 = vmax.f32 %v3605, 0.0
    %v4550 = vmax.f32 %v3607, 0.0
    %v4551 = vmax.f32 %v3991, 0.0
    %v4552 = vmax.f32 %v3993, 0.0
    %v4553 = vmax.f32 %v4377, 0.0
    %v4554 = vmax.f32 %v4379, 0.0
    %v4555 = vmax.f32 %v2453, 0.0
    %v4556 = vmax.f32 %v2455, 0.0
    %v4557 = vmax.f32 %v2839, 0.0
    %v4558 = vmax.f32 %v2841, 0.0
    %v4559 = vmax.f32 %v3225, 0.0
    %v4560 = vmax.f32 %v3227, 0.0
    %v4561 = vmax.f32 %v3611, 0.0
    %v4562 = vmax.f32 %v3613, 0.0
    %v4563 = vmax.f32 %v3997, 0.0
    %v4564 = vmax.f32 %v3999, 0.0
    %v4565 = vmax.f32 %v4383, 0.0
    %v4566 = vmax.f32 %v4385, 0.0
    %v4567 = vmax.f32 %v2457, 0.0
    %v4568 = vmax.f32 %v2459, 0.0
    %v4569 = vmax.f32 %v2843, 0.0
    %v4570 = vmax.f32 %v2845, 0.0
    %v4571 = vmax.f32 %v3229, 0.0
    %v4572 = vmax.f32 %v3231, 0.0
    %v4573 = vmax.f32 %v3615, 0.0
    %v4574 = vmax.f32 %v3617, 0.0
    %v4575 = vmax.f32 %v4001, 0.0
    %v4576 = vmax.f32 %v4003, 0.0
    %v4577 = vmax.f32 %v4387, 0.0
    %v4578 = vmax.f32 %v4389, 0.0
    %v4579 = vmax.f32 %v2463, 0.0
    %v4580 = vmax.f32 %v2465, 0.0
    %v4581 = vmax.f32 %v2849, 0.0
    %v4582 = vmax.f32 %v2851, 0.0
    %v4583 = vmax.f32 %v3235, 0.0
    %v4584 = vmax.f32 %v3237, 0.0
    %v4585 = vmax.f32 %v3621, 0.0
    %v4586 = vmax.f32 %v3623, 0.0
    %v4587 = vmax.f32 %v4007, 0.0
    %v4588 = vmax.f32 %v4009, 0.0
    %v4589 = vmax.f32 %v4393, 0.0
    %v4590 = vmax.f32 %v4395, 0.0
    %v4591 = vmax.f32 %v2467, 0.0
    %v4592 = vmax.f32 %v2469, 0.0
    %v4593 = vmax.f32 %v2853, 0.0
    %v4594 = vmax.f32 %v2855, 0.0
    %v4595 = vmax.f32 %v3239, 0.0
    %v4596 = vmax.f32 %v3241, 0.0
    %v4597 = vmax.f32 %v3625, 0.0
    %v4598 = vmax.f32 %v3627, 0.0
    %v4599 = vmax.f32 %v4011, 0.0
    %v4600 = vmax.f32 %v4013, 0.0
    %v4601 = vmax.f32 %v4397, 0.0
    %v4602 = vmax.f32 %v4399, 0.0
    %v4603 = vmax.f32 %v2473, 0.0
    %v4604 = vmax.f32 %v2475, 0.0
    %v4605 = vmax.f32 %v2859, 0.0
    %v4606 = vmax.f32 %v2861, 0.0
    %v4607 = vmax.f32 %v3245, 0.0
    %v4608 = vmax.f32 %v3247, 0.0
    %v4609 = vmax.f32 %v3631, 0.0
    %v4610 = vmax.f32 %v3633, 0.0
    %v4611 = vmax.f32 %v4017, 0.0
    %v4612 = vmax.f32 %v4019, 0.0
    %v4613 = vmax.f32 %v4403, 0.0
    %v4614 = vmax.f32 %v4405, 0.0
    %v4615 = vmax.f32 %v2477, 0.0
    %v4616 = vmax.f32 %v2479, 0.0
    %v4617 = vmax.f32 %v2863, 0.0
    %v4618 = vmax.f32 %v2865, 0.0
    %v4619 = vmax.f32 %v3249, 0.0
    %v4620 = vmax.f32 %v3251, 0.0
    %v4621 = vmax.f32 %v3635, 0.0
    %v4622 = vmax.f32 %v3637, 0.0
    %v4623 = vmax.f32 %v4021, 0.0
    %v4624 = vmax.f32 %v4023, 0.0
    %v4625 = vmax.f32 %v4407, 0.0
    %v4626 = vmax.f32 %v4409, 0.0
    %v4627 = vmax.f32 %v2483, 0.0
    %v4628 = vmax.f32 %v2485, 0.0
    %v4629 = vmax.f32 %v2869, 0.0
    %v4630 = vmax.f32 %v2871, 0.0
    %v4631 = vmax.f32 %v3255, 0.0
    %v4632 = vmax.f32 %v3257, 0.0
    %v4633 = vmax.f32 %v3641, 0.0
    %v4634 = vmax.f32 %v3643, 0.0
    %v4635 = vmax.f32 %v4027, 0.0
    %v4636 = vmax.f32 %v4029, 0.0
    %v4637 = vmax.f32 %v4413, 0.0
    %v4638 = vmax.f32 %v4415, 0.0
    %v4639 = vmax.f32 %v2487, 0.0
    %v4640 = vmax.f32 %v2489, 0.0
    %v4641 = vmax.f32 %v2873, 0.0
    %v4642 = vmax.f32 %v2875, 0.0
    %v4643 = vmax.f32 %v3259, 0.0
    %v4644 = vmax.f32 %v3261, 0.0
    %v4645 = vmax.f32 %v3645, 0.0
    %v4646 = vmax.f32 %v3647, 0.0
    %v4647 = vmax.f32 %v4031, 0.0
    %v4648 = vmax.f32 %v4033, 0.0
    %v4649 = vmax.f32 %v4417, 0.0
    %v4650 = vmax.f32 %v4419, 0.0
    %v4651 = vmax.f32 %v2493, 0.0
    %v4652 = vmax.f32 %v2495, 0.0
    %v4653 = vmax.f32 %v2879, 0.0
    %v4654 = vmax.f32 %v2881, 0.0
    %v4655 = vmax.f32 %v3265, 0.0
    %v4656 = vmax.f32 %v3267, 0.0
    %v4657 = vmax.f32 %v3651, 0.0
    %v4658 = vmax.f32 %v3653, 0.0
    %v4659 = vmax.f32 %v4037, 0.0
    %v4660 = vmax.f32 %v4039, 0.0
    %v4661 = vmax.f32 %v4423, 0.0
    %v4662 = vmax.f32 %v4425, 0.0
    %v4663 = vmax.f32 %v2497, 0.0
    %v4664 = vmax.f32 %v2499, 0.0
    %v4665 = vmax.f32 %v2883, 0.0
    %v4666 = vmax.f32 %v2885, 0.0
    %v4667 = vmax.f32 %v3269, 0.0
    %v4668 = vmax.f32 %v3271, 0.0
    %v4669 = vmax.f32 %v3655, 0.0
    %v4670 = vmax.f32 %v3657, 0.0
    %v4671 = vmax.f32 %v4041, 0.0
    %v4672 = vmax.f32 %v4043, 0.0
    %v4673 = vmax.f32 %v4427, 0.0
    %v4674 = vmax.f32 %v4429, 0.0
    %v4675 = vmax.f32 %v2503, 0.0
    %v4676 = vmax.f32 %v2505, 0.0
    %v4677 = vmax.f32 %v2889, 0.0
    %v4678 = vmax.f32 %v2891, 0.0
    %v4679 = vmax.f32 %v3275, 0.0
    %v4680 = vmax.f32 %v3277, 0.0
    %v4681 = vmax.f32 %v3661, 0.0
    %v4682 = vmax.f32 %v3663, 0.0
    %v4683 = vmax.f32 %v4047, 0.0
    %v4684 = vmax.f32 %v4049, 0.0
    %v4685 = vmax.f32 %v4433, 0.0
    %v4686 = vmax.f32 %v4435, 0.0
    %v4687 = vmax.f32 %v2507, 0.0
    %v4688 = vmax.f32 %v2509, 0.0
    %v4689 = vmax.f32 %v2893, 0.0
    %v4690 = vmax.f32 %v2895, 0.0
    %v4691 = vmax.f32 %v3279, 0.0
    %v4692 = vmax.f32 %v3281, 0.0
    %v4693 = vmax.f32 %v3665, 0.0
    %v4694 = vmax.f32 %v3667, 0.0
    %v4695 = vmax.f32 %v4051, 0.0
    %v4696 = vmax.f32 %v4053, 0.0
    %v4697 = vmax.f32 %v4437, 0.0
    %v4698 = vmax.f32 %v4439, 0.0
    %v4699 = vmax.f32 %v2513, 0.0
    %v4700 = vmax.f32 %v2515, 0.0
    %v4701 = vmax.f32 %v2899, 0.0
    %v4702 = vmax.f32 %v2901, 0.0
    %v4703 = vmax.f32 %v3285, 0.0
    %v4704 = vmax.f32 %v3287, 0.0
    %v4705 = vmax.f32 %v3671, 0.0
    %v4706 = vmax.f32 %v3673, 0.0
    %v4707 = vmax.f32 %v4057, 0.0
    %v4708 = vmax.f32 %v4059, 0.0
    %v4709 = vmax.f32 %v4443, 0.0
    %v4710 = vmax.f32 %v4445, 0.0
    %v4711 = vmax.f32 %v2517, 0.0
    %v4712 = vmax.f32 %v2519, 0.0
    %v4713 = vmax.f32 %v2903, 0.0
    %v4714 = vmax.f32 %v2905, 0.0
    %v4715 = vmax.f32 %v3289, 0.0
    %v4716 = vmax.f32 %v3291, 0.0
    %v4717 = vmax.f32 %v3675, 0.0
    %v4718 = vmax.f32 %v3677, 0.0
    %v4719 = vmax.f32 %v4061, 0.0
    %v4720 = vmax.f32 %v4063, 0.0
    %v4721 = vmax.f32 %v4447, 0.0
    %v4722 = vmax.f32 %v4449, 0.0
    %v4723 = vmax.f32 %v2523, 0.0
    %v4724 = vmax.f32 %v2525, 0.0
    %v4725 = vmax.f32 %v2909, 0.0
    %v4726 = vmax.f32 %v2911, 0.0
    %v4727 = vmax.f32 %v3295, 0.0
    %v4728 = vmax.f32 %v3297, 0.0
    %v4729 = vmax.f32 %v3681, 0.0
    %v4730 = vmax.f32 %v3683, 0.0
    %v4731 = vmax.f32 %v4067, 0.0
    %v4732 = vmax.f32 %v4069, 0.0
    %v4733 = vmax.f32 %v4453, 0.0
    %v4734 = vmax.f32 %v4455, 0.0
    %v4735 = vmax.f32 %v2527, 0.0
    %v4736 = vmax.f32 %v2529, 0.0
    %v4737 = vmax.f32 %v2913, 0.0
    %v4738 = vmax.f32 %v2915, 0.0
    %v4739 = vmax.f32 %v3299, 0.0
    %v4740 = vmax.f32 %v3301, 0.0
    %v4741 = vmax.f32 %v3685, 0.0
    %v4742 = vmax.f32 %v3687, 0.0
    %v4743 = vmax.f32 %v4071, 0.0
    %v4744 = vmax.f32 %v4073, 0.0
    %v4745 = vmax.f32 %v4457, 0.0
    %v4746 = vmax.f32 %v4459, 0.0
    %v4747 = vmax.f32 %v2533, 0.0
    %v4748 = vmax.f32 %v2535, 0.0
    %v4749 = vmax.f32 %v2919, 0.0
    %v4750 = vmax.f32 %v2921, 0.0
    %v4751 = vmax.f32 %v3305, 0.0
    %v4752 = vmax.f32 %v3307, 0.0
    %v4753 = vmax.f32 %v3691, 0.0
    %v4754 = vmax.f32 %v3693, 0.0
    %v4755 = vmax.f32 %v4077, 0.0
    %v4756 = vmax.f32 %v4079, 0.0
    %v4757 = vmax.f32 %v4463, 0.0
    %v4758 = vmax.f32 %v4465, 0.0
    %v4759 = vmax.f32 %v2537, 0.0
    %v4760 = vmax.f32 %v2539, 0.0
    %v4761 = vmax.f32 %v2923, 0.0
    %v4762 = vmax.f32 %v2925, 0.0
    %v4763 = vmax.f32 %v3309, 0.0
    %v4764 = vmax.f32 %v3311, 0.0
    %v4765 = vmax.f32 %v3695, 0.0
    %v4766 = vmax.f32 %v3697, 0.0
    %v4767 = vmax.f32 %v4081, 0.0
    %v4768 = vmax.f32 %v4083, 0.0
    %v4769 = vmax.f32 %v4467, 0.0
    %v4770 = vmax.f32 %v4469, 0.0
    %v4771 = vmax.f32 %v2543, 0.0
    %v4772 = vmax.f32 %v2545, 0.0
    %v4773 = vmax.f32 %v2929, 0.0
    %v4774 = vmax.f32 %v2931, 0.0
    %v4775 = vmax.f32 %v3315, 0.0
    %v4776 = vmax.f32 %v3317, 0.0
    %v4777 = vmax.f32 %v3701, 0.0
    %v4778 = vmax.f32 %v3703, 0.0
    %v4779 = vmax.f32 %v4087, 0.0
    %v4780 = vmax.f32 %v4089, 0.0
    %v4781 = vmax.f32 %v4473, 0.0
    %v4782 = vmax.f32 %v4475, 0.0
    %v4783 = vmax.f32 %v2547, 0.0
    %v4784 = vmax.f32 %v2549, 0.0
    %v4785 = vmax.f32 %v2933, 0.0
    %v4786 = vmax.f32 %v2935, 0.0
    %v4787 = vmax.f32 %v3319, 0.0
    %v4788 = vmax.f32 %v3321, 0.0
    %v4789 = vmax.f32 %v3705, 0.0
    %v4790 = vmax.f32 %v3707, 0.0
    %v4791 = vmax.f32 %v4091, 0.0
    %v4792 = vmax.f32 %v4093, 0.0
    %v4793 = vmax.f32 %v4477, 0.0
    %v4794 = vmax.f32 %v4479, 0.0
    %v4795 = vmax.f32 %v2553, 0.0
    %v4796 = vmax.f32 %v2555, 0.0
    %v4797 = vmax.f32 %v2939, 0.0
    %v4798 = vmax.f32 %v2941, 0.0
    %v4799 = vmax.f32 %v3325, 0.0
    %v4800 = vmax.f32 %v3327, 0.0
    %v4801 = vmax.f32 %v3711, 0.0
    %v4802 = vmax.f32 %v3713, 0.0
    %v4803 = vmax.f32 %v4097, 0.0
    %v4804 = vmax.f32 %v4099, 0.0
    %v4805 = vmax.f32 %v4483, 0.0
    %v4806 = vmax.f32 %v4485, 0.0
    %v4807 = vmax.f32 %v2557, 0.0
    %v4808 = vmax.f32 %v2559, 0.0
    %v4809 = vmax.f32 %v2943, 0.0
    %v4810 = vmax.f32 %v2945, 0.0
    %v4811 = vmax.f32 %v3329, 0.0
    %v4812 = vmax.f32 %v3331, 0.0
    %v4813 = vmax.f32 %v3715, 0.0
    %v4814 = vmax.f32 %v3717, 0.0
    %v4815 = vmax.f32 %v4101, 0.0
    %v4816 = vmax.f32 %v4103, 0.0
    %v4817 = vmax.f32 %v4487, 0.0
    %v4818 = vmax.f32 %v4489, 0.0
    %v4819 = vmax.f32 %v2563, 0.0
    %v4820 = vmax.f32 %v2565, 0.0
    %v4821 = vmax.f32 %v2949, 0.0
    %v4822 = vmax.f32 %v2951, 0.0
    %v4823 = vmax.f32 %v3335, 0.0
    %v4824 = vmax.f32 %v3337, 0.0
    %v4825 = vmax.f32 %v3721, 0.0
    %v4826 = vmax.f32 %v3723, 0.0
    %v4827 = vmax.f32 %v4107, 0.0
    %v4828 = vmax.f32 %v4109, 0.0
    %v4829 = vmax.f32 %v4493, 0.0
    %v4830 = vmax.f32 %v4495, 0.0
    %v4831 = vmax.f32 %v2567, 0.0
    %v4832 = vmax.f32 %v2569, 0.0
    %v4833 = vmax.f32 %v2953, 0.0
    %v4834 = vmax.f32 %v2955, 0.0
    %v4835 = vmax.f32 %v3339, 0.0
    %v4836 = vmax.f32 %v3341, 0.0
    %v4837 = vmax.f32 %v3725, 0.0
    %v4838 = vmax.f32 %v3727, 0.0
    %v4839 = vmax.f32 %v4111, 0.0
    %v4840 = vmax.f32 %v4113, 0.0
    %v4841 = vmax.f32 %v4497, 0.0
    %v4842 = vmax.f32 %v4499, 0.0
    %v4843 = vmax.f32 %v2573, 0.0
    %v4844 = vmax.f32 %v2575, 0.0
    %v4845 = vmax.f32 %v2959, 0.0
    %v4846 = vmax.f32 %v2961, 0.0
    %v4847 = vmax.f32 %v3345, 0.0
    %v4848 = vmax.f32 %v3347, 0.0
    %v4849 = vmax.f32 %v3731, 0.0
    %v4850 = vmax.f32 %v3733, 0.0
    %v4851 = vmax.f32 %v4117, 0.0
    %v4852 = vmax.f32 %v4119, 0.0
    %v4853 = vmax.f32 %v4503, 0.0
    %v4854 = vmax.f32 %v4505, 0.0
    %v4855 = vmax.f32 %v2577, 0.0
    %v4856 = vmax.f32 %v2579, 0.0
    %v4857 = vmax.f32 %v2963, 0.0
    %v4858 = vmax.f32 %v2965, 0.0
    %v4859 = vmax.f32 %v3349, 0.0
    %v4860 = vmax.f32 %v3351, 0.0
    %v4861 = vmax.f32 %v3735, 0.0
    %v4862 = vmax.f32 %v3737, 0.0
    %v4863 = vmax.f32 %v4121, 0.0
    %v4864 = vmax.f32 %v4123, 0.0
    %v4865 = vmax.f32 %v4507, 0.0
    %v4866 = vmax.f32 %v4509, 0.0
    %v4867 = vmax.f32 %v2583, 0.0
    %v4868 = vmax.f32 %v2585, 0.0
    %v4869 = vmax.f32 %v2969, 0.0
    %v4870 = vmax.f32 %v2971, 0.0
    %v4871 = vmax.f32 %v3355, 0.0
    %v4872 = vmax.f32 %v3357, 0.0
    %v4873 = vmax.f32 %v3741, 0.0
    %v4874 = vmax.f32 %v3743, 0.0
    %v4875 = vmax.f32 %v4127, 0.0
    %v4876 = vmax.f32 %v4129, 0.0
    %v4877 = vmax.f32 %v4513, 0.0
    %v4878 = vmax.f32 %v4515, 0.0
    %v4879 = vmax.f32 %v2587, 0.0
    %v4880 = vmax.f32 %v2589, 0.0
    %v4881 = vmax.f32 %v2973, 0.0
    %v4882 = vmax.f32 %v2975, 0.0
    %v4883 = vmax.f32 %v3359, 0.0
    %v4884 = vmax.f32 %v3361, 0.0
    %v4885 = vmax.f32 %v3745, 0.0
    %v4886 = vmax.f32 %v3747, 0.0
    %v4887 = vmax.f32 %v4131, 0.0
    %v4888 = vmax.f32 %v4133, 0.0
    %v4889 = vmax.f32 %v4517, 0.0
    %v4890 = vmax.f32 %v4519, 0.0
    %v4891 = vmax.f32 %v2593, 0.0
    %v4892 = vmax.f32 %v2595, 0.0
    %v4893 = vmax.f32 %v2979, 0.0
    %v4894 = vmax.f32 %v2981, 0.0
    %v4895 = vmax.f32 %v3365, 0.0
    %v4896 = vmax.f32 %v3367, 0.0
    %v4897 = vmax.f32 %v3751, 0.0
    %v4898 = vmax.f32 %v3753, 0.0
    %v4899 = vmax.f32 %v4137, 0.0
    %v4900 = vmax.f32 %v4139, 0.0
    %v4901 = vmax.f32 %v4523, 0.0
    %v4902 = vmax.f32 %v4525, 0.0
    %v4903 = vmax.f32 %v2597, 0.0
    %v4904 = vmax.f32 %v2599, 0.0
    %v4905 = vmax.f32 %v2983, 0.0
    %v4906 = vmax.f32 %v2985, 0.0
    %v4907 = vmax.f32 %v3369, 0.0
    %v4908 = vmax.f32 %v3371, 0.0
    %v4909 = vmax.f32 %v3755, 0.0
    %v4910 = vmax.f32 %v3757, 0.0
    %v4911 = vmax.f32 %v4141, 0.0
    %v4912 = vmax.f32 %v4143, 0.0
    %v4913 = vmax.f32 %v4527, 0.0
    %v4914 = vmax.f32 %v4529, 0.0
    %v4915 = vpack.c.bf16 %v4543, %v4531
    %v4916 = vpack.c.bf16 %v4544, %v4532
    %v4917 = vpack.c.bf16 %v4545, %v4533
    %v4918 = vpack.c.bf16 %v4546, %v4534
    %v4919 = vpack.c.bf16 %v4547, %v4535
    %v4920 = vpack.c.bf16 %v4548, %v4536
    %v4921 = vpack.c.bf16 %v4549, %v4537
    %v4922 = vpack.c.bf16 %v4550, %v4538
    %v4923 = vpack.c.bf16 %v4551, %v4539
    %v4924 = vpack.c.bf16 %v4552, %v4540
    %v4925 = vpack.c.bf16 %v4553, %v4541
    %v4926 = vpack.c.bf16 %v4554, %v4542
    %v4927 = vpack.c.bf16 %v4567, %v4555
    %v4928 = vpack.c.bf16 %v4568, %v4556
    %v4929 = vpack.c.bf16 %v4569, %v4557
    %v4930 = vpack.c.bf16 %v4570, %v4558
    %v4931 = vpack.c.bf16 %v4571, %v4559
    %v4932 = vpack.c.bf16 %v4572, %v4560
    %v4933 = vpack.c.bf16 %v4573, %v4561
    %v4934 = vpack.c.bf16 %v4574, %v4562
    %v4935 = vpack.c.bf16 %v4575, %v4563
    %v4936 = vpack.c.bf16 %v4576, %v4564
    %v4937 = vpack.c.bf16 %v4577, %v4565
    %v4938 = vpack.c.bf16 %v4578, %v4566
    %v4939 = vpack.c.bf16 %v4591, %v4579
    %v4940 = vpack.c.bf16 %v4592, %v4580
    %v4941 = vpack.c.bf16 %v4593, %v4581
    %v4942 = vpack.c.bf16 %v4594, %v4582
    %v4943 = vpack.c.bf16 %v4595, %v4583
    %v4944 = vpack.c.bf16 %v4596, %v4584
    %v4945 = vpack.c.bf16 %v4597, %v4585
    %v4946 = vpack.c.bf16 %v4598, %v4586
    %v4947 = vpack.c.bf16 %v4599, %v4587
    %v4948 = vpack.c.bf16 %v4600, %v4588
    %v4949 = vpack.c.bf16 %v4601, %v4589
    %v4950 = vpack.c.bf16 %v4602, %v4590
    %v4951 = vpack.c.bf16 %v4615, %v4603
    %v4952 = vpack.c.bf16 %v4616, %v4604
    %v4953 = vpack.c.bf16 %v4617, %v4605
    %v4954 = vpack.c.bf16 %v4618, %v4606
    %v4955 = vpack.c.bf16 %v4619, %v4607
    %v4956 = vpack.c.bf16 %v4620, %v4608
    %v4957 = vpack.c.bf16 %v4621, %v4609
    %v4958 = vpack.c.bf16 %v4622, %v4610
    %v4959 = vpack.c.bf16 %v4623, %v4611
    %v4960 = vpack.c.bf16 %v4624, %v4612
    %v4961 = vpack.c.bf16 %v4625, %v4613
    %v4962 = vpack.c.bf16 %v4626, %v4614
    %v4963 = vpack.c.bf16 %v4639, %v4627
    %v4964 = vpack.c.bf16 %v4640, %v4628
    %v4965 = vpack.c.bf16 %v4641, %v4629
    %v4966 = vpack.c.bf16 %v4642, %v4630
    %v4967 = vpack.c.bf16 %v4643, %v4631
    %v4968 = vpack.c.bf16 %v4644, %v4632
    %v4969 = vpack.c.bf16 %v4645, %v4633
    %v4970 = vpack.c.bf16 %v4646, %v4634
    %v4971 = vpack.c.bf16 %v4647, %v4635
    %v4972 = vpack.c.bf16 %v4648, %v4636
    %v4973 = vpack.c.bf16 %v4649, %v4637
    %v4974 = vpack.c.bf16 %v4650, %v4638
    %v4975 = vpack.c.bf16 %v4663, %v4651
    %v4976 = vpack.c.bf16 %v4664, %v4652
    %v4977 = vpack.c.bf16 %v4665, %v4653
    %v4978 = vpack.c.bf16 %v4666, %v4654
    %v4979 = vpack.c.bf16 %v4667, %v4655
    %v4980 = vpack.c.bf16 %v4668, %v4656
    %v4981 = vpack.c.bf16 %v4669, %v4657
    %v4982 = vpack.c.bf16 %v4670, %v4658
    %v4983 = vpack.c.bf16 %v4671, %v4659
    %v4984 = vpack.c.bf16 %v4672, %v4660
    %v4985 = vpack.c.bf16 %v4673, %v4661
    %v4986 = vpack.c.bf16 %v4674, %v4662
    %v4987 = vpack.c.bf16 %v4687, %v4675
    %v4988 = vpack.c.bf16 %v4688, %v4676
    %v4989 = vpack.c.bf16 %v4689, %v4677
    %v4990 = vpack.c.bf16 %v4690, %v4678
    %v4991 = vpack.c.bf16 %v4691, %v4679
    %v4992 = vpack.c.bf16 %v4692, %v4680
    %v4993 = vpack.c.bf16 %v4693, %v4681
    %v4994 = vpack.c.bf16 %v4694, %v4682
    %v4995 = vpack.c.bf16 %v4695, %v4683
    %v4996 = vpack.c.bf16 %v4696, %v4684
    %v4997 = vpack.c.bf16 %v4697, %v4685
    %v4998 = vpack.c.bf16 %v4698, %v4686
    %v4999 = vpack.c.bf16 %v4711, %v4699
    %v5000 = vpack.c.bf16 %v4712, %v4700
    %v5001 = vpack.c.bf16 %v4713, %v4701
    %v5002 = vpack.c.bf16 %v4714, %v4702
    %v5003 = vpack.c.bf16 %v4715, %v4703
    %v5004 = vpack.c.bf16 %v4716, %v4704
    %v5005 = vpack.c.bf16 %v4717, %v4705
    %v5006 = vpack.c.bf16 %v4718, %v4706
    %v5007 = vpack.c.bf16 %v4719, %v4707
    %v5008 = vpack.c.bf16 %v4720, %v4708
    %v5009 = vpack.c.bf16 %v4721, %v4709
    %v5010 = vpack.c.bf16 %v4722, %v4710
    %v5011 = vpack.c.bf16 %v4735, %v4723
    %v5012 = vpack.c.bf16 %v4736, %v4724
    %v5013 = vpack.c.bf16 %v4737, %v4725
    %v5014 = vpack.c.bf16 %v4738, %v4726
    %v5015 = vpack.c.bf16 %v4739, %v4727
    %v5016 = vpack.c.bf16 %v4740, %v4728
    %v5017 = vpack.c.bf16 %v4741, %v4729
    %v5018 = vpack.c.bf16 %v4742, %v4730
    %v5019 = vpack.c.bf16 %v4743, %v4731
    %v5020 = vpack.c.bf16 %v4744, %v4732
    %v5021 = vpack.c.bf16 %v4745, %v4733
    %v5022 = vpack.c.bf16 %v4746, %v4734
    %v5023 = vpack.c.bf16 %v4759, %v4747
    %v5024 = vpack.c.bf16 %v4760, %v4748
    %v5025 = vpack.c.bf16 %v4761, %v4749
    %v5026 = vpack.c.bf16 %v4762, %v4750
    %v5027 = vpack.c.bf16 %v4763, %v4751
    %v5028 = vpack.c.bf16 %v4764, %v4752
    %v5029 = vpack.c.bf16 %v4765, %v4753
    %v5030 = vpack.c.bf16 %v4766, %v4754
    %v5031 = vpack.c.bf16 %v4767, %v4755
    %v5032 = vpack.c.bf16 %v4768, %v4756
    %v5033 = vpack.c.bf16 %v4769, %v4757
    %v5034 = vpack.c.bf16 %v4770, %v4758
    %v5035 = vpack.c.bf16 %v4783, %v4771
    %v5036 = vpack.c.bf16 %v4784, %v4772
    %v5037 = vpack.c.bf16 %v4785, %v4773
    %v5038 = vpack.c.bf16 %v4786, %v4774
    %v5039 = vpack.c.bf16 %v4787, %v4775
    %v5040 = vpack.c.bf16 %v4788, %v4776
    %v5041 = vpack.c.bf16 %v4789, %v4777
    %v5042 = vpack.c.bf16 %v4790, %v4778
    %v5043 = vpack.c.bf16 %v4791, %v4779
    %v5044 = vpack.c.bf16 %v4792, %v4780
    %v5045 = vpack.c.bf16 %v4793, %v4781
    %v5046 = vpack.c.bf16 %v4794, %v4782
    %v5047 = vpack.c.bf16 %v4807, %v4795
    %v5048 = vpack.c.bf16 %v4808, %v4796
    %v5049 = vpack.c.bf16 %v4809, %v4797
    %v5050 = vpack.c.bf16 %v4810, %v4798
    %v5051 = vpack.c.bf16 %v4811, %v4799
    %v5052 = vpack.c.bf16 %v4812, %v4800
    %v5053 = vpack.c.bf16 %v4813, %v4801
    %v5054 = vpack.c.bf16 %v4814, %v4802
    %v5055 = vpack.c.bf16 %v4815, %v4803
    %v5056 = vpack.c.bf16 %v4816, %v4804
    %v5057 = vpack.c.bf16 %v4817, %v4805
    %v5058 = vpack.c.bf16 %v4818, %v4806
    %v5059 = vpack.c.bf16 %v4831, %v4819
    %v5060 = vpack.c.bf16 %v4832, %v4820
    %v5061 = vpack.c.bf16 %v4833, %v4821
    %v5062 = vpack.c.bf16 %v4834, %v4822
    %v5063 = vpack.c.bf16 %v4835, %v4823
    %v5064 = vpack.c.bf16 %v4836, %v4824
    %v5065 = vpack.c.bf16 %v4837, %v4825
    %v5066 = vpack.c.bf16 %v4838, %v4826
    %v5067 = vpack.c.bf16 %v4839, %v4827
    %v5068 = vpack.c.bf16 %v4840, %v4828
    %v5069 = vpack.c.bf16 %v4841, %v4829
    %v5070 = vpack.c.bf16 %v4842, %v4830
    %v5071 = vpack.c.bf16 %v4855, %v4843
    %v5072 = vpack.c.bf16 %v4856, %v4844
    %v5073 = vpack.c.bf16 %v4857, %v4845
    %v5074 = vpack.c.bf16 %v4858, %v4846
    %v5075 = vpack.c.bf16 %v4859, %v4847
    %v5076 = vpack.c.bf16 %v4860, %v4848
    %v5077 = vpack.c.bf16 %v4861, %v4849
    %v5078 = vpack.c.bf16 %v4862, %v4850
    %v5079 = vpack.c.bf16 %v4863, %v4851
    %v5080 = vpack.c.bf16 %v4864, %v4852
    %v5081 = vpack.c.bf16 %v4865, %v4853
    %v5082 = vpack.c.bf16 %v4866, %v4854
    %v5083 = vpack.c.bf16 %v4879, %v4867
    %v5084 = vpack.c.bf16 %v4880, %v4868
    %v5085 = vpack.c.bf16 %v4881, %v4869
    %v5086 = vpack.c.bf16 %v4882, %v4870
    %v5087 = vpack.c.bf16 %v4883, %v4871
    %v5088 = vpack.c.bf16 %v4884, %v4872
    %v5089 = vpack.c.bf16 %v4885, %v4873
    %v5090 = vpack.c.bf16 %v4886, %v4874
    %v5091 = vpack.c.bf16 %v4887, %v4875
    %v5092 = vpack.c.bf16 %v4888, %v4876
    %v5093 = vpack.c.bf16 %v4889, %v4877
    %v5094 = vpack.c.bf16 %v4890, %v4878
    %v5095 = vpack.c.bf16 %v4903, %v4891
    %v5096 = vpack.c.bf16 %v4904, %v4892
    %v5097 = vpack.c.bf16 %v4905, %v4893
    %v5098 = vpack.c.bf16 %v4906, %v4894
    %v5099 = vpack.c.bf16 %v4907, %v4895
    %v5100 = vpack.c.bf16 %v4908, %v4896
    %v5101 = vpack.c.bf16 %v4909, %v4897
    %v5102 = vpack.c.bf16 %v4910, %v4898
    %v5103 = vpack.c.bf16 %v4911, %v4899
    %v5104 = vpack.c.bf16 %v4912, %v4900
    %v5105 = vpack.c.bf16 %v4913, %v4901
    %v5106 = vpack.c.bf16 %v4914, %v4902
    %v5107 = vld [vmem:[#allocation8] sm:$0xff]
    %v5108 = vld [vmem:[#allocation8 + $0x8] sm:$0xf]
    %v5109 = vld [vmem:[#allocation8 + $0xc] sm:$0xff]
    %v5110 = vld [vmem:[#allocation8 + $0x14] sm:$0xf]
    %v5111 = vld [vmem:[#allocation8 + $0x18] sm:$0xff]
    %v5112 = vld [vmem:[#allocation8 + $0x20] sm:$0xf]
    %v5113 = vld [vmem:[#allocation8 + $0x24] sm:$0xff]
    %v5114 = vld [vmem:[#allocation8 + $0x2c] sm:$0xf]
    %v5115 = vld [vmem:[#allocation8 + $0x30] sm:$0xff]
    %v5116 = vld [vmem:[#allocation8 + $0x38] sm:$0xf]
    %v5117 = vld [vmem:[#allocation8 + $0x3c] sm:$0xff]
    %v5118 = vld [vmem:[#allocation8 + $0x44] sm:$0xf]
    %v5119 = vld [vmem:[#allocation8 + $0x48] sm:$0xff]
    %v5120 = vld [vmem:[#allocation8 + $0x50] sm:$0xf]
    %v5121 = vld [vmem:[#allocation8 + $0x54] sm:$0xff]
    %v5122 = vld [vmem:[#allocation8 + $0x5c] sm:$0xf]
    %v5123 = vld [vmem:[#allocation8 + $0x60] sm:$0xff]
    %v5124 = vld [vmem:[#allocation8 + $0x68] sm:$0xf]
    %v5125 = vld [vmem:[#allocation8 + $0x6c] sm:$0xff]
    %v5126 = vld [vmem:[#allocation8 + $0x74] sm:$0xf]
    %v5127 = vld [vmem:[#allocation8 + $0x78] sm:$0xff]
    %v5128 = vld [vmem:[#allocation8 + $0x80] sm:$0xf]
    %v5129 = vld [vmem:[#allocation8 + $0x84] sm:$0xff]
    %v5130 = vld [vmem:[#allocation8 + $0x8c] sm:$0xf]
    %v5131 = vld [vmem:[#allocation8 + $0x90] sm:$0xff]
    %v5132 = vld [vmem:[#allocation8 + $0x98] sm:$0xf]
    %v5133 = vld [vmem:[#allocation8 + $0x9c] sm:$0xff]
    %v5134 = vld [vmem:[#allocation8 + $0xa4] sm:$0xf]
    %v5135 = vld [vmem:[#allocation8 + $0xa8] sm:$0xff]
    %v5136 = vld [vmem:[#allocation8 + $0xb0] sm:$0xf]
    %v5137 = vld [vmem:[#allocation8 + $0xb4] sm:$0xff]
    %v5138 = vld [vmem:[#allocation8 + $0xbc] sm:$0xf]
    %v5139 = vld [vmem:[#allocation8 + $0xc0] sm:$0xff]
    %v5140 = vld [vmem:[#allocation8 + $0xc8] sm:$0xf]
    %v5141 = vld [vmem:[#allocation8 + $0xcc] sm:$0xff]
    %v5142 = vld [vmem:[#allocation8 + $0xd4] sm:$0xf]
    %v5143 = vld [vmem:[#allocation8 + $0xd8] sm:$0xff]
    %v5144 = vld [vmem:[#allocation8 + $0xe0] sm:$0xf]
    %v5145 = vld [vmem:[#allocation8 + $0xe4] sm:$0xff]
    %v5146 = vld [vmem:[#allocation8 + $0xec] sm:$0xf]
    %v5147 = vld [vmem:[#allocation8 + $0xf0] sm:$0xff]
    %v5148 = vld [vmem:[#allocation8 + $0xf8] sm:$0xf]
    %v5149 = vld [vmem:[#allocation8 + $0xfc] sm:$0xff]
    %v5150 = vld [vmem:[#allocation8 + $0x104] sm:$0xf]
    %v5151 = vld [vmem:[#allocation8 + $0x108] sm:$0xff]
    %v5152 = vld [vmem:[#allocation8 + $0x110] sm:$0xf]
    %v5153 = vld [vmem:[#allocation8 + $0x114] sm:$0xff]
    %v5154 = vld [vmem:[#allocation8 + $0x11c] sm:$0xf]
    %v5155 = vld [vmem:[#allocation8 + $0x120] sm:$0xff]
    %v5156 = vld [vmem:[#allocation8 + $0x128] sm:$0xf]
    %v5157 = vld [vmem:[#allocation8 + $0x12c] sm:$0xff]
    %v5158 = vld [vmem:[#allocation8 + $0x134] sm:$0xf]
    %v5159 = vld [vmem:[#allocation8 + $0x138] sm:$0xff]
    %v5160 = vld [vmem:[#allocation8 + $0x140] sm:$0xf]
    %v5161 = vld [vmem:[#allocation8 + $0x144] sm:$0xff]
    %v5162 = vld [vmem:[#allocation8 + $0x14c] sm:$0xf]
    %v5163 = vld [vmem:[#allocation8 + $0x150] sm:$0xff]
    %v5164 = vld [vmem:[#allocation8 + $0x158] sm:$0xf]
    %v5165 = vld [vmem:[#allocation8 + $0x15c] sm:$0xff]
    %v5166 = vld [vmem:[#allocation8 + $0x164] sm:$0xf]
    %v5167 = vld [vmem:[#allocation8 + $0x168] sm:$0xff]
    %v5168 = vld [vmem:[#allocation8 + $0x170] sm:$0xf]
    %v5169 = vld [vmem:[#allocation8 + $0x174] sm:$0xff]
    %v5170 = vld [vmem:[#allocation8 + $0x17c] sm:$0xf]
    %v5171 = vld [vmem:[#allocation8 + $0x180] sm:$0xff]
    %v5172 = vld [vmem:[#allocation8 + $0x188] sm:$0xf]
    %v5173 = vld [vmem:[#allocation8 + $0x18c] sm:$0xff]
    %v5174 = vld [vmem:[#allocation8 + $0x194] sm:$0xf]
    %v5175 = vld [vmem:[#allocation8 + $0x198] sm:$0xff]
    %v5176 = vld [vmem:[#allocation8 + $0x1a0] sm:$0xf]
    %v5177 = vld [vmem:[#allocation8 + $0x1a4] sm:$0xff]
    %v5178 = vld [vmem:[#allocation8 + $0x1ac] sm:$0xf]
    %v5179 = vld [vmem:[#allocation8 + $0x1b0] sm:$0xff]
    %v5180 = vld [vmem:[#allocation8 + $0x1b8] sm:$0xf]
    %v5181 = vld [vmem:[#allocation8 + $0x1bc] sm:$0xff]
    %v5182 = vld [vmem:[#allocation8 + $0x1c4] sm:$0xf]
    %v5183 = vld [vmem:[#allocation8 + $0x1c8] sm:$0xff]
    %v5184 = vld [vmem:[#allocation8 + $0x1d0] sm:$0xf]
    %v5185 = vld [vmem:[#allocation8 + $0x1d4] sm:$0xff]
    %v5186 = vld [vmem:[#allocation8 + $0x1dc] sm:$0xf]
    %v5187 = vld [vmem:[#allocation8 + $0x1e0] sm:$0xff]
    %v5188 = vld [vmem:[#allocation8 + $0x1e8] sm:$0xf]
    %v5189 = vld [vmem:[#allocation8 + $0x1ec] sm:$0xff]
    %v5190 = vld [vmem:[#allocation8 + $0x1f4] sm:$0xf]
    %v5191 = vld [vmem:[#allocation8 + $0x1f8] sm:$0xff]
    %v5192 = vld [vmem:[#allocation8 + $0x200] sm:$0xf]
    %v5193 = vld [vmem:[#allocation8 + $0x204] sm:$0xff]
    %v5194 = vld [vmem:[#allocation8 + $0x20c] sm:$0xf]
    %v5195 = vld [vmem:[#allocation8 + $0x210] sm:$0xff]
    %v5196 = vld [vmem:[#allocation8 + $0x218] sm:$0xf]
    %v5197 = vld [vmem:[#allocation8 + $0x21c] sm:$0xff]
    %v5198 = vld [vmem:[#allocation8 + $0x224] sm:$0xf]
    %v5199 = vld [vmem:[#allocation8 + $0x228] sm:$0xff]
    %v5200 = vld [vmem:[#allocation8 + $0x230] sm:$0xf]
    %v5201 = vld [vmem:[#allocation8 + $0x234] sm:$0xff]
    %v5202 = vld [vmem:[#allocation8 + $0x23c] sm:$0xf]
    %v5203 = vld [vmem:[#allocation8 + $0x240] sm:$0xff]
    %v5204 = vld [vmem:[#allocation8 + $0x248] sm:$0xf]
    %v5205 = vld [vmem:[#allocation8 + $0x24c] sm:$0xff]
    %v5206 = vld [vmem:[#allocation8 + $0x254] sm:$0xf]
    %v5207 = vld [vmem:[#allocation8 + $0x258] sm:$0xff]
    %v5208 = vld [vmem:[#allocation8 + $0x260] sm:$0xf]
    %v5209 = vld [vmem:[#allocation8 + $0x264] sm:$0xff]
    %v5210 = vld [vmem:[#allocation8 + $0x26c] sm:$0xf]
    %v5211 = vld [vmem:[#allocation8 + $0x270] sm:$0xff]
    %v5212 = vld [vmem:[#allocation8 + $0x278] sm:$0xf]
    %v5213 = vld [vmem:[#allocation8 + $0x27c] sm:$0xff]
    %v5214 = vld [vmem:[#allocation8 + $0x284] sm:$0xf]
    %v5215 = vld [vmem:[#allocation8 + $0x288] sm:$0xff]
    %v5216 = vld [vmem:[#allocation8 + $0x290] sm:$0xf]
    %v5217 = vld [vmem:[#allocation8 + $0x294] sm:$0xff]
    %v5218 = vld [vmem:[#allocation8 + $0x29c] sm:$0xf]
    %v5219 = vld [vmem:[#allocation8 + $0x2a0] sm:$0xff]
    %v5220 = vld [vmem:[#allocation8 + $0x2a8] sm:$0xf]
    %v5221 = vld [vmem:[#allocation8 + $0x2ac] sm:$0xff]
    %v5222 = vld [vmem:[#allocation8 + $0x2b4] sm:$0xf]
    %v5223 = vld [vmem:[#allocation8 + $0x2b8] sm:$0xff]
    %v5224 = vld [vmem:[#allocation8 + $0x2c0] sm:$0xf]
    %v5225 = vld [vmem:[#allocation8 + $0x2c4] sm:$0xff]
    %v5226 = vld [vmem:[#allocation8 + $0x2cc] sm:$0xf]
    %v5227 = vld [vmem:[#allocation8 + $0x2d0] sm:$0xff]
    %v5228 = vld [vmem:[#allocation8 + $0x2d8] sm:$0xf]
    %v5229 = vld [vmem:[#allocation8 + $0x2dc] sm:$0xff]
    %v5230 = vld [vmem:[#allocation8 + $0x2e4] sm:$0xf]
    %v5231 = vld [vmem:[#allocation8 + $0x2e8] sm:$0xff]
    %v5232 = vld [vmem:[#allocation8 + $0x2f0] sm:$0xf]
    %v5233 = vld [vmem:[#allocation8 + $0x2f4] sm:$0xff]
    %v5234 = vld [vmem:[#allocation8 + $0x2fc] sm:$0xf]
    %v5235 = vld [vmem:[#allocation8 + $0x300] sm:$0xff]
    %v5236 = vld [vmem:[#allocation8 + $0x308] sm:$0xf]
    %v5237 = vld [vmem:[#allocation8 + $0x30c] sm:$0xff]
    %v5238 = vld [vmem:[#allocation8 + $0x314] sm:$0xf]
    %v5239 = vld [vmem:[#allocation8 + $0x318] sm:$0xff]
    %v5240 = vld [vmem:[#allocation8 + $0x320] sm:$0xf]
    %v5241 = vld [vmem:[#allocation8 + $0x324] sm:$0xff]
    %v5242 = vld [vmem:[#allocation8 + $0x32c] sm:$0xf]
    %v5243 = vld [vmem:[#allocation8 + $0x330] sm:$0xff]
    %v5244 = vld [vmem:[#allocation8 + $0x338] sm:$0xf]
    %v5245 = vld [vmem:[#allocation8 + $0x33c] sm:$0xff]
    %v5246 = vld [vmem:[#allocation8 + $0x344] sm:$0xf]
    %v5247 = vld [vmem:[#allocation8 + $0x348] sm:$0xff]
    %v5248 = vld [vmem:[#allocation8 + $0x350] sm:$0xf]
    %v5249 = vld [vmem:[#allocation8 + $0x354] sm:$0xff]
    %v5250 = vld [vmem:[#allocation8 + $0x35c] sm:$0xf]
    %v5251 = vld [vmem:[#allocation8 + $0x360] sm:$0xff]
    %v5252 = vld [vmem:[#allocation8 + $0x368] sm:$0xf]
    %v5253 = vld [vmem:[#allocation8 + $0x36c] sm:$0xff]
    %v5254 = vld [vmem:[#allocation8 + $0x374] sm:$0xf]
    %v5255 = vld [vmem:[#allocation8 + $0x378] sm:$0xff]
    %v5256 = vld [vmem:[#allocation8 + $0x380] sm:$0xf]
    %v5257 = vld [vmem:[#allocation8 + $0x384] sm:$0xff]
    %v5258 = vld [vmem:[#allocation8 + $0x38c] sm:$0xf]
    %v5259 = vld [vmem:[#allocation8 + $0x390] sm:$0xff]
    %v5260 = vld [vmem:[#allocation8 + $0x398] sm:$0xf]
    %v5261 = vld [vmem:[#allocation8 + $0x39c] sm:$0xff]
    %v5262 = vld [vmem:[#allocation8 + $0x3a4] sm:$0xf]
    %v5263 = vld [vmem:[#allocation8 + $0x3a8] sm:$0xff]
    %v5264 = vld [vmem:[#allocation8 + $0x3b0] sm:$0xf]
    %v5265 = vld [vmem:[#allocation8 + $0x3b4] sm:$0xff]
    %v5266 = vld [vmem:[#allocation8 + $0x3bc] sm:$0xf]
    %v5267 = vld [vmem:[#allocation8 + $0x3c0] sm:$0xff]
    %v5268 = vld [vmem:[#allocation8 + $0x3c8] sm:$0xf]
    %v5269 = vld [vmem:[#allocation8 + $0x3cc] sm:$0xff]
    %v5270 = vld [vmem:[#allocation8 + $0x3d4] sm:$0xf]
    %v5271 = vld [vmem:[#allocation8 + $0x3d8] sm:$0xff]
    %v5272 = vld [vmem:[#allocation8 + $0x3e0] sm:$0xf]
    %v5273 = vld [vmem:[#allocation8 + $0x3e4] sm:$0xff]
    %v5274 = vld [vmem:[#allocation8 + $0x3ec] sm:$0xf]
    %v5275 = vld [vmem:[#allocation8 + $0x3f0] sm:$0xff]
    %v5276 = vld [vmem:[#allocation8 + $0x3f8] sm:$0xf]
    %v5277 = vld [vmem:[#allocation8 + $0x3fc] sm:$0xff]
    %v5278 = vld [vmem:[#allocation8 + $0x404] sm:$0xf]
    %v5279 = vld [vmem:[#allocation8 + $0x408] sm:$0xff]
    %v5280 = vld [vmem:[#allocation8 + $0x410] sm:$0xf]
    %v5281 = vld [vmem:[#allocation8 + $0x414] sm:$0xff]
    %v5282 = vld [vmem:[#allocation8 + $0x41c] sm:$0xf]
    %v5283 = vld [vmem:[#allocation8 + $0x420] sm:$0xff]
    %v5284 = vld [vmem:[#allocation8 + $0x428] sm:$0xf]
    %v5285 = vld [vmem:[#allocation8 + $0x42c] sm:$0xff]
    %v5286 = vld [vmem:[#allocation8 + $0x434] sm:$0xf]
    %v5287 = vld [vmem:[#allocation8 + $0x438] sm:$0xff]
    %v5288 = vld [vmem:[#allocation8 + $0x440] sm:$0xf]
    %v5289 = vld [vmem:[#allocation8 + $0x444] sm:$0xff]
    %v5290 = vld [vmem:[#allocation8 + $0x44c] sm:$0xf]
    %v5291 = vld [vmem:[#allocation8 + $0x450] sm:$0xff]
    %v5292 = vld [vmem:[#allocation8 + $0x458] sm:$0xf]
    %v5293 = vld [vmem:[#allocation8 + $0x45c] sm:$0xff]
    %v5294 = vld [vmem:[#allocation8 + $0x464] sm:$0xf]
    %v5295 = vld [vmem:[#allocation8 + $0x468] sm:$0xff]
    %v5296 = vld [vmem:[#allocation8 + $0x470] sm:$0xf]
    %v5297 = vld [vmem:[#allocation8 + $0x474] sm:$0xff]
    %v5298 = vld [vmem:[#allocation8 + $0x47c] sm:$0xf]
    %v5299 = vld [vmem:[#allocation8 + $0x480] sm:$0xff]
    %v5300 = vld [vmem:[#allocation8 + $0x488] sm:$0xf]
    %v5301 = vld [vmem:[#allocation8 + $0x48c] sm:$0xff]
    %v5302 = vld [vmem:[#allocation8 + $0x494] sm:$0xf]
    %v5303 = vld [vmem:[#allocation8 + $0x498] sm:$0xff]
    %v5304 = vld [vmem:[#allocation8 + $0x4a0] sm:$0xf]
    %v5305 = vld [vmem:[#allocation8 + $0x4a4] sm:$0xff]
    %v5306 = vld [vmem:[#allocation8 + $0x4ac] sm:$0xf]
    %v5307 = vld [vmem:[#allocation8 + $0x4b0] sm:$0xff]
    %v5308 = vld [vmem:[#allocation8 + $0x4b8] sm:$0xf]
    %v5309 = vld [vmem:[#allocation8 + $0x4bc] sm:$0xff]
    %v5310 = vld [vmem:[#allocation8 + $0x4c4] sm:$0xf]
    %v5311 = vld [vmem:[#allocation8 + $0x4c8] sm:$0xff]
    %v5312 = vld [vmem:[#allocation8 + $0x4d0] sm:$0xf]
    %v5313 = vld [vmem:[#allocation8 + $0x4d4] sm:$0xff]
    %v5314 = vld [vmem:[#allocation8 + $0x4dc] sm:$0xf]
    %v5315 = vld [vmem:[#allocation8 + $0x4e0] sm:$0xff]
    %v5316 = vld [vmem:[#allocation8 + $0x4e8] sm:$0xf]
    %v5317 = vld [vmem:[#allocation8 + $0x4ec] sm:$0xff]
    %v5318 = vld [vmem:[#allocation8 + $0x4f4] sm:$0xf]
    %v5319 = vld [vmem:[#allocation8 + $0x4f8] sm:$0xff]
    %v5320 = vld [vmem:[#allocation8 + $0x500] sm:$0xf]
    %v5321 = vld [vmem:[#allocation8 + $0x504] sm:$0xff]
    %v5322 = vld [vmem:[#allocation8 + $0x50c] sm:$0xf]
    %v5323 = vld [vmem:[#allocation8 + $0x510] sm:$0xff]
    %v5324 = vld [vmem:[#allocation8 + $0x518] sm:$0xf]
    %v5325 = vld [vmem:[#allocation8 + $0x51c] sm:$0xff]
    %v5326 = vld [vmem:[#allocation8 + $0x524] sm:$0xf]
    %v5327 = vld [vmem:[#allocation8 + $0x528] sm:$0xff]
    %v5328 = vld [vmem:[#allocation8 + $0x530] sm:$0xf]
    %v5329 = vld [vmem:[#allocation8 + $0x534] sm:$0xff]
    %v5330 = vld [vmem:[#allocation8 + $0x53c] sm:$0xf]
    %v5331 = vld [vmem:[#allocation8 + $0x540] sm:$0xff]
    %v5332 = vld [vmem:[#allocation8 + $0x548] sm:$0xf]
    %v5333 = vld [vmem:[#allocation8 + $0x54c] sm:$0xff]
    %v5334 = vld [vmem:[#allocation8 + $0x554] sm:$0xf]
    %v5335 = vld [vmem:[#allocation8 + $0x558] sm:$0xff]
    %v5336 = vld [vmem:[#allocation8 + $0x560] sm:$0xf]
    %v5337 = vld [vmem:[#allocation8 + $0x564] sm:$0xff]
    %v5338 = vld [vmem:[#allocation8 + $0x56c] sm:$0xf]
    %v5339 = vld [vmem:[#allocation8 + $0x570] sm:$0xff]
    %v5340 = vld [vmem:[#allocation8 + $0x578] sm:$0xf]
    %v5341 = vld [vmem:[#allocation8 + $0x57c] sm:$0xff]
    %v5342 = vld [vmem:[#allocation8 + $0x584] sm:$0xf]
    %v5343 = vld [vmem:[#allocation8 + $0x588] sm:$0xff]
    %v5344 = vld [vmem:[#allocation8 + $0x590] sm:$0xf]
    %v5345 = vld [vmem:[#allocation8 + $0x594] sm:$0xff]
    %v5346 = vld [vmem:[#allocation8 + $0x59c] sm:$0xf]
    %v5347 = vld [vmem:[#allocation8 + $0x5a0] sm:$0xff]
    %v5348 = vld [vmem:[#allocation8 + $0x5a8] sm:$0xf]
    %v5349 = vld [vmem:[#allocation8 + $0x5ac] sm:$0xff]
    %v5350 = vld [vmem:[#allocation8 + $0x5b4] sm:$0xf]
    %v5351 = vld [vmem:[#allocation8 + $0x5b8] sm:$0xff]
    %v5352 = vld [vmem:[#allocation8 + $0x5c0] sm:$0xf]
    %v5353 = vld [vmem:[#allocation8 + $0x5c4] sm:$0xff]
    %v5354 = vld [vmem:[#allocation8 + $0x5cc] sm:$0xf]
    %v5355 = vld [vmem:[#allocation8 + $0x5d0] sm:$0xff]
    %v5356 = vld [vmem:[#allocation8 + $0x5d8] sm:$0xf]
    %v5357 = vld [vmem:[#allocation8 + $0x5dc] sm:$0xff]
    %v5358 = vld [vmem:[#allocation8 + $0x5e4] sm:$0xf]
    %v5359 = vld [vmem:[#allocation8 + $0x5e8] sm:$0xff]
    %v5360 = vld [vmem:[#allocation8 + $0x5f0] sm:$0xf]
    %v5361 = vld [vmem:[#allocation8 + $0x5f4] sm:$0xff]
    %v5362 = vld [vmem:[#allocation8 + $0x5fc] sm:$0xf]
    %v5363 = vld [vmem:[#allocation8 + $0x600] sm:$0xff]
    %v5364 = vld [vmem:[#allocation8 + $0x608] sm:$0xf]
    %v5365 = vld [vmem:[#allocation8 + $0x60c] sm:$0xff]
    %v5366 = vld [vmem:[#allocation8 + $0x614] sm:$0xf]
    %v5367 = vld [vmem:[#allocation8 + $0x618] sm:$0xff]
    %v5368 = vld [vmem:[#allocation8 + $0x620] sm:$0xf]
    %v5369 = vld [vmem:[#allocation8 + $0x624] sm:$0xff]
    %v5370 = vld [vmem:[#allocation8 + $0x62c] sm:$0xf]
    %v5371 = vld [vmem:[#allocation8 + $0x630] sm:$0xff]
    %v5372 = vld [vmem:[#allocation8 + $0x638] sm:$0xf]
    %v5373 = vld [vmem:[#allocation8 + $0x63c] sm:$0xff]
    %v5374 = vld [vmem:[#allocation8 + $0x644] sm:$0xf]
    %v5375 = vld [vmem:[#allocation8 + $0x648] sm:$0xff]
    %v5376 = vld [vmem:[#allocation8 + $0x650] sm:$0xf]
    %v5377 = vld [vmem:[#allocation8 + $0x654] sm:$0xff]
    %v5378 = vld [vmem:[#allocation8 + $0x65c] sm:$0xf]
    %v5379 = vld [vmem:[#allocation8 + $0x660] sm:$0xff]
    %v5380 = vld [vmem:[#allocation8 + $0x668] sm:$0xf]
    %v5381 = vld [vmem:[#allocation8 + $0x66c] sm:$0xff]
    %v5382 = vld [vmem:[#allocation8 + $0x674] sm:$0xf]
    %v5383 = vld [vmem:[#allocation8 + $0x678] sm:$0xff]
    %v5384 = vld [vmem:[#allocation8 + $0x680] sm:$0xf]
    %v5385 = vld [vmem:[#allocation8 + $0x684] sm:$0xff]
    %v5386 = vld [vmem:[#allocation8 + $0x68c] sm:$0xf]
    %v5387 = vld [vmem:[#allocation8 + $0x690] sm:$0xff]
    %v5388 = vld [vmem:[#allocation8 + $0x698] sm:$0xf]
    %v5389 = vld [vmem:[#allocation8 + $0x69c] sm:$0xff]
    %v5390 = vld [vmem:[#allocation8 + $0x6a4] sm:$0xf]
    %v5391 = vld [vmem:[#allocation8 + $0x6a8] sm:$0xff]
    %v5392 = vld [vmem:[#allocation8 + $0x6b0] sm:$0xf]
    %v5393 = vld [vmem:[#allocation8 + $0x6b4] sm:$0xff]
    %v5394 = vld [vmem:[#allocation8 + $0x6bc] sm:$0xf]
    %v5395 = vld [vmem:[#allocation8 + $0x6c0] sm:$0xff]
    %v5396 = vld [vmem:[#allocation8 + $0x6c8] sm:$0xf]
    %v5397 = vld [vmem:[#allocation8 + $0x6cc] sm:$0xff]
    %v5398 = vld [vmem:[#allocation8 + $0x6d4] sm:$0xf]
    %v5399 = vld [vmem:[#allocation8 + $0x6d8] sm:$0xff]
    %v5400 = vld [vmem:[#allocation8 + $0x6e0] sm:$0xf]
    %v5401 = vld [vmem:[#allocation8 + $0x6e4] sm:$0xff]
    %v5402 = vld [vmem:[#allocation8 + $0x6ec] sm:$0xf]
    %v5403 = vld [vmem:[#allocation8 + $0x6f0] sm:$0xff]
    %v5404 = vld [vmem:[#allocation8 + $0x6f8] sm:$0xf]
    %v5405 = vld [vmem:[#allocation8 + $0x6fc] sm:$0xff]
    %v5406 = vld [vmem:[#allocation8 + $0x704] sm:$0xf]
    %v5407 = vld [vmem:[#allocation8 + $0x708] sm:$0xff]
    %v5408 = vld [vmem:[#allocation8 + $0x710] sm:$0xf]
    %v5409 = vld [vmem:[#allocation8 + $0x714] sm:$0xff]
    %v5410 = vld [vmem:[#allocation8 + $0x71c] sm:$0xf]
    %v5411 = vld [vmem:[#allocation8 + $0x720] sm:$0xff]
    %v5412 = vld [vmem:[#allocation8 + $0x728] sm:$0xf]
    %v5413 = vld [vmem:[#allocation8 + $0x72c] sm:$0xff]
    %v5414 = vld [vmem:[#allocation8 + $0x734] sm:$0xf]
    %v5415 = vld [vmem:[#allocation8 + $0x738] sm:$0xff]
    %v5416 = vld [vmem:[#allocation8 + $0x740] sm:$0xf]
    %v5417 = vld [vmem:[#allocation8 + $0x744] sm:$0xff]
    %v5418 = vld [vmem:[#allocation8 + $0x74c] sm:$0xf]
    %v5419 = vld [vmem:[#allocation8 + $0x750] sm:$0xff]
    %v5420 = vld [vmem:[#allocation8 + $0x758] sm:$0xf]
    %v5421 = vld [vmem:[#allocation8 + $0x75c] sm:$0xff]
    %v5422 = vld [vmem:[#allocation8 + $0x764] sm:$0xf]
    %v5423 = vld [vmem:[#allocation8 + $0x768] sm:$0xff]
    %v5424 = vld [vmem:[#allocation8 + $0x770] sm:$0xf]
    %v5425 = vld [vmem:[#allocation8 + $0x774] sm:$0xff]
    %v5426 = vld [vmem:[#allocation8 + $0x77c] sm:$0xf]
    %v5427 = vld [vmem:[#allocation8 + $0x780] sm:$0xff]
    %v5428 = vld [vmem:[#allocation8 + $0x788] sm:$0xf]
    %v5429 = vld [vmem:[#allocation8 + $0x78c] sm:$0xff]
    %v5430 = vld [vmem:[#allocation8 + $0x794] sm:$0xf]
    %v5431 = vld [vmem:[#allocation8 + $0x798] sm:$0xff]
    %v5432 = vld [vmem:[#allocation8 + $0x7a0] sm:$0xf]
    %v5433 = vld [vmem:[#allocation8 + $0x7a4] sm:$0xff]
    %v5434 = vld [vmem:[#allocation8 + $0x7ac] sm:$0xf]
    %v5435 = vld [vmem:[#allocation8 + $0x7b0] sm:$0xff]
    %v5436 = vld [vmem:[#allocation8 + $0x7b8] sm:$0xf]
    %v5437 = vld [vmem:[#allocation8 + $0x7bc] sm:$0xff]
    %v5438 = vld [vmem:[#allocation8 + $0x7c4] sm:$0xf]
    %v5439 = vld [vmem:[#allocation8 + $0x7c8] sm:$0xff]
    %v5440 = vld [vmem:[#allocation8 + $0x7d0] sm:$0xf]
    %v5441 = vld [vmem:[#allocation8 + $0x7d4] sm:$0xff]
    %v5442 = vld [vmem:[#allocation8 + $0x7dc] sm:$0xf]
    %v5443 = vld [vmem:[#allocation8 + $0x7e0] sm:$0xff]
    %v5444 = vld [vmem:[#allocation8 + $0x7e8] sm:$0xf]
    %v5445 = vld [vmem:[#allocation8 + $0x7ec] sm:$0xff]
    %v5446 = vld [vmem:[#allocation8 + $0x7f4] sm:$0xf]
    %v5447 = vld [vmem:[#allocation8 + $0x7f8] sm:$0xff]
    %v5448 = vld [vmem:[#allocation8 + $0x800] sm:$0xf]
    %v5449 = vld [vmem:[#allocation8 + $0x804] sm:$0xff]
    %v5450 = vld [vmem:[#allocation8 + $0x80c] sm:$0xf]
    %v5451 = vld [vmem:[#allocation8 + $0x810] sm:$0xff]
    %v5452 = vld [vmem:[#allocation8 + $0x818] sm:$0xf]
    %v5453 = vld [vmem:[#allocation8 + $0x81c] sm:$0xff]
    %v5454 = vld [vmem:[#allocation8 + $0x824] sm:$0xf]
    %v5455 = vld [vmem:[#allocation8 + $0x828] sm:$0xff]
    %v5456 = vld [vmem:[#allocation8 + $0x830] sm:$0xf]
    %v5457 = vld [vmem:[#allocation8 + $0x834] sm:$0xff]
    %v5458 = vld [vmem:[#allocation8 + $0x83c] sm:$0xf]
    %v5459 = vld [vmem:[#allocation8 + $0x840] sm:$0xff]
    %v5460 = vld [vmem:[#allocation8 + $0x848] sm:$0xf]
    %v5461 = vld [vmem:[#allocation8 + $0x84c] sm:$0xff]
    %v5462 = vld [vmem:[#allocation8 + $0x854] sm:$0xf]
    %v5463 = vld [vmem:[#allocation8 + $0x858] sm:$0xff]
    %v5464 = vld [vmem:[#allocation8 + $0x860] sm:$0xf]
    %v5465 = vld [vmem:[#allocation8 + $0x864] sm:$0xff]
    %v5466 = vld [vmem:[#allocation8 + $0x86c] sm:$0xf]
    %v5467 = vld [vmem:[#allocation8 + $0x870] sm:$0xff]
    %v5468 = vld [vmem:[#allocation8 + $0x878] sm:$0xf]
    %v5469 = vld [vmem:[#allocation8 + $0x87c] sm:$0xff]
    %v5470 = vld [vmem:[#allocation8 + $0x884] sm:$0xf]
    %v5471 = vld [vmem:[#allocation8 + $0x888] sm:$0xff]
    %v5472 = vld [vmem:[#allocation8 + $0x890] sm:$0xf]
    %v5473 = vld [vmem:[#allocation8 + $0x894] sm:$0xff]
    %v5474 = vld [vmem:[#allocation8 + $0x89c] sm:$0xf]
    %v5475 = vld [vmem:[#allocation8 + $0x8a0] sm:$0xff]
    %v5476 = vld [vmem:[#allocation8 + $0x8a8] sm:$0xf]
    %v5477 = vld [vmem:[#allocation8 + $0x8ac] sm:$0xff]
    %v5478 = vld [vmem:[#allocation8 + $0x8b4] sm:$0xf]
    %v5479 = vld [vmem:[#allocation8 + $0x8b8] sm:$0xff]
    %v5480 = vld [vmem:[#allocation8 + $0x8c0] sm:$0xf]
    %v5481 = vld [vmem:[#allocation8 + $0x8c4] sm:$0xff]
    %v5482 = vld [vmem:[#allocation8 + $0x8cc] sm:$0xf]
    %v5483 = vld [vmem:[#allocation8 + $0x8d0] sm:$0xff]
    %v5484 = vld [vmem:[#allocation8 + $0x8d8] sm:$0xf]
    %v5485 = vld [vmem:[#allocation8 + $0x8dc] sm:$0xff]
    %v5486 = vld [vmem:[#allocation8 + $0x8e4] sm:$0xf]
    %v5487 = vld [vmem:[#allocation8 + $0x8e8] sm:$0xff]
    %v5488 = vld [vmem:[#allocation8 + $0x8f0] sm:$0xf]
    %v5489 = vld [vmem:[#allocation8 + $0x8f4] sm:$0xff]
    %v5490 = vld [vmem:[#allocation8 + $0x8fc] sm:$0xf]
    %v5491 = vld [vmem:[#allocation10] sm:$0x7]
    %v5493 = vlaneseq
    %v5494 = vshrl.u32 %v5493, 7
    %v5495 = vsub.s32 0, %v5494
    %v5496 = vrot.slane %v5491, %v5495
    %v5497 = vlaneseq
    %v5498 = vshrl.u32 %v5497, 7
    %v5499 = vsub.s32 1, %v5498
    %v5500 = vrot.slane %v5491, %v5499
    %v5501 = vlaneseq
    %v5502 = vshrl.u32 %v5501, 7
    %v5503 = vsub.s32 2, %v5502
    %v5504 = vrot.slane %v5491, %v5503
    %v5892 = vunpack.c.l.b16 %v5107
    %v5893 = vunpack.c.h.b16 %v5107
    %v5894 = vunpack.c.l.b16 %v5108
    %v5895 = vunpack.c.l.b16 %v5109
    %v5896 = vunpack.c.h.b16 %v5109
    %v5897 = vunpack.c.l.b16 %v5110
    %v5898 = vunpack.c.l.b16 %v5111
    %v5899 = vunpack.c.h.b16 %v5111
    %v5900 = vunpack.c.l.b16 %v5112
    %v5901 = vunpack.c.l.b16 %v5113
    %v5902 = vunpack.c.h.b16 %v5113
    %v5903 = vunpack.c.l.b16 %v5114
    %v5904 = vunpack.c.l.b16 %v5115
    %v5905 = vunpack.c.h.b16 %v5115
    %v5906 = vunpack.c.l.b16 %v5116
    %v5907 = vunpack.c.l.b16 %v5117
    %v5908 = vunpack.c.h.b16 %v5117
    %v5909 = vunpack.c.l.b16 %v5118
    %v5910 = vunpack.c.l.b16 %v5119
    %v5911 = vunpack.c.h.b16 %v5119
    %v5912 = vunpack.c.l.b16 %v5120
    %v5913 = vunpack.c.l.b16 %v5121
    %v5914 = vunpack.c.h.b16 %v5121
    %v5915 = vunpack.c.l.b16 %v5122
    %v5916 = vunpack.c.l.b16 %v5123
    %v5917 = vunpack.c.h.b16 %v5123
    %v5918 = vunpack.c.l.b16 %v5124
    %v5919 = vunpack.c.l.b16 %v5125
    %v5920 = vunpack.c.h.b16 %v5125
    %v5921 = vunpack.c.l.b16 %v5126
    %v5922 = vunpack.c.l.b16 %v5127
    %v5923 = vunpack.c.h.b16 %v5127
    %v5924 = vunpack.c.l.b16 %v5128
    %v5925 = vunpack.c.l.b16 %v5129
    %v5926 = vunpack.c.h.b16 %v5129
    %v5927 = vunpack.c.l.b16 %v5130
    %v5928 = vunpack.c.l.b16 %v5131
    %v5929 = vunpack.c.h.b16 %v5131
    %v5930 = vunpack.c.l.b16 %v5132
    %v5931 = vunpack.c.l.b16 %v5133
    %v5932 = vunpack.c.h.b16 %v5133
    %v5933 = vunpack.c.l.b16 %v5134
    %v5934 = vunpack.c.l.b16 %v5135
    %v5935 = vunpack.c.h.b16 %v5135
    %v5936 = vunpack.c.l.b16 %v5136
    %v5937 = vunpack.c.l.b16 %v5137
    %v5938 = vunpack.c.h.b16 %v5137
    %v5939 = vunpack.c.l.b16 %v5138
    %v5940 = vunpack.c.l.b16 %v5139
    %v5941 = vunpack.c.h.b16 %v5139
    %v5942 = vunpack.c.l.b16 %v5140
    %v5943 = vunpack.c.l.b16 %v5141
    %v5944 = vunpack.c.h.b16 %v5141
    %v5945 = vunpack.c.l.b16 %v5142
    %v5946 = vunpack.c.l.b16 %v5143
    %v5947 = vunpack.c.h.b16 %v5143
    %v5948 = vunpack.c.l.b16 %v5144
    %v5949 = vunpack.c.l.b16 %v5145
    %v5950 = vunpack.c.h.b16 %v5145
    %v5951 = vunpack.c.l.b16 %v5146
    %v5952 = vunpack.c.l.b16 %v5147
    %v5953 = vunpack.c.h.b16 %v5147
    %v5954 = vunpack.c.l.b16 %v5148
    %v5955 = vunpack.c.l.b16 %v5149
    %v5956 = vunpack.c.h.b16 %v5149
    %v5957 = vunpack.c.l.b16 %v5150
    %v5958 = vunpack.c.l.b16 %v5151
    %v5959 = vunpack.c.h.b16 %v5151
    %v5960 = vunpack.c.l.b16 %v5152
    %v5961 = vunpack.c.l.b16 %v5153
    %v5962 = vunpack.c.h.b16 %v5153
    %v5963 = vunpack.c.l.b16 %v5154
    %v5964 = vunpack.c.l.b16 %v5155
    %v5965 = vunpack.c.h.b16 %v5155
    %v5966 = vunpack.c.l.b16 %v5156
    %v5967 = vunpack.c.l.b16 %v5157
    %v5968 = vunpack.c.h.b16 %v5157
    %v5969 = vunpack.c.l.b16 %v5158
    %v5970 = vunpack.c.l.b16 %v5159
    %v5971 = vunpack.c.h.b16 %v5159
    %v5972 = vunpack.c.l.b16 %v5160
    %v5973 = vunpack.c.l.b16 %v5161
    %v5974 = vunpack.c.h.b16 %v5161
    %v5975 = vunpack.c.l.b16 %v5162
    %v5976 = vunpack.c.l.b16 %v5163
    %v5977 = vunpack.c.h.b16 %v5163
    %v5978 = vunpack.c.l.b16 %v5164
    %v5979 = vunpack.c.l.b16 %v5165
    %v5980 = vunpack.c.h.b16 %v5165
    %v5981 = vunpack.c.l.b16 %v5166
    %v5982 = vunpack.c.l.b16 %v5167
    %v5983 = vunpack.c.h.b16 %v5167
    %v5984 = vunpack.c.l.b16 %v5168
    %v5985 = vunpack.c.l.b16 %v5169
    %v5986 = vunpack.c.h.b16 %v5169
    %v5987 = vunpack.c.l.b16 %v5170
    %v5988 = vunpack.c.l.b16 %v5171
    %v5989 = vunpack.c.h.b16 %v5171
    %v5990 = vunpack.c.l.b16 %v5172
    %v5991 = vunpack.c.l.b16 %v5173
    %v5992 = vunpack.c.h.b16 %v5173
    %v5993 = vunpack.c.l.b16 %v5174
    %v5994 = vunpack.c.l.b16 %v5175
    %v5995 = vunpack.c.h.b16 %v5175
    %v5996 = vunpack.c.l.b16 %v5176
    %v5997 = vunpack.c.l.b16 %v5177
    %v5998 = vunpack.c.h.b16 %v5177
    %v5999 = vunpack.c.l.b16 %v5178
    %v6000 = vunpack.c.l.b16 %v5179
    %v6001 = vunpack.c.h.b16 %v5179
    %v6002 = vunpack.c.l.b16 %v5180
    %v6003 = vunpack.c.l.b16 %v5181
    %v6004 = vunpack.c.h.b16 %v5181
    %v6005 = vunpack.c.l.b16 %v5182
    %v6006 = vunpack.c.l.b16 %v5183
    %v6007 = vunpack.c.h.b16 %v5183
    %v6008 = vunpack.c.l.b16 %v5184
    %v6009 = vunpack.c.l.b16 %v5185
    %v6010 = vunpack.c.h.b16 %v5185
    %v6011 = vunpack.c.l.b16 %v5186
    %v6012 = vunpack.c.l.b16 %v5187
    %v6013 = vunpack.c.h.b16 %v5187
    %v6014 = vunpack.c.l.b16 %v5188
    %v6015 = vunpack.c.l.b16 %v5189
    %v6016 = vunpack.c.h.b16 %v5189
    %v6017 = vunpack.c.l.b16 %v5190
    %v6018 = vunpack.c.l.b16 %v5191
    %v6019 = vunpack.c.h.b16 %v5191
    %v6020 = vunpack.c.l.b16 %v5192
    %v6021 = vunpack.c.l.b16 %v5193
    %v6022 = vunpack.c.h.b16 %v5193
    %v6023 = vunpack.c.l.b16 %v5194
    %v6024 = vunpack.c.l.b16 %v5195
    %v6025 = vunpack.c.h.b16 %v5195
    %v6026 = vunpack.c.l.b16 %v5196
    %v6027 = vunpack.c.l.b16 %v5197
    %v6028 = vunpack.c.h.b16 %v5197
    %v6029 = vunpack.c.l.b16 %v5198
    %v6030 = vunpack.c.l.b16 %v5199
    %v6031 = vunpack.c.h.b16 %v5199
    %v6032 = vunpack.c.l.b16 %v5200
    %v6033 = vunpack.c.l.b16 %v5201
    %v6034 = vunpack.c.h.b16 %v5201
    %v6035 = vunpack.c.l.b16 %v5202
    %v6036 = vunpack.c.l.b16 %v5203
    %v6037 = vunpack.c.h.b16 %v5203
    %v6038 = vunpack.c.l.b16 %v5204
    %v6039 = vunpack.c.l.b16 %v5205
    %v6040 = vunpack.c.h.b16 %v5205
    %v6041 = vunpack.c.l.b16 %v5206
    %v6042 = vunpack.c.l.b16 %v5207
    %v6043 = vunpack.c.h.b16 %v5207
    %v6044 = vunpack.c.l.b16 %v5208
    %v6045 = vunpack.c.l.b16 %v5209
    %v6046 = vunpack.c.h.b16 %v5209
    %v6047 = vunpack.c.l.b16 %v5210
    %v6048 = vunpack.c.l.b16 %v5211
    %v6049 = vunpack.c.h.b16 %v5211
    %v6050 = vunpack.c.l.b16 %v5212
    %v6051 = vunpack.c.l.b16 %v5213
    %v6052 = vunpack.c.h.b16 %v5213
    %v6053 = vunpack.c.l.b16 %v5214
    %v6054 = vunpack.c.l.b16 %v5215
    %v6055 = vunpack.c.h.b16 %v5215
    %v6056 = vunpack.c.l.b16 %v5216
    %v6057 = vunpack.c.l.b16 %v5217
    %v6058 = vunpack.c.h.b16 %v5217
    %v6059 = vunpack.c.l.b16 %v5218
    %v6060 = vunpack.c.l.b16 %v5219
    %v6061 = vunpack.c.h.b16 %v5219
    %v6062 = vunpack.c.l.b16 %v5220
    %v6063 = vunpack.c.l.b16 %v5221
    %v6064 = vunpack.c.h.b16 %v5221
    %v6065 = vunpack.c.l.b16 %v5222
    %v6066 = vunpack.c.l.b16 %v5223
    %v6067 = vunpack.c.h.b16 %v5223
    %v6068 = vunpack.c.l.b16 %v5224
    %v6069 = vunpack.c.l.b16 %v5225
    %v6070 = vunpack.c.h.b16 %v5225
    %v6071 = vunpack.c.l.b16 %v5226
    %v6072 = vunpack.c.l.b16 %v5227
    %v6073 = vunpack.c.h.b16 %v5227
    %v6074 = vunpack.c.l.b16 %v5228
    %v6075 = vunpack.c.l.b16 %v5229
    %v6076 = vunpack.c.h.b16 %v5229
    %v6077 = vunpack.c.l.b16 %v5230
    %v6078 = vunpack.c.l.b16 %v5231
    %v6079 = vunpack.c.h.b16 %v5231
    %v6080 = vunpack.c.l.b16 %v5232
    %v6081 = vunpack.c.l.b16 %v5233
    %v6082 = vunpack.c.h.b16 %v5233
    %v6083 = vunpack.c.l.b16 %v5234
    %v6084 = vunpack.c.l.b16 %v5235
    %v6085 = vunpack.c.h.b16 %v5235
    %v6086 = vunpack.c.l.b16 %v5236
    %v6087 = vunpack.c.l.b16 %v5237
    %v6088 = vunpack.c.h.b16 %v5237
    %v6089 = vunpack.c.l.b16 %v5238
    %v6090 = vunpack.c.l.b16 %v5239
    %v6091 = vunpack.c.h.b16 %v5239
    %v6092 = vunpack.c.l.b16 %v5240
    %v6093 = vunpack.c.l.b16 %v5241
    %v6094 = vunpack.c.h.b16 %v5241
    %v6095 = vunpack.c.l.b16 %v5242
    %v6096 = vunpack.c.l.b16 %v5243
    %v6097 = vunpack.c.h.b16 %v5243
    %v6098 = vunpack.c.l.b16 %v5244
    %v6099 = vunpack.c.l.b16 %v5245
    %v6100 = vunpack.c.h.b16 %v5245
    %v6101 = vunpack.c.l.b16 %v5246
    %v6102 = vunpack.c.l.b16 %v5247
    %v6103 = vunpack.c.h.b16 %v5247
    %v6104 = vunpack.c.l.b16 %v5248
    %v6105 = vunpack.c.l.b16 %v5249
    %v6106 = vunpack.c.h.b16 %v5249
    %v6107 = vunpack.c.l.b16 %v5250
    %v6108 = vunpack.c.l.b16 %v5251
    %v6109 = vunpack.c.h.b16 %v5251
    %v6110 = vunpack.c.l.b16 %v5252
    %v6111 = vunpack.c.l.b16 %v5253
    %v6112 = vunpack.c.h.b16 %v5253
    %v6113 = vunpack.c.l.b16 %v5254
    %v6114 = vunpack.c.l.b16 %v5255
    %v6115 = vunpack.c.h.b16 %v5255
    %v6116 = vunpack.c.l.b16 %v5256
    %v6117 = vunpack.c.l.b16 %v5257
    %v6118 = vunpack.c.h.b16 %v5257
    %v6119 = vunpack.c.l.b16 %v5258
    %v6120 = vunpack.c.l.b16 %v5259
    %v6121 = vunpack.c.h.b16 %v5259
    %v6122 = vunpack.c.l.b16 %v5260
    %v6123 = vunpack.c.l.b16 %v5261
    %v6124 = vunpack.c.h.b16 %v5261
    %v6125 = vunpack.c.l.b16 %v5262
    %v6126 = vunpack.c.l.b16 %v5263
    %v6127 = vunpack.c.h.b16 %v5263
    %v6128 = vunpack.c.l.b16 %v5264
    %v6129 = vunpack.c.l.b16 %v5265
    %v6130 = vunpack.c.h.b16 %v5265
    %v6131 = vunpack.c.l.b16 %v5266
    %v6132 = vunpack.c.l.b16 %v5267
    %v6133 = vunpack.c.h.b16 %v5267
    %v6134 = vunpack.c.l.b16 %v5268
    %v6135 = vunpack.c.l.b16 %v5269
    %v6136 = vunpack.c.h.b16 %v5269
    %v6137 = vunpack.c.l.b16 %v5270
    %v6138 = vunpack.c.l.b16 %v5271
    %v6139 = vunpack.c.h.b16 %v5271
    %v6140 = vunpack.c.l.b16 %v5272
    %v6141 = vunpack.c.l.b16 %v5273
    %v6142 = vunpack.c.h.b16 %v5273
    %v6143 = vunpack.c.l.b16 %v5274
    %v6144 = vunpack.c.l.b16 %v5275
    %v6145 = vunpack.c.h.b16 %v5275
    %v6146 = vunpack.c.l.b16 %v5276
    %v6147 = vunpack.c.l.b16 %v5277
    %v6148 = vunpack.c.h.b16 %v5277
    %v6149 = vunpack.c.l.b16 %v5278
    %v6150 = vunpack.c.l.b16 %v5279
    %v6151 = vunpack.c.h.b16 %v5279
    %v6152 = vunpack.c.l.b16 %v5280
    %v6153 = vunpack.c.l.b16 %v5281
    %v6154 = vunpack.c.h.b16 %v5281
    %v6155 = vunpack.c.l.b16 %v5282
    %v6156 = vunpack.c.l.b16 %v5283
    %v6157 = vunpack.c.h.b16 %v5283
    %v6158 = vunpack.c.l.b16 %v5284
    %v6159 = vunpack.c.l.b16 %v5285
    %v6160 = vunpack.c.h.b16 %v5285
    %v6161 = vunpack.c.l.b16 %v5286
    %v6162 = vunpack.c.l.b16 %v5287
    %v6163 = vunpack.c.h.b16 %v5287
    %v6164 = vunpack.c.l.b16 %v5288
    %v6165 = vunpack.c.l.b16 %v5289
    %v6166 = vunpack.c.h.b16 %v5289
    %v6167 = vunpack.c.l.b16 %v5290
    %v6168 = vunpack.c.l.b16 %v5291
    %v6169 = vunpack.c.h.b16 %v5291
    %v6170 = vunpack.c.l.b16 %v5292
    %v6171 = vunpack.c.l.b16 %v5293
    %v6172 = vunpack.c.h.b16 %v5293
    %v6173 = vunpack.c.l.b16 %v5294
    %v6174 = vunpack.c.l.b16 %v5295
    %v6175 = vunpack.c.h.b16 %v5295
    %v6176 = vunpack.c.l.b16 %v5296
    %v6177 = vunpack.c.l.b16 %v5297
    %v6178 = vunpack.c.h.b16 %v5297
    %v6179 = vunpack.c.l.b16 %v5298
    %v6180 = vunpack.c.l.b16 %v5299
    %v6181 = vunpack.c.h.b16 %v5299
    %v6182 = vunpack.c.l.b16 %v5300
    %v6183 = vunpack.c.l.b16 %v5301
    %v6184 = vunpack.c.h.b16 %v5301
    %v6185 = vunpack.c.l.b16 %v5302
    %v6186 = vunpack.c.l.b16 %v5303
    %v6187 = vunpack.c.h.b16 %v5303
    %v6188 = vunpack.c.l.b16 %v5304
    %v6189 = vunpack.c.l.b16 %v5305
    %v6190 = vunpack.c.h.b16 %v5305
    %v6191 = vunpack.c.l.b16 %v5306
    %v6192 = vunpack.c.l.b16 %v5307
    %v6193 = vunpack.c.h.b16 %v5307
    %v6194 = vunpack.c.l.b16 %v5308
    %v6195 = vunpack.c.l.b16 %v5309
    %v6196 = vunpack.c.h.b16 %v5309
    %v6197 = vunpack.c.l.b16 %v5310
    %v6198 = vunpack.c.l.b16 %v5311
    %v6199 = vunpack.c.h.b16 %v5311
    %v6200 = vunpack.c.l.b16 %v5312
    %v6201 = vunpack.c.l.b16 %v5313
    %v6202 = vunpack.c.h.b16 %v5313
    %v6203 = vunpack.c.l.b16 %v5314
    %v6204 = vunpack.c.l.b16 %v5315
    %v6205 = vunpack.c.h.b16 %v5315
    %v6206 = vunpack.c.l.b16 %v5316
    %v6207 = vunpack.c.l.b16 %v5317
    %v6208 = vunpack.c.h.b16 %v5317
    %v6209 = vunpack.c.l.b16 %v5318
    %v6210 = vunpack.c.l.b16 %v5319
    %v6211 = vunpack.c.h.b16 %v5319
    %v6212 = vunpack.c.l.b16 %v5320
    %v6213 = vunpack.c.l.b16 %v5321
    %v6214 = vunpack.c.h.b16 %v5321
    %v6215 = vunpack.c.l.b16 %v5322
    %v6216 = vunpack.c.l.b16 %v5323
    %v6217 = vunpack.c.h.b16 %v5323
    %v6218 = vunpack.c.l.b16 %v5324
    %v6219 = vunpack.c.l.b16 %v5325
    %v6220 = vunpack.c.h.b16 %v5325
    %v6221 = vunpack.c.l.b16 %v5326
    %v6222 = vunpack.c.l.b16 %v5327
    %v6223 = vunpack.c.h.b16 %v5327
    %v6224 = vunpack.c.l.b16 %v5328
    %v6225 = vunpack.c.l.b16 %v5329
    %v6226 = vunpack.c.h.b16 %v5329
    %v6227 = vunpack.c.l.b16 %v5330
    %v6228 = vunpack.c.l.b16 %v5331
    %v6229 = vunpack.c.h.b16 %v5331
    %v6230 = vunpack.c.l.b16 %v5332
    %v6231 = vunpack.c.l.b16 %v5333
    %v6232 = vunpack.c.h.b16 %v5333
    %v6233 = vunpack.c.l.b16 %v5334
    %v6234 = vunpack.c.l.b16 %v5335
    %v6235 = vunpack.c.h.b16 %v5335
    %v6236 = vunpack.c.l.b16 %v5336
    %v6237 = vunpack.c.l.b16 %v5337
    %v6238 = vunpack.c.h.b16 %v5337
    %v6239 = vunpack.c.l.b16 %v5338
    %v6240 = vunpack.c.l.b16 %v5339
    %v6241 = vunpack.c.h.b16 %v5339
    %v6242 = vunpack.c.l.b16 %v5340
    %v6243 = vunpack.c.l.b16 %v5341
    %v6244 = vunpack.c.h.b16 %v5341
    %v6245 = vunpack.c.l.b16 %v5342
    %v6246 = vunpack.c.l.b16 %v5343
    %v6247 = vunpack.c.h.b16 %v5343
    %v6248 = vunpack.c.l.b16 %v5344
    %v6249 = vunpack.c.l.b16 %v5345
    %v6250 = vunpack.c.h.b16 %v5345
    %v6251 = vunpack.c.l.b16 %v5346
    %v6252 = vunpack.c.l.b16 %v5347
    %v6253 = vunpack.c.h.b16 %v5347
    %v6254 = vunpack.c.l.b16 %v5348
    %v6255 = vunpack.c.l.b16 %v5349
    %v6256 = vunpack.c.h.b16 %v5349
    %v6257 = vunpack.c.l.b16 %v5350
    %v6258 = vunpack.c.l.b16 %v5351
    %v6259 = vunpack.c.h.b16 %v5351
    %v6260 = vunpack.c.l.b16 %v5352
    %v6261 = vunpack.c.l.b16 %v5353
    %v6262 = vunpack.c.h.b16 %v5353
    %v6263 = vunpack.c.l.b16 %v5354
    %v6264 = vunpack.c.l.b16 %v5355
    %v6265 = vunpack.c.h.b16 %v5355
    %v6266 = vunpack.c.l.b16 %v5356
    %v6267 = vunpack.c.l.b16 %v5357
    %v6268 = vunpack.c.h.b16 %v5357
    %v6269 = vunpack.c.l.b16 %v5358
    %v6270 = vunpack.c.l.b16 %v5359
    %v6271 = vunpack.c.h.b16 %v5359
    %v6272 = vunpack.c.l.b16 %v5360
    %v6273 = vunpack.c.l.b16 %v5361
    %v6274 = vunpack.c.h.b16 %v5361
    %v6275 = vunpack.c.l.b16 %v5362
    %v6276 = vunpack.c.l.b16 %v5363
    %v6277 = vunpack.c.h.b16 %v5363
    %v6278 = vunpack.c.l.b16 %v5364
    %v6279 = vunpack.c.l.b16 %v5365
    %v6280 = vunpack.c.h.b16 %v5365
    %v6281 = vunpack.c.l.b16 %v5366
    %v6282 = vunpack.c.l.b16 %v5367
    %v6283 = vunpack.c.h.b16 %v5367
    %v6284 = vunpack.c.l.b16 %v5368
    %v6285 = vunpack.c.l.b16 %v5369
    %v6286 = vunpack.c.h.b16 %v5369
    %v6287 = vunpack.c.l.b16 %v5370
    %v6288 = vunpack.c.l.b16 %v5371
    %v6289 = vunpack.c.h.b16 %v5371
    %v6290 = vunpack.c.l.b16 %v5372
    %v6291 = vunpack.c.l.b16 %v5373
    %v6292 = vunpack.c.h.b16 %v5373
    %v6293 = vunpack.c.l.b16 %v5374
    %v6294 = vunpack.c.l.b16 %v5375
    %v6295 = vunpack.c.h.b16 %v5375
    %v6296 = vunpack.c.l.b16 %v5376
    %v6297 = vunpack.c.l.b16 %v5377
    %v6298 = vunpack.c.h.b16 %v5377
    %v6299 = vunpack.c.l.b16 %v5378
    %v6300 = vunpack.c.l.b16 %v5379
    %v6301 = vunpack.c.h.b16 %v5379
    %v6302 = vunpack.c.l.b16 %v5380
    %v6303 = vunpack.c.l.b16 %v5381
    %v6304 = vunpack.c.h.b16 %v5381
    %v6305 = vunpack.c.l.b16 %v5382
    %v6306 = vunpack.c.l.b16 %v5383
    %v6307 = vunpack.c.h.b16 %v5383
    %v6308 = vunpack.c.l.b16 %v5384
    %v6309 = vunpack.c.l.b16 %v5385
    %v6310 = vunpack.c.h.b16 %v5385
    %v6311 = vunpack.c.l.b16 %v5386
    %v6312 = vunpack.c.l.b16 %v5387
    %v6313 = vunpack.c.h.b16 %v5387
    %v6314 = vunpack.c.l.b16 %v5388
    %v6315 = vunpack.c.l.b16 %v5389
    %v6316 = vunpack.c.h.b16 %v5389
    %v6317 = vunpack.c.l.b16 %v5390
    %v6318 = vunpack.c.l.b16 %v5391
    %v6319 = vunpack.c.h.b16 %v5391
    %v6320 = vunpack.c.l.b16 %v5392
    %v6321 = vunpack.c.l.b16 %v5393
    %v6322 = vunpack.c.h.b16 %v5393
    %v6323 = vunpack.c.l.b16 %v5394
    %v6324 = vunpack.c.l.b16 %v5395
    %v6325 = vunpack.c.h.b16 %v5395
    %v6326 = vunpack.c.l.b16 %v5396
    %v6327 = vunpack.c.l.b16 %v5397
    %v6328 = vunpack.c.h.b16 %v5397
    %v6329 = vunpack.c.l.b16 %v5398
    %v6330 = vunpack.c.l.b16 %v5399
    %v6331 = vunpack.c.h.b16 %v5399
    %v6332 = vunpack.c.l.b16 %v5400
    %v6333 = vunpack.c.l.b16 %v5401
    %v6334 = vunpack.c.h.b16 %v5401
    %v6335 = vunpack.c.l.b16 %v5402
    %v6336 = vunpack.c.l.b16 %v5403
    %v6337 = vunpack.c.h.b16 %v5403
    %v6338 = vunpack.c.l.b16 %v5404
    %v6339 = vunpack.c.l.b16 %v5405
    %v6340 = vunpack.c.h.b16 %v5405
    %v6341 = vunpack.c.l.b16 %v5406
    %v6342 = vunpack.c.l.b16 %v5407
    %v6343 = vunpack.c.h.b16 %v5407
    %v6344 = vunpack.c.l.b16 %v5408
    %v6345 = vunpack.c.l.b16 %v5409
    %v6346 = vunpack.c.h.b16 %v5409
    %v6347 = vunpack.c.l.b16 %v5410
    %v6348 = vunpack.c.l.b16 %v5411
    %v6349 = vunpack.c.h.b16 %v5411
    %v6350 = vunpack.c.l.b16 %v5412
    %v6351 = vunpack.c.l.b16 %v5413
    %v6352 = vunpack.c.h.b16 %v5413
    %v6353 = vunpack.c.l.b16 %v5414
    %v6354 = vunpack.c.l.b16 %v5415
    %v6355 = vunpack.c.h.b16 %v5415
    %v6356 = vunpack.c.l.b16 %v5416
    %v6357 = vunpack.c.l.b16 %v5417
    %v6358 = vunpack.c.h.b16 %v5417
    %v6359 = vunpack.c.l.b16 %v5418
    %v6360 = vunpack.c.l.b16 %v5419
    %v6361 = vunpack.c.h.b16 %v5419
    %v6362 = vunpack.c.l.b16 %v5420
    %v6363 = vunpack.c.l.b16 %v5421
    %v6364 = vunpack.c.h.b16 %v5421
    %v6365 = vunpack.c.l.b16 %v5422
    %v6366 = vunpack.c.l.b16 %v5423
    %v6367 = vunpack.c.h.b16 %v5423
    %v6368 = vunpack.c.l.b16 %v5424
    %v6369 = vunpack.c.l.b16 %v5425
    %v6370 = vunpack.c.h.b16 %v5425
    %v6371 = vunpack.c.l.b16 %v5426
    %v6372 = vunpack.c.l.b16 %v5427
    %v6373 = vunpack.c.h.b16 %v5427
    %v6374 = vunpack.c.l.b16 %v5428
    %v6375 = vunpack.c.l.b16 %v5429
    %v6376 = vunpack.c.h.b16 %v5429
    %v6377 = vunpack.c.l.b16 %v5430
    %v6378 = vunpack.c.l.b16 %v5431
    %v6379 = vunpack.c.h.b16 %v5431
    %v6380 = vunpack.c.l.b16 %v5432
    %v6381 = vunpack.c.l.b16 %v5433
    %v6382 = vunpack.c.h.b16 %v5433
    %v6383 = vunpack.c.l.b16 %v5434
    %v6384 = vunpack.c.l.b16 %v5435
    %v6385 = vunpack.c.h.b16 %v5435
    %v6386 = vunpack.c.l.b16 %v5436
    %v6387 = vunpack.c.l.b16 %v5437
    %v6388 = vunpack.c.h.b16 %v5437
    %v6389 = vunpack.c.l.b16 %v5438
    %v6390 = vunpack.c.l.b16 %v5439
    %v6391 = vunpack.c.h.b16 %v5439
    %v6392 = vunpack.c.l.b16 %v5440
    %v6393 = vunpack.c.l.b16 %v5441
    %v6394 = vunpack.c.h.b16 %v5441
    %v6395 = vunpack.c.l.b16 %v5442
    %v6396 = vunpack.c.l.b16 %v5443
    %v6397 = vunpack.c.h.b16 %v5443
    %v6398 = vunpack.c.l.b16 %v5444
    %v6399 = vunpack.c.l.b16 %v5445
    %v6400 = vunpack.c.h.b16 %v5445
    %v6401 = vunpack.c.l.b16 %v5446
    %v6402 = vunpack.c.l.b16 %v5447
    %v6403 = vunpack.c.h.b16 %v5447
    %v6404 = vunpack.c.l.b16 %v5448
    %v6405 = vunpack.c.l.b16 %v5449
    %v6406 = vunpack.c.h.b16 %v5449
    %v6407 = vunpack.c.l.b16 %v5450
    %v6408 = vunpack.c.l.b16 %v5451
    %v6409 = vunpack.c.h.b16 %v5451
    %v6410 = vunpack.c.l.b16 %v5452
    %v6411 = vunpack.c.l.b16 %v5453
    %v6412 = vunpack.c.h.b16 %v5453
    %v6413 = vunpack.c.l.b16 %v5454
    %v6414 = vunpack.c.l.b16 %v5455
    %v6415 = vunpack.c.h.b16 %v5455
    %v6416 = vunpack.c.l.b16 %v5456
    %v6417 = vunpack.c.l.b16 %v5457
    %v6418 = vunpack.c.h.b16 %v5457
    %v6419 = vunpack.c.l.b16 %v5458
    %v6420 = vunpack.c.l.b16 %v5459
    %v6421 = vunpack.c.h.b16 %v5459
    %v6422 = vunpack.c.l.b16 %v5460
    %v6423 = vunpack.c.l.b16 %v5461
    %v6424 = vunpack.c.h.b16 %v5461
    %v6425 = vunpack.c.l.b16 %v5462
    %v6426 = vunpack.c.l.b16 %v5463
    %v6427 = vunpack.c.h.b16 %v5463
    %v6428 = vunpack.c.l.b16 %v5464
    %v6429 = vunpack.c.l.b16 %v5465
    %v6430 = vunpack.c.h.b16 %v5465
    %v6431 = vunpack.c.l.b16 %v5466
    %v6432 = vunpack.c.l.b16 %v5467
    %v6433 = vunpack.c.h.b16 %v5467
    %v6434 = vunpack.c.l.b16 %v5468
    %v6435 = vunpack.c.l.b16 %v5469
    %v6436 = vunpack.c.h.b16 %v5469
    %v6437 = vunpack.c.l.b16 %v5470
    %v6438 = vunpack.c.l.b16 %v5471
    %v6439 = vunpack.c.h.b16 %v5471
    %v6440 = vunpack.c.l.b16 %v5472
    %v6441 = vunpack.c.l.b16 %v5473
    %v6442 = vunpack.c.h.b16 %v5473
    %v6443 = vunpack.c.l.b16 %v5474
    %v6444 = vunpack.c.l.b16 %v5475
    %v6445 = vunpack.c.h.b16 %v5475
    %v6446 = vunpack.c.l.b16 %v5476
    %v6447 = vunpack.c.l.b16 %v5477
    %v6448 = vunpack.c.h.b16 %v5477
    %v6449 = vunpack.c.l.b16 %v5478
    %v6450 = vunpack.c.l.b16 %v5479
    %v6451 = vunpack.c.h.b16 %v5479
    %v6452 = vunpack.c.l.b16 %v5480
    %v6453 = vunpack.c.l.b16 %v5481
    %v6454 = vunpack.c.h.b16 %v5481
    %v6455 = vunpack.c.l.b16 %v5482
    %v6456 = vunpack.c.l.b16 %v5483
    %v6457 = vunpack.c.h.b16 %v5483
    %v6458 = vunpack.c.l.b16 %v5484
    %v6459 = vunpack.c.l.b16 %v5485
    %v6460 = vunpack.c.h.b16 %v5485
    %v6461 = vunpack.c.l.b16 %v5486
    %v6462 = vunpack.c.l.b16 %v5487
    %v6463 = vunpack.c.h.b16 %v5487
    %v6464 = vunpack.c.l.b16 %v5488
    %v6465 = vunpack.c.l.b16 %v5489
    %v6466 = vunpack.c.h.b16 %v5489
    %v6467 = vunpack.c.l.b16 %v5490
    %v6468 = vpack.c.b16 %v5895, %v5892
    %v6469 = vpack.c.b16 %v5896, %v5893
    %v6470 = vpack.c.b16 %v5897, %v5894
    %v6471 = vpack.c.b16 %v5901, %v5898
    %v6472 = vpack.c.b16 %v5902, %v5899
    %v6473 = vpack.c.b16 %v5903, %v5900
    %v6474 = vpack.c.b16 %v5907, %v5904
    %v6475 = vpack.c.b16 %v5908, %v5905
    %v6476 = vpack.c.b16 %v5909, %v5906
    %v6477 = vpack.c.b16 %v5913, %v5910
    %v6478 = vpack.c.b16 %v5914, %v5911
    %v6479 = vpack.c.b16 %v5915, %v5912
    %v6480 = vpack.c.b16 %v5919, %v5916
    %v6481 = vpack.c.b16 %v5920, %v5917
    %v6482 = vpack.c.b16 %v5921, %v5918
    %v6483 = vpack.c.b16 %v5925, %v5922
    %v6484 = vpack.c.b16 %v5926, %v5923
    %v6485 = vpack.c.b16 %v5927, %v5924
    %v6486 = vpack.c.b16 %v5931, %v5928
    %v6487 = vpack.c.b16 %v5932, %v5929
    %v6488 = vpack.c.b16 %v5933, %v5930
    %v6489 = vpack.c.b16 %v5937, %v5934
    %v6490 = vpack.c.b16 %v5938, %v5935
    %v6491 = vpack.c.b16 %v5939, %v5936
    %v6492 = vpack.c.b16 %v5943, %v5940
    %v6493 = vpack.c.b16 %v5944, %v5941
    %v6494 = vpack.c.b16 %v5945, %v5942
    %v6495 = vpack.c.b16 %v5949, %v5946
    %v6496 = vpack.c.b16 %v5950, %v5947
    %v6497 = vpack.c.b16 %v5951, %v5948
    %v6498 = vpack.c.b16 %v5955, %v5952
    %v6499 = vpack.c.b16 %v5956, %v5953
    %v6500 = vpack.c.b16 %v5957, %v5954
    %v6501 = vpack.c.b16 %v5961, %v5958
    %v6502 = vpack.c.b16 %v5962, %v5959
    %v6503 = vpack.c.b16 %v5963, %v5960
    %v6504 = vpack.c.b16 %v5967, %v5964
    %v6505 = vpack.c.b16 %v5968, %v5965
    %v6506 = vpack.c.b16 %v5969, %v5966
    %v6507 = vpack.c.b16 %v5973, %v5970
    %v6508 = vpack.c.b16 %v5974, %v5971
    %v6509 = vpack.c.b16 %v5975, %v5972
    %v6510 = vpack.c.b16 %v5979, %v5976
    %v6511 = vpack.c.b16 %v5980, %v5977
    %v6512 = vpack.c.b16 %v5981, %v5978
    %v6513 = vpack.c.b16 %v5985, %v5982
    %v6514 = vpack.c.b16 %v5986, %v5983
    %v6515 = vpack.c.b16 %v5987, %v5984
    %v6516 = vpack.c.b16 %v5991, %v5988
    %v6517 = vpack.c.b16 %v5992, %v5989
    %v6518 = vpack.c.b16 %v5993, %v5990
    %v6519 = vpack.c.b16 %v5997, %v5994
    %v6520 = vpack.c.b16 %v5998, %v5995
    %v6521 = vpack.c.b16 %v5999, %v5996
    %v6522 = vpack.c.b16 %v6003, %v6000
    %v6523 = vpack.c.b16 %v6004, %v6001
    %v6524 = vpack.c.b16 %v6005, %v6002
    %v6525 = vpack.c.b16 %v6009, %v6006
    %v6526 = vpack.c.b16 %v6010, %v6007
    %v6527 = vpack.c.b16 %v6011, %v6008
    %v6528 = vpack.c.b16 %v6015, %v6012
    %v6529 = vpack.c.b16 %v6016, %v6013
    %v6530 = vpack.c.b16 %v6017, %v6014
    %v6531 = vpack.c.b16 %v6021, %v6018
    %v6532 = vpack.c.b16 %v6022, %v6019
    %v6533 = vpack.c.b16 %v6023, %v6020
    %v6534 = vpack.c.b16 %v6027, %v6024
    %v6535 = vpack.c.b16 %v6028, %v6025
    %v6536 = vpack.c.b16 %v6029, %v6026
    %v6537 = vpack.c.b16 %v6033, %v6030
    %v6538 = vpack.c.b16 %v6034, %v6031
    %v6539 = vpack.c.b16 %v6035, %v6032
    %v6540 = vpack.c.b16 %v6039, %v6036
    %v6541 = vpack.c.b16 %v6040, %v6037
    %v6542 = vpack.c.b16 %v6041, %v6038
    %v6543 = vpack.c.b16 %v6045, %v6042
    %v6544 = vpack.c.b16 %v6046, %v6043
    %v6545 = vpack.c.b16 %v6047, %v6044
    %v6546 = vpack.c.b16 %v6051, %v6048
    %v6547 = vpack.c.b16 %v6052, %v6049
    %v6548 = vpack.c.b16 %v6053, %v6050
    %v6549 = vpack.c.b16 %v6057, %v6054
    %v6550 = vpack.c.b16 %v6058, %v6055
    %v6551 = vpack.c.b16 %v6059, %v6056
    %v6552 = vpack.c.b16 %v6063, %v6060
    %v6553 = vpack.c.b16 %v6064, %v6061
    %v6554 = vpack.c.b16 %v6065, %v6062
    %v6555 = vpack.c.b16 %v6069, %v6066
    %v6556 = vpack.c.b16 %v6070, %v6067
    %v6557 = vpack.c.b16 %v6071, %v6068
    %v6558 = vpack.c.b16 %v6075, %v6072
    %v6559 = vpack.c.b16 %v6076, %v6073
    %v6560 = vpack.c.b16 %v6077, %v6074
    %v6561 = vpack.c.b16 %v6081, %v6078
    %v6562 = vpack.c.b16 %v6082, %v6079
    %v6563 = vpack.c.b16 %v6083, %v6080
    %v6564 = vpack.c.b16 %v6087, %v6084
    %v6565 = vpack.c.b16 %v6088, %v6085
    %v6566 = vpack.c.b16 %v6089, %v6086
    %v6567 = vpack.c.b16 %v6093, %v6090
    %v6568 = vpack.c.b16 %v6094, %v6091
    %v6569 = vpack.c.b16 %v6095, %v6092
    %v6570 = vpack.c.b16 %v6099, %v6096
    %v6571 = vpack.c.b16 %v6100, %v6097
    %v6572 = vpack.c.b16 %v6101, %v6098
    %v6573 = vpack.c.b16 %v6105, %v6102
    %v6574 = vpack.c.b16 %v6106, %v6103
    %v6575 = vpack.c.b16 %v6107, %v6104
    %v6576 = vpack.c.b16 %v6111, %v6108
    %v6577 = vpack.c.b16 %v6112, %v6109
    %v6578 = vpack.c.b16 %v6113, %v6110
    %v6579 = vpack.c.b16 %v6117, %v6114
    %v6580 = vpack.c.b16 %v6118, %v6115
    %v6581 = vpack.c.b16 %v6119, %v6116
    %v6582 = vpack.c.b16 %v6123, %v6120
    %v6583 = vpack.c.b16 %v6124, %v6121
    %v6584 = vpack.c.b16 %v6125, %v6122
    %v6585 = vpack.c.b16 %v6129, %v6126
    %v6586 = vpack.c.b16 %v6130, %v6127
    %v6587 = vpack.c.b16 %v6131, %v6128
    %v6588 = vpack.c.b16 %v6135, %v6132
    %v6589 = vpack.c.b16 %v6136, %v6133
    %v6590 = vpack.c.b16 %v6137, %v6134
    %v6591 = vpack.c.b16 %v6141, %v6138
    %v6592 = vpack.c.b16 %v6142, %v6139
    %v6593 = vpack.c.b16 %v6143, %v6140
    %v6594 = vpack.c.b16 %v6147, %v6144
    %v6595 = vpack.c.b16 %v6148, %v6145
    %v6596 = vpack.c.b16 %v6149, %v6146
    %v6597 = vpack.c.b16 %v6153, %v6150
    %v6598 = vpack.c.b16 %v6154, %v6151
    %v6599 = vpack.c.b16 %v6155, %v6152
    %v6600 = vpack.c.b16 %v6159, %v6156
    %v6601 = vpack.c.b16 %v6160, %v6157
    %v6602 = vpack.c.b16 %v6161, %v6158
    %v6603 = vpack.c.b16 %v6165, %v6162
    %v6604 = vpack.c.b16 %v6166, %v6163
    %v6605 = vpack.c.b16 %v6167, %v6164
    %v6606 = vpack.c.b16 %v6171, %v6168
    %v6607 = vpack.c.b16 %v6172, %v6169
    %v6608 = vpack.c.b16 %v6173, %v6170
    %v6609 = vpack.c.b16 %v6177, %v6174
    %v6610 = vpack.c.b16 %v6178, %v6175
    %v6611 = vpack.c.b16 %v6179, %v6176
    %v6612 = vpack.c.b16 %v6183, %v6180
    %v6613 = vpack.c.b16 %v6184, %v6181
    %v6614 = vpack.c.b16 %v6185, %v6182
    %v6615 = vpack.c.b16 %v6189, %v6186
    %v6616 = vpack.c.b16 %v6190, %v6187
    %v6617 = vpack.c.b16 %v6191, %v6188
    %v6618 = vpack.c.b16 %v6195, %v6192
    %v6619 = vpack.c.b16 %v6196, %v6193
    %v6620 = vpack.c.b16 %v6197, %v6194
    %v6621 = vpack.c.b16 %v6201, %v6198
    %v6622 = vpack.c.b16 %v6202, %v6199
    %v6623 = vpack.c.b16 %v6203, %v6200
    %v6624 = vpack.c.b16 %v6207, %v6204
    %v6625 = vpack.c.b16 %v6208, %v6205
    %v6626 = vpack.c.b16 %v6209, %v6206
    %v6627 = vpack.c.b16 %v6213, %v6210
    %v6628 = vpack.c.b16 %v6214, %v6211
    %v6629 = vpack.c.b16 %v6215, %v6212
    %v6630 = vpack.c.b16 %v6219, %v6216
    %v6631 = vpack.c.b16 %v6220, %v6217
    %v6632 = vpack.c.b16 %v6221, %v6218
    %v6633 = vpack.c.b16 %v6225, %v6222
    %v6634 = vpack.c.b16 %v6226, %v6223
    %v6635 = vpack.c.b16 %v6227, %v6224
    %v6636 = vpack.c.b16 %v6231, %v6228
    %v6637 = vpack.c.b16 %v6232, %v6229
    %v6638 = vpack.c.b16 %v6233, %v6230
    %v6639 = vpack.c.b16 %v6237, %v6234
    %v6640 = vpack.c.b16 %v6238, %v6235
    %v6641 = vpack.c.b16 %v6239, %v6236
    %v6642 = vpack.c.b16 %v6243, %v6240
    %v6643 = vpack.c.b16 %v6244, %v6241
    %v6644 = vpack.c.b16 %v6245, %v6242
    %v6645 = vpack.c.b16 %v6249, %v6246
    %v6646 = vpack.c.b16 %v6250, %v6247
    %v6647 = vpack.c.b16 %v6251, %v6248
    %v6648 = vpack.c.b16 %v6255, %v6252
    %v6649 = vpack.c.b16 %v6256, %v6253
    %v6650 = vpack.c.b16 %v6257, %v6254
    %v6651 = vpack.c.b16 %v6261, %v6258
    %v6652 = vpack.c.b16 %v6262, %v6259
    %v6653 = vpack.c.b16 %v6263, %v6260
    %v6654 = vpack.c.b16 %v6267, %v6264
    %v6655 = vpack.c.b16 %v6268, %v6265
    %v6656 = vpack.c.b16 %v6269, %v6266
    %v6657 = vpack.c.b16 %v6273, %v6270
    %v6658 = vpack.c.b16 %v6274, %v6271
    %v6659 = vpack.c.b16 %v6275, %v6272
    %v6660 = vpack.c.b16 %v6279, %v6276
    %v6661 = vpack.c.b16 %v6280, %v6277
    %v6662 = vpack.c.b16 %v6281, %v6278
    %v6663 = vpack.c.b16 %v6285, %v6282
    %v6664 = vpack.c.b16 %v6286, %v6283
    %v6665 = vpack.c.b16 %v6287, %v6284
    %v6666 = vpack.c.b16 %v6291, %v6288
    %v6667 = vpack.c.b16 %v6292, %v6289
    %v6668 = vpack.c.b16 %v6293, %v6290
    %v6669 = vpack.c.b16 %v6297, %v6294
    %v6670 = vpack.c.b16 %v6298, %v6295
    %v6671 = vpack.c.b16 %v6299, %v6296
    %v6672 = vpack.c.b16 %v6303, %v6300
    %v6673 = vpack.c.b16 %v6304, %v6301
    %v6674 = vpack.c.b16 %v6305, %v6302
    %v6675 = vpack.c.b16 %v6309, %v6306
    %v6676 = vpack.c.b16 %v6310, %v6307
    %v6677 = vpack.c.b16 %v6311, %v6308
    %v6678 = vpack.c.b16 %v6315, %v6312
    %v6679 = vpack.c.b16 %v6316, %v6313
    %v6680 = vpack.c.b16 %v6317, %v6314
    %v6681 = vpack.c.b16 %v6321, %v6318
    %v6682 = vpack.c.b16 %v6322, %v6319
    %v6683 = vpack.c.b16 %v6323, %v6320
    %v6684 = vpack.c.b16 %v6327, %v6324
    %v6685 = vpack.c.b16 %v6328, %v6325
    %v6686 = vpack.c.b16 %v6329, %v6326
    %v6687 = vpack.c.b16 %v6333, %v6330
    %v6688 = vpack.c.b16 %v6334, %v6331
    %v6689 = vpack.c.b16 %v6335, %v6332
    %v6690 = vpack.c.b16 %v6339, %v6336
    %v6691 = vpack.c.b16 %v6340, %v6337
    %v6692 = vpack.c.b16 %v6341, %v6338
    %v6693 = vpack.c.b16 %v6345, %v6342
    %v6694 = vpack.c.b16 %v6346, %v6343
    %v6695 = vpack.c.b16 %v6347, %v6344
    %v6696 = vpack.c.b16 %v6351, %v6348
    %v6697 = vpack.c.b16 %v6352, %v6349
    %v6698 = vpack.c.b16 %v6353, %v6350
    %v6699 = vpack.c.b16 %v6357, %v6354
    %v6700 = vpack.c.b16 %v6358, %v6355
    %v6701 = vpack.c.b16 %v6359, %v6356
    %v6702 = vpack.c.b16 %v6363, %v6360
    %v6703 = vpack.c.b16 %v6364, %v6361
    %v6704 = vpack.c.b16 %v6365, %v6362
    %v6705 = vpack.c.b16 %v6369, %v6366
    %v6706 = vpack.c.b16 %v6370, %v6367
    %v6707 = vpack.c.b16 %v6371, %v6368
    %v6708 = vpack.c.b16 %v6375, %v6372
    %v6709 = vpack.c.b16 %v6376, %v6373
    %v6710 = vpack.c.b16 %v6377, %v6374
    %v6711 = vpack.c.b16 %v6381, %v6378
    %v6712 = vpack.c.b16 %v6382, %v6379
    %v6713 = vpack.c.b16 %v6383, %v6380
    %v6714 = vpack.c.b16 %v6387, %v6384
    %v6715 = vpack.c.b16 %v6388, %v6385
    %v6716 = vpack.c.b16 %v6389, %v6386
    %v6717 = vpack.c.b16 %v6393, %v6390
    %v6718 = vpack.c.b16 %v6394, %v6391
    %v6719 = vpack.c.b16 %v6395, %v6392
    %v6720 = vpack.c.b16 %v6399, %v6396
    %v6721 = vpack.c.b16 %v6400, %v6397
    %v6722 = vpack.c.b16 %v6401, %v6398
    %v6723 = vpack.c.b16 %v6405, %v6402
    %v6724 = vpack.c.b16 %v6406, %v6403
    %v6725 = vpack.c.b16 %v6407, %v6404
    %v6726 = vpack.c.b16 %v6411, %v6408
    %v6727 = vpack.c.b16 %v6412, %v6409
    %v6728 = vpack.c.b16 %v6413, %v6410
    %v6729 = vpack.c.b16 %v6417, %v6414
    %v6730 = vpack.c.b16 %v6418, %v6415
    %v6731 = vpack.c.b16 %v6419, %v6416
    %v6732 = vpack.c.b16 %v6423, %v6420
    %v6733 = vpack.c.b16 %v6424, %v6421
    %v6734 = vpack.c.b16 %v6425, %v6422
    %v6735 = vpack.c.b16 %v6429, %v6426
    %v6736 = vpack.c.b16 %v6430, %v6427
    %v6737 = vpack.c.b16 %v6431, %v6428
    %v6738 = vpack.c.b16 %v6435, %v6432
    %v6739 = vpack.c.b16 %v6436, %v6433
    %v6740 = vpack.c.b16 %v6437, %v6434
    %v6741 = vpack.c.b16 %v6441, %v6438
    %v6742 = vpack.c.b16 %v6442, %v6439
    %v6743 = vpack.c.b16 %v6443, %v6440
    %v6744 = vpack.c.b16 %v6447, %v6444
    %v6745 = vpack.c.b16 %v6448, %v6445
    %v6746 = vpack.c.b16 %v6449, %v6446
    %v6747 = vpack.c.b16 %v6453, %v6450
    %v6748 = vpack.c.b16 %v6454, %v6451
    %v6749 = vpack.c.b16 %v6455, %v6452
    %v6750 = vpack.c.b16 %v6459, %v6456
    %v6751 = vpack.c.b16 %v6460, %v6457
    %v6752 = vpack.c.b16 %v6461, %v6458
    %v6753 = vpack.c.b16 %v6465, %v6462
    %v6754 = vpack.c.b16 %v6466, %v6463
    %v6755 = vpack.c.b16 %v6467, %v6464
    %7044 = vmatprep.subr.bf16.mxu0 %v6469
    %7045 = vmatpush1.bf16.msra.mxu0 %v6468
    %7046 = vmatprep.subr.bf16.mxu0 %v6472
    %7047 = vmatpush1.bf16.msra.mxu0 %v6471
    %7048 = vmatprep.subr.bf16.mxu0 %v6475
    %7049 = vmatpush1.bf16.msra.mxu0 %v6474
    %7050 = vmatprep.subr.bf16.mxu0 %v6478
    %7051 = vmatpush1.bf16.msra.mxu0 %v6477
    %7052 = vmatprep.subr.bf16.mxu0 %v6481
    %7053 = vmatpush1.bf16.msra.mxu0 %v6480
    %7054 = vmatprep.subr.bf16.mxu0 %v6484
    %7055 = vmatpush1.bf16.msra.mxu0 %v6483
    %7056 = vmatprep.subr.bf16.mxu0 %v6487
    %7057 = vmatpush1.bf16.msra.mxu0 %v6486
    %7058 = vmatprep.subr.bf16.mxu0 %v6490
    %7059 = vmatpush1.bf16.msra.mxu0 %v6489
    %7060 = vmatprep.subr.bf16.mxu0 %v6493
    %7061 = vmatpush1.bf16.msra.mxu0 %v6492
    %7062 = vmatprep.subr.bf16.mxu0 %v6496
    %7063 = vmatpush1.bf16.msra.mxu0 %v6495
    %7064 = vmatprep.subr.bf16.mxu0 %v6499
    %7065 = vmatpush1.bf16.msra.mxu0 %v6498
    %7066 = vmatprep.subr.bf16.mxu0 %v6502
    %7067 = vmatpush1.bf16.msra.mxu0 %v6501
    %7068 = vmatprep.subr.bf16.mxu0 %v6505
    %7069 = vmatpush1.bf16.msra.mxu0 %v6504
    %7070 = vmatprep.subr.bf16.mxu0 %v6508
    %7071 = vmatpush1.bf16.msra.mxu0 %v6507
    %7072 = vmatprep.subr.bf16.mxu0 %v6511
    %7073 = vmatpush1.bf16.msra.mxu0 %v6510
    %7074 = vmatprep.subr.bf16.mxu0 %v6514
    %7075 = vmatpush1.bf16.msra.mxu0 %v6513
    %7076 = vmatprep.mubr.bf16.mxu0 %v4916
    %7077 = vmatmul.mubr.bf16.gmra.mrb[0].mxu0 %v4915
    %v7078 = vpop.f32.mrb[0].mxu0
    %v7079 = vadd.f32 %v5496, %v7078
    %v7080 = vpop.f32.mrb[0].mxu0
    %v7081 = vadd.f32 %v5500, %v7080
    %v7082 = vpop.f32.mrb[0].mxu0
    %v7083 = vadd.f32 %v5496, %v7082
    %v7084 = vpop.f32.mrb[0].mxu0
    %v7085 = vadd.f32 %v5500, %v7084
    %7086 = vmatprep.mubr.bf16.mxu0 %v4928
    %7087 = vmatmul.mubr.bf16.gmra.mrb[0].mxu0 %v4927
    %v7088 = vpop.f32.mrb[0].mxu0
    %v7089 = vadd.f32 %v5496, %v7088
    %v7090 = vpop.f32.mrb[0].mxu0
    %v7091 = vadd.f32 %v5500, %v7090
    %v7092 = vpop.f32.mrb[0].mxu0
    %v7093 = vadd.f32 %v5496, %v7092
    %v7094 = vpop.f32.mrb[0].mxu0
    %v7095 = vadd.f32 %v5500, %v7094
    %7096 = vmatprep.mubr.bf16.mxu0 %v4940
    %7097 = vmatmul.mubr.bf16.gmra.mrb[0].mxu0 %v4939
    %v7098 = vpop.f32.mrb[0].mxu0
    %v7099 = vadd.f32 %v5496, %v7098
    %v7100 = vpop.f32.mrb[0].mxu0
    %v7101 = vadd.f32 %v5500, %v7100
    %v7102 = vpop.f32.mrb[0].mxu0
    %v7103 = vadd.f32 %v5496, %v7102
    %v7104 = vpop.f32.mrb[0].mxu0
    %v7105 = vadd.f32 %v5500, %v7104
    %7106 = vmatprep.mubr.bf16.mxu0 %v4952
    %7107 = vmatmul.mubr.bf16.gmra.mrb[0].mxu0 %v4951
    %v7108 = vpop.f32.mrb[0].mxu0
    %v7109 = vadd.f32 %v5496, %v7108
    %v7110 = vpop.f32.mrb[0].mxu0
    %v7111 = vadd.f32 %v5500, %v7110
    %v7112 = vpop.f32.mrb[0].mxu0
    %v7113 = vadd.f32 %v5496, %v7112
    %v7114 = vpop.f32.mrb[0].mxu0
    %v7115 = vadd.f32 %v5500, %v7114
    %7116 = vmatprep.mubr.bf16.mxu0 %v4964
    %7117 = vmatmul.mubr.bf16.gmra.mrb[0].mxu0 %v4963
    %v7118 = vpop.f32.mrb[0].mxu0
    %v7119 = vadd.f32 %v5496, %v7118
    %v7120 = vpop.f32.mrb[0].mxu0
    %v7121 = vadd.f32 %v5500, %v7120
    %v7122 = vpop.f32.mrb[0].mxu0
    %v7123 = vadd.f32 %v5496, %v7122
    %v7124 = vpop.f32.mrb[0].mxu0
    %v7125 = vadd.f32 %v5500, %v7124
    %7126 = vmatprep.mubr.bf16.mxu0 %v4976
    %7127 = vmatmul.mubr.bf16.gmra.mrb[0].mxu0 %v4975
    %v7128 = vpop.f32.mrb[0].mxu0
    %v7129 = vadd.f32 %v5496, %v7128
    %v7130 = vpop.f32.mrb[0].mxu0
    %v7131 = vadd.f32 %v5500, %v7130
    %v7132 = vpop.f32.mrb[0].mxu0
    %v7133 = vadd.f32 %v5496, %v7132
    %v7134 = vpop.f32.mrb[0].mxu0
    %v7135 = vadd.f32 %v5500, %v7134
    %7136 = vmatprep.mubr.bf16.mxu0 %v4988
    %7137 = vmatmul.mubr.bf16.gmra.mrb[0].mxu0 %v4987
    %v7138 = vpop.f32.mrb[0].mxu0
    %v7139 = vadd.f32 %v5496, %v7138
    %v7140 = vpop.f32.mrb[0].mxu0
    %v7141 = vadd.f32 %v5500, %v7140
    %v7142 = vpop.f32.mrb[0].mxu0
    %v7143 = vadd.f32 %v5496, %v7142
    %v7144 = vpop.f32.mrb[0].mxu0
    %v7145 = vadd.f32 %v5500, %v7144
    %7146 = vmatprep.mubr.bf16.mxu0 %v5000
    %7147 = vmatmul.mubr.bf16.gmra.mrb[0].mxu0 %v4999
    %v7148 = vpop.f32.mrb[0].mxu0
    %v7149 = vadd.f32 %v5496, %v7148
    %v7150 = vpop.f32.mrb[0].mxu0
    %v7151 = vadd.f32 %v5500, %v7150
    %v7152 = vpop.f32.mrb[0].mxu0
    %v7153 = vadd.f32 %v5496, %v7152
    %v7154 = vpop.f32.mrb[0].mxu0
    %v7155 = vadd.f32 %v5500, %v7154
    %7156 = vmatprep.mubr.bf16.mxu0 %v5012
    %7157 = vmatmul.mubr.bf16.gmra.mrb[0].mxu0 %v5011
    %v7158 = vpop.f32.mrb[0].mxu0
    %v7159 = vadd.f32 %v5496, %v7158
    %v7160 = vpop.f32.mrb[0].mxu0
    %v7161 = vadd.f32 %v5500, %v7160
    %v7162 = vpop.f32.mrb[0].mxu0
    %v7163 = vadd.f32 %v5496, %v7162
    %v7164 = vpop.f32.mrb[0].mxu0
    %v7165 = vadd.f32 %v5500, %v7164
    %7166 = vmatprep.mubr.bf16.mxu0 %v5024
    %7167 = vmatmul.mubr.bf16.gmra.mrb[0].mxu0 %v5023
    %v7168 = vpop.f32.mrb[0].mxu0
    %v7169 = vadd.f32 %v5496, %v7168
    %v7170 = vpop.f32.mrb[0].mxu0
    %v7171 = vadd.f32 %v5500, %v7170
    %v7172 = vpop.f32.mrb[0].mxu0
    %v7173 = vadd.f32 %v5496, %v7172
    %v7174 = vpop.f32.mrb[0].mxu0
    %v7175 = vadd.f32 %v5500, %v7174
    %7176 = vmatprep.mubr.bf16.mxu0 %v5036
    %7177 = vmatmul.mubr.bf16.gmra.mrb[0].mxu0 %v5035
    %v7178 = vpop.f32.mrb[0].mxu0
    %v7179 = vadd.f32 %v5496, %v7178
    %v7180 = vpop.f32.mrb[0].mxu0
    %v7181 = vadd.f32 %v5500, %v7180
    %v7182 = vpop.f32.mrb[0].mxu0
    %v7183 = vadd.f32 %v5496, %v7182
    %v7184 = vpop.f32.mrb[0].mxu0
    %v7185 = vadd.f32 %v5500, %v7184
    %7186 = vmatprep.mubr.bf16.mxu0 %v5048
    %7187 = vmatmul.mubr.bf16.gmra.mrb[0].mxu0 %v5047
    %v7188 = vpop.f32.mrb[0].mxu0
    %v7189 = vadd.f32 %v5496, %v7188
    %v7190 = vpop.f32.mrb[0].mxu0
    %v7191 = vadd.f32 %v5500, %v7190
    %v7192 = vpop.f32.mrb[0].mxu0
    %v7193 = vadd.f32 %v5496, %v7192
    %v7194 = vpop.f32.mrb[0].mxu0
    %v7195 = vadd.f32 %v5500, %v7194
    %7196 = vmatprep.mubr.bf16.mxu0 %v5060
    %7197 = vmatmul.mubr.bf16.gmra.mrb[0].mxu0 %v5059
    %v7198 = vpop.f32.mrb[0].mxu0
    %v7199 = vadd.f32 %v5496, %v7198
    %v7200 = vpop.f32.mrb[0].mxu0
    %v7201 = vadd.f32 %v5500, %v7200
    %v7202 = vpop.f32.mrb[0].mxu0
    %v7203 = vadd.f32 %v5496, %v7202
    %v7204 = vpop.f32.mrb[0].mxu0
    %v7205 = vadd.f32 %v5500, %v7204
    %7206 = vmatprep.mubr.bf16.mxu0 %v5072
    %7207 = vmatmul.mubr.bf16.gmra.mrb[0].mxu0 %v5071
    %v7208 = vpop.f32.mrb[0].mxu0
    %v7209 = vadd.f32 %v5496, %v7208
    %v7210 = vpop.f32.mrb[0].mxu0
    %v7211 = vadd.f32 %v5500, %v7210
    %v7212 = vpop.f32.mrb[0].mxu0
    %v7213 = vadd.f32 %v5496, %v7212
    %v7214 = vpop.f32.mrb[0].mxu0
    %v7215 = vadd.f32 %v5500, %v7214
    %7216 = vmatprep.mubr.bf16.mxu0 %v5084
    %7217 = vmatmul.mubr.bf16.gmra.mrb[0].mxu0 %v5083
    %v7218 = vpop.f32.mrb[0].mxu0
    %v7219 = vadd.f32 %v5496, %v7218
    %v7220 = vpop.f32.mrb[0].mxu0
    %v7221 = vadd.f32 %v5500, %v7220
    %v7222 = vpop.f32.mrb[0].mxu0
    %v7223 = vadd.f32 %v5496, %v7222
    %v7224 = vpop.f32.mrb[0].mxu0
    %v7225 = vadd.f32 %v5500, %v7224
    %7226 = vmatprep.mubr.bf16.mxu0 %v5096
    %7227 = vmatmul.mubr.bf16.gmra.mrb[0].mxu0 %v5095
    %v7228 = vpop.f32.mrb[0].mxu0
    %v7229 = vadd.f32 %v5496, %v7228
    %v7230 = vpop.f32.mrb[0].mxu0
    %v7231 = vadd.f32 %v5500, %v7230
    %v7232 = vpop.f32.mrb[0].mxu0
    %v7233 = vadd.f32 %v5496, %v7232
    %v7234 = vpop.f32.mrb[0].mxu0
    %v7235 = vadd.f32 %v5500, %v7234
    %7236 = vdwg.mxu0
    %7237 = vmatprep.subr.bf16.mxu0 %v6517
    %7238 = vmatpush1.bf16.msra.mxu0 %v6516
    %7239 = vmatprep.subr.bf16.mxu0 %v6520
    %7240 = vmatpush1.bf16.msra.mxu0 %v6519
    %7241 = vmatprep.subr.bf16.mxu0 %v6523
    %7242 = vmatpush1.bf16.msra.mxu0 %v6522
    %7243 = vmatprep.subr.bf16.mxu0 %v6526
    %7244 = vmatpush1.bf16.msra.mxu0 %v6525
    %7245 = vmatprep.subr.bf16.mxu0 %v6529
    %7246 = vmatpush1.bf16.msra.mxu0 %v6528
    %7247 = vmatprep.subr.bf16.mxu0 %v6532
    %7248 = vmatpush1.bf16.msra.mxu0 %v6531
    %7249 = vmatprep.subr.bf16.mxu0 %v6535
    %7250 = vmatpush1.bf16.msra.mxu0 %v6534
    %7251 = vmatprep.subr.bf16.mxu0 %v6538
    %7252 = vmatpush1.bf16.msra.mxu0 %v6537
    %7253 = vmatprep.subr.bf16.mxu0 %v6541
    %7254 = vmatpush1.bf16.msra.mxu0 %v6540
    %7255 = vmatprep.subr.bf16.mxu0 %v6544
    %7256 = vmatpush1.bf16.msra.mxu0 %v6543
    %7257 = vmatprep.subr.bf16.mxu0 %v6547
    %7258 = vmatpush1.bf16.msra.mxu0 %v6546
    %7259 = vmatprep.subr.bf16.mxu0 %v6550
    %7260 = vmatpush1.bf16.msra.mxu0 %v6549
    %7261 = vmatprep.subr.bf16.mxu0 %v6553
    %7262 = vmatpush1.bf16.msra.mxu0 %v6552
    %7263 = vmatprep.subr.bf16.mxu0 %v6556
    %7264 = vmatpush1.bf16.msra.mxu0 %v6555
    %7265 = vmatprep.subr.bf16.mxu0 %v6559
    %7266 = vmatpush1.bf16.msra.mxu0 %v6558
    %7267 = vmatprep.subr.bf16.mxu0 %v6562
    %7268 = vmatpush1.bf16.msra.mxu0 %v6561
    %7269 = vmatprep.mubr.bf16.mxu0 %v4918
    %7270 = vmatmul.mubr.bf16.gmra.mrb[0].mxu0 %v4917
    %v7271 = vpop.f32.mrb[0].mxu0
    %v7272 = vadd.f32 %v7079, %v7271
    %v7273 = vpop.f32.mrb[0].mxu0
    %v7274 = vadd.f32 %v7081, %v7273
    %v7275 = vpop.f32.mrb[0].mxu0
    %v7276 = vadd.f32 %v7083, %v7275
    %v7277 = vpop.f32.mrb[0].mxu0
    %v7278 = vadd.f32 %v7085, %v7277
    %7279 = vmatprep.mubr.bf16.mxu0 %v4930
    %7280 = vmatmul.mubr.bf16.gmra.mrb[0].mxu0 %v4929
    %v7281 = vpop.f32.mrb[0].mxu0
    %v7282 = vadd.f32 %v7089, %v7281
    %v7283 = vpop.f32.mrb[0].mxu0
    %v7284 = vadd.f32 %v7091, %v7283
    %v7285 = vpop.f32.mrb[0].mxu0
    %v7286 = vadd.f32 %v7093, %v7285
    %v7287 = vpop.f32.mrb[0].mxu0
    %v7288 = vadd.f32 %v7095, %v7287
    %7289 = vmatprep.mubr.bf16.mxu0 %v4942
    %7290 = vmatmul.mubr.bf16.gmra.mrb[0].mxu0 %v4941
    %v7291 = vpop.f32.mrb[0].mxu0
    %v7292 = vadd.f32 %v7099, %v7291
    %v7293 = vpop.f32.mrb[0].mxu0
    %v7294 = vadd.f32 %v7101, %v7293
    %v7295 = vpop.f32.mrb[0].mxu0
    %v7296 = vadd.f32 %v7103, %v7295
    %v7297 = vpop.f32.mrb[0].mxu0
    %v7298 = vadd.f32 %v7105, %v7297
    %7299 = vmatprep.mubr.bf16.mxu0 %v4954
    %7300 = vmatmul.mubr.bf16.gmra.mrb[0].mxu0 %v4953
    %v7301 = vpop.f32.mrb[0].mxu0
    %v7302 = vadd.f32 %v7109, %v7301
    %v7303 = vpop.f32.mrb[0].mxu0
    %v7304 = vadd.f32 %v7111, %v7303
    %v7305 = vpop.f32.mrb[0].mxu0
    %v7306 = vadd.f32 %v7113, %v7305
    %v7307 = vpop.f32.mrb[0].mxu0
    %v7308 = vadd.f32 %v7115, %v7307
    %7309 = vmatprep.mubr.bf16.mxu0 %v4966
    %7310 = vmatmul.mubr.bf16.gmra.mrb[0].mxu0 %v4965
    %v7311 = vpop.f32.mrb[0].mxu0
    %v7312 = vadd.f32 %v7119, %v7311
    %v7313 = vpop.f32.mrb[0].mxu0
    %v7314 = vadd.f32 %v7121, %v7313
    %v7315 = vpop.f32.mrb[0].mxu0
    %v7316 = vadd.f32 %v7123, %v7315
    %v7317 = vpop.f32.mrb[0].mxu0
    %v7318 = vadd.f32 %v7125, %v7317
    %7319 = vmatprep.mubr.bf16.mxu0 %v4978
    %7320 = vmatmul.mubr.bf16.gmra.mrb[0].mxu0 %v4977
    %v7321 = vpop.f32.mrb[0].mxu0
    %v7322 = vadd.f32 %v7129, %v7321
    %v7323 = vpop.f32.mrb[0].mxu0
    %v7324 = vadd.f32 %v7131, %v7323
    %v7325 = vpop.f32.mrb[0].mxu0
    %v7326 = vadd.f32 %v7133, %v7325
    %v7327 = vpop.f32.mrb[0].mxu0
    %v7328 = vadd.f32 %v7135, %v7327
    %7329 = vmatprep.mubr.bf16.mxu0 %v4990
    %7330 = vmatmul.mubr.bf16.gmra.mrb[0].mxu0 %v4989
    %v7331 = vpop.f32.mrb[0].mxu0
    %v7332 = vadd.f32 %v7139, %v7331
    %v7333 = vpop.f32.mrb[0].mxu0
    %v7334 = vadd.f32 %v7141, %v7333
    %v7335 = vpop.f32.mrb[0].mxu0
    %v7336 = vadd.f32 %v7143, %v7335
    %v7337 = vpop.f32.mrb[0].mxu0
    %v7338 = vadd.f32 %v7145, %v7337
    %7339 = vmatprep.mubr.bf16.mxu0 %v5002
    %7340 = vmatmul.mubr.bf16.gmra.mrb[0].mxu0 %v5001
    %v7341 = vpop.f32.mrb[0].mxu0
    %v7342 = vadd.f32 %v7149, %v7341
    %v7343 = vpop.f32.mrb[0].mxu0
    %v7344 = vadd.f32 %v7151, %v7343
    %v7345 = vpop.f32.mrb[0].mxu0
    %v7346 = vadd.f32 %v7153, %v7345
    %v7347 = vpop.f32.mrb[0].mxu0
    %v7348 = vadd.f32 %v7155, %v7347
    %7349 = vmatprep.mubr.bf16.mxu0 %v5014
    %7350 = vmatmul.mubr.bf16.gmra.mrb[0].mxu0 %v5013
    %v7351 = vpop.f32.mrb[0].mxu0
    %v7352 = vadd.f32 %v7159, %v7351
    %v7353 = vpop.f32.mrb[0].mxu0
    %v7354 = vadd.f32 %v7161, %v7353
    %v7355 = vpop.f32.mrb[0].mxu0
    %v7356 = vadd.f32 %v7163, %v7355
    %v7357 = vpop.f32.mrb[0].mxu0
    %v7358 = vadd.f32 %v7165, %v7357
    %7359 = vmatprep.mubr.bf16.mxu0 %v5026
    %7360 = vmatmul.mubr.bf16.gmra.mrb[0].mxu0 %v5025
    %v7361 = vpop.f32.mrb[0].mxu0
    %v7362 = vadd.f32 %v7169, %v7361
    %v7363 = vpop.f32.mrb[0].mxu0
    %v7364 = vadd.f32 %v7171, %v7363
    %v7365 = vpop.f32.mrb[0].mxu0
    %v7366 = vadd.f32 %v7173, %v7365
    %v7367 = vpop.f32.mrb[0].mxu0
    %v7368 = vadd.f32 %v7175, %v7367
    %7369 = vmatprep.mubr.bf16.mxu0 %v5038
    %7370 = vmatmul.mubr.bf16.gmra.mrb[0].mxu0 %v5037
    %v7371 = vpop.f32.mrb[0].mxu0
    %v7372 = vadd.f32 %v7179, %v7371
    %v7373 = vpop.f32.mrb[0].mxu0
    %v7374 = vadd.f32 %v7181, %v7373
    %v7375 = vpop.f32.mrb[0].mxu0
    %v7376 = vadd.f32 %v7183, %v7375
    %v7377 = vpop.f32.mrb[0].mxu0
    %v7378 = vadd.f32 %v7185, %v7377
    %7379 = vmatprep.mubr.bf16.mxu0 %v5050
    %7380 = vmatmul.mubr.bf16.gmra.mrb[0].mxu0 %v5049
    %v7381 = vpop.f32.mrb[0].mxu0
    %v7382 = vadd.f32 %v7189, %v7381
    %v7383 = vpop.f32.mrb[0].mxu0
    %v7384 = vadd.f32 %v7191, %v7383
    %v7385 = vpop.f32.mrb[0].mxu0
    %v7386 = vadd.f32 %v7193, %v7385
    %v7387 = vpop.f32.mrb[0].mxu0
    %v7388 = vadd.f32 %v7195, %v7387
    %7389 = vmatprep.mubr.bf16.mxu0 %v5062
    %7390 = vmatmul.mubr.bf16.gmra.mrb[0].mxu0 %v5061
    %v7391 = vpop.f32.mrb[0].mxu0
    %v7392 = vadd.f32 %v7199, %v7391
    %v7393 = vpop.f32.mrb[0].mxu0
    %v7394 = vadd.f32 %v7201, %v7393
    %v7395 = vpop.f32.mrb[0].mxu0
    %v7396 = vadd.f32 %v7203, %v7395
    %v7397 = vpop.f32.mrb[0].mxu0
    %v7398 = vadd.f32 %v7205, %v7397
    %7399 = vmatprep.mubr.bf16.mxu0 %v5074
    %7400 = vmatmul.mubr.bf16.gmra.mrb[0].mxu0 %v5073
    %v7401 = vpop.f32.mrb[0].mxu0
    %v7402 = vadd.f32 %v7209, %v7401
    %v7403 = vpop.f32.mrb[0].mxu0
    %v7404 = vadd.f32 %v7211, %v7403
    %v7405 = vpop.f32.mrb[0].mxu0
    %v7406 = vadd.f32 %v7213, %v7405
    %v7407 = vpop.f32.mrb[0].mxu0
    %v7408 = vadd.f32 %v7215, %v7407
    %7409 = vmatprep.mubr.bf16.mxu0 %v5086
    %7410 = vmatmul.mubr.bf16.gmra.mrb[0].mxu0 %v5085
    %v7411 = vpop.f32.mrb[0].mxu0
    %v7412 = vadd.f32 %v7219, %v7411
    %v7413 = vpop.f32.mrb[0].mxu0
    %v7414 = vadd.f32 %v7221, %v7413
    %v7415 = vpop.f32.mrb[0].mxu0
    %v7416 = vadd.f32 %v7223, %v7415
    %v7417 = vpop.f32.mrb[0].mxu0
    %v7418 = vadd.f32 %v7225, %v7417
    %7419 = vmatprep.mubr.bf16.mxu0 %v5098
    %7420 = vmatmul.mubr.bf16.gmra.mrb[0].mxu0 %v5097
    %v7421 = vpop.f32.mrb[0].mxu0
    %v7422 = vadd.f32 %v7229, %v7421
    %v7423 = vpop.f32.mrb[0].mxu0
    %v7424 = vadd.f32 %v7231, %v7423
    %v7425 = vpop.f32.mrb[0].mxu0
    %v7426 = vadd.f32 %v7233, %v7425
    %v7427 = vpop.f32.mrb[0].mxu0
    %v7428 = vadd.f32 %v7235, %v7427
    %7429 = vdwg.mxu0
    %7430 = vmatprep.subr.bf16.mxu0 %v6565
    %7431 = vmatpush1.bf16.msra.mxu0 %v6564
    %7432 = vmatprep.subr.bf16.mxu0 %v6568
    %7433 = vmatpush1.bf16.msra.mxu0 %v6567
    %7434 = vmatprep.subr.bf16.mxu0 %v6571
    %7435 = vmatpush1.bf16.msra.mxu0 %v6570
    %7436 = vmatprep.subr.bf16.mxu0 %v6574
    %7437 = vmatpush1.bf16.msra.mxu0 %v6573
    %7438 = vmatprep.subr.bf16.mxu0 %v6577
    %7439 = vmatpush1.bf16.msra.mxu0 %v6576
    %7440 = vmatprep.subr.bf16.mxu0 %v6580
    %7441 = vmatpush1.bf16.msra.mxu0 %v6579
    %7442 = vmatprep.subr.bf16.mxu0 %v6583
    %7443 = vmatpush1.bf16.msra.mxu0 %v6582
    %7444 = vmatprep.subr.bf16.mxu0 %v6586
    %7445 = vmatpush1.bf16.msra.mxu0 %v6585
    %7446 = vmatprep.subr.bf16.mxu0 %v6589
    %7447 = vmatpush1.bf16.msra.mxu0 %v6588
    %7448 = vmatprep.subr.bf16.mxu0 %v6592
    %7449 = vmatpush1.bf16.msra.mxu0 %v6591
    %7450 = vmatprep.subr.bf16.mxu0 %v6595
    %7451 = vmatpush1.bf16.msra.mxu0 %v6594
    %7452 = vmatprep.subr.bf16.mxu0 %v6598
    %7453 = vmatpush1.bf16.msra.mxu0 %v6597
    %7454 = vmatprep.subr.bf16.mxu0 %v6601
    %7455 = vmatpush1.bf16.msra.mxu0 %v6600
    %7456 = vmatprep.subr.bf16.mxu0 %v6604
    %7457 = vmatpush1.bf16.msra.mxu0 %v6603
    %7458 = vmatprep.subr.bf16.mxu0 %v6607
    %7459 = vmatpush1.bf16.msra.mxu0 %v6606
    %7460 = vmatprep.subr.bf16.mxu0 %v6610
    %7461 = vmatpush1.bf16.msra.mxu0 %v6609
    %7462 = vmatprep.mubr.bf16.mxu0 %v4920
    %7463 = vmatmul.mubr.bf16.gmra.mrb[0].mxu0 %v4919
    %v7464 = vpop.f32.mrb[0].mxu0
    %v7465 = vadd.f32 %v7272, %v7464
    %v7466 = vpop.f32.mrb[0].mxu0
    %v7467 = vadd.f32 %v7274, %v7466
    %v7468 = vpop.f32.mrb[0].mxu0
    %v7469 = vadd.f32 %v7276, %v7468
    %v7470 = vpop.f32.mrb[0].mxu0
    %v7471 = vadd.f32 %v7278, %v7470
    %7472 = vmatprep.mubr.bf16.mxu0 %v4932
    %7473 = vmatmul.mubr.bf16.gmra.mrb[0].mxu0 %v4931
    %v7474 = vpop.f32.mrb[0].mxu0
    %v7475 = vadd.f32 %v7282, %v7474
    %v7476 = vpop.f32.mrb[0].mxu0
    %v7477 = vadd.f32 %v7284, %v7476
    %v7478 = vpop.f32.mrb[0].mxu0
    %v7479 = vadd.f32 %v7286, %v7478
    %v7480 = vpop.f32.mrb[0].mxu0
    %v7481 = vadd.f32 %v7288, %v7480
    %7482 = vmatprep.mubr.bf16.mxu0 %v4944
    %7483 = vmatmul.mubr.bf16.gmra.mrb[0].mxu0 %v4943
    %v7484 = vpop.f32.mrb[0].mxu0
    %v7485 = vadd.f32 %v7292, %v7484
    %v7486 = vpop.f32.mrb[0].mxu0
    %v7487 = vadd.f32 %v7294, %v7486
    %v7488 = vpop.f32.mrb[0].mxu0
    %v7489 = vadd.f32 %v7296, %v7488
    %v7490 = vpop.f32.mrb[0].mxu0
    %v7491 = vadd.f32 %v7298, %v7490
    %7492 = vmatprep.mubr.bf16.mxu0 %v4956
    %7493 = vmatmul.mubr.bf16.gmra.mrb[0].mxu0 %v4955
    %v7494 = vpop.f32.mrb[0].mxu0
    %v7495 = vadd.f32 %v7302, %v7494
    %v7496 = vpop.f32.mrb[0].mxu0
    %v7497 = vadd.f32 %v7304, %v7496
    %v7498 = vpop.f32.mrb[0].mxu0
    %v7499 = vadd.f32 %v7306, %v7498
    %v7500 = vpop.f32.mrb[0].mxu0
    %v7501 = vadd.f32 %v7308, %v7500
    %7502 = vmatprep.mubr.bf16.mxu0 %v4968
    %7503 = vmatmul.mubr.bf16.gmra.mrb[0].mxu0 %v4967
    %v7504 = vpop.f32.mrb[0].mxu0
    %v7505 = vadd.f32 %v7312, %v7504
    %v7506 = vpop.f32.mrb[0].mxu0
    %v7507 = vadd.f32 %v7314, %v7506
    %v7508 = vpop.f32.mrb[0].mxu0
    %v7509 = vadd.f32 %v7316, %v7508
    %v7510 = vpop.f32.mrb[0].mxu0
    %v7511 = vadd.f32 %v7318, %v7510
    %7512 = vmatprep.mubr.bf16.mxu0 %v4980
    %7513 = vmatmul.mubr.bf16.gmra.mrb[0].mxu0 %v4979
    %v7514 = vpop.f32.mrb[0].mxu0
    %v7515 = vadd.f32 %v7322, %v7514
    %v7516 = vpop.f32.mrb[0].mxu0
    %v7517 = vadd.f32 %v7324, %v7516
    %v7518 = vpop.f32.mrb[0].mxu0
    %v7519 = vadd.f32 %v7326, %v7518
    %v7520 = vpop.f32.mrb[0].mxu0
    %v7521 = vadd.f32 %v7328, %v7520
    %7522 = vmatprep.mubr.bf16.mxu0 %v4992
    %7523 = vmatmul.mubr.bf16.gmra.mrb[0].mxu0 %v4991
    %v7524 = vpop.f32.mrb[0].mxu0
    %v7525 = vadd.f32 %v7332, %v7524
    %v7526 = vpop.f32.mrb[0].mxu0
    %v7527 = vadd.f32 %v7334, %v7526
    %v7528 = vpop.f32.mrb[0].mxu0
    %v7529 = vadd.f32 %v7336, %v7528
    %v7530 = vpop.f32.mrb[0].mxu0
    %v7531 = vadd.f32 %v7338, %v7530
    %7532 = vmatprep.mubr.bf16.mxu0 %v5004
    %7533 = vmatmul.mubr.bf16.gmra.mrb[0].mxu0 %v5003
    %v7534 = vpop.f32.mrb[0].mxu0
    %v7535 = vadd.f32 %v7342, %v7534
    %v7536 = vpop.f32.mrb[0].mxu0
    %v7537 = vadd.f32 %v7344, %v7536
    %v7538 = vpop.f32.mrb[0].mxu0
    %v7539 = vadd.f32 %v7346, %v7538
    %v7540 = vpop.f32.mrb[0].mxu0
    %v7541 = vadd.f32 %v7348, %v7540
    %7542 = vmatprep.mubr.bf16.mxu0 %v5016
    %7543 = vmatmul.mubr.bf16.gmra.mrb[0].mxu0 %v5015
    %v7544 = vpop.f32.mrb[0].mxu0
    %v7545 = vadd.f32 %v7352, %v7544
    %v7546 = vpop.f32.mrb[0].mxu0
    %v7547 = vadd.f32 %v7354, %v7546
    %v7548 = vpop.f32.mrb[0].mxu0
    %v7549 = vadd.f32 %v7356, %v7548
    %v7550 = vpop.f32.mrb[0].mxu0
    %v7551 = vadd.f32 %v7358, %v7550
    %7552 = vmatprep.mubr.bf16.mxu0 %v5028
    %7553 = vmatmul.mubr.bf16.gmra.mrb[0].mxu0 %v5027
    %v7554 = vpop.f32.mrb[0].mxu0
    %v7555 = vadd.f32 %v7362, %v7554
    %v7556 = vpop.f32.mrb[0].mxu0
    %v7557 = vadd.f32 %v7364, %v7556
    %v7558 = vpop.f32.mrb[0].mxu0
    %v7559 = vadd.f32 %v7366, %v7558
    %v7560 = vpop.f32.mrb[0].mxu0
    %v7561 = vadd.f32 %v7368, %v7560
    %7562 = vmatprep.mubr.bf16.mxu0 %v5040
    %7563 = vmatmul.mubr.bf16.gmra.mrb[0].mxu0 %v5039
    %v7564 = vpop.f32.mrb[0].mxu0
    %v7565 = vadd.f32 %v7372, %v7564
    %v7566 = vpop.f32.mrb[0].mxu0
    %v7567 = vadd.f32 %v7374, %v7566
    %v7568 = vpop.f32.mrb[0].mxu0
    %v7569 = vadd.f32 %v7376, %v7568
    %v7570 = vpop.f32.mrb[0].mxu0
    %v7571 = vadd.f32 %v7378, %v7570
    %7572 = vmatprep.mubr.bf16.mxu0 %v5052
    %7573 = vmatmul.mubr.bf16.gmra.mrb[0].mxu0 %v5051
    %v7574 = vpop.f32.mrb[0].mxu0
    %v7575 = vadd.f32 %v7382, %v7574
    %v7576 = vpop.f32.mrb[0].mxu0
    %v7577 = vadd.f32 %v7384, %v7576
    %v7578 = vpop.f32.mrb[0].mxu0
    %v7579 = vadd.f32 %v7386, %v7578
    %v7580 = vpop.f32.mrb[0].mxu0
    %v7581 = vadd.f32 %v7388, %v7580
    %7582 = vmatprep.mubr.bf16.mxu0 %v5064
    %7583 = vmatmul.mubr.bf16.gmra.mrb[0].mxu0 %v5063
    %v7584 = vpop.f32.mrb[0].mxu0
    %v7585 = vadd.f32 %v7392, %v7584
    %v7586 = vpop.f32.mrb[0].mxu0
    %v7587 = vadd.f32 %v7394, %v7586
    %v7588 = vpop.f32.mrb[0].mxu0
    %v7589 = vadd.f32 %v7396, %v7588
    %v7590 = vpop.f32.mrb[0].mxu0
    %v7591 = vadd.f32 %v7398, %v7590
    %7592 = vmatprep.mubr.bf16.mxu0 %v5076
    %7593 = vmatmul.mubr.bf16.gmra.mrb[0].mxu0 %v5075
    %v7594 = vpop.f32.mrb[0].mxu0
    %v7595 = vadd.f32 %v7402, %v7594
    %v7596 = vpop.f32.mrb[0].mxu0
    %v7597 = vadd.f32 %v7404, %v7596
    %v7598 = vpop.f32.mrb[0].mxu0
    %v7599 = vadd.f32 %v7406, %v7598
    %v7600 = vpop.f32.mrb[0].mxu0
    %v7601 = vadd.f32 %v7408, %v7600
    %7602 = vmatprep.mubr.bf16.mxu0 %v5088
    %7603 = vmatmul.mubr.bf16.gmra.mrb[0].mxu0 %v5087
    %v7604 = vpop.f32.mrb[0].mxu0
    %v7605 = vadd.f32 %v7412, %v7604
    %v7606 = vpop.f32.mrb[0].mxu0
    %v7607 = vadd.f32 %v7414, %v7606
    %v7608 = vpop.f32.mrb[0].mxu0
    %v7609 = vadd.f32 %v7416, %v7608
    %v7610 = vpop.f32.mrb[0].mxu0
    %v7611 = vadd.f32 %v7418, %v7610
    %7612 = vmatprep.mubr.bf16.mxu0 %v5100
    %7613 = vmatmul.mubr.bf16.gmra.mrb[0].mxu0 %v5099
    %v7614 = vpop.f32.mrb[0].mxu0
    %v7615 = vadd.f32 %v7422, %v7614
    %v7616 = vpop.f32.mrb[0].mxu0
    %v7617 = vadd.f32 %v7424, %v7616
    %v7618 = vpop.f32.mrb[0].mxu0
    %v7619 = vadd.f32 %v7426, %v7618
    %v7620 = vpop.f32.mrb[0].mxu0
    %v7621 = vadd.f32 %v7428, %v7620
    %7622 = vdwg.mxu0
    %7623 = vmatprep.subr.bf16.mxu0 %v6613
    %7624 = vmatpush1.bf16.msra.mxu0 %v6612
    %7625 = vmatprep.subr.bf16.mxu0 %v6616
    %7626 = vmatpush1.bf16.msra.mxu0 %v6615
    %7627 = vmatprep.subr.bf16.mxu0 %v6619
    %7628 = vmatpush1.bf16.msra.mxu0 %v6618
    %7629 = vmatprep.subr.bf16.mxu0 %v6622
    %7630 = vmatpush1.bf16.msra.mxu0 %v6621
    %7631 = vmatprep.subr.bf16.mxu0 %v6625
    %7632 = vmatpush1.bf16.msra.mxu0 %v6624
    %7633 = vmatprep.subr.bf16.mxu0 %v6628
    %7634 = vmatpush1.bf16.msra.mxu0 %v6627
    %7635 = vmatprep.subr.bf16.mxu0 %v6631
    %7636 = vmatpush1.bf16.msra.mxu0 %v6630
    %7637 = vmatprep.subr.bf16.mxu0 %v6634
    %7638 = vmatpush1.bf16.msra.mxu0 %v6633
    %7639 = vmatprep.subr.bf16.mxu0 %v6637
    %7640 = vmatpush1.bf16.msra.mxu0 %v6636
    %7641 = vmatprep.subr.bf16.mxu0 %v6640
    %7642 = vmatpush1.bf16.msra.mxu0 %v6639
    %7643 = vmatprep.subr.bf16.mxu0 %v6643
    %7644 = vmatpush1.bf16.msra.mxu0 %v6642
    %7645 = vmatprep.subr.bf16.mxu0 %v6646
    %7646 = vmatpush1.bf16.msra.mxu0 %v6645
    %7647 = vmatprep.subr.bf16.mxu0 %v6649
    %7648 = vmatpush1.bf16.msra.mxu0 %v6648
    %7649 = vmatprep.subr.bf16.mxu0 %v6652
    %7650 = vmatpush1.bf16.msra.mxu0 %v6651
    %7651 = vmatprep.subr.bf16.mxu0 %v6655
    %7652 = vmatpush1.bf16.msra.mxu0 %v6654
    %7653 = vmatprep.subr.bf16.mxu0 %v6658
    %7654 = vmatpush1.bf16.msra.mxu0 %v6657
    %7655 = vmatprep.mubr.bf16.mxu0 %v4922
    %7656 = vmatmul.mubr.bf16.gmra.mrb[0].mxu0 %v4921
    %v7657 = vpop.f32.mrb[0].mxu0
    %v7658 = vadd.f32 %v7465, %v7657
    %v7659 = vpop.f32.mrb[0].mxu0
    %v7660 = vadd.f32 %v7467, %v7659
    %v7661 = vpop.f32.mrb[0].mxu0
    %v7662 = vadd.f32 %v7469, %v7661
    %v7663 = vpop.f32.mrb[0].mxu0
    %v7664 = vadd.f32 %v7471, %v7663
    %7665 = vmatprep.mubr.bf16.mxu0 %v4934
    %7666 = vmatmul.mubr.bf16.gmra.mrb[0].mxu0 %v4933
    %v7667 = vpop.f32.mrb[0].mxu0
    %v7668 = vadd.f32 %v7475, %v7667
    %v7669 = vpop.f32.mrb[0].mxu0
    %v7670 = vadd.f32 %v7477, %v7669
    %v7671 = vpop.f32.mrb[0].mxu0
    %v7672 = vadd.f32 %v7479, %v7671
    %v7673 = vpop.f32.mrb[0].mxu0
    %v7674 = vadd.f32 %v7481, %v7673
    %7675 = vmatprep.mubr.bf16.mxu0 %v4946
    %7676 = vmatmul.mubr.bf16.gmra.mrb[0].mxu0 %v4945
    %v7677 = vpop.f32.mrb[0].mxu0
    %v7678 = vadd.f32 %v7485, %v7677
    %v7679 = vpop.f32.mrb[0].mxu0
    %v7680 = vadd.f32 %v7487, %v7679
    %v7681 = vpop.f32.mrb[0].mxu0
    %v7682 = vadd.f32 %v7489, %v7681
    %v7683 = vpop.f32.mrb[0].mxu0
    %v7684 = vadd.f32 %v7491, %v7683
    %7685 = vmatprep.mubr.bf16.mxu0 %v4958
    %7686 = vmatmul.mubr.bf16.gmra.mrb[0].mxu0 %v4957
    %v7687 = vpop.f32.mrb[0].mxu0
    %v7688 = vadd.f32 %v7495, %v7687
    %v7689 = vpop.f32.mrb[0].mxu0
    %v7690 = vadd.f32 %v7497, %v7689
    %v7691 = vpop.f32.mrb[0].mxu0
    %v7692 = vadd.f32 %v7499, %v7691
    %v7693 = vpop.f32.mrb[0].mxu0
    %v7694 = vadd.f32 %v7501, %v7693
    %7695 = vmatprep.mubr.bf16.mxu0 %v4970
    %7696 = vmatmul.mubr.bf16.gmra.mrb[0].mxu0 %v4969
    %v7697 = vpop.f32.mrb[0].mxu0
    %v7698 = vadd.f32 %v7505, %v7697
    %v7699 = vpop.f32.mrb[0].mxu0
    %v7700 = vadd.f32 %v7507, %v7699
    %v7701 = vpop.f32.mrb[0].mxu0
    %v7702 = vadd.f32 %v7509, %v7701
    %v7703 = vpop.f32.mrb[0].mxu0
    %v7704 = vadd.f32 %v7511, %v7703
    %7705 = vmatprep.mubr.bf16.mxu0 %v4982
    %7706 = vmatmul.mubr.bf16.gmra.mrb[0].mxu0 %v4981
    %v7707 = vpop.f32.mrb[0].mxu0
    %v7708 = vadd.f32 %v7515, %v7707
    %v7709 = vpop.f32.mrb[0].mxu0
    %v7710 = vadd.f32 %v7517, %v7709
    %v7711 = vpop.f32.mrb[0].mxu0
    %v7712 = vadd.f32 %v7519, %v7711
    %v7713 = vpop.f32.mrb[0].mxu0
    %v7714 = vadd.f32 %v7521, %v7713
    %7715 = vmatprep.mubr.bf16.mxu0 %v4994
    %7716 = vmatmul.mubr.bf16.gmra.mrb[0].mxu0 %v4993
    %v7717 = vpop.f32.mrb[0].mxu0
    %v7718 = vadd.f32 %v7525, %v7717
    %v7719 = vpop.f32.mrb[0].mxu0
    %v7720 = vadd.f32 %v7527, %v7719
    %v7721 = vpop.f32.mrb[0].mxu0
    %v7722 = vadd.f32 %v7529, %v7721
    %v7723 = vpop.f32.mrb[0].mxu0
    %v7724 = vadd.f32 %v7531, %v7723
    %7725 = vmatprep.mubr.bf16.mxu0 %v5006
    %7726 = vmatmul.mubr.bf16.gmra.mrb[0].mxu0 %v5005
    %v7727 = vpop.f32.mrb[0].mxu0
    %v7728 = vadd.f32 %v7535, %v7727
    %v7729 = vpop.f32.mrb[0].mxu0
    %v7730 = vadd.f32 %v7537, %v7729
    %v7731 = vpop.f32.mrb[0].mxu0
    %v7732 = vadd.f32 %v7539, %v7731
    %v7733 = vpop.f32.mrb[0].mxu0
    %v7734 = vadd.f32 %v7541, %v7733
    %7735 = vmatprep.mubr.bf16.mxu0 %v5018
    %7736 = vmatmul.mubr.bf16.gmra.mrb[0].mxu0 %v5017
    %v7737 = vpop.f32.mrb[0].mxu0
    %v7738 = vadd.f32 %v7545, %v7737
    %v7739 = vpop.f32.mrb[0].mxu0
    %v7740 = vadd.f32 %v7547, %v7739
    %v7741 = vpop.f32.mrb[0].mxu0
    %v7742 = vadd.f32 %v7549, %v7741
    %v7743 = vpop.f32.mrb[0].mxu0
    %v7744 = vadd.f32 %v7551, %v7743
    %7745 = vmatprep.mubr.bf16.mxu0 %v5030
    %7746 = vmatmul.mubr.bf16.gmra.mrb[0].mxu0 %v5029
    %v7747 = vpop.f32.mrb[0].mxu0
    %v7748 = vadd.f32 %v7555, %v7747
    %v7749 = vpop.f32.mrb[0].mxu0
    %v7750 = vadd.f32 %v7557, %v7749
    %v7751 = vpop.f32.mrb[0].mxu0
    %v7752 = vadd.f32 %v7559, %v7751
    %v7753 = vpop.f32.mrb[0].mxu0
    %v7754 = vadd.f32 %v7561, %v7753
    %7755 = vmatprep.mubr.bf16.mxu0 %v5042
    %7756 = vmatmul.mubr.bf16.gmra.mrb[0].mxu0 %v5041
    %v7757 = vpop.f32.mrb[0].mxu0
    %v7758 = vadd.f32 %v7565, %v7757
    %v7759 = vpop.f32.mrb[0].mxu0
    %v7760 = vadd.f32 %v7567, %v7759
    %v7761 = vpop.f32.mrb[0].mxu0
    %v7762 = vadd.f32 %v7569, %v7761
    %v7763 = vpop.f32.mrb[0].mxu0
    %v7764 = vadd.f32 %v7571, %v7763
    %7765 = vmatprep.mubr.bf16.mxu0 %v5054
    %7766 = vmatmul.mubr.bf16.gmra.mrb[0].mxu0 %v5053
    %v7767 = vpop.f32.mrb[0].mxu0
    %v7768 = vadd.f32 %v7575, %v7767
    %v7769 = vpop.f32.mrb[0].mxu0
    %v7770 = vadd.f32 %v7577, %v7769
    %v7771 = vpop.f32.mrb[0].mxu0
    %v7772 = vadd.f32 %v7579, %v7771
    %v7773 = vpop.f32.mrb[0].mxu0
    %v7774 = vadd.f32 %v7581, %v7773
    %7775 = vmatprep.mubr.bf16.mxu0 %v5066
    %7776 = vmatmul.mubr.bf16.gmra.mrb[0].mxu0 %v5065
    %v7777 = vpop.f32.mrb[0].mxu0
    %v7778 = vadd.f32 %v7585, %v7777
    %v7779 = vpop.f32.mrb[0].mxu0
    %v7780 = vadd.f32 %v7587, %v7779
    %v7781 = vpop.f32.mrb[0].mxu0
    %v7782 = vadd.f32 %v7589, %v7781
    %v7783 = vpop.f32.mrb[0].mxu0
    %v7784 = vadd.f32 %v7591, %v7783
    %7785 = vmatprep.mubr.bf16.mxu0 %v5078
    %7786 = vmatmul.mubr.bf16.gmra.mrb[0].mxu0 %v5077
    %v7787 = vpop.f32.mrb[0].mxu0
    %v7788 = vadd.f32 %v7595, %v7787
    %v7789 = vpop.f32.mrb[0].mxu0
    %v7790 = vadd.f32 %v7597, %v7789
    %v7791 = vpop.f32.mrb[0].mxu0
    %v7792 = vadd.f32 %v7599, %v7791
    %v7793 = vpop.f32.mrb[0].mxu0
    %v7794 = vadd.f32 %v7601, %v7793
    %7795 = vmatprep.mubr.bf16.mxu0 %v5090
    %7796 = vmatmul.mubr.bf16.gmra.mrb[0].mxu0 %v5089
    %v7797 = vpop.f32.mrb[0].mxu0
    %v7798 = vadd.f32 %v7605, %v7797
    %v7799 = vpop.f32.mrb[0].mxu0
    %v7800 = vadd.f32 %v7607, %v7799
    %v7801 = vpop.f32.mrb[0].mxu0
    %v7802 = vadd.f32 %v7609, %v7801
    %v7803 = vpop.f32.mrb[0].mxu0
    %v7804 = vadd.f32 %v7611, %v7803
    %7805 = vmatprep.mubr.bf16.mxu0 %v5102
    %7806 = vmatmul.mubr.bf16.gmra.mrb[0].mxu0 %v5101
    %v7807 = vpop.f32.mrb[0].mxu0
    %v7808 = vadd.f32 %v7615, %v7807
    %v7809 = vpop.f32.mrb[0].mxu0
    %v7810 = vadd.f32 %v7617, %v7809
    %v7811 = vpop.f32.mrb[0].mxu0
    %v7812 = vadd.f32 %v7619, %v7811
    %v7813 = vpop.f32.mrb[0].mxu0
    %v7814 = vadd.f32 %v7621, %v7813
    %7815 = vdwg.mxu0
    %7816 = vmatprep.subr.bf16.mxu0 %v6661
    %7817 = vmatpush1.bf16.msra.mxu0 %v6660
    %7818 = vmatprep.subr.bf16.mxu0 %v6664
    %7819 = vmatpush1.bf16.msra.mxu0 %v6663
    %7820 = vmatprep.subr.bf16.mxu0 %v6667
    %7821 = vmatpush1.bf16.msra.mxu0 %v6666
    %7822 = vmatprep.subr.bf16.mxu0 %v6670
    %7823 = vmatpush1.bf16.msra.mxu0 %v6669
    %7824 = vmatprep.subr.bf16.mxu0 %v6673
    %7825 = vmatpush1.bf16.msra.mxu0 %v6672
    %7826 = vmatprep.subr.bf16.mxu0 %v6676
    %7827 = vmatpush1.bf16.msra.mxu0 %v6675
    %7828 = vmatprep.subr.bf16.mxu0 %v6679
    %7829 = vmatpush1.bf16.msra.mxu0 %v6678
    %7830 = vmatprep.subr.bf16.mxu0 %v6682
    %7831 = vmatpush1.bf16.msra.mxu0 %v6681
    %7832 = vmatprep.subr.bf16.mxu0 %v6685
    %7833 = vmatpush1.bf16.msra.mxu0 %v6684
    %7834 = vmatprep.subr.bf16.mxu0 %v6688
    %7835 = vmatpush1.bf16.msra.mxu0 %v6687
    %7836 = vmatprep.subr.bf16.mxu0 %v6691
    %7837 = vmatpush1.bf16.msra.mxu0 %v6690
    %7838 = vmatprep.subr.bf16.mxu0 %v6694
    %7839 = vmatpush1.bf16.msra.mxu0 %v6693
    %7840 = vmatprep.subr.bf16.mxu0 %v6697
    %7841 = vmatpush1.bf16.msra.mxu0 %v6696
    %7842 = vmatprep.subr.bf16.mxu0 %v6700
    %7843 = vmatpush1.bf16.msra.mxu0 %v6699
    %7844 = vmatprep.subr.bf16.mxu0 %v6703
    %7845 = vmatpush1.bf16.msra.mxu0 %v6702
    %7846 = vmatprep.subr.bf16.mxu0 %v6706
    %7847 = vmatpush1.bf16.msra.mxu0 %v6705
    %7848 = vmatprep.mubr.bf16.mxu0 %v4924
    %7849 = vmatmul.mubr.bf16.gmra.mrb[0].mxu0 %v4923
    %v7850 = vpop.f32.mrb[0].mxu0
    %v7851 = vadd.f32 %v7658, %v7850
    %v7852 = vpop.f32.mrb[0].mxu0
    %v7853 = vadd.f32 %v7660, %v7852
    %v7854 = vpop.f32.mrb[0].mxu0
    %v7855 = vadd.f32 %v7662, %v7854
    %v7856 = vpop.f32.mrb[0].mxu0
    %v7857 = vadd.f32 %v7664, %v7856
    %7858 = vmatprep.mubr.bf16.mxu0 %v4936
    %7859 = vmatmul.mubr.bf16.gmra.mrb[0].mxu0 %v4935
    %v7860 = vpop.f32.mrb[0].mxu0
    %v7861 = vadd.f32 %v7668, %v7860
    %v7862 = vpop.f32.mrb[0].mxu0
    %v7863 = vadd.f32 %v7670, %v7862
    %v7864 = vpop.f32.mrb[0].mxu0
    %v7865 = vadd.f32 %v7672, %v7864
    %v7866 = vpop.f32.mrb[0].mxu0
    %v7867 = vadd.f32 %v7674, %v7866
    %7868 = vmatprep.mubr.bf16.mxu0 %v4948
    %7869 = vmatmul.mubr.bf16.gmra.mrb[0].mxu0 %v4947
    %v7870 = vpop.f32.mrb[0].mxu0
    %v7871 = vadd.f32 %v7678, %v7870
    %v7872 = vpop.f32.mrb[0].mxu0
    %v7873 = vadd.f32 %v7680, %v7872
    %v7874 = vpop.f32.mrb[0].mxu0
    %v7875 = vadd.f32 %v7682, %v7874
    %v7876 = vpop.f32.mrb[0].mxu0
    %v7877 = vadd.f32 %v7684, %v7876
    %7878 = vmatprep.mubr.bf16.mxu0 %v4960
    %7879 = vmatmul.mubr.bf16.gmra.mrb[0].mxu0 %v4959
    %v7880 = vpop.f32.mrb[0].mxu0
    %v7881 = vadd.f32 %v7688, %v7880
    %v7882 = vpop.f32.mrb[0].mxu0
    %v7883 = vadd.f32 %v7690, %v7882
    %v7884 = vpop.f32.mrb[0].mxu0
    %v7885 = vadd.f32 %v7692, %v7884
    %v7886 = vpop.f32.mrb[0].mxu0
    %v7887 = vadd.f32 %v7694, %v7886
    %7888 = vmatprep.mubr.bf16.mxu0 %v4972
    %7889 = vmatmul.mubr.bf16.gmra.mrb[0].mxu0 %v4971
    %v7890 = vpop.f32.mrb[0].mxu0
    %v7891 = vadd.f32 %v7698, %v7890
    %v7892 = vpop.f32.mrb[0].mxu0
    %v7893 = vadd.f32 %v7700, %v7892
    %v7894 = vpop.f32.mrb[0].mxu0
    %v7895 = vadd.f32 %v7702, %v7894
    %v7896 = vpop.f32.mrb[0].mxu0
    %v7897 = vadd.f32 %v7704, %v7896
    %7898 = vmatprep.mubr.bf16.mxu0 %v4984
    %7899 = vmatmul.mubr.bf16.gmra.mrb[0].mxu0 %v4983
    %v7900 = vpop.f32.mrb[0].mxu0
    %v7901 = vadd.f32 %v7708, %v7900
    %v7902 = vpop.f32.mrb[0].mxu0
    %v7903 = vadd.f32 %v7710, %v7902
    %v7904 = vpop.f32.mrb[0].mxu0
    %v7905 = vadd.f32 %v7712, %v7904
    %v7906 = vpop.f32.mrb[0].mxu0
    %v7907 = vadd.f32 %v7714, %v7906
    %7908 = vmatprep.mubr.bf16.mxu0 %v4996
    %7909 = vmatmul.mubr.bf16.gmra.mrb[0].mxu0 %v4995
    %v7910 = vpop.f32.mrb[0].mxu0
    %v7911 = vadd.f32 %v7718, %v7910
    %v7912 = vpop.f32.mrb[0].mxu0
    %v7913 = vadd.f32 %v7720, %v7912
    %v7914 = vpop.f32.mrb[0].mxu0
    %v7915 = vadd.f32 %v7722, %v7914
    %v7916 = vpop.f32.mrb[0].mxu0
    %v7917 = vadd.f32 %v7724, %v7916
    %7918 = vmatprep.mubr.bf16.mxu0 %v5008
    %7919 = vmatmul.mubr.bf16.gmra.mrb[0].mxu0 %v5007
    %v7920 = vpop.f32.mrb[0].mxu0
    %v7921 = vadd.f32 %v7728, %v7920
    %v7922 = vpop.f32.mrb[0].mxu0
    %v7923 = vadd.f32 %v7730, %v7922
    %v7924 = vpop.f32.mrb[0].mxu0
    %v7925 = vadd.f32 %v7732, %v7924
    %v7926 = vpop.f32.mrb[0].mxu0
    %v7927 = vadd.f32 %v7734, %v7926
    %7928 = vmatprep.mubr.bf16.mxu0 %v5020
    %7929 = vmatmul.mubr.bf16.gmra.mrb[0].mxu0 %v5019
    %v7930 = vpop.f32.mrb[0].mxu0
    %v7931 = vadd.f32 %v7738, %v7930
    %v7932 = vpop.f32.mrb[0].mxu0
    %v7933 = vadd.f32 %v7740, %v7932
    %v7934 = vpop.f32.mrb[0].mxu0
    %v7935 = vadd.f32 %v7742, %v7934
    %v7936 = vpop.f32.mrb[0].mxu0
    %v7937 = vadd.f32 %v7744, %v7936
    %7938 = vmatprep.mubr.bf16.mxu0 %v5032
    %7939 = vmatmul.mubr.bf16.gmra.mrb[0].mxu0 %v5031
    %v7940 = vpop.f32.mrb[0].mxu0
    %v7941 = vadd.f32 %v7748, %v7940
    %v7942 = vpop.f32.mrb[0].mxu0
    %v7943 = vadd.f32 %v7750, %v7942
    %v7944 = vpop.f32.mrb[0].mxu0
    %v7945 = vadd.f32 %v7752, %v7944
    %v7946 = vpop.f32.mrb[0].mxu0
    %v7947 = vadd.f32 %v7754, %v7946
    %7948 = vmatprep.mubr.bf16.mxu0 %v5044
    %7949 = vmatmul.mubr.bf16.gmra.mrb[0].mxu0 %v5043
    %v7950 = vpop.f32.mrb[0].mxu0
    %v7951 = vadd.f32 %v7758, %v7950
    %v7952 = vpop.f32.mrb[0].mxu0
    %v7953 = vadd.f32 %v7760, %v7952
    %v7954 = vpop.f32.mrb[0].mxu0
    %v7955 = vadd.f32 %v7762, %v7954
    %v7956 = vpop.f32.mrb[0].mxu0
    %v7957 = vadd.f32 %v7764, %v7956
    %7958 = vmatprep.mubr.bf16.mxu0 %v5056
    %7959 = vmatmul.mubr.bf16.gmra.mrb[0].mxu0 %v5055
    %v7960 = vpop.f32.mrb[0].mxu0
    %v7961 = vadd.f32 %v7768, %v7960
    %v7962 = vpop.f32.mrb[0].mxu0
    %v7963 = vadd.f32 %v7770, %v7962
    %v7964 = vpop.f32.mrb[0].mxu0
    %v7965 = vadd.f32 %v7772, %v7964
    %v7966 = vpop.f32.mrb[0].mxu0
    %v7967 = vadd.f32 %v7774, %v7966
    %7968 = vmatprep.mubr.bf16.mxu0 %v5068
    %7969 = vmatmul.mubr.bf16.gmra.mrb[0].mxu0 %v5067
    %v7970 = vpop.f32.mrb[0].mxu0
    %v7971 = vadd.f32 %v7778, %v7970
    %v7972 = vpop.f32.mrb[0].mxu0
    %v7973 = vadd.f32 %v7780, %v7972
    %v7974 = vpop.f32.mrb[0].mxu0
    %v7975 = vadd.f32 %v7782, %v7974
    %v7976 = vpop.f32.mrb[0].mxu0
    %v7977 = vadd.f32 %v7784, %v7976
    %7978 = vmatprep.mubr.bf16.mxu0 %v5080
    %7979 = vmatmul.mubr.bf16.gmra.mrb[0].mxu0 %v5079
    %v7980 = vpop.f32.mrb[0].mxu0
    %v7981 = vadd.f32 %v7788, %v7980
    %v7982 = vpop.f32.mrb[0].mxu0
    %v7983 = vadd.f32 %v7790, %v7982
    %v7984 = vpop.f32.mrb[0].mxu0
    %v7985 = vadd.f32 %v7792, %v7984
    %v7986 = vpop.f32.mrb[0].mxu0
    %v7987 = vadd.f32 %v7794, %v7986
    %7988 = vmatprep.mubr.bf16.mxu0 %v5092
    %7989 = vmatmul.mubr.bf16.gmra.mrb[0].mxu0 %v5091
    %v7990 = vpop.f32.mrb[0].mxu0
    %v7991 = vadd.f32 %v7798, %v7990
    %v7992 = vpop.f32.mrb[0].mxu0
    %v7993 = vadd.f32 %v7800, %v7992
    %v7994 = vpop.f32.mrb[0].mxu0
    %v7995 = vadd.f32 %v7802, %v7994
    %v7996 = vpop.f32.mrb[0].mxu0
    %v7997 = vadd.f32 %v7804, %v7996
    %7998 = vmatprep.mubr.bf16.mxu0 %v5104
    %7999 = vmatmul.mubr.bf16.gmra.mrb[0].mxu0 %v5103
    %v8000 = vpop.f32.mrb[0].mxu0
    %v8001 = vadd.f32 %v7808, %v8000
    %v8002 = vpop.f32.mrb[0].mxu0
    %v8003 = vadd.f32 %v7810, %v8002
    %v8004 = vpop.f32.mrb[0].mxu0
    %v8005 = vadd.f32 %v7812, %v8004
    %v8006 = vpop.f32.mrb[0].mxu0
    %v8007 = vadd.f32 %v7814, %v8006
    %8008 = vdwg.mxu0
    %8009 = vmatprep.subr.bf16.mxu0 %v6709
    %8010 = vmatpush1.bf16.msra.mxu0 %v6708
    %8011 = vmatprep.subr.bf16.mxu0 %v6712
    %8012 = vmatpush1.bf16.msra.mxu0 %v6711
    %8013 = vmatprep.subr.bf16.mxu0 %v6715
    %8014 = vmatpush1.bf16.msra.mxu0 %v6714
    %8015 = vmatprep.subr.bf16.mxu0 %v6718
    %8016 = vmatpush1.bf16.msra.mxu0 %v6717
    %8017 = vmatprep.subr.bf16.mxu0 %v6721
    %8018 = vmatpush1.bf16.msra.mxu0 %v6720
    %8019 = vmatprep.subr.bf16.mxu0 %v6724
    %8020 = vmatpush1.bf16.msra.mxu0 %v6723
    %8021 = vmatprep.subr.bf16.mxu0 %v6727
    %8022 = vmatpush1.bf16.msra.mxu0 %v6726
    %8023 = vmatprep.subr.bf16.mxu0 %v6730
    %8024 = vmatpush1.bf16.msra.mxu0 %v6729
    %8025 = vmatprep.subr.bf16.mxu0 %v6733
    %8026 = vmatpush1.bf16.msra.mxu0 %v6732
    %8027 = vmatprep.subr.bf16.mxu0 %v6736
    %8028 = vmatpush1.bf16.msra.mxu0 %v6735
    %8029 = vmatprep.subr.bf16.mxu0 %v6739
    %8030 = vmatpush1.bf16.msra.mxu0 %v6738
    %8031 = vmatprep.subr.bf16.mxu0 %v6742
    %8032 = vmatpush1.bf16.msra.mxu0 %v6741
    %8033 = vmatprep.subr.bf16.mxu0 %v6745
    %8034 = vmatpush1.bf16.msra.mxu0 %v6744
    %8035 = vmatprep.subr.bf16.mxu0 %v6748
    %8036 = vmatpush1.bf16.msra.mxu0 %v6747
    %8037 = vmatprep.subr.bf16.mxu0 %v6751
    %8038 = vmatpush1.bf16.msra.mxu0 %v6750
    %8039 = vmatprep.subr.bf16.mxu0 %v6754
    %8040 = vmatpush1.bf16.msra.mxu0 %v6753
    %8041 = vmatprep.mubr.bf16.mxu0 %v4926
    %8042 = vmatmul.mubr.bf16.gmra.mrb[0].mxu0 %v4925
    %v8043 = vpop.f32.mrb[0].mxu0
    %v8044 = vadd.f32 %v7851, %v8043
    %v8045 = vpop.f32.mrb[0].mxu0
    %v8046 = vadd.f32 %v7853, %v8045
    %v8047 = vpop.f32.mrb[0].mxu0
    %v8048 = vadd.f32 %v7855, %v8047
    %v8049 = vpop.f32.mrb[0].mxu0
    %v8050 = vadd.f32 %v7857, %v8049
    %8051 = vmatprep.mubr.bf16.mxu0 %v4938
    %8052 = vmatmul.mubr.bf16.gmra.mrb[0].mxu0 %v4937
    %v8053 = vpop.f32.mrb[0].mxu0
    %v8054 = vadd.f32 %v7861, %v8053
    %v8055 = vpop.f32.mrb[0].mxu0
    %v8056 = vadd.f32 %v7863, %v8055
    %v8057 = vpop.f32.mrb[0].mxu0
    %v8058 = vadd.f32 %v7865, %v8057
    %v8059 = vpop.f32.mrb[0].mxu0
    %v8060 = vadd.f32 %v7867, %v8059
    %8061 = vmatprep.mubr.bf16.mxu0 %v4950
    %8062 = vmatmul.mubr.bf16.gmra.mrb[0].mxu0 %v4949
    %v8063 = vpop.f32.mrb[0].mxu0
    %v8064 = vadd.f32 %v7871, %v8063
    %v8065 = vpop.f32.mrb[0].mxu0
    %v8066 = vadd.f32 %v7873, %v8065
    %v8067 = vpop.f32.mrb[0].mxu0
    %v8068 = vadd.f32 %v7875, %v8067
    %v8069 = vpop.f32.mrb[0].mxu0
    %v8070 = vadd.f32 %v7877, %v8069
    %8071 = vmatprep.mubr.bf16.mxu0 %v4962
    %8072 = vmatmul.mubr.bf16.gmra.mrb[0].mxu0 %v4961
    %v8073 = vpop.f32.mrb[0].mxu0
    %v8074 = vadd.f32 %v7881, %v8073
    %v8075 = vpop.f32.mrb[0].mxu0
    %v8076 = vadd.f32 %v7883, %v8075
    %v8077 = vpop.f32.mrb[0].mxu0
    %v8078 = vadd.f32 %v7885, %v8077
    %v8079 = vpop.f32.mrb[0].mxu0
    %v8080 = vadd.f32 %v7887, %v8079
    %8081 = vmatprep.mubr.bf16.mxu0 %v4974
    %8082 = vmatmul.mubr.bf16.gmra.mrb[0].mxu0 %v4973
    %v8083 = vpop.f32.mrb[0].mxu0
    %v8084 = vadd.f32 %v7891, %v8083
    %v8085 = vpop.f32.mrb[0].mxu0
    %v8086 = vadd.f32 %v7893, %v8085
    %v8087 = vpop.f32.mrb[0].mxu0
    %v8088 = vadd.f32 %v7895, %v8087
    %v8089 = vpop.f32.mrb[0].mxu0
    %v8090 = vadd.f32 %v7897, %v8089
    %8091 = vmatprep.mubr.bf16.mxu0 %v4986
    %8092 = vmatmul.mubr.bf16.gmra.mrb[0].mxu0 %v4985
    %v8093 = vpop.f32.mrb[0].mxu0
    %v8094 = vadd.f32 %v7901, %v8093
    %v8095 = vpop.f32.mrb[0].mxu0
    %v8096 = vadd.f32 %v7903, %v8095
    %v8097 = vpop.f32.mrb[0].mxu0
    %v8098 = vadd.f32 %v7905, %v8097
    %v8099 = vpop.f32.mrb[0].mxu0
    %v8100 = vadd.f32 %v7907, %v8099
    %8101 = vmatprep.mubr.bf16.mxu0 %v4998
    %8102 = vmatmul.mubr.bf16.gmra.mrb[0].mxu0 %v4997
    %v8103 = vpop.f32.mrb[0].mxu0
    %v8104 = vadd.f32 %v7911, %v8103
    %v8105 = vpop.f32.mrb[0].mxu0
    %v8106 = vadd.f32 %v7913, %v8105
    %v8107 = vpop.f32.mrb[0].mxu0
    %v8108 = vadd.f32 %v7915, %v8107
    %v8109 = vpop.f32.mrb[0].mxu0
    %v8110 = vadd.f32 %v7917, %v8109
    %8111 = vmatprep.mubr.bf16.mxu0 %v5010
    %8112 = vmatmul.mubr.bf16.gmra.mrb[0].mxu0 %v5009
    %v8113 = vpop.f32.mrb[0].mxu0
    %v8114 = vadd.f32 %v7921, %v8113
    %v8115 = vpop.f32.mrb[0].mxu0
    %v8116 = vadd.f32 %v7923, %v8115
    %v8117 = vpop.f32.mrb[0].mxu0
    %v8118 = vadd.f32 %v7925, %v8117
    %v8119 = vpop.f32.mrb[0].mxu0
    %v8120 = vadd.f32 %v7927, %v8119
    %8121 = vmatprep.mubr.bf16.mxu0 %v5022
    %8122 = vmatmul.mubr.bf16.gmra.mrb[0].mxu0 %v5021
    %v8123 = vpop.f32.mrb[0].mxu0
    %v8124 = vadd.f32 %v7931, %v8123
    %v8125 = vpop.f32.mrb[0].mxu0
    %v8126 = vadd.f32 %v7933, %v8125
    %v8127 = vpop.f32.mrb[0].mxu0
    %v8128 = vadd.f32 %v7935, %v8127
    %v8129 = vpop.f32.mrb[0].mxu0
    %v8130 = vadd.f32 %v7937, %v8129
    %8131 = vmatprep.mubr.bf16.mxu0 %v5034
    %8132 = vmatmul.mubr.bf16.gmra.mrb[0].mxu0 %v5033
    %v8133 = vpop.f32.mrb[0].mxu0
    %v8134 = vadd.f32 %v7941, %v8133
    %v8135 = vpop.f32.mrb[0].mxu0
    %v8136 = vadd.f32 %v7943, %v8135
    %v8137 = vpop.f32.mrb[0].mxu0
    %v8138 = vadd.f32 %v7945, %v8137
    %v8139 = vpop.f32.mrb[0].mxu0
    %v8140 = vadd.f32 %v7947, %v8139
    %8141 = vmatprep.mubr.bf16.mxu0 %v5046
    %8142 = vmatmul.mubr.bf16.gmra.mrb[0].mxu0 %v5045
    %v8143 = vpop.f32.mrb[0].mxu0
    %v8144 = vadd.f32 %v7951, %v8143
    %v8145 = vpop.f32.mrb[0].mxu0
    %v8146 = vadd.f32 %v7953, %v8145
    %v8147 = vpop.f32.mrb[0].mxu0
    %v8148 = vadd.f32 %v7955, %v8147
    %v8149 = vpop.f32.mrb[0].mxu0
    %v8150 = vadd.f32 %v7957, %v8149
    %8151 = vmatprep.mubr.bf16.mxu0 %v5058
    %8152 = vmatmul.mubr.bf16.gmra.mrb[0].mxu0 %v5057
    %v8153 = vpop.f32.mrb[0].mxu0
    %v8154 = vadd.f32 %v7961, %v8153
    %v8155 = vpop.f32.mrb[0].mxu0
    %v8156 = vadd.f32 %v7963, %v8155
    %v8157 = vpop.f32.mrb[0].mxu0
    %v8158 = vadd.f32 %v7965, %v8157
    %v8159 = vpop.f32.mrb[0].mxu0
    %v8160 = vadd.f32 %v7967, %v8159
    %8161 = vmatprep.mubr.bf16.mxu0 %v5070
    %8162 = vmatmul.mubr.bf16.gmra.mrb[0].mxu0 %v5069
    %v8163 = vpop.f32.mrb[0].mxu0
    %v8164 = vadd.f32 %v7971, %v8163
    %v8165 = vpop.f32.mrb[0].mxu0
    %v8166 = vadd.f32 %v7973, %v8165
    %v8167 = vpop.f32.mrb[0].mxu0
    %v8168 = vadd.f32 %v7975, %v8167
    %v8169 = vpop.f32.mrb[0].mxu0
    %v8170 = vadd.f32 %v7977, %v8169
    %8171 = vmatprep.mubr.bf16.mxu0 %v5082
    %8172 = vmatmul.mubr.bf16.gmra.mrb[0].mxu0 %v5081
    %v8173 = vpop.f32.mrb[0].mxu0
    %v8174 = vadd.f32 %v7981, %v8173
    %v8175 = vpop.f32.mrb[0].mxu0
    %v8176 = vadd.f32 %v7983, %v8175
    %v8177 = vpop.f32.mrb[0].mxu0
    %v8178 = vadd.f32 %v7985, %v8177
    %v8179 = vpop.f32.mrb[0].mxu0
    %v8180 = vadd.f32 %v7987, %v8179
    %8181 = vmatprep.mubr.bf16.mxu0 %v5094
    %8182 = vmatmul.mubr.bf16.gmra.mrb[0].mxu0 %v5093
    %v8183 = vpop.f32.mrb[0].mxu0
    %v8184 = vadd.f32 %v7991, %v8183
    %v8185 = vpop.f32.mrb[0].mxu0
    %v8186 = vadd.f32 %v7993, %v8185
    %v8187 = vpop.f32.mrb[0].mxu0
    %v8188 = vadd.f32 %v7995, %v8187
    %v8189 = vpop.f32.mrb[0].mxu0
    %v8190 = vadd.f32 %v7997, %v8189
    %8191 = vmatprep.mubr.bf16.mxu0 %v5106
    %8192 = vmatmul.mubr.bf16.gmra.mrb[0].mxu0 %v5105
    %v8193 = vpop.f32.mrb[0].mxu0
    %v8194 = vadd.f32 %v8001, %v8193
    %v8195 = vpop.f32.mrb[0].mxu0
    %v8196 = vadd.f32 %v8003, %v8195
    %v8197 = vpop.f32.mrb[0].mxu0
    %v8198 = vadd.f32 %v8005, %v8197
    %v8199 = vpop.f32.mrb[0].mxu0
    %v8200 = vadd.f32 %v8007, %v8199
    %8201 = vdwg.mxu0
    %8202 = vmatprep.subr.bf16.mxu0 0
    %8203 = vmatpush1.bf16.msra.mxu0 %v6470
    %8204 = vmatprep.subr.bf16.mxu0 0
    %8205 = vmatpush1.bf16.msra.mxu0 %v6473
    %8206 = vmatprep.subr.bf16.mxu0 0
    %8207 = vmatpush1.bf16.msra.mxu0 %v6476
    %8208 = vmatprep.subr.bf16.mxu0 0
    %8209 = vmatpush1.bf16.msra.mxu0 %v6479
    %8210 = vmatprep.subr.bf16.mxu0 0
    %8211 = vmatpush1.bf16.msra.mxu0 %v6482
    %8212 = vmatprep.subr.bf16.mxu0 0
    %8213 = vmatpush1.bf16.msra.mxu0 %v6485
    %8214 = vmatprep.subr.bf16.mxu0 0
    %8215 = vmatpush1.bf16.msra.mxu0 %v6488
    %8216 = vmatprep.subr.bf16.mxu0 0
    %8217 = vmatpush1.bf16.msra.mxu0 %v6491
    %8218 = vmatprep.subr.bf16.mxu0 0
    %8219 = vmatpush1.bf16.msra.mxu0 %v6494
    %8220 = vmatprep.subr.bf16.mxu0 0
    %8221 = vmatpush1.bf16.msra.mxu0 %v6497
    %8222 = vmatprep.subr.bf16.mxu0 0
    %8223 = vmatpush1.bf16.msra.mxu0 %v6500
    %8224 = vmatprep.subr.bf16.mxu0 0
    %8225 = vmatpush1.bf16.msra.mxu0 %v6503
    %8226 = vmatprep.subr.bf16.mxu0 0
    %8227 = vmatpush1.bf16.msra.mxu0 %v6506
    %8228 = vmatprep.subr.bf16.mxu0 0
    %8229 = vmatpush1.bf16.msra.mxu0 %v6509
    %8230 = vmatprep.subr.bf16.mxu0 0
    %8231 = vmatpush1.bf16.msra.mxu0 %v6512
    %8232 = vmatprep.subr.bf16.mxu0 0
    %8233 = vmatpush1.bf16.msra.mxu0 %v6515
    %8234 = vmatprep.mubr.bf16.mxu0 %v4916
    %8235 = vmatmul.mubr.bf16.gmra.mrb[0].mxu0 %v4915
    %v8236 = vpop.f32.mrb[0].mxu0
    %v8237 = vadd.f32 %v5504, %v8236
    %v8238 = vpop.f32.mrb[0].mxu0
    %v8239 = vpop.f32.mrb[0].mxu0
    %v8240 = vadd.f32 %v5504, %v8239
    %v8241 = vpop.f32.mrb[0].mxu0
    %8242 = vmatprep.mubr.bf16.mxu0 %v4928
    %8243 = vmatmul.mubr.bf16.gmra.mrb[0].mxu0 %v4927
    %v8244 = vpop.f32.mrb[0].mxu0
    %v8245 = vadd.f32 %v5504, %v8244
    %v8246 = vpop.f32.mrb[0].mxu0
    %v8247 = vpop.f32.mrb[0].mxu0
    %v8248 = vadd.f32 %v5504, %v8247
    %v8249 = vpop.f32.mrb[0].mxu0
    %8250 = vmatprep.mubr.bf16.mxu0 %v4940
    %8251 = vmatmul.mubr.bf16.gmra.mrb[0].mxu0 %v4939
    %v8252 = vpop.f32.mrb[0].mxu0
    %v8253 = vadd.f32 %v5504, %v8252
    %v8254 = vpop.f32.mrb[0].mxu0
    %v8255 = vpop.f32.mrb[0].mxu0
    %v8256 = vadd.f32 %v5504, %v8255
    %v8257 = vpop.f32.mrb[0].mxu0
    %8258 = vmatprep.mubr.bf16.mxu0 %v4952
    %8259 = vmatmul.mubr.bf16.gmra.mrb[0].mxu0 %v4951
    %v8260 = vpop.f32.mrb[0].mxu0
    %v8261 = vadd.f32 %v5504, %v8260
    %v8262 = vpop.f32.mrb[0].mxu0
    %v8263 = vpop.f32.mrb[0].mxu0
    %v8264 = vadd.f32 %v5504, %v8263
    %v8265 = vpop.f32.mrb[0].mxu0
    %8266 = vmatprep.mubr.bf16.mxu0 %v4964
    %8267 = vmatmul.mubr.bf16.gmra.mrb[0].mxu0 %v4963
    %v8268 = vpop.f32.mrb[0].mxu0
    %v8269 = vadd.f32 %v5504, %v8268
    %v8270 = vpop.f32.mrb[0].mxu0
    %v8271 = vpop.f32.mrb[0].mxu0
    %v8272 = vadd.f32 %v5504, %v8271
    %v8273 = vpop.f32.mrb[0].mxu0
    %8274 = vmatprep.mubr.bf16.mxu0 %v4976
    %8275 = vmatmul.mubr.bf16.gmra.mrb[0].mxu0 %v4975
    %v8276 = vpop.f32.mrb[0].mxu0
    %v8277 = vadd.f32 %v5504, %v8276
    %v8278 = vpop.f32.mrb[0].mxu0
    %v8279 = vpop.f32.mrb[0].mxu0
    %v8280 = vadd.f32 %v5504, %v8279
    %v8281 = vpop.f32.mrb[0].mxu0
    %8282 = vmatprep.mubr.bf16.mxu0 %v4988
    %8283 = vmatmul.mubr.bf16.gmra.mrb[0].mxu0 %v4987
    %v8284 = vpop.f32.mrb[0].mxu0
    %v8285 = vadd.f32 %v5504, %v8284
    %v8286 = vpop.f32.mrb[0].mxu0
    %v8287 = vpop.f32.mrb[0].mxu0
    %v8288 = vadd.f32 %v5504, %v8287
    %v8289 = vpop.f32.mrb[0].mxu0
    %8290 = vmatprep.mubr.bf16.mxu0 %v5000
    %8291 = vmatmul.mubr.bf16.gmra.mrb[0].mxu0 %v4999
    %v8292 = vpop.f32.mrb[0].mxu0
    %v8293 = vadd.f32 %v5504, %v8292
    %v8294 = vpop.f32.mrb[0].mxu0
    %v8295 = vpop.f32.mrb[0].mxu0
    %v8296 = vadd.f32 %v5504, %v8295
    %v8297 = vpop.f32.mrb[0].mxu0
    %8298 = vmatprep.mubr.bf16.mxu0 %v5012
    %8299 = vmatmul.mubr.bf16.gmra.mrb[0].mxu0 %v5011
    %v8300 = vpop.f32.mrb[0].mxu0
    %v8301 = vadd.f32 %v5504, %v8300
    %v8302 = vpop.f32.mrb[0].mxu0
    %v8303 = vpop.f32.mrb[0].mxu0
    %v8304 = vadd.f32 %v5504, %v8303
    %v8305 = vpop.f32.mrb[0].mxu0
    %8306 = vmatprep.mubr.bf16.mxu0 %v5024
    %8307 = vmatmul.mubr.bf16.gmra.mrb[0].mxu0 %v5023
    %v8308 = vpop.f32.mrb[0].mxu0
    %v8309 = vadd.f32 %v5504, %v8308
    %v8310 = vpop.f32.mrb[0].mxu0
    %v8311 = vpop.f32.mrb[0].mxu0
    %v8312 = vadd.f32 %v5504, %v8311
    %v8313 = vpop.f32.mrb[0].mxu0
    %8314 = vmatprep.mubr.bf16.mxu0 %v5036
    %8315 = vmatmul.mubr.bf16.gmra.mrb[0].mxu0 %v5035
    %v8316 = vpop.f32.mrb[0].mxu0
    %v8317 = vadd.f32 %v5504, %v8316
    %v8318 = vpop.f32.mrb[0].mxu0
    %v8319 = vpop.f32.mrb[0].mxu0
    %v8320 = vadd.f32 %v5504, %v8319
    %v8321 = vpop.f32.mrb[0].mxu0
    %8322 = vmatprep.mubr.bf16.mxu0 %v5048
    %8323 = vmatmul.mubr.bf16.gmra.mrb[0].mxu0 %v5047
    %v8324 = vpop.f32.mrb[0].mxu0
    %v8325 = vadd.f32 %v5504, %v8324
    %v8326 = vpop.f32.mrb[0].mxu0
    %v8327 = vpop.f32.mrb[0].mxu0
    %v8328 = vadd.f32 %v5504, %v8327
    %v8329 = vpop.f32.mrb[0].mxu0
    %8330 = vmatprep.mubr.bf16.mxu0 %v5060
    %8331 = vmatmul.mubr.bf16.gmra.mrb[0].mxu0 %v5059
    %v8332 = vpop.f32.mrb[0].mxu0
    %v8333 = vadd.f32 %v5504, %v8332
    %v8334 = vpop.f32.mrb[0].mxu0
    %v8335 = vpop.f32.mrb[0].mxu0
    %v8336 = vadd.f32 %v5504, %v8335
    %v8337 = vpop.f32.mrb[0].mxu0
    %8338 = vmatprep.mubr.bf16.mxu0 %v5072
    %8339 = vmatmul.mubr.bf16.gmra.mrb[0].mxu0 %v5071
    %v8340 = vpop.f32.mrb[0].mxu0
    %v8341 = vadd.f32 %v5504, %v8340
    %v8342 = vpop.f32.mrb[0].mxu0
    %v8343 = vpop.f32.mrb[0].mxu0
    %v8344 = vadd.f32 %v5504, %v8343
    %v8345 = vpop.f32.mrb[0].mxu0
    %8346 = vmatprep.mubr.bf16.mxu0 %v5084
    %8347 = vmatmul.mubr.bf16.gmra.mrb[0].mxu0 %v5083
    %v8348 = vpop.f32.mrb[0].mxu0
    %v8349 = vadd.f32 %v5504, %v8348
    %v8350 = vpop.f32.mrb[0].mxu0
    %v8351 = vpop.f32.mrb[0].mxu0
    %v8352 = vadd.f32 %v5504, %v8351
    %v8353 = vpop.f32.mrb[0].mxu0
    %8354 = vmatprep.mubr.bf16.mxu0 %v5096
    %8355 = vmatmul.mubr.bf16.gmra.mrb[0].mxu0 %v5095
    %v8356 = vpop.f32.mrb[0].mxu0
    %v8357 = vadd.f32 %v5504, %v8356
    %v8358 = vpop.f32.mrb[0].mxu0
    %v8359 = vpop.f32.mrb[0].mxu0
    %v8360 = vadd.f32 %v5504, %v8359
    %v8361 = vpop.f32.mrb[0].mxu0
    %8362 = vdwg.mxu0
    %8363 = vmatprep.subr.bf16.mxu0 0
    %8364 = vmatpush1.bf16.msra.mxu0 %v6518
    %8365 = vmatprep.subr.bf16.mxu0 0
    %8366 = vmatpush1.bf16.msra.mxu0 %v6521
    %8367 = vmatprep.subr.bf16.mxu0 0
    %8368 = vmatpush1.bf16.msra.mxu0 %v6524
    %8369 = vmatprep.subr.bf16.mxu0 0
    %8370 = vmatpush1.bf16.msra.mxu0 %v6527
    %8371 = vmatprep.subr.bf16.mxu0 0
    %8372 = vmatpush1.bf16.msra.mxu0 %v6530
    %8373 = vmatprep.subr.bf16.mxu0 0
    %8374 = vmatpush1.bf16.msra.mxu0 %v6533
    %8375 = vmatprep.subr.bf16.mxu0 0
    %8376 = vmatpush1.bf16.msra.mxu0 %v6536
    %8377 = vmatprep.subr.bf16.mxu0 0
    %8378 = vmatpush1.bf16.msra.mxu0 %v6539
    %8379 = vmatprep.subr.bf16.mxu0 0
    %8380 = vmatpush1.bf16.msra.mxu0 %v6542
    %8381 = vmatprep.subr.bf16.mxu0 0
    %8382 = vmatpush1.bf16.msra.mxu0 %v6545
    %8383 = vmatprep.subr.bf16.mxu0 0
    %8384 = vmatpush1.bf16.msra.mxu0 %v6548
    %8385 = vmatprep.subr.bf16.mxu0 0
    %8386 = vmatpush1.bf16.msra.mxu0 %v6551
    %8387 = vmatprep.subr.bf16.mxu0 0
    %8388 = vmatpush1.bf16.msra.mxu0 %v6554
    %8389 = vmatprep.subr.bf16.mxu0 0
    %8390 = vmatpush1.bf16.msra.mxu0 %v6557
    %8391 = vmatprep.subr.bf16.mxu0 0
    %8392 = vmatpush1.bf16.msra.mxu0 %v6560
    %8393 = vmatprep.subr.bf16.mxu0 0
    %8394 = vmatpush1.bf16.msra.mxu0 %v6563
    %8395 = vmatprep.mubr.bf16.mxu0 %v4918
    %8396 = vmatmul.mubr.bf16.gmra.mrb[0].mxu0 %v4917
    %v8397 = vpop.f32.mrb[0].mxu0
    %v8398 = vadd.f32 %v8237, %v8397
    %v8399 = vpop.f32.mrb[0].mxu0
    %v8400 = vpop.f32.mrb[0].mxu0
    %v8401 = vadd.f32 %v8240, %v8400
    %v8402 = vpop.f32.mrb[0].mxu0
    %8403 = vmatprep.mubr.bf16.mxu0 %v4930
    %8404 = vmatmul.mubr.bf16.gmra.mrb[0].mxu0 %v4929
    %v8405 = vpop.f32.mrb[0].mxu0
    %v8406 = vadd.f32 %v8245, %v8405
    %v8407 = vpop.f32.mrb[0].mxu0
    %v8408 = vpop.f32.mrb[0].mxu0
    %v8409 = vadd.f32 %v8248, %v8408
    %v8410 = vpop.f32.mrb[0].mxu0
    %8411 = vmatprep.mubr.bf16.mxu0 %v4942
    %8412 = vmatmul.mubr.bf16.gmra.mrb[0].mxu0 %v4941
    %v8413 = vpop.f32.mrb[0].mxu0
    %v8414 = vadd.f32 %v8253, %v8413
    %v8415 = vpop.f32.mrb[0].mxu0
    %v8416 = vpop.f32.mrb[0].mxu0
    %v8417 = vadd.f32 %v8256, %v8416
    %v8418 = vpop.f32.mrb[0].mxu0
    %8419 = vmatprep.mubr.bf16.mxu0 %v4954
    %8420 = vmatmul.mubr.bf16.gmra.mrb[0].mxu0 %v4953
    %v8421 = vpop.f32.mrb[0].mxu0
    %v8422 = vadd.f32 %v8261, %v8421
    %v8423 = vpop.f32.mrb[0].mxu0
    %v8424 = vpop.f32.mrb[0].mxu0
    %v8425 = vadd.f32 %v8264, %v8424
    %v8426 = vpop.f32.mrb[0].mxu0
    %8427 = vmatprep.mubr.bf16.mxu0 %v4966
    %8428 = vmatmul.mubr.bf16.gmra.mrb[0].mxu0 %v4965
    %v8429 = vpop.f32.mrb[0].mxu0
    %v8430 = vadd.f32 %v8269, %v8429
    %v8431 = vpop.f32.mrb[0].mxu0
    %v8432 = vpop.f32.mrb[0].mxu0
    %v8433 = vadd.f32 %v8272, %v8432
    %v8434 = vpop.f32.mrb[0].mxu0
    %8435 = vmatprep.mubr.bf16.mxu0 %v4978
    %8436 = vmatmul.mubr.bf16.gmra.mrb[0].mxu0 %v4977
    %v8437 = vpop.f32.mrb[0].mxu0
    %v8438 = vadd.f32 %v8277, %v8437
    %v8439 = vpop.f32.mrb[0].mxu0
    %v8440 = vpop.f32.mrb[0].mxu0
    %v8441 = vadd.f32 %v8280, %v8440
    %v8442 = vpop.f32.mrb[0].mxu0
    %8443 = vmatprep.mubr.bf16.mxu0 %v4990
    %8444 = vmatmul.mubr.bf16.gmra.mrb[0].mxu0 %v4989
    %v8445 = vpop.f32.mrb[0].mxu0
    %v8446 = vadd.f32 %v8285, %v8445
    %v8447 = vpop.f32.mrb[0].mxu0
    %v8448 = vpop.f32.mrb[0].mxu0
    %v8449 = vadd.f32 %v8288, %v8448
    %v8450 = vpop.f32.mrb[0].mxu0
    %8451 = vmatprep.mubr.bf16.mxu0 %v5002
    %8452 = vmatmul.mubr.bf16.gmra.mrb[0].mxu0 %v5001
    %v8453 = vpop.f32.mrb[0].mxu0
    %v8454 = vadd.f32 %v8293, %v8453
    %v8455 = vpop.f32.mrb[0].mxu0
    %v8456 = vpop.f32.mrb[0].mxu0
    %v8457 = vadd.f32 %v8296, %v8456
    %v8458 = vpop.f32.mrb[0].mxu0
    %8459 = vmatprep.mubr.bf16.mxu0 %v5014
    %8460 = vmatmul.mubr.bf16.gmra.mrb[0].mxu0 %v5013
    %v8461 = vpop.f32.mrb[0].mxu0
    %v8462 = vadd.f32 %v8301, %v8461
    %v8463 = vpop.f32.mrb[0].mxu0
    %v8464 = vpop.f32.mrb[0].mxu0
    %v8465 = vadd.f32 %v8304, %v8464
    %v8466 = vpop.f32.mrb[0].mxu0
    %8467 = vmatprep.mubr.bf16.mxu0 %v5026
    %8468 = vmatmul.mubr.bf16.gmra.mrb[0].mxu0 %v5025
    %v8469 = vpop.f32.mrb[0].mxu0
    %v8470 = vadd.f32 %v8309, %v8469
    %v8471 = vpop.f32.mrb[0].mxu0
    %v8472 = vpop.f32.mrb[0].mxu0
    %v8473 = vadd.f32 %v8312, %v8472
    %v8474 = vpop.f32.mrb[0].mxu0
    %8475 = vmatprep.mubr.bf16.mxu0 %v5038
    %8476 = vmatmul.mubr.bf16.gmra.mrb[0].mxu0 %v5037
    %v8477 = vpop.f32.mrb[0].mxu0
    %v8478 = vadd.f32 %v8317, %v8477
    %v8479 = vpop.f32.mrb[0].mxu0
    %v8480 = vpop.f32.mrb[0].mxu0
    %v8481 = vadd.f32 %v8320, %v8480
    %v8482 = vpop.f32.mrb[0].mxu0
    %8483 = vmatprep.mubr.bf16.mxu0 %v5050
    %8484 = vmatmul.mubr.bf16.gmra.mrb[0].mxu0 %v5049
    %v8485 = vpop.f32.mrb[0].mxu0
    %v8486 = vadd.f32 %v8325, %v8485
    %v8487 = vpop.f32.mrb[0].mxu0
    %v8488 = vpop.f32.mrb[0].mxu0
    %v8489 = vadd.f32 %v8328, %v8488
    %v8490 = vpop.f32.mrb[0].mxu0
    %8491 = vmatprep.mubr.bf16.mxu0 %v5062
    %8492 = vmatmul.mubr.bf16.gmra.mrb[0].mxu0 %v5061
    %v8493 = vpop.f32.mrb[0].mxu0
    %v8494 = vadd.f32 %v8333, %v8493
    %v8495 = vpop.f32.mrb[0].mxu0
    %v8496 = vpop.f32.mrb[0].mxu0
    %v8497 = vadd.f32 %v8336, %v8496
    %v8498 = vpop.f32.mrb[0].mxu0
    %8499 = vmatprep.mubr.bf16.mxu0 %v5074
    %8500 = vmatmul.mubr.bf16.gmra.mrb[0].mxu0 %v5073
    %v8501 = vpop.f32.mrb[0].mxu0
    %v8502 = vadd.f32 %v8341, %v8501
    %v8503 = vpop.f32.mrb[0].mxu0
    %v8504 = vpop.f32.mrb[0].mxu0
    %v8505 = vadd.f32 %v8344, %v8504
    %v8506 = vpop.f32.mrb[0].mxu0
    %8507 = vmatprep.mubr.bf16.mxu0 %v5086
    %8508 = vmatmul.mubr.bf16.gmra.mrb[0].mxu0 %v5085
    %v8509 = vpop.f32.mrb[0].mxu0
    %v8510 = vadd.f32 %v8349, %v8509
    %v8511 = vpop.f32.mrb[0].mxu0
    %v8512 = vpop.f32.mrb[0].mxu0
    %v8513 = vadd.f32 %v8352, %v8512
    %v8514 = vpop.f32.mrb[0].mxu0
    %8515 = vmatprep.mubr.bf16.mxu0 %v5098
    %8516 = vmatmul.mubr.bf16.gmra.mrb[0].mxu0 %v5097
    %v8517 = vpop.f32.mrb[0].mxu0
    %v8518 = vadd.f32 %v8357, %v8517
    %v8519 = vpop.f32.mrb[0].mxu0
    %v8520 = vpop.f32.mrb[0].mxu0
    %v8521 = vadd.f32 %v8360, %v8520
    %v8522 = vpop.f32.mrb[0].mxu0
    %8523 = vdwg.mxu0
    %8524 = vmatprep.subr.bf16.mxu0 0
    %8525 = vmatpush1.bf16.msra.mxu0 %v6566
    %8526 = vmatprep.subr.bf16.mxu0 0
    %8527 = vmatpush1.bf16.msra.mxu0 %v6569
    %8528 = vmatprep.subr.bf16.mxu0 0
    %8529 = vmatpush1.bf16.msra.mxu0 %v6572
    %8530 = vmatprep.subr.bf16.mxu0 0
    %8531 = vmatpush1.bf16.msra.mxu0 %v6575
    %8532 = vmatprep.subr.bf16.mxu0 0
    %8533 = vmatpush1.bf16.msra.mxu0 %v6578
    %8534 = vmatprep.subr.bf16.mxu0 0
    %8535 = vmatpush1.bf16.msra.mxu0 %v6581
    %8536 = vmatprep.subr.bf16.mxu0 0
    %8537 = vmatpush1.bf16.msra.mxu0 %v6584
    %8538 = vmatprep.subr.bf16.mxu0 0
    %8539 = vmatpush1.bf16.msra.mxu0 %v6587
    %8540 = vmatprep.subr.bf16.mxu0 0
    %8541 = vmatpush1.bf16.msra.mxu0 %v6590
    %8542 = vmatprep.subr.bf16.mxu0 0
    %8543 = vmatpush1.bf16.msra.mxu0 %v6593
    %8544 = vmatprep.subr.bf16.mxu0 0
    %8545 = vmatpush1.bf16.msra.mxu0 %v6596
    %8546 = vmatprep.subr.bf16.mxu0 0
    %8547 = vmatpush1.bf16.msra.mxu0 %v6599
    %8548 = vmatprep.subr.bf16.mxu0 0
    %8549 = vmatpush1.bf16.msra.mxu0 %v6602
    %8550 = vmatprep.subr.bf16.mxu0 0
    %8551 = vmatpush1.bf16.msra.mxu0 %v6605
    %8552 = vmatprep.subr.bf16.mxu0 0
    %8553 = vmatpush1.bf16.msra.mxu0 %v6608
    %8554 = vmatprep.subr.bf16.mxu0 0
    %8555 = vmatpush1.bf16.msra.mxu0 %v6611
    %8556 = vmatprep.mubr.bf16.mxu0 %v4920
    %8557 = vmatmul.mubr.bf16.gmra.mrb[0].mxu0 %v4919
    %v8558 = vpop.f32.mrb[0].mxu0
    %v8559 = vadd.f32 %v8398, %v8558
    %v8560 = vpop.f32.mrb[0].mxu0
    %v8561 = vpop.f32.mrb[0].mxu0
    %v8562 = vadd.f32 %v8401, %v8561
    %v8563 = vpop.f32.mrb[0].mxu0
    %8564 = vmatprep.mubr.bf16.mxu0 %v4932
    %8565 = vmatmul.mubr.bf16.gmra.mrb[0].mxu0 %v4931
    %v8566 = vpop.f32.mrb[0].mxu0
    %v8567 = vadd.f32 %v8406, %v8566
    %v8568 = vpop.f32.mrb[0].mxu0
    %v8569 = vpop.f32.mrb[0].mxu0
    %v8570 = vadd.f32 %v8409, %v8569
    %v8571 = vpop.f32.mrb[0].mxu0
    %8572 = vmatprep.mubr.bf16.mxu0 %v4944
    %8573 = vmatmul.mubr.bf16.gmra.mrb[0].mxu0 %v4943
    %v8574 = vpop.f32.mrb[0].mxu0
    %v8575 = vadd.f32 %v8414, %v8574
    %v8576 = vpop.f32.mrb[0].mxu0
    %v8577 = vpop.f32.mrb[0].mxu0
    %v8578 = vadd.f32 %v8417, %v8577
    %v8579 = vpop.f32.mrb[0].mxu0
    %8580 = vmatprep.mubr.bf16.mxu0 %v4956
    %8581 = vmatmul.mubr.bf16.gmra.mrb[0].mxu0 %v4955
    %v8582 = vpop.f32.mrb[0].mxu0
    %v8583 = vadd.f32 %v8422, %v8582
    %v8584 = vpop.f32.mrb[0].mxu0
    %v8585 = vpop.f32.mrb[0].mxu0
    %v8586 = vadd.f32 %v8425, %v8585
    %v8587 = vpop.f32.mrb[0].mxu0
    %8588 = vmatprep.mubr.bf16.mxu0 %v4968
    %8589 = vmatmul.mubr.bf16.gmra.mrb[0].mxu0 %v4967
    %v8590 = vpop.f32.mrb[0].mxu0
    %v8591 = vadd.f32 %v8430, %v8590
    %v8592 = vpop.f32.mrb[0].mxu0
    %v8593 = vpop.f32.mrb[0].mxu0
    %v8594 = vadd.f32 %v8433, %v8593
    %v8595 = vpop.f32.mrb[0].mxu0
    %8596 = vmatprep.mubr.bf16.mxu0 %v4980
    %8597 = vmatmul.mubr.bf16.gmra.mrb[0].mxu0 %v4979
    %v8598 = vpop.f32.mrb[0].mxu0
    %v8599 = vadd.f32 %v8438, %v8598
    %v8600 = vpop.f32.mrb[0].mxu0
    %v8601 = vpop.f32.mrb[0].mxu0
    %v8602 = vadd.f32 %v8441, %v8601
    %v8603 = vpop.f32.mrb[0].mxu0
    %8604 = vmatprep.mubr.bf16.mxu0 %v4992
    %8605 = vmatmul.mubr.bf16.gmra.mrb[0].mxu0 %v4991
    %v8606 = vpop.f32.mrb[0].mxu0
    %v8607 = vadd.f32 %v8446, %v8606
    %v8608 = vpop.f32.mrb[0].mxu0
    %v8609 = vpop.f32.mrb[0].mxu0
    %v8610 = vadd.f32 %v8449, %v8609
    %v8611 = vpop.f32.mrb[0].mxu0
    %8612 = vmatprep.mubr.bf16.mxu0 %v5004
    %8613 = vmatmul.mubr.bf16.gmra.mrb[0].mxu0 %v5003
    %v8614 = vpop.f32.mrb[0].mxu0
    %v8615 = vadd.f32 %v8454, %v8614
    %v8616 = vpop.f32.mrb[0].mxu0
    %v8617 = vpop.f32.mrb[0].mxu0
    %v8618 = vadd.f32 %v8457, %v8617
    %v8619 = vpop.f32.mrb[0].mxu0
    %8620 = vmatprep.mubr.bf16.mxu0 %v5016
    %8621 = vmatmul.mubr.bf16.gmra.mrb[0].mxu0 %v5015
    %v8622 = vpop.f32.mrb[0].mxu0
    %v8623 = vadd.f32 %v8462, %v8622
    %v8624 = vpop.f32.mrb[0].mxu0
    %v8625 = vpop.f32.mrb[0].mxu0
    %v8626 = vadd.f32 %v8465, %v8625
    %v8627 = vpop.f32.mrb[0].mxu0
    %8628 = vmatprep.mubr.bf16.mxu0 %v5028
    %8629 = vmatmul.mubr.bf16.gmra.mrb[0].mxu0 %v5027
    %v8630 = vpop.f32.mrb[0].mxu0
    %v8631 = vadd.f32 %v8470, %v8630
    %v8632 = vpop.f32.mrb[0].mxu0
    %v8633 = vpop.f32.mrb[0].mxu0
    %v8634 = vadd.f32 %v8473, %v8633
    %v8635 = vpop.f32.mrb[0].mxu0
    %8636 = vmatprep.mubr.bf16.mxu0 %v5040
    %8637 = vmatmul.mubr.bf16.gmra.mrb[0].mxu0 %v5039
    %v8638 = vpop.f32.mrb[0].mxu0
    %v8639 = vadd.f32 %v8478, %v8638
    %v8640 = vpop.f32.mrb[0].mxu0
    %v8641 = vpop.f32.mrb[0].mxu0
    %v8642 = vadd.f32 %v8481, %v8641
    %v8643 = vpop.f32.mrb[0].mxu0
    %8644 = vmatprep.mubr.bf16.mxu0 %v5052
    %8645 = vmatmul.mubr.bf16.gmra.mrb[0].mxu0 %v5051
    %v8646 = vpop.f32.mrb[0].mxu0
    %v8647 = vadd.f32 %v8486, %v8646
    %v8648 = vpop.f32.mrb[0].mxu0
    %v8649 = vpop.f32.mrb[0].mxu0
    %v8650 = vadd.f32 %v8489, %v8649
    %v8651 = vpop.f32.mrb[0].mxu0
    %8652 = vmatprep.mubr.bf16.mxu0 %v5064
    %8653 = vmatmul.mubr.bf16.gmra.mrb[0].mxu0 %v5063
    %v8654 = vpop.f32.mrb[0].mxu0
    %v8655 = vadd.f32 %v8494, %v8654
    %v8656 = vpop.f32.mrb[0].mxu0
    %v8657 = vpop.f32.mrb[0].mxu0
    %v8658 = vadd.f32 %v8497, %v8657
    %v8659 = vpop.f32.mrb[0].mxu0
    %8660 = vmatprep.mubr.bf16.mxu0 %v5076
    %8661 = vmatmul.mubr.bf16.gmra.mrb[0].mxu0 %v5075
    %v8662 = vpop.f32.mrb[0].mxu0
    %v8663 = vadd.f32 %v8502, %v8662
    %v8664 = vpop.f32.mrb[0].mxu0
    %v8665 = vpop.f32.mrb[0].mxu0
    %v8666 = vadd.f32 %v8505, %v8665
    %v8667 = vpop.f32.mrb[0].mxu0
    %8668 = vmatprep.mubr.bf16.mxu0 %v5088
    %8669 = vmatmul.mubr.bf16.gmra.mrb[0].mxu0 %v5087
    %v8670 = vpop.f32.mrb[0].mxu0
    %v8671 = vadd.f32 %v8510, %v8670
    %v8672 = vpop.f32.mrb[0].mxu0
    %v8673 = vpop.f32.mrb[0].mxu0
    %v8674 = vadd.f32 %v8513, %v8673
    %v8675 = vpop.f32.mrb[0].mxu0
    %8676 = vmatprep.mubr.bf16.mxu0 %v5100
    %8677 = vmatmul.mubr.bf16.gmra.mrb[0].mxu0 %v5099
    %v8678 = vpop.f32.mrb[0].mxu0
    %v8679 = vadd.f32 %v8518, %v8678
    %v8680 = vpop.f32.mrb[0].mxu0
    %v8681 = vpop.f32.mrb[0].mxu0
    %v8682 = vadd.f32 %v8521, %v8681
    %v8683 = vpop.f32.mrb[0].mxu0
    %8684 = vdwg.mxu0
    %8685 = vmatprep.subr.bf16.mxu0 0
    %8686 = vmatpush1.bf16.msra.mxu0 %v6614
    %8687 = vmatprep.subr.bf16.mxu0 0
    %8688 = vmatpush1.bf16.msra.mxu0 %v6617
    %8689 = vmatprep.subr.bf16.mxu0 0
    %8690 = vmatpush1.bf16.msra.mxu0 %v6620
    %8691 = vmatprep.subr.bf16.mxu0 0
    %8692 = vmatpush1.bf16.msra.mxu0 %v6623
    %8693 = vmatprep.subr.bf16.mxu0 0
    %8694 = vmatpush1.bf16.msra.mxu0 %v6626
    %8695 = vmatprep.subr.bf16.mxu0 0
    %8696 = vmatpush1.bf16.msra.mxu0 %v6629
    %8697 = vmatprep.subr.bf16.mxu0 0
    %8698 = vmatpush1.bf16.msra.mxu0 %v6632
    %8699 = vmatprep.subr.bf16.mxu0 0
    %8700 = vmatpush1.bf16.msra.mxu0 %v6635
    %8701 = vmatprep.subr.bf16.mxu0 0
    %8702 = vmatpush1.bf16.msra.mxu0 %v6638
    %8703 = vmatprep.subr.bf16.mxu0 0
    %8704 = vmatpush1.bf16.msra.mxu0 %v6641
    %8705 = vmatprep.subr.bf16.mxu0 0
    %8706 = vmatpush1.bf16.msra.mxu0 %v6644
    %8707 = vmatprep.subr.bf16.mxu0 0
    %8708 = vmatpush1.bf16.msra.mxu0 %v6647
    %8709 = vmatprep.subr.bf16.mxu0 0
    %8710 = vmatpush1.bf16.msra.mxu0 %v6650
    %8711 = vmatprep.subr.bf16.mxu0 0
    %8712 = vmatpush1.bf16.msra.mxu0 %v6653
    %8713 = vmatprep.subr.bf16.mxu0 0
    %8714 = vmatpush1.bf16.msra.mxu0 %v6656
    %8715 = vmatprep.subr.bf16.mxu0 0
    %8716 = vmatpush1.bf16.msra.mxu0 %v6659
    %8717 = vmatprep.mubr.bf16.mxu0 %v4922
    %8718 = vmatmul.mubr.bf16.gmra.mrb[0].mxu0 %v4921
    %v8719 = vpop.f32.mrb[0].mxu0
    %v8720 = vadd.f32 %v8559, %v8719
    %v8721 = vpop.f32.mrb[0].mxu0
    %v8722 = vpop.f32.mrb[0].mxu0
    %v8723 = vadd.f32 %v8562, %v8722
    %v8724 = vpop.f32.mrb[0].mxu0
    %8725 = vmatprep.mubr.bf16.mxu0 %v4934
    %8726 = vmatmul.mubr.bf16.gmra.mrb[0].mxu0 %v4933
    %v8727 = vpop.f32.mrb[0].mxu0
    %v8728 = vadd.f32 %v8567, %v8727
    %v8729 = vpop.f32.mrb[0].mxu0
    %v8730 = vpop.f32.mrb[0].mxu0
    %v8731 = vadd.f32 %v8570, %v8730
    %v8732 = vpop.f32.mrb[0].mxu0
    %8733 = vmatprep.mubr.bf16.mxu0 %v4946
    %8734 = vmatmul.mubr.bf16.gmra.mrb[0].mxu0 %v4945
    %v8735 = vpop.f32.mrb[0].mxu0
    %v8736 = vadd.f32 %v8575, %v8735
    %v8737 = vpop.f32.mrb[0].mxu0
    %v8738 = vpop.f32.mrb[0].mxu0
    %v8739 = vadd.f32 %v8578, %v8738
    %v8740 = vpop.f32.mrb[0].mxu0
    %8741 = vmatprep.mubr.bf16.mxu0 %v4958
    %8742 = vmatmul.mubr.bf16.gmra.mrb[0].mxu0 %v4957
    %v8743 = vpop.f32.mrb[0].mxu0
    %v8744 = vadd.f32 %v8583, %v8743
    %v8745 = vpop.f32.mrb[0].mxu0
    %v8746 = vpop.f32.mrb[0].mxu0
    %v8747 = vadd.f32 %v8586, %v8746
    %v8748 = vpop.f32.mrb[0].mxu0
    %8749 = vmatprep.mubr.bf16.mxu0 %v4970
    %8750 = vmatmul.mubr.bf16.gmra.mrb[0].mxu0 %v4969
    %v8751 = vpop.f32.mrb[0].mxu0
    %v8752 = vadd.f32 %v8591, %v8751
    %v8753 = vpop.f32.mrb[0].mxu0
    %v8754 = vpop.f32.mrb[0].mxu0
    %v8755 = vadd.f32 %v8594, %v8754
    %v8756 = vpop.f32.mrb[0].mxu0
    %8757 = vmatprep.mubr.bf16.mxu0 %v4982
    %8758 = vmatmul.mubr.bf16.gmra.mrb[0].mxu0 %v4981
    %v8759 = vpop.f32.mrb[0].mxu0
    %v8760 = vadd.f32 %v8599, %v8759
    %v8761 = vpop.f32.mrb[0].mxu0
    %v8762 = vpop.f32.mrb[0].mxu0
    %v8763 = vadd.f32 %v8602, %v8762
    %v8764 = vpop.f32.mrb[0].mxu0
    %8765 = vmatprep.mubr.bf16.mxu0 %v4994
    %8766 = vmatmul.mubr.bf16.gmra.mrb[0].mxu0 %v4993
    %v8767 = vpop.f32.mrb[0].mxu0
    %v8768 = vadd.f32 %v8607, %v8767
    %v8769 = vpop.f32.mrb[0].mxu0
    %v8770 = vpop.f32.mrb[0].mxu0
    %v8771 = vadd.f32 %v8610, %v8770
    %v8772 = vpop.f32.mrb[0].mxu0
    %8773 = vmatprep.mubr.bf16.mxu0 %v5006
    %8774 = vmatmul.mubr.bf16.gmra.mrb[0].mxu0 %v5005
    %v8775 = vpop.f32.mrb[0].mxu0
    %v8776 = vadd.f32 %v8615, %v8775
    %v8777 = vpop.f32.mrb[0].mxu0
    %v8778 = vpop.f32.mrb[0].mxu0
    %v8779 = vadd.f32 %v8618, %v8778
    %v8780 = vpop.f32.mrb[0].mxu0
    %8781 = vmatprep.mubr.bf16.mxu0 %v5018
    %8782 = vmatmul.mubr.bf16.gmra.mrb[0].mxu0 %v5017
    %v8783 = vpop.f32.mrb[0].mxu0
    %v8784 = vadd.f32 %v8623, %v8783
    %v8785 = vpop.f32.mrb[0].mxu0
    %v8786 = vpop.f32.mrb[0].mxu0
    %v8787 = vadd.f32 %v8626, %v8786
    %v8788 = vpop.f32.mrb[0].mxu0
    %8789 = vmatprep.mubr.bf16.mxu0 %v5030
    %8790 = vmatmul.mubr.bf16.gmra.mrb[0].mxu0 %v5029
    %v8791 = vpop.f32.mrb[0].mxu0
    %v8792 = vadd.f32 %v8631, %v8791
    %v8793 = vpop.f32.mrb[0].mxu0
    %v8794 = vpop.f32.mrb[0].mxu0
    %v8795 = vadd.f32 %v8634, %v8794
    %v8796 = vpop.f32.mrb[0].mxu0
    %8797 = vmatprep.mubr.bf16.mxu0 %v5042
    %8798 = vmatmul.mubr.bf16.gmra.mrb[0].mxu0 %v5041
    %v8799 = vpop.f32.mrb[0].mxu0
    %v8800 = vadd.f32 %v8639, %v8799
    %v8801 = vpop.f32.mrb[0].mxu0
    %v8802 = vpop.f32.mrb[0].mxu0
    %v8803 = vadd.f32 %v8642, %v8802
    %v8804 = vpop.f32.mrb[0].mxu0
    %8805 = vmatprep.mubr.bf16.mxu0 %v5054
    %8806 = vmatmul.mubr.bf16.gmra.mrb[0].mxu0 %v5053
    %v8807 = vpop.f32.mrb[0].mxu0
    %v8808 = vadd.f32 %v8647, %v8807
    %v8809 = vpop.f32.mrb[0].mxu0
    %v8810 = vpop.f32.mrb[0].mxu0
    %v8811 = vadd.f32 %v8650, %v8810
    %v8812 = vpop.f32.mrb[0].mxu0
    %8813 = vmatprep.mubr.bf16.mxu0 %v5066
    %8814 = vmatmul.mubr.bf16.gmra.mrb[0].mxu0 %v5065
    %v8815 = vpop.f32.mrb[0].mxu0
    %v8816 = vadd.f32 %v8655, %v8815
    %v8817 = vpop.f32.mrb[0].mxu0
    %v8818 = vpop.f32.mrb[0].mxu0
    %v8819 = vadd.f32 %v8658, %v8818
    %v8820 = vpop.f32.mrb[0].mxu0
    %8821 = vmatprep.mubr.bf16.mxu0 %v5078
    %8822 = vmatmul.mubr.bf16.gmra.mrb[0].mxu0 %v5077
    %v8823 = vpop.f32.mrb[0].mxu0
    %v8824 = vadd.f32 %v8663, %v8823
    %v8825 = vpop.f32.mrb[0].mxu0
    %v8826 = vpop.f32.mrb[0].mxu0
    %v8827 = vadd.f32 %v8666, %v8826
    %v8828 = vpop.f32.mrb[0].mxu0
    %8829 = vmatprep.mubr.bf16.mxu0 %v5090
    %8830 = vmatmul.mubr.bf16.gmra.mrb[0].mxu0 %v5089
    %v8831 = vpop.f32.mrb[0].mxu0
    %v8832 = vadd.f32 %v8671, %v8831
    %v8833 = vpop.f32.mrb[0].mxu0
    %v8834 = vpop.f32.mrb[0].mxu0
    %v8835 = vadd.f32 %v8674, %v8834
    %v8836 = vpop.f32.mrb[0].mxu0
    %8837 = vmatprep.mubr.bf16.mxu0 %v5102
    %8838 = vmatmul.mubr.bf16.gmra.mrb[0].mxu0 %v5101
    %v8839 = vpop.f32.mrb[0].mxu0
    %v8840 = vadd.f32 %v8679, %v8839
    %v8841 = vpop.f32.mrb[0].mxu0
    %v8842 = vpop.f32.mrb[0].mxu0
    %v8843 = vadd.f32 %v8682, %v8842
    %v8844 = vpop.f32.mrb[0].mxu0
    %8845 = vdwg.mxu0
    %8846 = vmatprep.subr.bf16.mxu0 0
    %8847 = vmatpush1.bf16.msra.mxu0 %v6662
    %8848 = vmatprep.subr.bf16.mxu0 0
    %8849 = vmatpush1.bf16.msra.mxu0 %v6665
    %8850 = vmatprep.subr.bf16.mxu0 0
    %8851 = vmatpush1.bf16.msra.mxu0 %v6668
    %8852 = vmatprep.subr.bf16.mxu0 0
    %8853 = vmatpush1.bf16.msra.mxu0 %v6671
    %8854 = vmatprep.subr.bf16.mxu0 0
    %8855 = vmatpush1.bf16.msra.mxu0 %v6674
    %8856 = vmatprep.subr.bf16.mxu0 0
    %8857 = vmatpush1.bf16.msra.mxu0 %v6677
    %8858 = vmatprep.subr.bf16.mxu0 0
    %8859 = vmatpush1.bf16.msra.mxu0 %v6680
    %8860 = vmatprep.subr.bf16.mxu0 0
    %8861 = vmatpush1.bf16.msra.mxu0 %v6683
    %8862 = vmatprep.subr.bf16.mxu0 0
    %8863 = vmatpush1.bf16.msra.mxu0 %v6686
    %8864 = vmatprep.subr.bf16.mxu0 0
    %8865 = vmatpush1.bf16.msra.mxu0 %v6689
    %8866 = vmatprep.subr.bf16.mxu0 0
    %8867 = vmatpush1.bf16.msra.mxu0 %v6692
    %8868 = vmatprep.subr.bf16.mxu0 0
    %8869 = vmatpush1.bf16.msra.mxu0 %v6695
    %8870 = vmatprep.subr.bf16.mxu0 0
    %8871 = vmatpush1.bf16.msra.mxu0 %v6698
    %8872 = vmatprep.subr.bf16.mxu0 0
    %8873 = vmatpush1.bf16.msra.mxu0 %v6701
    %8874 = vmatprep.subr.bf16.mxu0 0
    %8875 = vmatpush1.bf16.msra.mxu0 %v6704
    %8876 = vmatprep.subr.bf16.mxu0 0
    %8877 = vmatpush1.bf16.msra.mxu0 %v6707
    %8878 = vmatprep.mubr.bf16.mxu0 %v4924
    %8879 = vmatmul.mubr.bf16.gmra.mrb[0].mxu0 %v4923
    %v8880 = vpop.f32.mrb[0].mxu0
    %v8881 = vadd.f32 %v8720, %v8880
    %v8882 = vpop.f32.mrb[0].mxu0
    %v8883 = vpop.f32.mrb[0].mxu0
    %v8884 = vadd.f32 %v8723, %v8883
    %v8885 = vpop.f32.mrb[0].mxu0
    %8886 = vmatprep.mubr.bf16.mxu0 %v4936
    %8887 = vmatmul.mubr.bf16.gmra.mrb[0].mxu0 %v4935
    %v8888 = vpop.f32.mrb[0].mxu0
    %v8889 = vadd.f32 %v8728, %v8888
    %v8890 = vpop.f32.mrb[0].mxu0
    %v8891 = vpop.f32.mrb[0].mxu0
    %v8892 = vadd.f32 %v8731, %v8891
    %v8893 = vpop.f32.mrb[0].mxu0
    %8894 = vmatprep.mubr.bf16.mxu0 %v4948
    %8895 = vmatmul.mubr.bf16.gmra.mrb[0].mxu0 %v4947
    %v8896 = vpop.f32.mrb[0].mxu0
    %v8897 = vadd.f32 %v8736, %v8896
    %v8898 = vpop.f32.mrb[0].mxu0
    %v8899 = vpop.f32.mrb[0].mxu0
    %v8900 = vadd.f32 %v8739, %v8899
    %v8901 = vpop.f32.mrb[0].mxu0
    %8902 = vmatprep.mubr.bf16.mxu0 %v4960
    %8903 = vmatmul.mubr.bf16.gmra.mrb[0].mxu0 %v4959
    %v8904 = vpop.f32.mrb[0].mxu0
    %v8905 = vadd.f32 %v8744, %v8904
    %v8906 = vpop.f32.mrb[0].mxu0
    %v8907 = vpop.f32.mrb[0].mxu0
    %v8908 = vadd.f32 %v8747, %v8907
    %v8909 = vpop.f32.mrb[0].mxu0
    %8910 = vmatprep.mubr.bf16.mxu0 %v4972
    %8911 = vmatmul.mubr.bf16.gmra.mrb[0].mxu0 %v4971
    %v8912 = vpop.f32.mrb[0].mxu0
    %v8913 = vadd.f32 %v8752, %v8912
    %v8914 = vpop.f32.mrb[0].mxu0
    %v8915 = vpop.f32.mrb[0].mxu0
    %v8916 = vadd.f32 %v8755, %v8915
    %v8917 = vpop.f32.mrb[0].mxu0
    %8918 = vmatprep.mubr.bf16.mxu0 %v4984
    %8919 = vmatmul.mubr.bf16.gmra.mrb[0].mxu0 %v4983
    %v8920 = vpop.f32.mrb[0].mxu0
    %v8921 = vadd.f32 %v8760, %v8920
    %v8922 = vpop.f32.mrb[0].mxu0
    %v8923 = vpop.f32.mrb[0].mxu0
    %v8924 = vadd.f32 %v8763, %v8923
    %v8925 = vpop.f32.mrb[0].mxu0
    %8926 = vmatprep.mubr.bf16.mxu0 %v4996
    %8927 = vmatmul.mubr.bf16.gmra.mrb[0].mxu0 %v4995
    %v8928 = vpop.f32.mrb[0].mxu0
    %v8929 = vadd.f32 %v8768, %v8928
    %v8930 = vpop.f32.mrb[0].mxu0
    %v8931 = vpop.f32.mrb[0].mxu0
    %v8932 = vadd.f32 %v8771, %v8931
    %v8933 = vpop.f32.mrb[0].mxu0
    %8934 = vmatprep.mubr.bf16.mxu0 %v5008
    %8935 = vmatmul.mubr.bf16.gmra.mrb[0].mxu0 %v5007
    %v8936 = vpop.f32.mrb[0].mxu0
    %v8937 = vadd.f32 %v8776, %v8936
    %v8938 = vpop.f32.mrb[0].mxu0
    %v8939 = vpop.f32.mrb[0].mxu0
    %v8940 = vadd.f32 %v8779, %v8939
    %v8941 = vpop.f32.mrb[0].mxu0
    %8942 = vmatprep.mubr.bf16.mxu0 %v5020
    %8943 = vmatmul.mubr.bf16.gmra.mrb[0].mxu0 %v5019
    %v8944 = vpop.f32.mrb[0].mxu0
    %v8945 = vadd.f32 %v8784, %v8944
    %v8946 = vpop.f32.mrb[0].mxu0
    %v8947 = vpop.f32.mrb[0].mxu0
    %v8948 = vadd.f32 %v8787, %v8947
    %v8949 = vpop.f32.mrb[0].mxu0
    %8950 = vmatprep.mubr.bf16.mxu0 %v5032
    %8951 = vmatmul.mubr.bf16.gmra.mrb[0].mxu0 %v5031
    %v8952 = vpop.f32.mrb[0].mxu0
    %v8953 = vadd.f32 %v8792, %v8952
    %v8954 = vpop.f32.mrb[0].mxu0
    %v8955 = vpop.f32.mrb[0].mxu0
    %v8956 = vadd.f32 %v8795, %v8955
    %v8957 = vpop.f32.mrb[0].mxu0
    %8958 = vmatprep.mubr.bf16.mxu0 %v5044
    %8959 = vmatmul.mubr.bf16.gmra.mrb[0].mxu0 %v5043
    %v8960 = vpop.f32.mrb[0].mxu0
    %v8961 = vadd.f32 %v8800, %v8960
    %v8962 = vpop.f32.mrb[0].mxu0
    %v8963 = vpop.f32.mrb[0].mxu0
    %v8964 = vadd.f32 %v8803, %v8963
    %v8965 = vpop.f32.mrb[0].mxu0
    %8966 = vmatprep.mubr.bf16.mxu0 %v5056
    %8967 = vmatmul.mubr.bf16.gmra.mrb[0].mxu0 %v5055
    %v8968 = vpop.f32.mrb[0].mxu0
    %v8969 = vadd.f32 %v8808, %v8968
    %v8970 = vpop.f32.mrb[0].mxu0
    %v8971 = vpop.f32.mrb[0].mxu0
    %v8972 = vadd.f32 %v8811, %v8971
    %v8973 = vpop.f32.mrb[0].mxu0
    %8974 = vmatprep.mubr.bf16.mxu0 %v5068
    %8975 = vmatmul.mubr.bf16.gmra.mrb[0].mxu0 %v5067
    %v8976 = vpop.f32.mrb[0].mxu0
    %v8977 = vadd.f32 %v8816, %v8976
    %v8978 = vpop.f32.mrb[0].mxu0
    %v8979 = vpop.f32.mrb[0].mxu0
    %v8980 = vadd.f32 %v8819, %v8979
    %v8981 = vpop.f32.mrb[0].mxu0
    %8982 = vmatprep.mubr.bf16.mxu0 %v5080
    %8983 = vmatmul.mubr.bf16.gmra.mrb[0].mxu0 %v5079
    %v8984 = vpop.f32.mrb[0].mxu0
    %v8985 = vadd.f32 %v8824, %v8984
    %v8986 = vpop.f32.mrb[0].mxu0
    %v8987 = vpop.f32.mrb[0].mxu0
    %v8988 = vadd.f32 %v8827, %v8987
    %v8989 = vpop.f32.mrb[0].mxu0
    %8990 = vmatprep.mubr.bf16.mxu0 %v5092
    %8991 = vmatmul.mubr.bf16.gmra.mrb[0].mxu0 %v5091
    %v8992 = vpop.f32.mrb[0].mxu0
    %v8993 = vadd.f32 %v8832, %v8992
    %v8994 = vpop.f32.mrb[0].mxu0
    %v8995 = vpop.f32.mrb[0].mxu0
    %v8996 = vadd.f32 %v8835, %v8995
    %v8997 = vpop.f32.mrb[0].mxu0
    %8998 = vmatprep.mubr.bf16.mxu0 %v5104
    %8999 = vmatmul.mubr.bf16.gmra.mrb[0].mxu0 %v5103
    %v9000 = vpop.f32.mrb[0].mxu0
    %v9001 = vadd.f32 %v8840, %v9000
    %v9002 = vpop.f32.mrb[0].mxu0
    %v9003 = vpop.f32.mrb[0].mxu0
    %v9004 = vadd.f32 %v8843, %v9003
    %v9005 = vpop.f32.mrb[0].mxu0
    %9006 = vdwg.mxu0
    %9007 = vmatprep.subr.bf16.mxu0 0
    %9008 = vmatpush1.bf16.msra.mxu0 %v6710
    %9009 = vmatprep.subr.bf16.mxu0 0
    %9010 = vmatpush1.bf16.msra.mxu0 %v6713
    %9011 = vmatprep.subr.bf16.mxu0 0
    %9012 = vmatpush1.bf16.msra.mxu0 %v6716
    %9013 = vmatprep.subr.bf16.mxu0 0
    %9014 = vmatpush1.bf16.msra.mxu0 %v6719
    %9015 = vmatprep.subr.bf16.mxu0 0
    %9016 = vmatpush1.bf16.msra.mxu0 %v6722
    %9017 = vmatprep.subr.bf16.mxu0 0
    %9018 = vmatpush1.bf16.msra.mxu0 %v6725
    %9019 = vmatprep.subr.bf16.mxu0 0
    %9020 = vmatpush1.bf16.msra.mxu0 %v6728
    %9021 = vmatprep.subr.bf16.mxu0 0
    %9022 = vmatpush1.bf16.msra.mxu0 %v6731
    %9023 = vmatprep.subr.bf16.mxu0 0
    %9024 = vmatpush1.bf16.msra.mxu0 %v6734
    %9025 = vmatprep.subr.bf16.mxu0 0
    %9026 = vmatpush1.bf16.msra.mxu0 %v6737
    %9027 = vmatprep.subr.bf16.mxu0 0
    %9028 = vmatpush1.bf16.msra.mxu0 %v6740
    %9029 = vmatprep.subr.bf16.mxu0 0
    %9030 = vmatpush1.bf16.msra.mxu0 %v6743
    %9031 = vmatprep.subr.bf16.mxu0 0
    %9032 = vmatpush1.bf16.msra.mxu0 %v6746
    %9033 = vmatprep.subr.bf16.mxu0 0
    %9034 = vmatpush1.bf16.msra.mxu0 %v6749
    %9035 = vmatprep.subr.bf16.mxu0 0
    %9036 = vmatpush1.bf16.msra.mxu0 %v6752
    %9037 = vmatprep.subr.bf16.mxu0 0
    %9038 = vmatpush1.bf16.msra.mxu0 %v6755
    %9039 = vmatprep.mubr.bf16.mxu0 %v4926
    %9040 = vmatmul.mubr.bf16.gmra.mrb[0].mxu0 %v4925
    %v9041 = vpop.f32.mrb[0].mxu0
    %v9042 = vadd.f32 %v8881, %v9041
    %v9043 = vpop.f32.mrb[0].mxu0
    %v9044 = vpop.f32.mrb[0].mxu0
    %v9045 = vadd.f32 %v8884, %v9044
    %v9046 = vpop.f32.mrb[0].mxu0
    %9047 = vmatprep.mubr.bf16.mxu0 %v4938
    %9048 = vmatmul.mubr.bf16.gmra.mrb[0].mxu0 %v4937
    %v9049 = vpop.f32.mrb[0].mxu0
    %v9050 = vadd.f32 %v8889, %v9049
    %v9051 = vpop.f32.mrb[0].mxu0
    %v9052 = vpop.f32.mrb[0].mxu0
    %v9053 = vadd.f32 %v8892, %v9052
    %v9054 = vpop.f32.mrb[0].mxu0
    %9055 = vmatprep.mubr.bf16.mxu0 %v4950
    %9056 = vmatmul.mubr.bf16.gmra.mrb[0].mxu0 %v4949
    %v9057 = vpop.f32.mrb[0].mxu0
    %v9058 = vadd.f32 %v8897, %v9057
    %v9059 = vpop.f32.mrb[0].mxu0
    %v9060 = vpop.f32.mrb[0].mxu0
    %v9061 = vadd.f32 %v8900, %v9060
    %v9062 = vpop.f32.mrb[0].mxu0
    %9063 = vmatprep.mubr.bf16.mxu0 %v4962
    %9064 = vmatmul.mubr.bf16.gmra.mrb[0].mxu0 %v4961
    %v9065 = vpop.f32.mrb[0].mxu0
    %v9066 = vadd.f32 %v8905, %v9065
    %v9067 = vpop.f32.mrb[0].mxu0
    %v9068 = vpop.f32.mrb[0].mxu0
    %v9069 = vadd.f32 %v8908, %v9068
    %v9070 = vpop.f32.mrb[0].mxu0
    %9071 = vmatprep.mubr.bf16.mxu0 %v4974
    %9072 = vmatmul.mubr.bf16.gmra.mrb[0].mxu0 %v4973
    %v9073 = vpop.f32.mrb[0].mxu0
    %v9074 = vadd.f32 %v8913, %v9073
    %v9075 = vpop.f32.mrb[0].mxu0
    %v9076 = vpop.f32.mrb[0].mxu0
    %v9077 = vadd.f32 %v8916, %v9076
    %v9078 = vpop.f32.mrb[0].mxu0
    %9079 = vmatprep.mubr.bf16.mxu0 %v4986
    %9080 = vmatmul.mubr.bf16.gmra.mrb[0].mxu0 %v4985
    %v9081 = vpop.f32.mrb[0].mxu0
    %v9082 = vadd.f32 %v8921, %v9081
    %v9083 = vpop.f32.mrb[0].mxu0
    %v9084 = vpop.f32.mrb[0].mxu0
    %v9085 = vadd.f32 %v8924, %v9084
    %v9086 = vpop.f32.mrb[0].mxu0
    %9087 = vmatprep.mubr.bf16.mxu0 %v4998
    %9088 = vmatmul.mubr.bf16.gmra.mrb[0].mxu0 %v4997
    %v9089 = vpop.f32.mrb[0].mxu0
    %v9090 = vadd.f32 %v8929, %v9089
    %v9091 = vpop.f32.mrb[0].mxu0
    %v9092 = vpop.f32.mrb[0].mxu0
    %v9093 = vadd.f32 %v8932, %v9092
    %v9094 = vpop.f32.mrb[0].mxu0
    %9095 = vmatprep.mubr.bf16.mxu0 %v5010
    %9096 = vmatmul.mubr.bf16.gmra.mrb[0].mxu0 %v5009
    %v9097 = vpop.f32.mrb[0].mxu0
    %v9098 = vadd.f32 %v8937, %v9097
    %v9099 = vpop.f32.mrb[0].mxu0
    %v9100 = vpop.f32.mrb[0].mxu0
    %v9101 = vadd.f32 %v8940, %v9100
    %v9102 = vpop.f32.mrb[0].mxu0
    %9103 = vmatprep.mubr.bf16.mxu0 %v5022
    %9104 = vmatmul.mubr.bf16.gmra.mrb[0].mxu0 %v5021
    %v9105 = vpop.f32.mrb[0].mxu0
    %v9106 = vadd.f32 %v8945, %v9105
    %v9107 = vpop.f32.mrb[0].mxu0
    %v9108 = vpop.f32.mrb[0].mxu0
    %v9109 = vadd.f32 %v8948, %v9108
    %v9110 = vpop.f32.mrb[0].mxu0
    %9111 = vmatprep.mubr.bf16.mxu0 %v5034
    %9112 = vmatmul.mubr.bf16.gmra.mrb[0].mxu0 %v5033
    %v9113 = vpop.f32.mrb[0].mxu0
    %v9114 = vadd.f32 %v8953, %v9113
    %v9115 = vpop.f32.mrb[0].mxu0
    %v9116 = vpop.f32.mrb[0].mxu0
    %v9117 = vadd.f32 %v8956, %v9116
    %v9118 = vpop.f32.mrb[0].mxu0
    %9119 = vmatprep.mubr.bf16.mxu0 %v5046
    %9120 = vmatmul.mubr.bf16.gmra.mrb[0].mxu0 %v5045
    %v9121 = vpop.f32.mrb[0].mxu0
    %v9122 = vadd.f32 %v8961, %v9121
    %v9123 = vpop.f32.mrb[0].mxu0
    %v9124 = vpop.f32.mrb[0].mxu0
    %v9125 = vadd.f32 %v8964, %v9124
    %v9126 = vpop.f32.mrb[0].mxu0
    %9127 = vmatprep.mubr.bf16.mxu0 %v5058
    %9128 = vmatmul.mubr.bf16.gmra.mrb[0].mxu0 %v5057
    %v9129 = vpop.f32.mrb[0].mxu0
    %v9130 = vadd.f32 %v8969, %v9129
    %v9131 = vpop.f32.mrb[0].mxu0
    %v9132 = vpop.f32.mrb[0].mxu0
    %v9133 = vadd.f32 %v8972, %v9132
    %v9134 = vpop.f32.mrb[0].mxu0
    %9135 = vmatprep.mubr.bf16.mxu0 %v5070
    %9136 = vmatmul.mubr.bf16.gmra.mrb[0].mxu0 %v5069
    %v9137 = vpop.f32.mrb[0].mxu0
    %v9138 = vadd.f32 %v8977, %v9137
    %v9139 = vpop.f32.mrb[0].mxu0
    %v9140 = vpop.f32.mrb[0].mxu0
    %v9141 = vadd.f32 %v8980, %v9140
    %v9142 = vpop.f32.mrb[0].mxu0
    %9143 = vmatprep.mubr.bf16.mxu0 %v5082
    %9144 = vmatmul.mubr.bf16.gmra.mrb[0].mxu0 %v5081
    %v9145 = vpop.f32.mrb[0].mxu0
    %v9146 = vadd.f32 %v8985, %v9145
    %v9147 = vpop.f32.mrb[0].mxu0
    %v9148 = vpop.f32.mrb[0].mxu0
    %v9149 = vadd.f32 %v8988, %v9148
    %v9150 = vpop.f32.mrb[0].mxu0
    %9151 = vmatprep.mubr.bf16.mxu0 %v5094
    %9152 = vmatmul.mubr.bf16.gmra.mrb[0].mxu0 %v5093
    %v9153 = vpop.f32.mrb[0].mxu0
    %v9154 = vadd.f32 %v8993, %v9153
    %v9155 = vpop.f32.mrb[0].mxu0
    %v9156 = vpop.f32.mrb[0].mxu0
    %v9157 = vadd.f32 %v8996, %v9156
    %v9158 = vpop.f32.mrb[0].mxu0
    %9159 = vmatprep.mubr.bf16.mxu0 %v5106
    %9160 = vmatmul.mubr.bf16.gmra.mrb[0].mxu0 %v5105
    %v9161 = vpop.f32.mrb[0].mxu0
    %v9162 = vadd.f32 %v9001, %v9161
    %v9163 = vpop.f32.mrb[0].mxu0
    %v9164 = vpop.f32.mrb[0].mxu0
    %v9165 = vadd.f32 %v9004, %v9164
    %v9166 = vpop.f32.mrb[0].mxu0
    %9167 = vdwg.mxu0
    %v9168 = vld [vmem:[#allocation11] sm:$0xff]
    %v9169 = vld [vmem:[#allocation11 + $0x8] sm:$0xf]
    %v9170 = vld [vmem:[#allocation11 + $0xc] sm:$0xff]
    %v9171 = vld [vmem:[#allocation11 + $0x14] sm:$0xf]
    %v9172 = vld [vmem:[#allocation11 + $0x18] sm:$0xff]
    %v9173 = vld [vmem:[#allocation11 + $0x20] sm:$0xf]
    %v9174 = vld [vmem:[#allocation11 + $0x24] sm:$0xff]
    %v9175 = vld [vmem:[#allocation11 + $0x2c] sm:$0xf]
    %v9176 = vld [vmem:[#allocation11 + $0x30] sm:$0xff]
    %v9177 = vld [vmem:[#allocation11 + $0x38] sm:$0xf]
    %v9178 = vld [vmem:[#allocation11 + $0x3c] sm:$0xff]
    %v9179 = vld [vmem:[#allocation11 + $0x44] sm:$0xf]
    %v9180 = vld [vmem:[#allocation11 + $0x48] sm:$0xff]
    %v9181 = vld [vmem:[#allocation11 + $0x50] sm:$0xf]
    %v9182 = vld [vmem:[#allocation11 + $0x54] sm:$0xff]
    %v9183 = vld [vmem:[#allocation11 + $0x5c] sm:$0xf]
    %v9184 = vld [vmem:[#allocation11 + $0x60] sm:$0xff]
    %v9185 = vld [vmem:[#allocation11 + $0x68] sm:$0xf]
    %v9186 = vld [vmem:[#allocation11 + $0x6c] sm:$0xff]
    %v9187 = vld [vmem:[#allocation11 + $0x74] sm:$0xf]
    %v9188 = vld [vmem:[#allocation11 + $0x78] sm:$0xff]
    %v9189 = vld [vmem:[#allocation11 + $0x80] sm:$0xf]
    %v9190 = vld [vmem:[#allocation11 + $0x84] sm:$0xff]
    %v9191 = vld [vmem:[#allocation11 + $0x8c] sm:$0xf]
    %v9192 = vld [vmem:[#allocation11 + $0x90] sm:$0xff]
    %v9193 = vld [vmem:[#allocation11 + $0x98] sm:$0xf]
    %v9194 = vld [vmem:[#allocation11 + $0x9c] sm:$0xff]
    %v9195 = vld [vmem:[#allocation11 + $0xa4] sm:$0xf]
    %v9196 = vld [vmem:[#allocation11 + $0xa8] sm:$0xff]
    %v9197 = vld [vmem:[#allocation11 + $0xb0] sm:$0xf]
    %v9198 = vld [vmem:[#allocation11 + $0xb4] sm:$0xff]
    %v9199 = vld [vmem:[#allocation11 + $0xbc] sm:$0xf]
    %v9200 = vld [vmem:[#allocation11 + $0xc0] sm:$0xff]
    %v9201 = vld [vmem:[#allocation11 + $0xc8] sm:$0xf]
    %v9202 = vld [vmem:[#allocation11 + $0xcc] sm:$0xff]
    %v9203 = vld [vmem:[#allocation11 + $0xd4] sm:$0xf]
    %v9204 = vld [vmem:[#allocation11 + $0xd8] sm:$0xff]
    %v9205 = vld [vmem:[#allocation11 + $0xe0] sm:$0xf]
    %v9206 = vld [vmem:[#allocation11 + $0xe4] sm:$0xff]
    %v9207 = vld [vmem:[#allocation11 + $0xec] sm:$0xf]
    %v9208 = vld [vmem:[#allocation11 + $0xf0] sm:$0xff]
    %v9209 = vld [vmem:[#allocation11 + $0xf8] sm:$0xf]
    %v9210 = vld [vmem:[#allocation11 + $0xfc] sm:$0xff]
    %v9211 = vld [vmem:[#allocation11 + $0x104] sm:$0xf]
    %v9212 = vld [vmem:[#allocation11 + $0x108] sm:$0xff]
    %v9213 = vld [vmem:[#allocation11 + $0x110] sm:$0xf]
    %v9214 = vld [vmem:[#allocation11 + $0x114] sm:$0xff]
    %v9215 = vld [vmem:[#allocation11 + $0x11c] sm:$0xf]
    %v9216 = vld [vmem:[#allocation11 + $0x120] sm:$0xff]
    %v9217 = vld [vmem:[#allocation11 + $0x128] sm:$0xf]
    %v9218 = vld [vmem:[#allocation11 + $0x12c] sm:$0xff]
    %v9219 = vld [vmem:[#allocation11 + $0x134] sm:$0xf]
    %v9220 = vld [vmem:[#allocation11 + $0x138] sm:$0xff]
    %v9221 = vld [vmem:[#allocation11 + $0x140] sm:$0xf]
    %v9222 = vld [vmem:[#allocation11 + $0x144] sm:$0xff]
    %v9223 = vld [vmem:[#allocation11 + $0x14c] sm:$0xf]
    %v9224 = vld [vmem:[#allocation11 + $0x150] sm:$0xff]
    %v9225 = vld [vmem:[#allocation11 + $0x158] sm:$0xf]
    %v9226 = vld [vmem:[#allocation11 + $0x15c] sm:$0xff]
    %v9227 = vld [vmem:[#allocation11 + $0x164] sm:$0xf]
    %v9228 = vld [vmem:[#allocation11 + $0x168] sm:$0xff]
    %v9229 = vld [vmem:[#allocation11 + $0x170] sm:$0xf]
    %v9230 = vld [vmem:[#allocation11 + $0x174] sm:$0xff]
    %v9231 = vld [vmem:[#allocation11 + $0x17c] sm:$0xf]
    %v9232 = vunpack.c.l.bf16 %v9168
    %v9233 = vunpack.c.h.bf16 %v9168
    %v9234 = vunpack.c.l.bf16 %v9169
    %v9235 = vunpack.c.l.bf16 %v9170
    %v9236 = vunpack.c.h.bf16 %v9170
    %v9237 = vunpack.c.l.bf16 %v9171
    %v9238 = vunpack.c.l.bf16 %v9172
    %v9239 = vunpack.c.h.bf16 %v9172
    %v9240 = vunpack.c.l.bf16 %v9173
    %v9241 = vunpack.c.l.bf16 %v9174
    %v9242 = vunpack.c.h.bf16 %v9174
    %v9243 = vunpack.c.l.bf16 %v9175
    %v9244 = vunpack.c.l.bf16 %v9176
    %v9245 = vunpack.c.h.bf16 %v9176
    %v9246 = vunpack.c.l.bf16 %v9177
    %v9247 = vunpack.c.l.bf16 %v9178
    %v9248 = vunpack.c.h.bf16 %v9178
    %v9249 = vunpack.c.l.bf16 %v9179
    %v9250 = vunpack.c.l.bf16 %v9180
    %v9251 = vunpack.c.h.bf16 %v9180
    %v9252 = vunpack.c.l.bf16 %v9181
    %v9253 = vunpack.c.l.bf16 %v9182
    %v9254 = vunpack.c.h.bf16 %v9182
    %v9255 = vunpack.c.l.bf16 %v9183
    %v9256 = vunpack.c.l.bf16 %v9184
    %v9257 = vunpack.c.h.bf16 %v9184
    %v9258 = vunpack.c.l.bf16 %v9185
    %v9259 = vunpack.c.l.bf16 %v9186
    %v9260 = vunpack.c.h.bf16 %v9186
    %v9261 = vunpack.c.l.bf16 %v9187
    %v9262 = vunpack.c.l.bf16 %v9188
    %v9263 = vunpack.c.h.bf16 %v9188
    %v9264 = vunpack.c.l.bf16 %v9189
    %v9265 = vunpack.c.l.bf16 %v9190
    %v9266 = vunpack.c.h.bf16 %v9190
    %v9267 = vunpack.c.l.bf16 %v9191
    %v9268 = vunpack.c.l.bf16 %v9192
    %v9269 = vunpack.c.h.bf16 %v9192
    %v9270 = vunpack.c.l.bf16 %v9193
    %v9271 = vunpack.c.l.bf16 %v9194
    %v9272 = vunpack.c.h.bf16 %v9194
    %v9273 = vunpack.c.l.bf16 %v9195
    %v9274 = vunpack.c.l.bf16 %v9196
    %v9275 = vunpack.c.h.bf16 %v9196
    %v9276 = vunpack.c.l.bf16 %v9197
    %v9277 = vunpack.c.l.bf16 %v9198
    %v9278 = vunpack.c.h.bf16 %v9198
    %v9279 = vunpack.c.l.bf16 %v9199
    %v9280 = vunpack.c.l.bf16 %v9200
    %v9281 = vunpack.c.h.bf16 %v9200
    %v9282 = vunpack.c.l.bf16 %v9201
    %v9283 = vunpack.c.l.bf16 %v9202
    %v9284 = vunpack.c.h.bf16 %v9202
    %v9285 = vunpack.c.l.bf16 %v9203
    %v9286 = vunpack.c.l.bf16 %v9204
    %v9287 = vunpack.c.h.bf16 %v9204
    %v9288 = vunpack.c.l.bf16 %v9205
    %v9289 = vunpack.c.l.bf16 %v9206
    %v9290 = vunpack.c.h.bf16 %v9206
    %v9291 = vunpack.c.l.bf16 %v9207
    %v9292 = vunpack.c.l.bf16 %v9208
    %v9293 = vunpack.c.h.bf16 %v9208
    %v9294 = vunpack.c.l.bf16 %v9209
    %v9295 = vunpack.c.l.bf16 %v9210
    %v9296 = vunpack.c.h.bf16 %v9210
    %v9297 = vunpack.c.l.bf16 %v9211
    %v9298 = vunpack.c.l.bf16 %v9212
    %v9299 = vunpack.c.h.bf16 %v9212
    %v9300 = vunpack.c.l.bf16 %v9213
    %v9301 = vunpack.c.l.bf16 %v9214
    %v9302 = vunpack.c.h.bf16 %v9214
    %v9303 = vunpack.c.l.bf16 %v9215
    %v9304 = vunpack.c.l.bf16 %v9216
    %v9305 = vunpack.c.h.bf16 %v9216
    %v9306 = vunpack.c.l.bf16 %v9217
    %v9307 = vunpack.c.l.bf16 %v9218
    %v9308 = vunpack.c.h.bf16 %v9218
    %v9309 = vunpack.c.l.bf16 %v9219
    %v9310 = vunpack.c.l.bf16 %v9220
    %v9311 = vunpack.c.h.bf16 %v9220
    %v9312 = vunpack.c.l.bf16 %v9221
    %v9313 = vunpack.c.l.bf16 %v9222
    %v9314 = vunpack.c.h.bf16 %v9222
    %v9315 = vunpack.c.l.bf16 %v9223
    %v9316 = vunpack.c.l.bf16 %v9224
    %v9317 = vunpack.c.h.bf16 %v9224
    %v9318 = vunpack.c.l.bf16 %v9225
    %v9319 = vunpack.c.l.bf16 %v9226
    %v9320 = vunpack.c.h.bf16 %v9226
    %v9321 = vunpack.c.l.bf16 %v9227
    %v9322 = vunpack.c.l.bf16 %v9228
    %v9323 = vunpack.c.h.bf16 %v9228
    %v9324 = vunpack.c.l.bf16 %v9229
    %v9325 = vunpack.c.l.bf16 %v9230
    %v9326 = vunpack.c.h.bf16 %v9230
    %v9327 = vunpack.c.l.bf16 %v9231
    %v9328 = vmul.f32 %v8044, %v9232
    %v9329 = vmul.f32 %v8046, %v9233
    %v9330 = vmul.f32 %v9042, %v9234
    %v9331 = vmul.f32 %v8048, %v9235
    %v9332 = vmul.f32 %v8050, %v9236
    %v9333 = vmul.f32 %v9045, %v9237
    %v9334 = vmul.f32 %v8054, %v9238
    %v9335 = vmul.f32 %v8056, %v9239
    %v9336 = vmul.f32 %v9050, %v9240
    %v9337 = vmul.f32 %v8058, %v9241
    %v9338 = vmul.f32 %v8060, %v9242
    %v9339 = vmul.f32 %v9053, %v9243
    %v9340 = vmul.f32 %v8064, %v9244
    %v9341 = vmul.f32 %v8066, %v9245
    %v9342 = vmul.f32 %v9058, %v9246
    %v9343 = vmul.f32 %v8068, %v9247
    %v9344 = vmul.f32 %v8070, %v9248
    %v9345 = vmul.f32 %v9061, %v9249
    %v9346 = vmul.f32 %v8074, %v9250
    %v9347 = vmul.f32 %v8076, %v9251
    %v9348 = vmul.f32 %v9066, %v9252
    %v9349 = vmul.f32 %v8078, %v9253
    %v9350 = vmul.f32 %v8080, %v9254
    %v9351 = vmul.f32 %v9069, %v9255
    %v9352 = vmul.f32 %v8084, %v9256
    %v9353 = vmul.f32 %v8086, %v9257
    %v9354 = vmul.f32 %v9074, %v9258
    %v9355 = vmul.f32 %v8088, %v9259
    %v9356 = vmul.f32 %v8090, %v9260
    %v9357 = vmul.f32 %v9077, %v9261
    %v9358 = vmul.f32 %v8094, %v9262
    %v9359 = vmul.f32 %v8096, %v9263
    %v9360 = vmul.f32 %v9082, %v9264
    %v9361 = vmul.f32 %v8098, %v9265
    %v9362 = vmul.f32 %v8100, %v9266
    %v9363 = vmul.f32 %v9085, %v9267
    %v9364 = vmul.f32 %v8104, %v9268
    %v9365 = vmul.f32 %v8106, %v9269
    %v9366 = vmul.f32 %v9090, %v9270
    %v9367 = vmul.f32 %v8108, %v9271
    %v9368 = vmul.f32 %v8110, %v9272
    %v9369 = vmul.f32 %v9093, %v9273
    %v9370 = vmul.f32 %v8114, %v9274
    %v9371 = vmul.f32 %v8116, %v9275
    %v9372 = vmul.f32 %v9098, %v9276
    %v9373 = vmul.f32 %v8118, %v9277
    %v9374 = vmul.f32 %v8120, %v9278
    %v9375 = vmul.f32 %v9101, %v9279
    %v9376 = vmul.f32 %v8124, %v9280
    %v9377 = vmul.f32 %v8126, %v9281
    %v9378 = vmul.f32 %v9106, %v9282
    %v9379 = vmul.f32 %v8128, %v9283
    %v9380 = vmul.f32 %v8130, %v9284
    %v9381 = vmul.f32 %v9109, %v9285
    %v9382 = vmul.f32 %v8134, %v9286
    %v9383 = vmul.f32 %v8136, %v9287
    %v9384 = vmul.f32 %v9114, %v9288
    %v9385 = vmul.f32 %v8138, %v9289
    %v9386 = vmul.f32 %v8140, %v9290
    %v9387 = vmul.f32 %v9117, %v9291
    %v9388 = vmul.f32 %v8144, %v9292
    %v9389 = vmul.f32 %v8146, %v9293
    %v9390 = vmul.f32 %v9122, %v9294
    %v9391 = vmul.f32 %v8148, %v9295
    %v9392 = vmul.f32 %v8150, %v9296
    %v9393 = vmul.f32 %v9125, %v9297
    %v9394 = vmul.f32 %v8154, %v9298
    %v9395 = vmul.f32 %v8156, %v9299
    %v9396 = vmul.f32 %v9130, %v9300
    %v9397 = vmul.f32 %v8158, %v9301
    %v9398 = vmul.f32 %v8160, %v9302
    %v9399 = vmul.f32 %v9133, %v9303
    %v9400 = vmul.f32 %v8164, %v9304
    %v9401 = vmul.f32 %v8166, %v9305
    %v9402 = vmul.f32 %v9138, %v9306
    %v9403 = vmul.f32 %v8168, %v9307
    %v9404 = vmul.f32 %v8170, %v9308
    %v9405 = vmul.f32 %v9141, %v9309
    %v9406 = vmul.f32 %v8174, %v9310
    %v9407 = vmul.f32 %v8176, %v9311
    %v9408 = vmul.f32 %v9146, %v9312
    %v9409 = vmul.f32 %v8178, %v9313
    %v9410 = vmul.f32 %v8180, %v9314
    %v9411 = vmul.f32 %v9149, %v9315
    %v9412 = vmul.f32 %v8184, %v9316
    %v9413 = vmul.f32 %v8186, %v9317
    %v9414 = vmul.f32 %v9154, %v9318
    %v9415 = vmul.f32 %v8188, %v9319
    %v9416 = vmul.f32 %v8190, %v9320
    %v9417 = vmul.f32 %v9157, %v9321
    %v9418 = vmul.f32 %v8194, %v9322
    %v9419 = vmul.f32 %v8196, %v9323
    %v9420 = vmul.f32 %v9162, %v9324
    %v9421 = vmul.f32 %v8198, %v9325
    %v9422 = vmul.f32 %v8200, %v9326
    %v9423 = vmul.f32 %v9165, %v9327
    %9424 = vst [vmem:[#allocation13] sm:$0xff] %v9328
    %9425 = vst [vmem:[#allocation13 + $0x8] sm:$0xff] %v9329
    %9426 = vst [vmem:[#allocation13 + $0x10] sm:$0xff] %v9330
    %9427 = vst [vmem:[#allocation13 + $0x18] sm:$0xff] %v9331
    %9428 = vst [vmem:[#allocation13 + $0x20] sm:$0xff] %v9332
    %9429 = vst [vmem:[#allocation13 + $0x28] sm:$0xff] %v9333
    %9430 = vst [vmem:[#allocation13 + $0x30] sm:$0xff] %v9334
    %9431 = vst [vmem:[#allocation13 + $0x38] sm:$0xff] %v9335
    %9432 = vst [vmem:[#allocation13 + $0x40] sm:$0xff] %v9336
    %9433 = vst [vmem:[#allocation13 + $0x48] sm:$0xff] %v9337
    %9434 = vst [vmem:[#allocation13 + $0x50] sm:$0xff] %v9338
    %9435 = vst [vmem:[#allocation13 + $0x58] sm:$0xff] %v9339
    %9436 = vst [vmem:[#allocation13 + $0x60] sm:$0xff] %v9340
    %9437 = vst [vmem:[#allocation13 + $0x68] sm:$0xff] %v9341
    %9438 = vst [vmem:[#allocation13 + $0x70] sm:$0xff] %v9342
    %9439 = vst [vmem:[#allocation13 + $0x78] sm:$0xff] %v9343
    %9440 = vst [vmem:[#allocation13 + $0x80] sm:$0xff] %v9344
    %9441 = vst [vmem:[#allocation13 + $0x88] sm:$0xff] %v9345
    %9442 = vst [vmem:[#allocation13 + $0x90] sm:$0xff] %v9346
    %9443 = vst [vmem:[#allocation13 + $0x98] sm:$0xff] %v9347
    %9444 = vst [vmem:[#allocation13 + $0xa0] sm:$0xff] %v9348
    %9445 = vst [vmem:[#allocation13 + $0xa8] sm:$0xff] %v9349
    %9446 = vst [vmem:[#allocation13 + $0xb0] sm:$0xff] %v9350
    %9447 = vst [vmem:[#allocation13 + $0xb8] sm:$0xff] %v9351
    %9448 = vst [vmem:[#allocation13 + $0xc0] sm:$0xff] %v9352
    %9449 = vst [vmem:[#allocation13 + $0xc8] sm:$0xff] %v9353
    %9450 = vst [vmem:[#allocation13 + $0xd0] sm:$0xff] %v9354
    %9451 = vst [vmem:[#allocation13 + $0xd8] sm:$0xff] %v9355
    %9452 = vst [vmem:[#allocation13 + $0xe0] sm:$0xff] %v9356
    %9453 = vst [vmem:[#allocation13 + $0xe8] sm:$0xff] %v9357
    %9454 = vst [vmem:[#allocation13 + $0xf0] sm:$0xff] %v9358
    %9455 = vst [vmem:[#allocation13 + $0xf8] sm:$0xff] %v9359
    %9456 = vst [vmem:[#allocation13 + $0x100] sm:$0xff] %v9360
    %9457 = vst [vmem:[#allocation13 + $0x108] sm:$0xff] %v9361
    %9458 = vst [vmem:[#allocation13 + $0x110] sm:$0xff] %v9362
    %9459 = vst [vmem:[#allocation13 + $0x118] sm:$0xff] %v9363
    %9460 = vst [vmem:[#allocation13 + $0x120] sm:$0xff] %v9364
    %9461 = vst [vmem:[#allocation13 + $0x128] sm:$0xff] %v9365
    %9462 = vst [vmem:[#allocation13 + $0x130] sm:$0xff] %v9366
    %9463 = vst [vmem:[#allocation13 + $0x138] sm:$0xff] %v9367
    %9464 = vst [vmem:[#allocation13 + $0x140] sm:$0xff] %v9368
    %9465 = vst [vmem:[#allocation13 + $0x148] sm:$0xff] %v9369
    %9466 = vst [vmem:[#allocation13 + $0x150] sm:$0xff] %v9370
    %9467 = vst [vmem:[#allocation13 + $0x158] sm:$0xff] %v9371
    %9468 = vst [vmem:[#allocation13 + $0x160] sm:$0xff] %v9372
    %9469 = vst [vmem:[#allocation13 + $0x168] sm:$0xff] %v9373
    %9470 = vst [vmem:[#allocation13 + $0x170] sm:$0xff] %v9374
    %9471 = vst [vmem:[#allocation13 + $0x178] sm:$0xff] %v9375
    %9472 = vst [vmem:[#allocation13 + $0x180] sm:$0xff] %v9376
    %9473 = vst [vmem:[#allocation13 + $0x188] sm:$0xff] %v9377
    %9474 = vst [vmem:[#allocation13 + $0x190] sm:$0xff] %v9378
    %9475 = vst [vmem:[#allocation13 + $0x198] sm:$0xff] %v9379
    %9476 = vst [vmem:[#allocation13 + $0x1a0] sm:$0xff] %v9380
    %9477 = vst [vmem:[#allocation13 + $0x1a8] sm:$0xff] %v9381
    %9478 = vst [vmem:[#allocation13 + $0x1b0] sm:$0xff] %v9382
    %9479 = vst [vmem:[#allocation13 + $0x1b8] sm:$0xff] %v9383
    %9480 = vst [vmem:[#allocation13 + $0x1c0] sm:$0xff] %v9384
    %9481 = vst [vmem:[#allocation13 + $0x1c8] sm:$0xff] %v9385
    %9482 = vst [vmem:[#allocation13 + $0x1d0] sm:$0xff] %v9386
    %9483 = vst [vmem:[#allocation13 + $0x1d8] sm:$0xff] %v9387
    %9484 = vst [vmem:[#allocation13 + $0x1e0] sm:$0xff] %v9388
    %9485 = vst [vmem:[#allocation13 + $0x1e8] sm:$0xff] %v9389
    %9486 = vst [vmem:[#allocation13 + $0x1f0] sm:$0xff] %v9390
    %9487 = vst [vmem:[#allocation13 + $0x1f8] sm:$0xff] %v9391
    %9488 = vst [vmem:[#allocation13 + $0x200] sm:$0xff] %v9392
    %9489 = vst [vmem:[#allocation13 + $0x208] sm:$0xff] %v9393
    %9490 = vst [vmem:[#allocation13 + $0x210] sm:$0xff] %v9394
    %9491 = vst [vmem:[#allocation13 + $0x218] sm:$0xff] %v9395
    %9492 = vst [vmem:[#allocation13 + $0x220] sm:$0xff] %v9396
    %9493 = vst [vmem:[#allocation13 + $0x228] sm:$0xff] %v9397
    %9494 = vst [vmem:[#allocation13 + $0x230] sm:$0xff] %v9398
    %9495 = vst [vmem:[#allocation13 + $0x238] sm:$0xff] %v9399
    %9496 = vst [vmem:[#allocation13 + $0x240] sm:$0xff] %v9400
    %9497 = vst [vmem:[#allocation13 + $0x248] sm:$0xff] %v9401
    %9498 = vst [vmem:[#allocation13 + $0x250] sm:$0xff] %v9402
    %9499 = vst [vmem:[#allocation13 + $0x258] sm:$0xff] %v9403
    %9500 = vst [vmem:[#allocation13 + $0x260] sm:$0xff] %v9404
    %9501 = vst [vmem:[#allocation13 + $0x268] sm:$0xff] %v9405
    %9502 = vst [vmem:[#allocation13 + $0x270] sm:$0xff] %v9406
    %9503 = vst [vmem:[#allocation13 + $0x278] sm:$0xff] %v9407
    %9504 = vst [vmem:[#allocation13 + $0x280] sm:$0xff] %v9408
    %9505 = vst [vmem:[#allocation13 + $0x288] sm:$0xff] %v9409
    %9506 = vst [vmem:[#allocation13 + $0x290] sm:$0xff] %v9410
    %9507 = vst [vmem:[#allocation13 + $0x298] sm:$0xff] %v9411
    %9508 = vst [vmem:[#allocation13 + $0x2a0] sm:$0xff] %v9412
    %9509 = vst [vmem:[#allocation13 + $0x2a8] sm:$0xff] %v9413
    %9510 = vst [vmem:[#allocation13 + $0x2b0] sm:$0xff] %v9414
    %9511 = vst [vmem:[#allocation13 + $0x2b8] sm:$0xff] %v9415
    %9512 = vst [vmem:[#allocation13 + $0x2c0] sm:$0xff] %v9416
    %9513 = vst [vmem:[#allocation13 + $0x2c8] sm:$0xff] %v9417
    %9514 = vst [vmem:[#allocation13 + $0x2d0] sm:$0xff] %v9418
    %9515 = vst [vmem:[#allocation13 + $0x2d8] sm:$0xff] %v9419
    %9516 = vst [vmem:[#allocation13 + $0x2e0] sm:$0xff] %v9420
    %9517 = vst [vmem:[#allocation13 + $0x2e8] sm:$0xff] %v9421
    %9518 = vst [vmem:[#allocation13 + $0x2f0] sm:$0xff] %v9422
    %9519 = vst [vmem:[#allocation13 + $0x2f8] sm:$0xff] %v9423
    // Predicated region
    $region50: #{tpu_custom_call.1} parent=1 // pred_check
      _
    $region51: #{tpu_custom_call.1} parent=1 // pred_check_branch
      %9521 = sbr.rel (0) target = $region53
    $region52: #{tpu_custom_call.1} parent=1 // pred_region
      %s9523 = ssub.s32 12288, 12288
      %9524 = vsyncadd [#allocation4], %s9523
      %s9525 = sshll.u32 [#allocation13], 4
      %s9526 = int_to_ptr.vmem [resolvable:$true] %s9525
      %9531 = dma.vmem_to_hbm [thread:$0]  %s9526, 12288, %s6, [#allocation4], 384, 384, 24
    $region53: #{tpu_custom_call.1} parent=1 // pred_fallthru
      _
    // Predicated region
    $region54: #{tpu_custom_call.1} parent=1 // pred_check
      _
    $region55: #{tpu_custom_call.1} parent=1 // pred_check_branch
      %9533 = sbr.rel (0) target = $region57
    $region56: #{tpu_custom_call.1} parent=1 // pred_region
      %9534 = dma.done [#allocation4], 12288
    $region57: #{tpu_custom_call.1} parent=1 // pred_fallthru
      _
    %9535 = vsyncpa [#allocation3], 1
    %9536 = vsyncpa [#allocation6], 1
    %9537 = vsyncpa [#allocation9], 1
    %9538 = vsyncpa [#allocation12], 1
    %9539 = vsyncpa [#allocation4], 1

</llo_original>
